<compile_context>
chip_gen: v6e
topology: v6e:2x2x1
jax: 0.10.0
libtpu: 0.0.40
codegen_flags: <defaults>
</compile_context>

<pallas_src>
import functools

import jax
import jax.numpy as jnp
from jax.experimental import pallas as pl
from jax.experimental.pallas import tpu as pltpu


BB = 8   # batch samples per grid step (B=16 -> grid=2, "parallel")

# conv geometry of the PyTorch module: (kernel_size, padding)
_K1, _PAD1 = 7, 1
_K2, _PAD2 = 5, 2
_K3, _PAD3 = 3, 1


def _round8(n):
    return ((n + 7) // 8) * 8


# ------------------------------- kernel -------------------------------------

def _eeg_cnn_kernel(geom, x_ref,
                    w1_ref, s1_ref, b1_ref,
                    w2_ref, s2_ref, b2_ref,
                    w3_ref, s3_ref, b3_ref,
                    wfc_ref, bfc_ref, avg_ref,
                    o_ref, p2_ref, p3_ref):
    q1, t2p, q2, t3p = geom
    bb, t1p, kc1 = x_ref.shape
    c1 = w1_ref.shape[-1]          # 32
    c2 = w2_ref.shape[-1]          # 64
    t2buf = p2_ref.shape[1]
    t3buf = p3_ref.shape[1]

    # ---- conv1 + bn1 + relu: im2col was done in the wrapper, so this is one
    # wide-contraction bf16 matmul; t1p % 8 == 0 keeps the reshape layout-free.
    cols1 = x_ref[...].reshape(bb * t1p, kc1)
    h = jnp.dot(cols1, w1_ref[...], preferred_element_type=jnp.float32)
    h = jnp.maximum(h * s1_ref[...] + b1_ref[...], 0.0)

    # ---- pool1: sublane-pairwise max; pad-row pairs (time >= 2*q1) are
    # dropped by the [:, :q1] slice below.
    h = jnp.max(h.reshape(bb * t1p // 2, 2, c1), axis=1)
    h = h.reshape(bb, t1p // 2, c1)

    # ---- stage conv2 input: zero only pad/alignment rows (interior is fully
    # rewritten each step; never gate this on program_id == 0 -- on v7x each
    # TensorCore owns its own scratch).
    p2_ref[:, :_PAD2, :] = jnp.zeros((bb, _PAD2, c1), p2_ref.dtype)
    p2_ref[:, _PAD2 + q1:t2buf, :] = jnp.zeros(
        (bb, t2buf - _PAD2 - q1, c1), p2_ref.dtype)
    p2_ref[:, _PAD2:_PAD2 + q1, :] = h[:, :q1, :]

    # ---- conv2 + bn2 + relu: per-tap accumulating matmuls; tap windows read
    # t2p (= round8(t2)) rows so the 3D->2D reshapes stay layout no-ops.
    acc = None
    for k in range(_K2):
        tap = p2_ref[:, k:k + t2p, :].reshape(bb * t2p, c1).astype(jnp.bfloat16)
        part = jnp.dot(tap, w2_ref[k], preferred_element_type=jnp.float32)
        acc = part if acc is None else acc + part
    h = jnp.maximum(acc * s2_ref[...] + b2_ref[...], 0.0)

    # ---- pool2
    h = jnp.max(h.reshape(bb * t2p // 2, 2, c2), axis=1)
    h = h.reshape(bb, t2p // 2, c2)

    # ---- stage conv3 input
    p3_ref[:, :_PAD3, :] = jnp.zeros((bb, _PAD3, c2), p3_ref.dtype)
    p3_ref[:, _PAD3 + q2:t3buf, :] = jnp.zeros(
        (bb, t3buf - _PAD3 - q2, c2), p3_ref.dtype)
    p3_ref[:, _PAD3:_PAD3 + q2, :] = h[:, :q2, :]

    # ---- conv3 + bn3 + relu
    acc = None
    for k in range(_K3):
        tap = p3_ref[:, k:k + t3p, :].reshape(bb * t3p, c2).astype(jnp.bfloat16)
        part = jnp.dot(tap, w3_ref[k], preferred_element_type=jnp.float32)
        acc = part if acc is None else acc + part
    h = jnp.maximum(acc * s3_ref[...] + b3_ref[...], 0.0)      # (bb*t3p, 128)

    # ---- AdaptiveAvgPool1d(1) as a matmul against a constant averaging matrix
    # (also masks the t3p - t3 alignment rows), then the fc layer; the logits
    # are stored as one lane-dense (bb, 128) block.
    g = jnp.dot(avg_ref[...], h, preferred_element_type=jnp.float32)  # (bb, 128)
    logits = jnp.dot(g.astype(jnp.bfloat16), wfc_ref[...],
                     preferred_element_type=jnp.float32)
    o_ref[...] = logits + bfc_ref[...]


# ------------------------------- wrapper ------------------------------------

@functools.partial(jax.jit, static_argnames=("block_b",))
def eeg_cnn_forward(x_nct, params, *, block_b=BB):
    """x_nct: (B, in_channels, input_time)  ->  logits (B, num_classes)."""
    b, c_in, t_in = x_nct.shape
    c1 = params["w1"].shape[-1]
    c2 = params["w2"].shape[-1]
    nc = params["wfc"].shape[1]
    nc_pad = ((nc + 127) // 128) * 128       # lane-dense logit block width

    # conv / pool geometry (mirrors the PyTorch module)
    t1 = t_in + 2 * _PAD1 - _K1 + 1
    q1 = t1 // 2
    t2 = q1 + 2 * _PAD2 - _K2 + 1
    q2 = t2 // 2
    t3 = q2 + 2 * _PAD3 - _K3 + 1
    if t1 % 2 or t2 % 2:
        # TODO(synk): odd pooling lengths (PyTorch drops the trailing element).
        raise NotImplementedError("input_time yielding odd pooling length")

    # 8-aligned time extents so in-kernel reshapes are layout no-ops
    t1p = _round8(t1)
    t2p = _round8(t2)
    t3p = _round8(t3)
    t2buf = _round8(max(q1 + 2 * _PAD2, (_K2 - 1) + t2p))
    t3buf = _round8(max(q2 + 2 * _PAD3, (_K3 - 1) + t3p))

    bb = block_b
    bp = ((b + bb - 1) // bb) * bb           # batch padded to the block size

    # channels-last bf16 input; conv1 zero-pad + im2col done once here so the
    # kernel's first matmul has no tap slicing / concatenation.
    x = jnp.transpose(x_nct, (0, 2, 1)).astype(jnp.bfloat16)
    x = jnp.pad(x, ((0, bp - b), (_PAD1, _PAD1), (0, 0)))
    xi = jnp.concatenate([x[:, k:k + t1, :] for k in range(_K1)], axis=-1)
    xi = jnp.pad(xi, ((0, 0), (0, t1p - t1), (0, 0)))   # (bp, t1p, K1*C_in)

    w1 = params["w1"].reshape(-1, c1).astype(jnp.bfloat16)   # (K1*C_in, 32)
    w2 = params["w2"].astype(jnp.bfloat16)                   # (K2, 32, 64)
    w3 = params["w3"].astype(jnp.bfloat16)                   # (K3, 64, 128)
    wfc = jnp.pad(params["wfc"], ((0, 0), (0, nc_pad - nc))).astype(jnp.bfloat16)
    bfc = jnp.pad(params["bfc"], ((0, 0), (0, nc_pad - nc)))

    # AdaptiveAvgPool1d(1) as a constant (bb, bb*t3p) averaging matrix; also
    # masks the t3p - t3 alignment rows of the conv3 output.
    rows = jnp.arange(bb, dtype=jnp.int32)[:, None]
    cols = jnp.arange(bb * t3p, dtype=jnp.int32)[None, :]
    avg = jnp.where((cols // t3p == rows) & (cols % t3p < t3),
                    1.0 / t3, 0.0).astype(jnp.float32)

    def full_spec(a):
        nd = a.ndim
        return pl.BlockSpec(a.shape, lambda i, _nd=nd: (0,) * _nd)

    grid_spec = pltpu.PrefetchScalarGridSpec(
        num_scalar_prefetch=0,
        grid=(bp // bb,),
        in_specs=[
            pl.BlockSpec((bb, t1p, _K1 * c_in), lambda i: (i, 0, 0)),
            full_spec(w1), full_spec(params["s1"]), full_spec(params["b1"]),
            full_spec(w2), full_spec(params["s2"]), full_spec(params["b2"]),
            full_spec(w3), full_spec(params["s3"]), full_spec(params["b3"]),
            full_spec(wfc), full_spec(bfc), full_spec(avg),
        ],
        out_specs=pl.BlockSpec((bb, nc_pad), lambda i: (i, 0)),
        scratch_shapes=[
            pltpu.VMEM((bb, t2buf, c1), jnp.float32),
            pltpu.VMEM((bb, t3buf, c2), jnp.float32),
        ],
    )

    out = pl.pallas_call(
        functools.partial(_eeg_cnn_kernel, (q1, t2p, q2, t3p)),
        out_shape=jax.ShapeDtypeStruct((bp, nc_pad), jnp.float32),
        grid_spec=grid_spec,
        compiler_params=pltpu.CompilerParams(
            dimension_semantics=("parallel",)),
    )(xi, w1, params["s1"], params["b1"],
      w2, params["s2"], params["b2"],
      w3, params["s3"], params["b3"],
      wfc, bfc, avg)
    return out[:b, :nc]


# ------------------------- pure-JAX reference --------------------------------

def eeg_cnn_reference(x_nct, params):
    x = jnp.transpose(x_nct, (0, 2, 1)).astype(jnp.float32)

    def conv(h, w, pad):
        k = w.shape[0]
        t_out = h.shape[1] + 2 * pad - k + 1
        hp = jnp.pad(h, ((0, 0), (pad, pad), (0, 0)))
        return sum(jnp.einsum("btc,cd->btd", hp[:, i:i + t_out], w[i])
                   for i in range(k))

    def pool(h):
        bb, t, c = h.shape
        return jnp.max(h.reshape(bb, t // 2, 2, c), axis=2)

    h = jax.nn.relu(conv(x, params["w1"], 1) * params["s1"] + params["b1"])
    h = pool(h)
    h = jax.nn.relu(conv(h, params["w2"], 2) * params["s2"] + params["b2"])
    h = pool(h)
    h = jax.nn.relu(conv(h, params["w3"], 1) * params["s3"] + params["b3"])
    g = jnp.mean(h, axis=1)
    return g @ params["wfc"] + params["bfc"]


# ------------------------- deterministic params -------------------------------

def init_params(key, in_channels, num_classes):
    eps = 1e-5
    counter = [0]

    def nxt():
        counter[0] += 1
        return jax.random.fold_in(key, counter[0])

    def conv_layer(c_in, c_out, k):
        w = 0.1 * jax.random.normal(nxt(), (k, c_in, c_out), jnp.float32)
        conv_b = 0.1 * jax.random.normal(nxt(), (c_out,), jnp.float32)
        gamma = 1.0 + 0.1 * jax.random.normal(nxt(), (c_out,), jnp.float32)
        beta = 0.1 * jax.random.normal(nxt(), (c_out,), jnp.float32)
        mean = 0.1 * jax.random.normal(nxt(), (c_out,), jnp.float32)
        var = jax.random.uniform(nxt(), (c_out,), jnp.float32, 0.5, 1.5)
        scale = gamma / jnp.sqrt(var + eps)
        shift = (conv_b - mean) * scale + beta
        return w, scale.reshape(1, c_out), shift.reshape(1, c_out)

    w1, s1, b1 = conv_layer(in_channels, 32, _K1)
    w2, s2, b2 = conv_layer(32, 64, _K2)
    w3, s3, b3 = conv_layer(64, 128, _K3)
    wfc = 0.1 * jax.random.normal(nxt(), (128, num_classes), jnp.float32)
    bfc = 0.1 * jax.random.normal(nxt(), (1, num_classes), jnp.float32)
    return dict(w1=w1, s1=s1, b1=b1, w2=w2, s2=s2, b2=b2,
                w3=w3, s3=s3, b3=b3, wfc=wfc, bfc=bfc)


# ---------------------------------- main --------------------------------------

if __name__ == "__main__":
    BATCH, IN_CHANNELS, INPUT_TIME, NUM_CLASSES = 16, 16, 64, 2

    key = jax.random.PRNGKey(0)
    params = init_params(key, IN_CHANNELS, NUM_CLASSES)
    x = jax.random.normal(jax.random.fold_in(key, 999),
                          (BATCH, IN_CHANNELS, INPUT_TIME), jnp.float32)

    out = jax.block_until_ready(eeg_cnn_forward(x, params))
    ref = jax.block_until_ready(eeg_cnn_reference(x, params))

    assert out.shape == (BATCH, NUM_CLASSES), out.shape
    # bf16 matmul inputs (f32 accumulation) vs the pure-f32 reference.
    err = float(jnp.max(jnp.abs(out - ref)))
    assert jnp.allclose(out, ref, rtol=3e-2, atol=3e-2), (err, out, ref)
    print("KERNEL_OK")
</pallas_src>

<mosaic_0001>
module attributes {stable_mosaic.version = 11 : i64} {
  func.func @_eeg_cnn_kernel(%arg0: i32, %arg1: memref<8x64x112xbf16, #tpu.memory_space<vmem>>, %arg2: memref<112x32xbf16, #tpu.memory_space<vmem>>, %arg3: memref<1x32xf32, #tpu.memory_space<vmem>>, %arg4: memref<1x32xf32, #tpu.memory_space<vmem>>, %arg5: memref<5x32x64xbf16, #tpu.memory_space<vmem>>, %arg6: memref<1x64xf32, #tpu.memory_space<vmem>>, %arg7: memref<1x64xf32, #tpu.memory_space<vmem>>, %arg8: memref<3x64x128xbf16, #tpu.memory_space<vmem>>, %arg9: memref<1x128xf32, #tpu.memory_space<vmem>>, %arg10: memref<1x128xf32, #tpu.memory_space<vmem>>, %arg11: memref<128x128xbf16, #tpu.memory_space<vmem>>, %arg12: memref<1x128xf32, #tpu.memory_space<vmem>>, %arg13: memref<8x128xf32, #tpu.memory_space<vmem>>, %arg14: memref<8x128xf32, #tpu.memory_space<vmem>>, %arg15: memref<8x40x32xf32, #tpu.memory_space<vmem>>, %arg16: memref<8x24x64xf32, #tpu.memory_space<vmem>>) attributes {dimension_semantics = [#tpu.dimension_semantics<parallel>], iteration_bounds = array<i64: 2>, scalar_prefetch = 0 : i64, scratch_operands = 2 : i64, tpu.core_type = #tpu.core_type<tc>, window_params = [{transform_indices = @transform_0, window_bounds = array<i64: 8, 64, 112>}, {pipeline_mode = #tpu.pipeline_mode<synchronous>, transform_indices = @transform_1, window_bounds = array<i64: 112, 32>}, {pipeline_mode = #tpu.pipeline_mode<synchronous>, transform_indices = @transform_2, window_bounds = array<i64: 1, 32>}, {pipeline_mode = #tpu.pipeline_mode<synchronous>, transform_indices = @transform_3, window_bounds = array<i64: 1, 32>}, {pipeline_mode = #tpu.pipeline_mode<synchronous>, transform_indices = @transform_4, window_bounds = array<i64: 5, 32, 64>}, {pipeline_mode = #tpu.pipeline_mode<synchronous>, transform_indices = @transform_5, window_bounds = array<i64: 1, 64>}, {pipeline_mode = #tpu.pipeline_mode<synchronous>, transform_indices = @transform_6, window_bounds = array<i64: 1, 64>}, {pipeline_mode = #tpu.pipeline_mode<synchronous>, transform_indices = @transform_7, window_bounds = array<i64: 3, 64, 128>}, {pipeline_mode = #tpu.pipeline_mode<synchronous>, transform_indices = @transform_8, window_bounds = array<i64: 1, 128>}, {pipeline_mode = #tpu.pipeline_mode<synchronous>, transform_indices = @transform_9, window_bounds = array<i64: 1, 128>}, {pipeline_mode = #tpu.pipeline_mode<synchronous>, transform_indices = @transform_10, window_bounds = array<i64: 128, 128>}, {pipeline_mode = #tpu.pipeline_mode<synchronous>, transform_indices = @transform_11, window_bounds = array<i64: 1, 128>}, {pipeline_mode = #tpu.pipeline_mode<synchronous>, transform_indices = @transform_12, window_bounds = array<i64: 8, 128>}, {transform_indices = @transform_13, window_bounds = array<i64: 8, 128>}]} {
    %c0 = arith.constant 0 : index
    %c0_0 = arith.constant 0 : index
    %c0_1 = arith.constant 0 : index
    %0 = vector.load %arg1[%c0, %c0_0, %c0_1] : memref<8x64x112xbf16, #tpu.memory_space<vmem>>, vector<8x64x112xbf16>
    %1 = vector.shape_cast %0 : vector<8x64x112xbf16> to vector<512x112xbf16>
    %c0_2 = arith.constant 0 : index
    %c0_3 = arith.constant 0 : index
    %2 = vector.load %arg2[%c0_2, %c0_3] : memref<112x32xbf16, #tpu.memory_space<vmem>>, vector<112x32xbf16>
    %cst = arith.constant dense<0.000000e+00> : vector<512x32xf32>
    %3 = tpu.matmul %1, %2, %cst {dimension_numbers = #tpu.dot_dimension_numbers<[1], [0], [0], [1], [0, 0, 1, 1], [], []>} : vector<512x112xbf16>, vector<112x32xbf16>, vector<512x32xf32> -> vector<512x32xf32>
    %c0_4 = arith.constant 0 : index
    %c0_5 = arith.constant 0 : index
    %4 = vector.load %arg3[%c0_4, %c0_5] : memref<1x32xf32, #tpu.memory_space<vmem>>, vector<1x32xf32>
    %5 = vector.broadcast %4 : vector<1x32xf32> to vector<512x32xf32>
    %6 = arith.mulf %3, %5 : vector<512x32xf32>
    %c0_6 = arith.constant 0 : index
    %c0_7 = arith.constant 0 : index
    %7 = vector.load %arg4[%c0_6, %c0_7] : memref<1x32xf32, #tpu.memory_space<vmem>>, vector<1x32xf32>
    %8 = vector.broadcast %7 : vector<1x32xf32> to vector<512x32xf32>
    %9 = arith.addf %6, %8 : vector<512x32xf32>
    %cst_8 = arith.constant 0.000000e+00 : f32
    %10 = vector.broadcast %cst_8 : f32 to vector<512x32xf32>
    %11 = arith.maximumf %9, %10 : vector<512x32xf32>
    %12 = vector.shape_cast %11 : vector<512x32xf32> to vector<256x2x32xf32>
    %cst_9 = arith.constant dense<0xFF800000> : vector<256x32xf32>
    %13 = vector.multi_reduction <maximumf>, %12, %cst_9 [1] : vector<256x2x32xf32> to vector<256x32xf32>
    %14 = vector.shape_cast %13 : vector<256x32xf32> to vector<8x32x32xf32>
    %cst_10 = arith.constant 0.000000e+00 : f32
    %15 = vector.broadcast %cst_10 : f32 to vector<8x2x32xf32>
    %c0_11 = arith.constant 0 : index
    %c0_12 = arith.constant 0 : index
    %c0_13 = arith.constant 0 : index
    %16 = vector.load %arg15[%c0_11, %c0_12, %c0_13] : memref<8x40x32xf32, #tpu.memory_space<vmem>>, vector<8x2x32xf32>
    tpu.vector_store %arg15[%c0_11, %c0_12, %c0_13], %15 {strides = array<i32>} : memref<8x40x32xf32, #tpu.memory_space<vmem>>, vector<8x2x32xf32>,
    %cst_14 = arith.constant 0.000000e+00 : f32
    %17 = vector.broadcast %cst_14 : f32 to vector<8x8x32xf32>
    %c0_15 = arith.constant 0 : index
    %c32 = arith.constant 32 : index
    %c0_16 = arith.constant 0 : index
    %18 = vector.load %arg15[%c0_15, %c32, %c0_16] : memref<8x40x32xf32, #tpu.memory_space<vmem>>, vector<8x8x32xf32>
    tpu.vector_store %arg15[%c0_15, %c32, %c0_16], %17 {strides = array<i32>} : memref<8x40x32xf32, #tpu.memory_space<vmem>>, vector<8x8x32xf32>,
    %19 = vector.extract_strided_slice %14 {offsets = [0, 0, 0], sizes = [8, 30, 32], strides = [1, 1, 1]} : vector<8x32x32xf32> to vector<8x30x32xf32>
    %c0_17 = arith.constant 0 : index
    %c2 = arith.constant 2 : index
    %c0_18 = arith.constant 0 : index
    %20 = vector.load %arg15[%c0_17, %c2, %c0_18] : memref<8x40x32xf32, #tpu.memory_space<vmem>>, vector<8x30x32xf32>
    tpu.vector_store %arg15[%c0_17, %c2, %c0_18], %19 {strides = array<i32>} : memref<8x40x32xf32, #tpu.memory_space<vmem>>, vector<8x30x32xf32>,
    %c0_19 = arith.constant 0 : index
    %c0_20 = arith.constant 0 : index
    %c0_21 = arith.constant 0 : index
    %21 = vector.load %arg15[%c0_19, %c0_20, %c0_21] : memref<8x40x32xf32, #tpu.memory_space<vmem>>, vector<8x32x32xf32>
    %22 = vector.shape_cast %21 : vector<8x32x32xf32> to vector<256x32xf32>
    %23 = arith.truncf %22 : vector<256x32xf32> to vector<256x32xbf16>
    %c0_22 = arith.constant 0 : index
    %c0_23 = arith.constant 0 : index
    %c0_24 = arith.constant 0 : index
    %24 = vector.load %arg5[%c0_22, %c0_23, %c0_24] : memref<5x32x64xbf16, #tpu.memory_space<vmem>>, vector<1x32x64xbf16>
    %25 = vector.shape_cast %24 : vector<1x32x64xbf16> to vector<32x64xbf16>
    %cst_25 = arith.constant dense<0.000000e+00> : vector<256x64xf32>
    %26 = tpu.matmul %23, %25, %cst_25 {dimension_numbers = #tpu.dot_dimension_numbers<[1], [0], [0], [1], [0, 0, 1, 1], [], []>} : vector<256x32xbf16>, vector<32x64xbf16>, vector<256x64xf32> -> vector<256x64xf32>
    %c0_26 = arith.constant 0 : index
    %c1 = arith.constant 1 : index
    %c0_27 = arith.constant 0 : index
    %27 = vector.load %arg15[%c0_26, %c1, %c0_27] : memref<8x40x32xf32, #tpu.memory_space<vmem>>, vector<8x32x32xf32>
    %28 = vector.shape_cast %27 : vector<8x32x32xf32> to vector<256x32xf32>
    %29 = arith.truncf %28 : vector<256x32xf32> to vector<256x32xbf16>
    %c1_28 = arith.constant 1 : index
    %c0_29 = arith.constant 0 : index
    %c0_30 = arith.constant 0 : index
    %30 = vector.load %arg5[%c1_28, %c0_29, %c0_30] : memref<5x32x64xbf16, #tpu.memory_space<vmem>>, vector<1x32x64xbf16>
    %31 = vector.shape_cast %30 : vector<1x32x64xbf16> to vector<32x64xbf16>
    %cst_31 = arith.constant dense<0.000000e+00> : vector<256x64xf32>
    %32 = tpu.matmul %29, %31, %cst_31 {dimension_numbers = #tpu.dot_dimension_numbers<[1], [0], [0], [1], [0, 0, 1, 1], [], []>} : vector<256x32xbf16>, vector<32x64xbf16>, vector<256x64xf32> -> vector<256x64xf32>
    %33 = arith.addf %26, %32 : vector<256x64xf32>
    %c0_32 = arith.constant 0 : index
    %c2_33 = arith.constant 2 : index
    %c0_34 = arith.constant 0 : index
    %34 = vector.load %arg15[%c0_32, %c2_33, %c0_34] : memref<8x40x32xf32, #tpu.memory_space<vmem>>, vector<8x32x32xf32>
    %35 = vector.shape_cast %34 : vector<8x32x32xf32> to vector<256x32xf32>
    %36 = arith.truncf %35 : vector<256x32xf32> to vector<256x32xbf16>
    %c2_35 = arith.constant 2 : index
    %c0_36 = arith.constant 0 : index
    %c0_37 = arith.constant 0 : index
    %37 = vector.load %arg5[%c2_35, %c0_36, %c0_37] : memref<5x32x64xbf16, #tpu.memory_space<vmem>>, vector<1x32x64xbf16>
    %38 = vector.shape_cast %37 : vector<1x32x64xbf16> to vector<32x64xbf16>
    %cst_38 = arith.constant dense<0.000000e+00> : vector<256x64xf32>
    %39 = tpu.matmul %36, %38, %cst_38 {dimension_numbers = #tpu.dot_dimension_numbers<[1], [0], [0], [1], [0, 0, 1, 1], [], []>} : vector<256x32xbf16>, vector<32x64xbf16>, vector<256x64xf32> -> vector<256x64xf32>
    %40 = arith.addf %33, %39 : vector<256x64xf32>
    %c0_39 = arith.constant 0 : index
    %c3 = arith.constant 3 : index
    %c0_40 = arith.constant 0 : index
    %41 = vector.load %arg15[%c0_39, %c3, %c0_40] : memref<8x40x32xf32, #tpu.memory_space<vmem>>, vector<8x32x32xf32>
    %42 = vector.shape_cast %41 : vector<8x32x32xf32> to vector<256x32xf32>
    %43 = arith.truncf %42 : vector<256x32xf32> to vector<256x32xbf16>
    %c3_41 = arith.constant 3 : index
    %c0_42 = arith.constant 0 : index
    %c0_43 = arith.constant 0 : index
    %44 = vector.load %arg5[%c3_41, %c0_42, %c0_43] : memref<5x32x64xbf16, #tpu.memory_space<vmem>>, vector<1x32x64xbf16>
    %45 = vector.shape_cast %44 : vector<1x32x64xbf16> to vector<32x64xbf16>
    %cst_44 = arith.constant dense<0.000000e+00> : vector<256x64xf32>
    %46 = tpu.matmul %43, %45, %cst_44 {dimension_numbers = #tpu.dot_dimension_numbers<[1], [0], [0], [1], [0, 0, 1, 1], [], []>} : vector<256x32xbf16>, vector<32x64xbf16>, vector<256x64xf32> -> vector<256x64xf32>
    %47 = arith.addf %40, %46 : vector<256x64xf32>
    %c0_45 = arith.constant 0 : index
    %c4 = arith.constant 4 : index
    %c0_46 = arith.constant 0 : index
    %48 = vector.load %arg15[%c0_45, %c4, %c0_46] : memref<8x40x32xf32, #tpu.memory_space<vmem>>, vector<8x32x32xf32>
    %49 = vector.shape_cast %48 : vector<8x32x32xf32> to vector<256x32xf32>
    %50 = arith.truncf %49 : vector<256x32xf32> to vector<256x32xbf16>
    %c4_47 = arith.constant 4 : index
    %c0_48 = arith.constant 0 : index
    %c0_49 = arith.constant 0 : index
    %51 = vector.load %arg5[%c4_47, %c0_48, %c0_49] : memref<5x32x64xbf16, #tpu.memory_space<vmem>>, vector<1x32x64xbf16>
    %52 = vector.shape_cast %51 : vector<1x32x64xbf16> to vector<32x64xbf16>
    %cst_50 = arith.constant dense<0.000000e+00> : vector<256x64xf32>
    %53 = tpu.matmul %50, %52, %cst_50 {dimension_numbers = #tpu.dot_dimension_numbers<[1], [0], [0], [1], [0, 0, 1, 1], [], []>} : vector<256x32xbf16>, vector<32x64xbf16>, vector<256x64xf32> -> vector<256x64xf32>
    %54 = arith.addf %47, %53 : vector<256x64xf32>
    %c0_51 = arith.constant 0 : index
    %c0_52 = arith.constant 0 : index
    %55 = vector.load %arg6[%c0_51, %c0_52] : memref<1x64xf32, #tpu.memory_space<vmem>>, vector<1x64xf32>
    %56 = vector.broadcast %55 : vector<1x64xf32> to vector<256x64xf32>
    %57 = arith.mulf %54, %56 : vector<256x64xf32>
    %c0_53 = arith.constant 0 : index
    %c0_54 = arith.constant 0 : index
    %58 = vector.load %arg7[%c0_53, %c0_54] : memref<1x64xf32, #tpu.memory_space<vmem>>, vector<1x64xf32>
    %59 = vector.broadcast %58 : vector<1x64xf32> to vector<256x64xf32>
    %60 = arith.addf %57, %59 : vector<256x64xf32>
    %cst_55 = arith.constant 0.000000e+00 : f32
    %61 = vector.broadcast %cst_55 : f32 to vector<256x64xf32>
    %62 = arith.maximumf %60, %61 : vector<256x64xf32>
    %63 = vector.shape_cast %62 : vector<256x64xf32> to vector<128x2x64xf32>
    %cst_56 = arith.constant dense<0xFF800000> : vector<128x64xf32>
    %64 = vector.multi_reduction <maximumf>, %63, %cst_56 [1] : vector<128x2x64xf32> to vector<128x64xf32>
    %65 = vector.shape_cast %64 : vector<128x64xf32> to vector<8x16x64xf32>
    %cst_57 = arith.constant 0.000000e+00 : f32
    %66 = vector.broadcast %cst_57 : f32 to vector<8x1x64xf32>
    %c0_58 = arith.constant 0 : index
    %c0_59 = arith.constant 0 : index
    %c0_60 = arith.constant 0 : index
    %67 = vector.load %arg16[%c0_58, %c0_59, %c0_60] : memref<8x24x64xf32, #tpu.memory_space<vmem>>, vector<8x1x64xf32>
    tpu.vector_store %arg16[%c0_58, %c0_59, %c0_60], %66 {strides = array<i32>} : memref<8x24x64xf32, #tpu.memory_space<vmem>>, vector<8x1x64xf32>,
    %cst_61 = arith.constant 0.000000e+00 : f32
    %68 = vector.broadcast %cst_61 : f32 to vector<8x8x64xf32>
    %c0_62 = arith.constant 0 : index
    %c16 = arith.constant 16 : index
    %c0_63 = arith.constant 0 : index
    %69 = vector.load %arg16[%c0_62, %c16, %c0_63] : memref<8x24x64xf32, #tpu.memory_space<vmem>>, vector<8x8x64xf32>
    tpu.vector_store %arg16[%c0_62, %c16, %c0_63], %68 {strides = array<i32>} : memref<8x24x64xf32, #tpu.memory_space<vmem>>, vector<8x8x64xf32>,
    %70 = vector.extract_strided_slice %65 {offsets = [0, 0, 0], sizes = [8, 15, 64], strides = [1, 1, 1]} : vector<8x16x64xf32> to vector<8x15x64xf32>
    %c0_64 = arith.constant 0 : index
    %c1_65 = arith.constant 1 : index
    %c0_66 = arith.constant 0 : index
    %71 = vector.load %arg16[%c0_64, %c1_65, %c0_66] : memref<8x24x64xf32, #tpu.memory_space<vmem>>, vector<8x15x64xf32>
    tpu.vector_store %arg16[%c0_64, %c1_65, %c0_66], %70 {strides = array<i32>} : memref<8x24x64xf32, #tpu.memory_space<vmem>>, vector<8x15x64xf32>,
    %c0_67 = arith.constant 0 : index
    %c0_68 = arith.constant 0 : index
    %c0_69 = arith.constant 0 : index
    %72 = vector.load %arg16[%c0_67, %c0_68, %c0_69] : memref<8x24x64xf32, #tpu.memory_space<vmem>>, vector<8x16x64xf32>
    %73 = vector.shape_cast %72 : vector<8x16x64xf32> to vector<128x64xf32>
    %74 = arith.truncf %73 : vector<128x64xf32> to vector<128x64xbf16>
    %c0_70 = arith.constant 0 : index
    %c0_71 = arith.constant 0 : index
    %c0_72 = arith.constant 0 : index
    %75 = vector.load %arg8[%c0_70, %c0_71, %c0_72] : memref<3x64x128xbf16, #tpu.memory_space<vmem>>, vector<1x64x128xbf16>
    %76 = vector.shape_cast %75 : vector<1x64x128xbf16> to vector<64x128xbf16>
    %cst_73 = arith.constant dense<0.000000e+00> : vector<128x128xf32>
    %77 = tpu.matmul %74, %76, %cst_73 {dimension_numbers = #tpu.dot_dimension_numbers<[1], [0], [0], [1], [0, 0, 1, 1], [], []>} : vector<128x64xbf16>, vector<64x128xbf16>, vector<128x128xf32> -> vector<128x128xf32>
    %c0_74 = arith.constant 0 : index
    %c1_75 = arith.constant 1 : index
    %c0_76 = arith.constant 0 : index
    %78 = vector.load %arg16[%c0_74, %c1_75, %c0_76] : memref<8x24x64xf32, #tpu.memory_space<vmem>>, vector<8x16x64xf32>
    %79 = vector.shape_cast %78 : vector<8x16x64xf32> to vector<128x64xf32>
    %80 = arith.truncf %79 : vector<128x64xf32> to vector<128x64xbf16>
    %c1_77 = arith.constant 1 : index
    %c0_78 = arith.constant 0 : index
    %c0_79 = arith.constant 0 : index
    %81 = vector.load %arg8[%c1_77, %c0_78, %c0_79] : memref<3x64x128xbf16, #tpu.memory_space<vmem>>, vector<1x64x128xbf16>
    %82 = vector.shape_cast %81 : vector<1x64x128xbf16> to vector<64x128xbf16>
    %cst_80 = arith.constant dense<0.000000e+00> : vector<128x128xf32>
    %83 = tpu.matmul %80, %82, %cst_80 {dimension_numbers = #tpu.dot_dimension_numbers<[1], [0], [0], [1], [0, 0, 1, 1], [], []>} : vector<128x64xbf16>, vector<64x128xbf16>, vector<128x128xf32> -> vector<128x128xf32>
    %84 = arith.addf %77, %83 : vector<128x128xf32>
    %c0_81 = arith.constant 0 : index
    %c2_82 = arith.constant 2 : index
    %c0_83 = arith.constant 0 : index
    %85 = vector.load %arg16[%c0_81, %c2_82, %c0_83] : memref<8x24x64xf32, #tpu.memory_space<vmem>>, vector<8x16x64xf32>
    %86 = vector.shape_cast %85 : vector<8x16x64xf32> to vector<128x64xf32>
    %87 = arith.truncf %86 : vector<128x64xf32> to vector<128x64xbf16>
    %c2_84 = arith.constant 2 : index
    %c0_85 = arith.constant 0 : index
    %c0_86 = arith.constant 0 : index
    %88 = vector.load %arg8[%c2_84, %c0_85, %c0_86] : memref<3x64x128xbf16, #tpu.memory_space<vmem>>, vector<1x64x128xbf16>
    %89 = vector.shape_cast %88 : vector<1x64x128xbf16> to vector<64x128xbf16>
    %cst_87 = arith.constant dense<0.000000e+00> : vector<128x128xf32>
    %90 = tpu.matmul %87, %89, %cst_87 {dimension_numbers = #tpu.dot_dimension_numbers<[1], [0], [0], [1], [0, 0, 1, 1], [], []>} : vector<128x64xbf16>, vector<64x128xbf16>, vector<128x128xf32> -> vector<128x128xf32>
    %91 = arith.addf %84, %90 : vector<128x128xf32>
    %c0_88 = arith.constant 0 : index
    %c0_89 = arith.constant 0 : index
    %92 = vector.load %arg9[%c0_88, %c0_89] : memref<1x128xf32, #tpu.memory_space<vmem>>, vector<1x128xf32>
    %93 = vector.broadcast %92 : vector<1x128xf32> to vector<128x128xf32>
    %94 = arith.mulf %91, %93 : vector<128x128xf32>
    %c0_90 = arith.constant 0 : index
    %c0_91 = arith.constant 0 : index
    %95 = vector.load %arg10[%c0_90, %c0_91] : memref<1x128xf32, #tpu.memory_space<vmem>>, vector<1x128xf32>
    %96 = vector.broadcast %95 : vector<1x128xf32> to vector<128x128xf32>
    %97 = arith.addf %94, %96 : vector<128x128xf32>
    %cst_92 = arith.constant 0.000000e+00 : f32
    %98 = vector.broadcast %cst_92 : f32 to vector<128x128xf32>
    %99 = arith.maximumf %97, %98 : vector<128x128xf32>
    %c0_93 = arith.constant 0 : index
    %c0_94 = arith.constant 0 : index
    %100 = vector.load %arg13[%c0_93, %c0_94] : memref<8x128xf32, #tpu.memory_space<vmem>>, vector<8x128xf32>
    %cst_95 = arith.constant dense<0.000000e+00> : vector<8x128xf32>
    %101 = tpu.matmul %100, %99, %cst_95 {dimension_numbers = #tpu.dot_dimension_numbers<[1], [0], [0], [1], [0, 0, 1, 1], [], []>} : vector<8x128xf32>, vector<128x128xf32>, vector<8x128xf32> -> vector<8x128xf32>
    %102 = arith.truncf %101 : vector<8x128xf32> to vector<8x128xbf16>
    %c0_96 = arith.constant 0 : index
    %c0_97 = arith.constant 0 : index
    %103 = vector.load %arg11[%c0_96, %c0_97] : memref<128x128xbf16, #tpu.memory_space<vmem>>, vector<128x128xbf16>
    %cst_98 = arith.constant dense<0.000000e+00> : vector<8x128xf32>
    %104 = tpu.matmul %102, %103, %cst_98 {dimension_numbers = #tpu.dot_dimension_numbers<[1], [0], [0], [1], [0, 0, 1, 1], [], []>} : vector<8x128xbf16>, vector<128x128xbf16>, vector<8x128xf32> -> vector<8x128xf32>
    %c0_99 = arith.constant 0 : index
    %c0_100 = arith.constant 0 : index
    %105 = vector.load %arg12[%c0_99, %c0_100] : memref<1x128xf32, #tpu.memory_space<vmem>>, vector<1x128xf32>
    %106 = vector.broadcast %105 : vector<1x128xf32> to vector<8x128xf32>
    %107 = arith.addf %104, %106 : vector<8x128xf32>
    %c0_101 = arith.constant 0 : index
    %c0_102 = arith.constant 0 : index
    %108 = vector.load %arg14[%c0_101, %c0_102] : memref<8x128xf32, #tpu.memory_space<vmem>>, vector<8x128xf32>
    tpu.vector_store %arg14[%c0_101, %c0_102], %107 {strides = array<i32>} : memref<8x128xf32, #tpu.memory_space<vmem>>, vector<8x128xf32>,
    return
  }
  func.func @transform_0(%arg0: i32) -> (i32, i32, i32) {
    %c0_i32 = arith.constant 0 : i32
    %c0_i32_0 = arith.constant 0 : i32
    %c0_i32_1 = arith.constant 0 : i32
    return %arg0, %c0_i32, %c0_i32_0 : i32, i32, i32
  }
  func.func @transform_1(%arg0: i32) -> (i32, i32) {
    %c0_i32 = arith.constant 0 : i32
    %c0_i32_0 = arith.constant 0 : i32
    %c0_i32_1 = arith.constant 0 : i32
    return %c0_i32, %c0_i32_0 : i32, i32
  }
  func.func @transform_2(%arg0: i32) -> (i32, i32) {
    %c0_i32 = arith.constant 0 : i32
    %c0_i32_0 = arith.constant 0 : i32
    %c0_i32_1 = arith.constant 0 : i32
    return %c0_i32, %c0_i32_0 : i32, i32
  }
  func.func @transform_3(%arg0: i32) -> (i32, i32) {
    %c0_i32 = arith.constant 0 : i32
    %c0_i32_0 = arith.constant 0 : i32
    %c0_i32_1 = arith.constant 0 : i32
    return %c0_i32, %c0_i32_0 : i32, i32
  }
  func.func @transform_4(%arg0: i32) -> (i32, i32, i32) {
    %c0_i32 = arith.constant 0 : i32
    %c0_i32_0 = arith.constant 0 : i32
    %c0_i32_1 = arith.constant 0 : i32
    %c0_i32_2 = arith.constant 0 : i32
    return %c0_i32, %c0_i32_0, %c0_i32_1 : i32, i32, i32
  }
  func.func @transform_5(%arg0: i32) -> (i32, i32) {
    %c0_i32 = arith.constant 0 : i32
    %c0_i32_0 = arith.constant 0 : i32
    %c0_i32_1 = arith.constant 0 : i32
    return %c0_i32, %c0_i32_0 : i32, i32
  }
  func.func @transform_6(%arg0: i32) -> (i32, i32) {
    %c0_i32 = arith.constant 0 : i32
    %c0_i32_0 = arith.constant 0 : i32
    %c0_i32_1 = arith.constant 0 : i32
    return %c0_i32, %c0_i32_0 : i32, i32
  }
  func.func @transform_7(%arg0: i32) -> (i32, i32, i32) {
    %c0_i32 = arith.constant 0 : i32
    %c0_i32_0 = arith.constant 0 : i32
    %c0_i32_1 = arith.constant 0 : i32
    %c0_i32_2 = arith.constant 0 : i32
    return %c0_i32, %c0_i32_0, %c0_i32_1 : i32, i32, i32
  }
  func.func @transform_8(%arg0: i32) -> (i32, i32) {
    %c0_i32 = arith.constant 0 : i32
    %c0_i32_0 = arith.constant 0 : i32
    %c0_i32_1 = arith.constant 0 : i32
    return %c0_i32, %c0_i32_0 : i32, i32
  }
  func.func @transform_9(%arg0: i32) -> (i32, i32) {
    %c0_i32 = arith.constant 0 : i32
    %c0_i32_0 = arith.constant 0 : i32
    %c0_i32_1 = arith.constant 0 : i32
    return %c0_i32, %c0_i32_0 : i32, i32
  }
  func.func @transform_10(%arg0: i32) -> (i32, i32) {
    %c0_i32 = arith.constant 0 : i32
    %c0_i32_0 = arith.constant 0 : i32
    %c0_i32_1 = arith.constant 0 : i32
    return %c0_i32, %c0_i32_0 : i32, i32
  }
  func.func @transform_11(%arg0: i32) -> (i32, i32) {
    %c0_i32 = arith.constant 0 : i32
    %c0_i32_0 = arith.constant 0 : i32
    %c0_i32_1 = arith.constant 0 : i32
    return %c0_i32, %c0_i32_0 : i32, i32
  }
  func.func @transform_12(%arg0: i32) -> (i32, i32) {
    %c0_i32 = arith.constant 0 : i32
    %c0_i32_0 = arith.constant 0 : i32
    %c0_i32_1 = arith.constant 0 : i32
    return %c0_i32, %c0_i32_0 : i32, i32
  }
  func.func @transform_13(%arg0: i32) -> (i32, i32) {
    %c0_i32 = arith.constant 0 : i32
    %c0_i32_0 = arith.constant 0 : i32
    return %arg0, %c0_i32 : i32, i32
  }
}

</mosaic_0001>

<llo_original>
// kernel: eeg_cnn_forward.1
$region0: #{eeg_cnn_forward.1}
  #allocation0 [shape = 'u32[]', space=smem, size = 0x4, offset = 0x4, fixed_abs, tag = 'smem constant byte address 0x4 - core index']
  #allocation1 [shape = 'u32[144,128]{1,0:T(1,128)}', space=vmem, size = 0x12000, scoped, tag = 'internal scratch']
  #allocation2 [shape = 'f32[8,40,32]{2,1,0:T(8,128)}', space=vmem, size = 0x28000, scoped, tag = 'scratch operand']
  #allocation3 [shape = 'f32[8,24,64]{2,1,0:T(8,128)}', space=vmem, size = 0x18000, scoped, tag = 'scratch operand']
  %s0 = inlined_call_operand.vmem [shape: bf16[16,64,112], index: 0, kind: input, shape index: {}]
  %s1 = inlined_call_operand.vmem [shape: bf16[112,32], index: 1, kind: input, shape index: {}]
  %s2 = inlined_call_operand.vmem [shape: f32[1,32], index: 2, kind: input, shape index: {}]
  %s3 = inlined_call_operand.vmem [shape: f32[1,32], index: 3, kind: input, shape index: {}]
  %s4 = inlined_call_operand.vmem [shape: bf16[5,32,64], index: 4, kind: input, shape index: {}]
  %s5 = inlined_call_operand.vmem [shape: f32[1,64], index: 5, kind: input, shape index: {}]
  %s6 = inlined_call_operand.vmem [shape: f32[1,64], index: 6, kind: input, shape index: {}]
  %s7 = inlined_call_operand.vmem [shape: bf16[3,64,128], index: 7, kind: input, shape index: {}]
  %s8 = inlined_call_operand.vmem [shape: f32[1,128], index: 8, kind: input, shape index: {}]
  %s9 = inlined_call_operand.vmem [shape: f32[1,128], index: 9, kind: input, shape index: {}]
  %s10 = inlined_call_operand.vmem [shape: bf16[128,128], index: 10, kind: input, shape index: {}]
  %s11 = inlined_call_operand.vmem [shape: f32[1,128], index: 11, kind: input, shape index: {}]
  %s12 = inlined_call_operand.vmem [shape: f32[8,128], index: 12, kind: input, shape index: {}]
  %s13 = inlined_call_operand.vmem [shape: f32[16,128], index: 13, kind: output, shape index: {}]
  %s14 = sld [smem:[#allocation0]]
  $region85: #{eeg_cnn_forward.1} parent=0
    _
  %s16 = ssub.s32 1, %s14
  %s17 = scalar_select 0, %s16, %s14
  loop: start=0, step=1, limit=4
  $region2: #{eeg_cnn_forward.1} parent=0 // loop_pre_header
    _
  $region3: #{eeg_cnn_forward.1} parent=0 // loop_header
    %s19 = sphi 0, %s23
    %p20 = scmp.ge.s32.totalorder %s19, 4
    %s29 = sphi 0, %s31
    %s32 = sphi 0, %s29
    %s33 = sphi 0, %s32
    %s49 = sphi 0, %s33
    %s53 = sphi 0, %s53
    %s55 = sphi 0, %s53
    %s56 = sphi 0, %s55
    %s70 = sphi 0, %s56
    %s74 = sphi 0, %s74
    %s76 = sphi 0, %s74
    %s77 = sphi 0, %s76
    %s91 = sphi 0, %s77
    %s95 = sphi 0, %s95
    %s97 = sphi 0, %s95
    %s98 = sphi 0, %s97
    %s112 = sphi 0, %s98
    %s116 = sphi 0, %s116
    %s118 = sphi 0, %s116
    %s119 = sphi 0, %s118
    %s133 = sphi 0, %s119
    %s137 = sphi 0, %s137
    %s139 = sphi 0, %s137
    %s140 = sphi 0, %s139
    %s154 = sphi 0, %s140
    %s158 = sphi 0, %s158
    %s160 = sphi 0, %s158
    %s161 = sphi 0, %s160
    %s175 = sphi 0, %s161
    %s179 = sphi 0, %s179
    %s181 = sphi 0, %s179
    %s182 = sphi 0, %s181
    %s196 = sphi 0, %s182
    %s200 = sphi 0, %s200
    %s202 = sphi 0, %s200
    %s203 = sphi 0, %s202
    %s217 = sphi 0, %s203
    %s221 = sphi 0, %s221
    %s223 = sphi 0, %s221
    %s224 = sphi 0, %s223
    %s238 = sphi 0, %s224
    %s242 = sphi 0, %s242
    %s244 = sphi 0, %s242
    %s245 = sphi 0, %s244
    %s259 = sphi 0, %s245
    %s263 = sphi 0, %s263
    %s265 = sphi 0, %s263
    %s266 = sphi 0, %s265
    %s280 = sphi 0, %s266
    %s284 = sphi 0, %s284
    %s286 = sphi 0, %s284
    %s287 = sphi 0, %s286
    %s301 = sphi 0, %s287
    %s307 = sphi 0, %s309
    %s310 = sphi 0, %s307
    %s311 = sphi 0, %s310
    %s327 = sphi 0, %s311
  $region4: #{eeg_cnn_forward.1} parent=0 // loop_header_branch
    %22 = sbr.rel (%p20) target = $region8
  $region5: #{eeg_cnn_forward.1} parent=0 // loop_body
    %s24 = ssub.s32 %s19, 1
    %s25 = ssub.s32 %s19, 2
    %s26 = sadd.s32 %s19, 1
    %s27 = ssub.s32 %s19, %s26
    %p28 = scmp.eq.s32.totalorder %s27, 0
    %s30 = sadd.s32 %s29, 1
    %s31 = scalar_select %p28, %s29, %s30
    %p34 = pneg %p28
    %p35 = scmp.eq.s32.totalorder %s19, 1
    %p36 = por %p34, %p35
    %p37 = scmp.ne.s32.totalorder %s29, %s32
    %p38 = scmp.eq.s32.totalorder %s19, 0
    %p39 = por %p37, %p38
    %p40 = scmp.ne.s32.totalorder %s29, %s32
    %p41 = scmp.eq.s32.totalorder %s24, 1
    %p42 = por %p40, %p41
    %p43 = scmp.ne.s32.totalorder %s32, %s33
    %p44 = scmp.eq.s32.totalorder %s24, 0
    %p45 = por %p43, %p44
    %p46 = scmp.ne.s32.totalorder %s32, %s33
    %p47 = scmp.eq.s32.totalorder %s25, 1
    %p48 = por %p46, %p47
    %p50 = scmp.ne.s32.totalorder %s33, %s49
    %p51 = scmp.eq.s32.totalorder %s25, 0
    %p52 = por %p50, %p51
    %s54 = sadd.s32 %s53, 1
    %p57 = scmp.eq.s32.totalorder %s19, 1
    %p58 = scmp.ne.s32.totalorder %s53, %s55
    %p59 = scmp.eq.s32.totalorder %s19, 0
    %p60 = por %p58, %p59
    %p61 = scmp.ne.s32.totalorder %s53, %s55
    %p62 = scmp.eq.s32.totalorder %s24, 1
    %p63 = por %p61, %p62
    %p64 = scmp.ne.s32.totalorder %s55, %s56
    %p65 = scmp.eq.s32.totalorder %s24, 0
    %p66 = por %p64, %p65
    %p67 = scmp.ne.s32.totalorder %s55, %s56
    %p68 = scmp.eq.s32.totalorder %s25, 1
    %p69 = por %p67, %p68
    %p71 = scmp.ne.s32.totalorder %s56, %s70
    %p72 = scmp.eq.s32.totalorder %s25, 0
    %p73 = por %p71, %p72
    %s75 = sadd.s32 %s74, 1
    %p78 = scmp.eq.s32.totalorder %s19, 1
    %p79 = scmp.ne.s32.totalorder %s74, %s76
    %p80 = scmp.eq.s32.totalorder %s19, 0
    %p81 = por %p79, %p80
    %p82 = scmp.ne.s32.totalorder %s74, %s76
    %p83 = scmp.eq.s32.totalorder %s24, 1
    %p84 = por %p82, %p83
    %p85 = scmp.ne.s32.totalorder %s76, %s77
    %p86 = scmp.eq.s32.totalorder %s24, 0
    %p87 = por %p85, %p86
    %p88 = scmp.ne.s32.totalorder %s76, %s77
    %p89 = scmp.eq.s32.totalorder %s25, 1
    %p90 = por %p88, %p89
    %p92 = scmp.ne.s32.totalorder %s77, %s91
    %p93 = scmp.eq.s32.totalorder %s25, 0
    %p94 = por %p92, %p93
    %s96 = sadd.s32 %s95, 1
    %p99 = scmp.eq.s32.totalorder %s19, 1
    %p100 = scmp.ne.s32.totalorder %s95, %s97
    %p101 = scmp.eq.s32.totalorder %s19, 0
    %p102 = por %p100, %p101
    %p103 = scmp.ne.s32.totalorder %s95, %s97
    %p104 = scmp.eq.s32.totalorder %s24, 1
    %p105 = por %p103, %p104
    %p106 = scmp.ne.s32.totalorder %s97, %s98
    %p107 = scmp.eq.s32.totalorder %s24, 0
    %p108 = por %p106, %p107
    %p109 = scmp.ne.s32.totalorder %s97, %s98
    %p110 = scmp.eq.s32.totalorder %s25, 1
    %p111 = por %p109, %p110
    %p113 = scmp.ne.s32.totalorder %s98, %s112
    %p114 = scmp.eq.s32.totalorder %s25, 0
    %p115 = por %p113, %p114
    %s117 = sadd.s32 %s116, 1
    %p120 = scmp.eq.s32.totalorder %s19, 1
    %p121 = scmp.ne.s32.totalorder %s116, %s118
    %p122 = scmp.eq.s32.totalorder %s19, 0
    %p123 = por %p121, %p122
    %p124 = scmp.ne.s32.totalorder %s116, %s118
    %p125 = scmp.eq.s32.totalorder %s24, 1
    %p126 = por %p124, %p125
    %p127 = scmp.ne.s32.totalorder %s118, %s119
    %p128 = scmp.eq.s32.totalorder %s24, 0
    %p129 = por %p127, %p128
    %p130 = scmp.ne.s32.totalorder %s118, %s119
    %p131 = scmp.eq.s32.totalorder %s25, 1
    %p132 = por %p130, %p131
    %p134 = scmp.ne.s32.totalorder %s119, %s133
    %p135 = scmp.eq.s32.totalorder %s25, 0
    %p136 = por %p134, %p135
    %s138 = sadd.s32 %s137, 1
    %p141 = scmp.eq.s32.totalorder %s19, 1
    %p142 = scmp.ne.s32.totalorder %s137, %s139
    %p143 = scmp.eq.s32.totalorder %s19, 0
    %p144 = por %p142, %p143
    %p145 = scmp.ne.s32.totalorder %s137, %s139
    %p146 = scmp.eq.s32.totalorder %s24, 1
    %p147 = por %p145, %p146
    %p148 = scmp.ne.s32.totalorder %s139, %s140
    %p149 = scmp.eq.s32.totalorder %s24, 0
    %p150 = por %p148, %p149
    %p151 = scmp.ne.s32.totalorder %s139, %s140
    %p152 = scmp.eq.s32.totalorder %s25, 1
    %p153 = por %p151, %p152
    %p155 = scmp.ne.s32.totalorder %s140, %s154
    %p156 = scmp.eq.s32.totalorder %s25, 0
    %p157 = por %p155, %p156
    %s159 = sadd.s32 %s158, 1
    %p162 = scmp.eq.s32.totalorder %s19, 1
    %p163 = scmp.ne.s32.totalorder %s158, %s160
    %p164 = scmp.eq.s32.totalorder %s19, 0
    %p165 = por %p163, %p164
    %p166 = scmp.ne.s32.totalorder %s158, %s160
    %p167 = scmp.eq.s32.totalorder %s24, 1
    %p168 = por %p166, %p167
    %p169 = scmp.ne.s32.totalorder %s160, %s161
    %p170 = scmp.eq.s32.totalorder %s24, 0
    %p171 = por %p169, %p170
    %p172 = scmp.ne.s32.totalorder %s160, %s161
    %p173 = scmp.eq.s32.totalorder %s25, 1
    %p174 = por %p172, %p173
    %p176 = scmp.ne.s32.totalorder %s161, %s175
    %p177 = scmp.eq.s32.totalorder %s25, 0
    %p178 = por %p176, %p177
    %s180 = sadd.s32 %s179, 1
    %p183 = scmp.eq.s32.totalorder %s19, 1
    %p184 = scmp.ne.s32.totalorder %s179, %s181
    %p185 = scmp.eq.s32.totalorder %s19, 0
    %p186 = por %p184, %p185
    %p187 = scmp.ne.s32.totalorder %s179, %s181
    %p188 = scmp.eq.s32.totalorder %s24, 1
    %p189 = por %p187, %p188
    %p190 = scmp.ne.s32.totalorder %s181, %s182
    %p191 = scmp.eq.s32.totalorder %s24, 0
    %p192 = por %p190, %p191
    %p193 = scmp.ne.s32.totalorder %s181, %s182
    %p194 = scmp.eq.s32.totalorder %s25, 1
    %p195 = por %p193, %p194
    %p197 = scmp.ne.s32.totalorder %s182, %s196
    %p198 = scmp.eq.s32.totalorder %s25, 0
    %p199 = por %p197, %p198
    %s201 = sadd.s32 %s200, 1
    %p204 = scmp.eq.s32.totalorder %s19, 1
    %p205 = scmp.ne.s32.totalorder %s200, %s202
    %p206 = scmp.eq.s32.totalorder %s19, 0
    %p207 = por %p205, %p206
    %p208 = scmp.ne.s32.totalorder %s200, %s202
    %p209 = scmp.eq.s32.totalorder %s24, 1
    %p210 = por %p208, %p209
    %p211 = scmp.ne.s32.totalorder %s202, %s203
    %p212 = scmp.eq.s32.totalorder %s24, 0
    %p213 = por %p211, %p212
    %p214 = scmp.ne.s32.totalorder %s202, %s203
    %p215 = scmp.eq.s32.totalorder %s25, 1
    %p216 = por %p214, %p215
    %p218 = scmp.ne.s32.totalorder %s203, %s217
    %p219 = scmp.eq.s32.totalorder %s25, 0
    %p220 = por %p218, %p219
    %s222 = sadd.s32 %s221, 1
    %p225 = scmp.eq.s32.totalorder %s19, 1
    %p226 = scmp.ne.s32.totalorder %s221, %s223
    %p227 = scmp.eq.s32.totalorder %s19, 0
    %p228 = por %p226, %p227
    %p229 = scmp.ne.s32.totalorder %s221, %s223
    %p230 = scmp.eq.s32.totalorder %s24, 1
    %p231 = por %p229, %p230
    %p232 = scmp.ne.s32.totalorder %s223, %s224
    %p233 = scmp.eq.s32.totalorder %s24, 0
    %p234 = por %p232, %p233
    %p235 = scmp.ne.s32.totalorder %s223, %s224
    %p236 = scmp.eq.s32.totalorder %s25, 1
    %p237 = por %p235, %p236
    %p239 = scmp.ne.s32.totalorder %s224, %s238
    %p240 = scmp.eq.s32.totalorder %s25, 0
    %p241 = por %p239, %p240
    %s243 = sadd.s32 %s242, 1
    %p246 = scmp.eq.s32.totalorder %s19, 1
    %p247 = scmp.ne.s32.totalorder %s242, %s244
    %p248 = scmp.eq.s32.totalorder %s19, 0
    %p249 = por %p247, %p248
    %p250 = scmp.ne.s32.totalorder %s242, %s244
    %p251 = scmp.eq.s32.totalorder %s24, 1
    %p252 = por %p250, %p251
    %p253 = scmp.ne.s32.totalorder %s244, %s245
    %p254 = scmp.eq.s32.totalorder %s24, 0
    %p255 = por %p253, %p254
    %p256 = scmp.ne.s32.totalorder %s244, %s245
    %p257 = scmp.eq.s32.totalorder %s25, 1
    %p258 = por %p256, %p257
    %p260 = scmp.ne.s32.totalorder %s245, %s259
    %p261 = scmp.eq.s32.totalorder %s25, 0
    %p262 = por %p260, %p261
    %s264 = sadd.s32 %s263, 1
    %p267 = scmp.eq.s32.totalorder %s19, 1
    %p268 = scmp.ne.s32.totalorder %s263, %s265
    %p269 = scmp.eq.s32.totalorder %s19, 0
    %p270 = por %p268, %p269
    %p271 = scmp.ne.s32.totalorder %s263, %s265
    %p272 = scmp.eq.s32.totalorder %s24, 1
    %p273 = por %p271, %p272
    %p274 = scmp.ne.s32.totalorder %s265, %s266
    %p275 = scmp.eq.s32.totalorder %s24, 0
    %p276 = por %p274, %p275
    %p277 = scmp.ne.s32.totalorder %s265, %s266
    %p278 = scmp.eq.s32.totalorder %s25, 1
    %p279 = por %p277, %p278
    %p281 = scmp.ne.s32.totalorder %s266, %s280
    %p282 = scmp.eq.s32.totalorder %s25, 0
    %p283 = por %p281, %p282
    %s285 = sadd.s32 %s284, 1
    %p288 = scmp.eq.s32.totalorder %s19, 1
    %p289 = scmp.ne.s32.totalorder %s284, %s286
    %p290 = scmp.eq.s32.totalorder %s19, 0
    %p291 = por %p289, %p290
    %p292 = scmp.ne.s32.totalorder %s284, %s286
    %p293 = scmp.eq.s32.totalorder %s24, 1
    %p294 = por %p292, %p293
    %p295 = scmp.ne.s32.totalorder %s286, %s287
    %p296 = scmp.eq.s32.totalorder %s24, 0
    %p297 = por %p295, %p296
    %p298 = scmp.ne.s32.totalorder %s286, %s287
    %p299 = scmp.eq.s32.totalorder %s25, 1
    %p300 = por %p298, %p299
    %p302 = scmp.ne.s32.totalorder %s287, %s301
    %p303 = scmp.eq.s32.totalorder %s25, 0
    %p304 = por %p302, %p303
    %s305 = ssub.s32 %s19, %s26
    %p306 = scmp.eq.s32.totalorder %s305, 0
    %s308 = sadd.s32 %s307, 1
    %s309 = scalar_select %p306, %s307, %s308
    %p312 = pneg %p306
    %p313 = scmp.eq.s32.totalorder %s19, 1
    %p314 = por %p312, %p313
    %p315 = scmp.ne.s32.totalorder %s307, %s310
    %p316 = scmp.eq.s32.totalorder %s19, 0
    %p317 = por %p315, %p316
    %p318 = scmp.ne.s32.totalorder %s307, %s310
    %p319 = scmp.eq.s32.totalorder %s24, 1
    %p320 = por %p318, %p319
    %p321 = scmp.ne.s32.totalorder %s310, %s311
    %p322 = scmp.eq.s32.totalorder %s24, 0
    %p323 = por %p321, %p322
    %p324 = scmp.ne.s32.totalorder %s310, %s311
    %p325 = scmp.eq.s32.totalorder %s25, 1
    %p326 = por %p324, %p325
    %p328 = scmp.ne.s32.totalorder %s311, %s327
    %p329 = scmp.eq.s32.totalorder %s25, 0
    %p330 = por %p328, %p329
    %p331 = scmp.le.s32.totalorder 1, %s19
    %p332 = scmp.lt.s32.totalorder %s19, 3
    %p333 = pnand %p331, %p332
    %p334 = pneg %p333
    // Predicated region
    $region9: #{eeg_cnn_forward.1} parent=5 // pred_check
      _
    $region10: #{eeg_cnn_forward.1} parent=5 // pred_check_branch
      %336 = sbr.rel (%p333) target = $region12
    $region11: #{eeg_cnn_forward.1} parent=5 // pred_region
      %s337 = ssub.s32 %s19, 1
      // Predicated region
      $region13: #{eeg_cnn_forward.1} parent=11 // pred_check
        %p338 = pneg %p66
      $region14: #{eeg_cnn_forward.1} parent=11 // pred_check_branch
        %340 = sbr.rel (%p338) target = $region16
      $region15: #{eeg_cnn_forward.1} parent=11 // pred_region
        _
      $region16: #{eeg_cnn_forward.1} parent=11 // pred_fallthru
        _
      // Predicated region
      $region17: #{eeg_cnn_forward.1} parent=11 // pred_check
        %p341 = pneg %p87
      $region18: #{eeg_cnn_forward.1} parent=11 // pred_check_branch
        %343 = sbr.rel (%p341) target = $region20
      $region19: #{eeg_cnn_forward.1} parent=11 // pred_region
        _
      $region20: #{eeg_cnn_forward.1} parent=11 // pred_fallthru
        _
      // Predicated region
      $region21: #{eeg_cnn_forward.1} parent=11 // pred_check
        %p344 = pneg %p108
      $region22: #{eeg_cnn_forward.1} parent=11 // pred_check_branch
        %346 = sbr.rel (%p344) target = $region24
      $region23: #{eeg_cnn_forward.1} parent=11 // pred_region
        _
      $region24: #{eeg_cnn_forward.1} parent=11 // pred_fallthru
        _
      // Predicated region
      $region25: #{eeg_cnn_forward.1} parent=11 // pred_check
        %p347 = pneg %p129
      $region26: #{eeg_cnn_forward.1} parent=11 // pred_check_branch
        %349 = sbr.rel (%p347) target = $region28
      $region27: #{eeg_cnn_forward.1} parent=11 // pred_region
        _
      $region28: #{eeg_cnn_forward.1} parent=11 // pred_fallthru
        _
      // Predicated region
      $region29: #{eeg_cnn_forward.1} parent=11 // pred_check
        %p350 = pneg %p150
      $region30: #{eeg_cnn_forward.1} parent=11 // pred_check_branch
        %352 = sbr.rel (%p350) target = $region32
      $region31: #{eeg_cnn_forward.1} parent=11 // pred_region
        _
      $region32: #{eeg_cnn_forward.1} parent=11 // pred_fallthru
        _
      // Predicated region
      $region33: #{eeg_cnn_forward.1} parent=11 // pred_check
        %p353 = pneg %p171
      $region34: #{eeg_cnn_forward.1} parent=11 // pred_check_branch
        %355 = sbr.rel (%p353) target = $region36
      $region35: #{eeg_cnn_forward.1} parent=11 // pred_region
        _
      $region36: #{eeg_cnn_forward.1} parent=11 // pred_fallthru
        _
      // Predicated region
      $region37: #{eeg_cnn_forward.1} parent=11 // pred_check
        %p356 = pneg %p192
      $region38: #{eeg_cnn_forward.1} parent=11 // pred_check_branch
        %358 = sbr.rel (%p356) target = $region40
      $region39: #{eeg_cnn_forward.1} parent=11 // pred_region
        _
      $region40: #{eeg_cnn_forward.1} parent=11 // pred_fallthru
        _
      // Predicated region
      $region41: #{eeg_cnn_forward.1} parent=11 // pred_check
        %p359 = pneg %p213
      $region42: #{eeg_cnn_forward.1} parent=11 // pred_check_branch
        %361 = sbr.rel (%p359) target = $region44
      $region43: #{eeg_cnn_forward.1} parent=11 // pred_region
        _
      $region44: #{eeg_cnn_forward.1} parent=11 // pred_fallthru
        _
      // Predicated region
      $region45: #{eeg_cnn_forward.1} parent=11 // pred_check
        %p362 = pneg %p234
      $region46: #{eeg_cnn_forward.1} parent=11 // pred_check_branch
        %364 = sbr.rel (%p362) target = $region48
      $region47: #{eeg_cnn_forward.1} parent=11 // pred_region
        _
      $region48: #{eeg_cnn_forward.1} parent=11 // pred_fallthru
        _
      // Predicated region
      $region49: #{eeg_cnn_forward.1} parent=11 // pred_check
        %p365 = pneg %p255
      $region50: #{eeg_cnn_forward.1} parent=11 // pred_check_branch
        %367 = sbr.rel (%p365) target = $region52
      $region51: #{eeg_cnn_forward.1} parent=11 // pred_region
        _
      $region52: #{eeg_cnn_forward.1} parent=11 // pred_fallthru
        _
      // Predicated region
      $region53: #{eeg_cnn_forward.1} parent=11 // pred_check
        %p368 = pneg %p276
      $region54: #{eeg_cnn_forward.1} parent=11 // pred_check_branch
        %370 = sbr.rel (%p368) target = $region56
      $region55: #{eeg_cnn_forward.1} parent=11 // pred_region
        _
      $region56: #{eeg_cnn_forward.1} parent=11 // pred_fallthru
        _
      // Predicated region
      $region57: #{eeg_cnn_forward.1} parent=11 // pred_check
        %p371 = pneg %p297
      $region58: #{eeg_cnn_forward.1} parent=11 // pred_check_branch
        %373 = sbr.rel (%p371) target = $region60
      $region59: #{eeg_cnn_forward.1} parent=11 // pred_region
        _
      $region60: #{eeg_cnn_forward.1} parent=11 // pred_fallthru
        _
    $region12: #{eeg_cnn_forward.1} parent=5 // pred_fallthru
      _
    %p374 = scmp.lt.s32.totalorder %s19, 2
    // Predicated region
    $region61: #{eeg_cnn_forward.1} parent=5 // pred_check
      %p375 = pneg %p374
    $region62: #{eeg_cnn_forward.1} parent=5 // pred_check_branch
      %377 = sbr.rel (%p375) target = $region64
    $region63: #{eeg_cnn_forward.1} parent=5 // pred_region
      // Predicated region
      $region65: #{eeg_cnn_forward.1} parent=63 // pred_check
        %p378 = pneg %p39
      $region66: #{eeg_cnn_forward.1} parent=63 // pred_check_branch
        %380 = sbr.rel (%p378) target = $region68
      $region67: #{eeg_cnn_forward.1} parent=63 // pred_region
        %s381 = smul.u32 8, %s19
        %p382 = scmp.lt.s32.totalorder %s381, 15
        %s383 = scalar_select %p382, %s381, 15
        %s384 = smul.addr %s383, 8
        %s385 = smul.addr %s384, 4
        %s386 = scalar_lea.vmem %s0, %s385
        %s387 = smul.u32 8, %s19
      $region68: #{eeg_cnn_forward.1} parent=63 // pred_fallthru
        _
    $region64: #{eeg_cnn_forward.1} parent=5 // pred_fallthru
      _
    %p388 = scmp.le.s32.totalorder 1, %s19
    %p389 = scmp.lt.s32.totalorder %s19, 3
    %p390 = pnand %p388, %p389
    %p391 = pneg %p390
    // Predicated region
    $region69: #{eeg_cnn_forward.1} parent=5 // pred_check
      _
    $region70: #{eeg_cnn_forward.1} parent=5 // pred_check_branch
      %393 = sbr.rel (%p390) target = $region72
    $region71: #{eeg_cnn_forward.1} parent=5 // pred_region
      %s394 = ssub.s32 %s19, 1
      %s395 = smul.u32 8, %s24
      %p396 = scmp.lt.s32.totalorder %s395, 15
      %s397 = scalar_select %p396, %s395, 15
      %s398 = smul.addr %s397, 8
      %s399 = smul.addr %s398, 4
      %s400 = scalar_lea.vmem %s0, %s399
      %p401 = pneg %p45
      %p402 = pneg %p42
      %p403 = pneg %p66
      %p404 = pneg %p63
      %p405 = pneg %p87
      %p406 = pneg %p84
      %p407 = pneg %p108
      %p408 = pneg %p105
      %p409 = pneg %p129
      %p410 = pneg %p126
      %p411 = pneg %p150
      %p412 = pneg %p147
      %p413 = pneg %p171
      %p414 = pneg %p168
      %p415 = pneg %p192
      %p416 = pneg %p189
      %p417 = pneg %p213
      %p418 = pneg %p210
      %p419 = pneg %p234
      %p420 = pneg %p231
      %p421 = pneg %p255
      %p422 = pneg %p252
      %p423 = pneg %p276
      %p424 = pneg %p273
      %p425 = pneg %p297
      %p426 = pneg %p294
      %p427 = pneg %p323
      %p428 = pneg %p320
      %p429 = scmp.lt.s32.totalorder %s24, 1
      %s430 = scalar_select %p429, %s24, 1
      %s431 = smul.addr %s430, 8
      %s432 = scalar_lea.vmem %s13, %s431
      %s433 = smul.u32 8, %s24
      %p434 = scmp.lt.s32.totalorder %s433, 15
      %s435 = scalar_select %p434, %s433, 15
      %s436 = smul.addr %s435, 8
      %s437 = smul.addr %s436, 4
      %s438 = scalar_lea.vmem %s0, %s437
      %s439 = smul.u32 8, %s24
      %p440 = scmp.lt.s32.totalorder %s24, 1
      %s441 = scalar_select %p440, %s24, 1
      %s442 = smul.addr %s441, 8
      %s443 = scalar_lea.vmem %s13, %s442
      %v445 = vld [vmem:[%s438] sm:$0xf]
      %v446 = vld [vmem:[%s438 + $0x4] sm:$0xf]
      %v447 = vld [vmem:[%s438 + $0x8] sm:$0xf]
      %v448 = vld [vmem:[%s438 + $0xc] sm:$0xf]
      %v449 = vld [vmem:[%s438 + $0x10] sm:$0xf]
      %v450 = vld [vmem:[%s438 + $0x14] sm:$0xf]
      %v451 = vld [vmem:[%s438 + $0x18] sm:$0xf]
      %v452 = vld [vmem:[%s438 + $0x1c] sm:$0xf]
      %v453 = vld [vmem:[%s438 + $0x20] sm:$0xf]
      %v454 = vld [vmem:[%s438 + $0x24] sm:$0xf]
      %v455 = vld [vmem:[%s438 + $0x28] sm:$0xf]
      %v456 = vld [vmem:[%s438 + $0x2c] sm:$0xf]
      %v457 = vld [vmem:[%s438 + $0x30] sm:$0xf]
      %v458 = vld [vmem:[%s438 + $0x34] sm:$0xf]
      %v459 = vld [vmem:[%s438 + $0x38] sm:$0xf]
      %v460 = vld [vmem:[%s438 + $0x3c] sm:$0xf]
      %v461 = vld [vmem:[%s438 + $0x40] sm:$0xf]
      %v462 = vld [vmem:[%s438 + $0x44] sm:$0xf]
      %v463 = vld [vmem:[%s438 + $0x48] sm:$0xf]
      %v464 = vld [vmem:[%s438 + $0x4c] sm:$0xf]
      %v465 = vld [vmem:[%s438 + $0x50] sm:$0xf]
      %v466 = vld [vmem:[%s438 + $0x54] sm:$0xf]
      %v467 = vld [vmem:[%s438 + $0x58] sm:$0xf]
      %v468 = vld [vmem:[%s438 + $0x5c] sm:$0xf]
      %v469 = vld [vmem:[%s438 + $0x60] sm:$0xf]
      %v470 = vld [vmem:[%s438 + $0x64] sm:$0xf]
      %v471 = vld [vmem:[%s438 + $0x68] sm:$0xf]
      %v472 = vld [vmem:[%s438 + $0x6c] sm:$0xf]
      %v473 = vld [vmem:[%s438 + $0x70] sm:$0xf]
      %v474 = vld [vmem:[%s438 + $0x74] sm:$0xf]
      %v475 = vld [vmem:[%s438 + $0x78] sm:$0xf]
      %v476 = vld [vmem:[%s438 + $0x7c] sm:$0xf]
      %v477 = vld [vmem:[%s438 + $0x80] sm:$0xf]
      %v478 = vld [vmem:[%s438 + $0x84] sm:$0xf]
      %v479 = vld [vmem:[%s438 + $0x88] sm:$0xf]
      %v480 = vld [vmem:[%s438 + $0x8c] sm:$0xf]
      %v481 = vld [vmem:[%s438 + $0x90] sm:$0xf]
      %v482 = vld [vmem:[%s438 + $0x94] sm:$0xf]
      %v483 = vld [vmem:[%s438 + $0x98] sm:$0xf]
      %v484 = vld [vmem:[%s438 + $0x9c] sm:$0xf]
      %v485 = vld [vmem:[%s438 + $0xa0] sm:$0xf]
      %v486 = vld [vmem:[%s438 + $0xa4] sm:$0xf]
      %v487 = vld [vmem:[%s438 + $0xa8] sm:$0xf]
      %v488 = vld [vmem:[%s438 + $0xac] sm:$0xf]
      %v489 = vld [vmem:[%s438 + $0xb0] sm:$0xf]
      %v490 = vld [vmem:[%s438 + $0xb4] sm:$0xf]
      %v491 = vld [vmem:[%s438 + $0xb8] sm:$0xf]
      %v492 = vld [vmem:[%s438 + $0xbc] sm:$0xf]
      %v493 = vld [vmem:[%s438 + $0xc0] sm:$0xf]
      %v494 = vld [vmem:[%s438 + $0xc4] sm:$0xf]
      %v495 = vld [vmem:[%s438 + $0xc8] sm:$0xf]
      %v496 = vld [vmem:[%s438 + $0xcc] sm:$0xf]
      %v497 = vld [vmem:[%s438 + $0xd0] sm:$0xf]
      %v498 = vld [vmem:[%s438 + $0xd4] sm:$0xf]
      %v499 = vld [vmem:[%s438 + $0xd8] sm:$0xf]
      %v500 = vld [vmem:[%s438 + $0xdc] sm:$0xf]
      %v501 = vld [vmem:[%s438 + $0xe0] sm:$0xf]
      %v502 = vld [vmem:[%s438 + $0xe4] sm:$0xf]
      %v503 = vld [vmem:[%s438 + $0xe8] sm:$0xf]
      %v504 = vld [vmem:[%s438 + $0xec] sm:$0xf]
      %v505 = vld [vmem:[%s438 + $0xf0] sm:$0xf]
      %v506 = vld [vmem:[%s438 + $0xf4] sm:$0xf]
      %v507 = vld [vmem:[%s438 + $0xf8] sm:$0xf]
      %v508 = vld [vmem:[%s438 + $0xfc] sm:$0xf]
      %v509 = vld [vmem:[%s1] sm:$0xf]
      %v510 = vld [vmem:[%s1 + $0x4] sm:$0xf]
      %v511 = vld [vmem:[%s1 + $0x8] sm:$0xf]
      %v512 = vld [vmem:[%s1 + $0xc] sm:$0xf]
      %v513 = vld [vmem:[%s1 + $0x10] sm:$0xf]
      %v514 = vld [vmem:[%s1 + $0x14] sm:$0xf]
      %v515 = vld [vmem:[%s1 + $0x18] sm:$0xf]
      %v516 = vld [vmem:[%s1 + $0x1c] sm:$0xf]
      %v517 = vld [vmem:[%s1 + $0x20] sm:$0xf]
      %v518 = vld [vmem:[%s1 + $0x24] sm:$0xf]
      %v519 = vld [vmem:[%s1 + $0x28] sm:$0xf]
      %v520 = vld [vmem:[%s1 + $0x2c] sm:$0xf]
      %v521 = vld [vmem:[%s1 + $0x30] sm:$0xf]
      %v522 = vld [vmem:[%s1 + $0x34] sm:$0xf]
      %v587 = vunpack.c.l.b16 %v445
      %v588 = vunpack.c.l.b16 %v446
      %v589 = vunpack.c.l.b16 %v447
      %v590 = vunpack.c.l.b16 %v448
      %v591 = vunpack.c.l.b16 %v449
      %v592 = vunpack.c.l.b16 %v450
      %v593 = vunpack.c.l.b16 %v451
      %v594 = vunpack.c.l.b16 %v452
      %v595 = vunpack.c.l.b16 %v453
      %v596 = vunpack.c.l.b16 %v454
      %v597 = vunpack.c.l.b16 %v455
      %v598 = vunpack.c.l.b16 %v456
      %v599 = vunpack.c.l.b16 %v457
      %v600 = vunpack.c.l.b16 %v458
      %v601 = vunpack.c.l.b16 %v459
      %v602 = vunpack.c.l.b16 %v460
      %v603 = vunpack.c.l.b16 %v461
      %v604 = vunpack.c.l.b16 %v462
      %v605 = vunpack.c.l.b16 %v463
      %v606 = vunpack.c.l.b16 %v464
      %v607 = vunpack.c.l.b16 %v465
      %v608 = vunpack.c.l.b16 %v466
      %v609 = vunpack.c.l.b16 %v467
      %v610 = vunpack.c.l.b16 %v468
      %v611 = vunpack.c.l.b16 %v469
      %v612 = vunpack.c.l.b16 %v470
      %v613 = vunpack.c.l.b16 %v471
      %v614 = vunpack.c.l.b16 %v472
      %v615 = vunpack.c.l.b16 %v473
      %v616 = vunpack.c.l.b16 %v474
      %v617 = vunpack.c.l.b16 %v475
      %v618 = vunpack.c.l.b16 %v476
      %v619 = vunpack.c.l.b16 %v477
      %v620 = vunpack.c.l.b16 %v478
      %v621 = vunpack.c.l.b16 %v479
      %v622 = vunpack.c.l.b16 %v480
      %v623 = vunpack.c.l.b16 %v481
      %v624 = vunpack.c.l.b16 %v482
      %v625 = vunpack.c.l.b16 %v483
      %v626 = vunpack.c.l.b16 %v484
      %v627 = vunpack.c.l.b16 %v485
      %v628 = vunpack.c.l.b16 %v486
      %v629 = vunpack.c.l.b16 %v487
      %v630 = vunpack.c.l.b16 %v488
      %v631 = vunpack.c.l.b16 %v489
      %v632 = vunpack.c.l.b16 %v490
      %v633 = vunpack.c.l.b16 %v491
      %v634 = vunpack.c.l.b16 %v492
      %v635 = vunpack.c.l.b16 %v493
      %v636 = vunpack.c.l.b16 %v494
      %v637 = vunpack.c.l.b16 %v495
      %v638 = vunpack.c.l.b16 %v496
      %v639 = vunpack.c.l.b16 %v497
      %v640 = vunpack.c.l.b16 %v498
      %v641 = vunpack.c.l.b16 %v499
      %v642 = vunpack.c.l.b16 %v500
      %v643 = vunpack.c.l.b16 %v501
      %v644 = vunpack.c.l.b16 %v502
      %v645 = vunpack.c.l.b16 %v503
      %v646 = vunpack.c.l.b16 %v504
      %v647 = vunpack.c.l.b16 %v505
      %v648 = vunpack.c.l.b16 %v506
      %v649 = vunpack.c.l.b16 %v507
      %v650 = vunpack.c.l.b16 %v508
      %v651 = vpack.c.b16 %v588, %v587
      %v652 = vpack.c.b16 %v590, %v589
      %v653 = vpack.c.b16 %v592, %v591
      %v654 = vpack.c.b16 %v594, %v593
      %v655 = vpack.c.b16 %v596, %v595
      %v656 = vpack.c.b16 %v598, %v597
      %v657 = vpack.c.b16 %v600, %v599
      %v658 = vpack.c.b16 %v602, %v601
      %v659 = vpack.c.b16 %v604, %v603
      %v660 = vpack.c.b16 %v606, %v605
      %v661 = vpack.c.b16 %v608, %v607
      %v662 = vpack.c.b16 %v610, %v609
      %v663 = vpack.c.b16 %v612, %v611
      %v664 = vpack.c.b16 %v614, %v613
      %v665 = vpack.c.b16 %v616, %v615
      %v666 = vpack.c.b16 %v618, %v617
      %v667 = vpack.c.b16 %v620, %v619
      %v668 = vpack.c.b16 %v622, %v621
      %v669 = vpack.c.b16 %v624, %v623
      %v670 = vpack.c.b16 %v626, %v625
      %v671 = vpack.c.b16 %v628, %v627
      %v672 = vpack.c.b16 %v630, %v629
      %v673 = vpack.c.b16 %v632, %v631
      %v674 = vpack.c.b16 %v634, %v633
      %v675 = vpack.c.b16 %v636, %v635
      %v676 = vpack.c.b16 %v638, %v637
      %v677 = vpack.c.b16 %v640, %v639
      %v678 = vpack.c.b16 %v642, %v641
      %v679 = vpack.c.b16 %v644, %v643
      %v680 = vpack.c.b16 %v646, %v645
      %v681 = vpack.c.b16 %v648, %v647
      %v682 = vpack.c.b16 %v650, %v649
      %v697 = vunpack.c.l.b16 %v509
      %v698 = vunpack.c.l.b16 %v510
      %v699 = vunpack.c.l.b16 %v511
      %v700 = vunpack.c.l.b16 %v512
      %v701 = vunpack.c.l.b16 %v513
      %v702 = vunpack.c.l.b16 %v514
      %v703 = vunpack.c.l.b16 %v515
      %v704 = vunpack.c.l.b16 %v516
      %v705 = vunpack.c.l.b16 %v517
      %v706 = vunpack.c.l.b16 %v518
      %v707 = vunpack.c.l.b16 %v519
      %v708 = vunpack.c.l.b16 %v520
      %v709 = vunpack.c.l.b16 %v521
      %v710 = vunpack.c.l.b16 %v522
      %v711 = vpack.c.b16 %v698, %v697
      %v712 = vpack.c.b16 %v700, %v699
      %v713 = vpack.c.b16 %v702, %v701
      %v714 = vpack.c.b16 %v704, %v703
      %v715 = vpack.c.b16 %v706, %v705
      %v716 = vpack.c.b16 %v708, %v707
      %v717 = vpack.c.b16 %v710, %v709
      %vm725 = vcmask 916480
      %v727 = vsel %vm725, %v651, 0
      %v730 = vsel %vm725, %v652, 0
      %v733 = vsel %vm725, %v653, 0
      %v736 = vsel %vm725, %v654, 0
      %v739 = vsel %vm725, %v655, 0
      %v742 = vsel %vm725, %v656, 0
      %v745 = vsel %vm725, %v657, 0
      %v748 = vsel %vm725, %v658, 0
      %v751 = vsel %vm725, %v659, 0
      %v754 = vsel %vm725, %v660, 0
      %v757 = vsel %vm725, %v661, 0
      %v760 = vsel %vm725, %v662, 0
      %v763 = vsel %vm725, %v663, 0
      %v766 = vsel %vm725, %v664, 0
      %v769 = vsel %vm725, %v665, 0
      %v772 = vsel %vm725, %v666, 0
      %v775 = vsel %vm725, %v667, 0
      %v778 = vsel %vm725, %v668, 0
      %v781 = vsel %vm725, %v669, 0
      %v784 = vsel %vm725, %v670, 0
      %v787 = vsel %vm725, %v671, 0
      %v790 = vsel %vm725, %v672, 0
      %v793 = vsel %vm725, %v673, 0
      %v796 = vsel %vm725, %v674, 0
      %v799 = vsel %vm725, %v675, 0
      %v802 = vsel %vm725, %v676, 0
      %v805 = vsel %vm725, %v677, 0
      %v808 = vsel %vm725, %v678, 0
      %v811 = vsel %vm725, %v679, 0
      %v814 = vsel %vm725, %v680, 0
      %v817 = vsel %vm725, %v681, 0
      %v820 = vsel %vm725, %v682, 0
      %822 = vmatprep.subr.bf16.mxu0 0
      %823 = vmatpush1.bf16.msra.mxu0 0
      %824 = vmatprep.subr.bf16.mxu0 0
      %825 = vmatpush1.bf16.msra.mxu0 %v717
      %826 = vmatprep.subr.bf16.mxu0 0
      %827 = vmatpush1.bf16.msra.mxu0 %v716
      %828 = vmatprep.subr.bf16.mxu0 0
      %829 = vmatpush1.bf16.msra.mxu0 %v715
      %830 = vmatprep.subr.bf16.mxu0 0
      %831 = vmatpush1.bf16.msra.mxu0 %v714
      %832 = vmatprep.subr.bf16.mxu0 0
      %833 = vmatpush1.bf16.msra.mxu0 %v713
      %834 = vmatprep.subr.bf16.mxu0 0
      %835 = vmatpush1.bf16.msra.mxu0 %v712
      %836 = vmatprep.subr.bf16.mxu0 0
      %837 = vmatpush1.bf16.msra.mxu0 %v711
      %838 = vmatprep.subr.bf16.mxu0 0
      %839 = vmatpush2.bf16.msra.mxu0 0
      %840 = vmatprep.subr.bf16.mxu0 0
      %841 = vmatpush2.bf16.msra.mxu0 0
      %842 = vmatprep.subr.bf16.mxu0 0
      %843 = vmatpush2.bf16.msra.mxu0 0
      %844 = vmatprep.subr.bf16.mxu0 0
      %845 = vmatpush2.bf16.msra.mxu0 0
      %846 = vmatprep.subr.bf16.mxu0 0
      %847 = vmatpush2.bf16.msra.mxu0 0
      %848 = vmatprep.subr.bf16.mxu0 0
      %849 = vmatpush2.bf16.msra.mxu0 0
      %850 = vmatprep.subr.bf16.mxu0 0
      %851 = vmatpush2.bf16.msra.mxu0 0
      %852 = vmatprep.subr.bf16.mxu0 0
      %853 = vmatpush2.bf16.msra.mxu0 0
      %854 = vmatprep.mubr.bf16.mxu0 0
      %855 = vmatmul.mubr.bf16.gmra.mxu0 %v727
      %v856 = vpop.f32.mrf.mxu0
      %v857 = vadd.f32 0.0, %v856
      %v858 = vpop.f32.mrf.mxu0
      %v859 = vpop.f32.mrf.mxu0
      %v860 = vadd.f32 0.0, %v859
      %v861 = vpop.f32.mrf.mxu0
      %862 = vmatprep.mubr.bf16.mxu0 0
      %863 = vmatmul.mubr.bf16.gmra.mxu0 %v730
      %v864 = vpop.f32.mrf.mxu0
      %v865 = vadd.f32 0.0, %v864
      %v866 = vpop.f32.mrf.mxu0
      %v867 = vpop.f32.mrf.mxu0
      %v868 = vadd.f32 0.0, %v867
      %v869 = vpop.f32.mrf.mxu0
      %870 = vmatprep.mubr.bf16.mxu0 0
      %871 = vmatmul.mubr.bf16.gmra.mxu0 %v733
      %v872 = vpop.f32.mrf.mxu0
      %v873 = vadd.f32 0.0, %v872
      %v874 = vpop.f32.mrf.mxu0
      %v875 = vpop.f32.mrf.mxu0
      %v876 = vadd.f32 0.0, %v875
      %v877 = vpop.f32.mrf.mxu0
      %878 = vmatprep.mubr.bf16.mxu0 0
      %879 = vmatmul.mubr.bf16.gmra.mxu0 %v736
      %v880 = vpop.f32.mrf.mxu0
      %v881 = vadd.f32 0.0, %v880
      %v882 = vpop.f32.mrf.mxu0
      %v883 = vpop.f32.mrf.mxu0
      %v884 = vadd.f32 0.0, %v883
      %v885 = vpop.f32.mrf.mxu0
      %886 = vmatprep.mubr.bf16.mxu0 0
      %887 = vmatmul.mubr.bf16.gmra.mxu0 %v739
      %v888 = vpop.f32.mrf.mxu0
      %v889 = vadd.f32 0.0, %v888
      %v890 = vpop.f32.mrf.mxu0
      %v891 = vpop.f32.mrf.mxu0
      %v892 = vadd.f32 0.0, %v891
      %v893 = vpop.f32.mrf.mxu0
      %894 = vmatprep.mubr.bf16.mxu0 0
      %895 = vmatmul.mubr.bf16.gmra.mxu0 %v742
      %v896 = vpop.f32.mrf.mxu0
      %v897 = vadd.f32 0.0, %v896
      %v898 = vpop.f32.mrf.mxu0
      %v899 = vpop.f32.mrf.mxu0
      %v900 = vadd.f32 0.0, %v899
      %v901 = vpop.f32.mrf.mxu0
      %902 = vmatprep.mubr.bf16.mxu0 0
      %903 = vmatmul.mubr.bf16.gmra.mxu0 %v745
      %v904 = vpop.f32.mrf.mxu0
      %v905 = vadd.f32 0.0, %v904
      %v906 = vpop.f32.mrf.mxu0
      %v907 = vpop.f32.mrf.mxu0
      %v908 = vadd.f32 0.0, %v907
      %v909 = vpop.f32.mrf.mxu0
      %910 = vmatprep.mubr.bf16.mxu0 0
      %911 = vmatmul.mubr.bf16.gmra.mxu0 %v748
      %v912 = vpop.f32.mrf.mxu0
      %v913 = vadd.f32 0.0, %v912
      %v914 = vpop.f32.mrf.mxu0
      %v915 = vpop.f32.mrf.mxu0
      %v916 = vadd.f32 0.0, %v915
      %v917 = vpop.f32.mrf.mxu0
      %918 = vmatprep.mubr.bf16.mxu0 0
      %919 = vmatmul.mubr.bf16.gmra.mxu0 %v751
      %v920 = vpop.f32.mrf.mxu0
      %v921 = vadd.f32 0.0, %v920
      %v922 = vpop.f32.mrf.mxu0
      %v923 = vpop.f32.mrf.mxu0
      %v924 = vadd.f32 0.0, %v923
      %v925 = vpop.f32.mrf.mxu0
      %926 = vmatprep.mubr.bf16.mxu0 0
      %927 = vmatmul.mubr.bf16.gmra.mxu0 %v754
      %v928 = vpop.f32.mrf.mxu0
      %v929 = vadd.f32 0.0, %v928
      %v930 = vpop.f32.mrf.mxu0
      %v931 = vpop.f32.mrf.mxu0
      %v932 = vadd.f32 0.0, %v931
      %v933 = vpop.f32.mrf.mxu0
      %934 = vmatprep.mubr.bf16.mxu0 0
      %935 = vmatmul.mubr.bf16.gmra.mxu0 %v757
      %v936 = vpop.f32.mrf.mxu0
      %v937 = vadd.f32 0.0, %v936
      %v938 = vpop.f32.mrf.mxu0
      %v939 = vpop.f32.mrf.mxu0
      %v940 = vadd.f32 0.0, %v939
      %v941 = vpop.f32.mrf.mxu0
      %942 = vmatprep.mubr.bf16.mxu0 0
      %943 = vmatmul.mubr.bf16.gmra.mxu0 %v760
      %v944 = vpop.f32.mrf.mxu0
      %v945 = vadd.f32 0.0, %v944
      %v946 = vpop.f32.mrf.mxu0
      %v947 = vpop.f32.mrf.mxu0
      %v948 = vadd.f32 0.0, %v947
      %v949 = vpop.f32.mrf.mxu0
      %950 = vmatprep.mubr.bf16.mxu0 0
      %951 = vmatmul.mubr.bf16.gmra.mxu0 %v763
      %v952 = vpop.f32.mrf.mxu0
      %v953 = vadd.f32 0.0, %v952
      %v954 = vpop.f32.mrf.mxu0
      %v955 = vpop.f32.mrf.mxu0
      %v956 = vadd.f32 0.0, %v955
      %v957 = vpop.f32.mrf.mxu0
      %958 = vmatprep.mubr.bf16.mxu0 0
      %959 = vmatmul.mubr.bf16.gmra.mxu0 %v766
      %v960 = vpop.f32.mrf.mxu0
      %v961 = vadd.f32 0.0, %v960
      %v962 = vpop.f32.mrf.mxu0
      %v963 = vpop.f32.mrf.mxu0
      %v964 = vadd.f32 0.0, %v963
      %v965 = vpop.f32.mrf.mxu0
      %966 = vmatprep.mubr.bf16.mxu0 0
      %967 = vmatmul.mubr.bf16.gmra.mxu0 %v769
      %v968 = vpop.f32.mrf.mxu0
      %v969 = vadd.f32 0.0, %v968
      %v970 = vpop.f32.mrf.mxu0
      %v971 = vpop.f32.mrf.mxu0
      %v972 = vadd.f32 0.0, %v971
      %v973 = vpop.f32.mrf.mxu0
      %974 = vmatprep.mubr.bf16.mxu0 0
      %975 = vmatmul.mubr.bf16.gmra.mxu0 %v772
      %v976 = vpop.f32.mrf.mxu0
      %v977 = vadd.f32 0.0, %v976
      %v978 = vpop.f32.mrf.mxu0
      %v979 = vpop.f32.mrf.mxu0
      %v980 = vadd.f32 0.0, %v979
      %v981 = vpop.f32.mrf.mxu0
      %982 = vmatprep.mubr.bf16.mxu0 0
      %983 = vmatmul.mubr.bf16.gmra.mxu0 %v775
      %v984 = vpop.f32.mrf.mxu0
      %v985 = vadd.f32 0.0, %v984
      %v986 = vpop.f32.mrf.mxu0
      %v987 = vpop.f32.mrf.mxu0
      %v988 = vadd.f32 0.0, %v987
      %v989 = vpop.f32.mrf.mxu0
      %990 = vmatprep.mubr.bf16.mxu0 0
      %991 = vmatmul.mubr.bf16.gmra.mxu0 %v778
      %v992 = vpop.f32.mrf.mxu0
      %v993 = vadd.f32 0.0, %v992
      %v994 = vpop.f32.mrf.mxu0
      %v995 = vpop.f32.mrf.mxu0
      %v996 = vadd.f32 0.0, %v995
      %v997 = vpop.f32.mrf.mxu0
      %998 = vmatprep.mubr.bf16.mxu0 0
      %999 = vmatmul.mubr.bf16.gmra.mxu0 %v781
      %v1000 = vpop.f32.mrf.mxu0
      %v1001 = vadd.f32 0.0, %v1000
      %v1002 = vpop.f32.mrf.mxu0
      %v1003 = vpop.f32.mrf.mxu0
      %v1004 = vadd.f32 0.0, %v1003
      %v1005 = vpop.f32.mrf.mxu0
      %1006 = vmatprep.mubr.bf16.mxu0 0
      %1007 = vmatmul.mubr.bf16.gmra.mxu0 %v784
      %v1008 = vpop.f32.mrf.mxu0
      %v1009 = vadd.f32 0.0, %v1008
      %v1010 = vpop.f32.mrf.mxu0
      %v1011 = vpop.f32.mrf.mxu0
      %v1012 = vadd.f32 0.0, %v1011
      %v1013 = vpop.f32.mrf.mxu0
      %1014 = vmatprep.mubr.bf16.mxu0 0
      %1015 = vmatmul.mubr.bf16.gmra.mxu0 %v787
      %v1016 = vpop.f32.mrf.mxu0
      %v1017 = vadd.f32 0.0, %v1016
      %v1018 = vpop.f32.mrf.mxu0
      %v1019 = vpop.f32.mrf.mxu0
      %v1020 = vadd.f32 0.0, %v1019
      %v1021 = vpop.f32.mrf.mxu0
      %1022 = vmatprep.mubr.bf16.mxu0 0
      %1023 = vmatmul.mubr.bf16.gmra.mxu0 %v790
      %v1024 = vpop.f32.mrf.mxu0
      %v1025 = vadd.f32 0.0, %v1024
      %v1026 = vpop.f32.mrf.mxu0
      %v1027 = vpop.f32.mrf.mxu0
      %v1028 = vadd.f32 0.0, %v1027
      %v1029 = vpop.f32.mrf.mxu0
      %1030 = vmatprep.mubr.bf16.mxu0 0
      %1031 = vmatmul.mubr.bf16.gmra.mxu0 %v793
      %v1032 = vpop.f32.mrf.mxu0
      %v1033 = vadd.f32 0.0, %v1032
      %v1034 = vpop.f32.mrf.mxu0
      %v1035 = vpop.f32.mrf.mxu0
      %v1036 = vadd.f32 0.0, %v1035
      %v1037 = vpop.f32.mrf.mxu0
      %1038 = vmatprep.mubr.bf16.mxu0 0
      %1039 = vmatmul.mubr.bf16.gmra.mxu0 %v796
      %v1040 = vpop.f32.mrf.mxu0
      %v1041 = vadd.f32 0.0, %v1040
      %v1042 = vpop.f32.mrf.mxu0
      %v1043 = vpop.f32.mrf.mxu0
      %v1044 = vadd.f32 0.0, %v1043
      %v1045 = vpop.f32.mrf.mxu0
      %1046 = vmatprep.mubr.bf16.mxu0 0
      %1047 = vmatmul.mubr.bf16.gmra.mxu0 %v799
      %v1048 = vpop.f32.mrf.mxu0
      %v1049 = vadd.f32 0.0, %v1048
      %v1050 = vpop.f32.mrf.mxu0
      %v1051 = vpop.f32.mrf.mxu0
      %v1052 = vadd.f32 0.0, %v1051
      %v1053 = vpop.f32.mrf.mxu0
      %1054 = vmatprep.mubr.bf16.mxu0 0
      %1055 = vmatmul.mubr.bf16.gmra.mxu0 %v802
      %v1056 = vpop.f32.mrf.mxu0
      %v1057 = vadd.f32 0.0, %v1056
      %v1058 = vpop.f32.mrf.mxu0
      %v1059 = vpop.f32.mrf.mxu0
      %v1060 = vadd.f32 0.0, %v1059
      %v1061 = vpop.f32.mrf.mxu0
      %1062 = vmatprep.mubr.bf16.mxu0 0
      %1063 = vmatmul.mubr.bf16.gmra.mxu0 %v805
      %v1064 = vpop.f32.mrf.mxu0
      %v1065 = vadd.f32 0.0, %v1064
      %v1066 = vpop.f32.mrf.mxu0
      %v1067 = vpop.f32.mrf.mxu0
      %v1068 = vadd.f32 0.0, %v1067
      %v1069 = vpop.f32.mrf.mxu0
      %1070 = vmatprep.mubr.bf16.mxu0 0
      %1071 = vmatmul.mubr.bf16.gmra.mxu0 %v808
      %v1072 = vpop.f32.mrf.mxu0
      %v1073 = vadd.f32 0.0, %v1072
      %v1074 = vpop.f32.mrf.mxu0
      %v1075 = vpop.f32.mrf.mxu0
      %v1076 = vadd.f32 0.0, %v1075
      %v1077 = vpop.f32.mrf.mxu0
      %1078 = vmatprep.mubr.bf16.mxu0 0
      %1079 = vmatmul.mubr.bf16.gmra.mxu0 %v811
      %v1080 = vpop.f32.mrf.mxu0
      %v1081 = vadd.f32 0.0, %v1080
      %v1082 = vpop.f32.mrf.mxu0
      %v1083 = vpop.f32.mrf.mxu0
      %v1084 = vadd.f32 0.0, %v1083
      %v1085 = vpop.f32.mrf.mxu0
      %1086 = vmatprep.mubr.bf16.mxu0 0
      %1087 = vmatmul.mubr.bf16.gmra.mxu0 %v814
      %v1088 = vpop.f32.mrf.mxu0
      %v1089 = vadd.f32 0.0, %v1088
      %v1090 = vpop.f32.mrf.mxu0
      %v1091 = vpop.f32.mrf.mxu0
      %v1092 = vadd.f32 0.0, %v1091
      %v1093 = vpop.f32.mrf.mxu0
      %1094 = vmatprep.mubr.bf16.mxu0 0
      %1095 = vmatmul.mubr.bf16.gmra.mxu0 %v817
      %v1096 = vpop.f32.mrf.mxu0
      %v1097 = vadd.f32 0.0, %v1096
      %v1098 = vpop.f32.mrf.mxu0
      %v1099 = vpop.f32.mrf.mxu0
      %v1100 = vadd.f32 0.0, %v1099
      %v1101 = vpop.f32.mrf.mxu0
      %1102 = vmatprep.mubr.bf16.mxu0 0
      %1103 = vmatmul.mubr.bf16.gmra.mxu0 %v820
      %v1104 = vpop.f32.mrf.mxu0
      %v1105 = vadd.f32 0.0, %v1104
      %v1106 = vpop.f32.mrf.mxu0
      %v1107 = vpop.f32.mrf.mxu0
      %v1108 = vadd.f32 0.0, %v1107
      %v1109 = vpop.f32.mrf.mxu0
      %1110 = vdwg.mxu0
      %v1111 = vld [vmem:[%s2] sm:$0x1]
      %v1113 = vlaneseq
      %v1114 = vshrl.u32 %v1113, 7
      %v1115 = vsub.s32 0, %v1114
      %v1116 = vrot.slane %v1111, %v1115
      %v1118 = vmul.f32 %v857, %v1116
      %v1119 = vmul.f32 %v860, %v1116
      %v1120 = vmul.f32 %v865, %v1116
      %v1121 = vmul.f32 %v868, %v1116
      %v1122 = vmul.f32 %v873, %v1116
      %v1123 = vmul.f32 %v876, %v1116
      %v1124 = vmul.f32 %v881, %v1116
      %v1125 = vmul.f32 %v884, %v1116
      %v1126 = vmul.f32 %v889, %v1116
      %v1127 = vmul.f32 %v892, %v1116
      %v1128 = vmul.f32 %v897, %v1116
      %v1129 = vmul.f32 %v900, %v1116
      %v1130 = vmul.f32 %v905, %v1116
      %v1131 = vmul.f32 %v908, %v1116
      %v1132 = vmul.f32 %v913, %v1116
      %v1133 = vmul.f32 %v916, %v1116
      %v1134 = vmul.f32 %v921, %v1116
      %v1135 = vmul.f32 %v924, %v1116
      %v1136 = vmul.f32 %v929, %v1116
      %v1137 = vmul.f32 %v932, %v1116
      %v1138 = vmul.f32 %v937, %v1116
      %v1139 = vmul.f32 %v940, %v1116
      %v1140 = vmul.f32 %v945, %v1116
      %v1141 = vmul.f32 %v948, %v1116
      %v1142 = vmul.f32 %v953, %v1116
      %v1143 = vmul.f32 %v956, %v1116
      %v1144 = vmul.f32 %v961, %v1116
      %v1145 = vmul.f32 %v964, %v1116
      %v1146 = vmul.f32 %v969, %v1116
      %v1147 = vmul.f32 %v972, %v1116
      %v1148 = vmul.f32 %v977, %v1116
      %v1149 = vmul.f32 %v980, %v1116
      %v1150 = vmul.f32 %v985, %v1116
      %v1151 = vmul.f32 %v988, %v1116
      %v1152 = vmul.f32 %v993, %v1116
      %v1153 = vmul.f32 %v996, %v1116
      %v1154 = vmul.f32 %v1001, %v1116
      %v1155 = vmul.f32 %v1004, %v1116
      %v1156 = vmul.f32 %v1009, %v1116
      %v1157 = vmul.f32 %v1012, %v1116
      %v1158 = vmul.f32 %v1017, %v1116
      %v1159 = vmul.f32 %v1020, %v1116
      %v1160 = vmul.f32 %v1025, %v1116
      %v1161 = vmul.f32 %v1028, %v1116
      %v1162 = vmul.f32 %v1033, %v1116
      %v1163 = vmul.f32 %v1036, %v1116
      %v1164 = vmul.f32 %v1041, %v1116
      %v1165 = vmul.f32 %v1044, %v1116
      %v1166 = vmul.f32 %v1049, %v1116
      %v1167 = vmul.f32 %v1052, %v1116
      %v1168 = vmul.f32 %v1057, %v1116
      %v1169 = vmul.f32 %v1060, %v1116
      %v1170 = vmul.f32 %v1065, %v1116
      %v1171 = vmul.f32 %v1068, %v1116
      %v1172 = vmul.f32 %v1073, %v1116
      %v1173 = vmul.f32 %v1076, %v1116
      %v1174 = vmul.f32 %v1081, %v1116
      %v1175 = vmul.f32 %v1084, %v1116
      %v1176 = vmul.f32 %v1089, %v1116
      %v1177 = vmul.f32 %v1092, %v1116
      %v1178 = vmul.f32 %v1097, %v1116
      %v1179 = vmul.f32 %v1100, %v1116
      %v1180 = vmul.f32 %v1105, %v1116
      %v1181 = vmul.f32 %v1108, %v1116
      %v1182 = vld [vmem:[%s3] sm:$0x1]
      %v1184 = vlaneseq
      %v1185 = vshrl.u32 %v1184, 7
      %v1186 = vsub.s32 0, %v1185
      %v1187 = vrot.slane %v1182, %v1186
      %v1189 = vadd.f32 %v1118, %v1187
      %v1190 = vadd.f32 %v1119, %v1187
      %v1191 = vadd.f32 %v1120, %v1187
      %v1192 = vadd.f32 %v1121, %v1187
      %v1193 = vadd.f32 %v1122, %v1187
      %v1194 = vadd.f32 %v1123, %v1187
      %v1195 = vadd.f32 %v1124, %v1187
      %v1196 = vadd.f32 %v1125, %v1187
      %v1197 = vadd.f32 %v1126, %v1187
      %v1198 = vadd.f32 %v1127, %v1187
      %v1199 = vadd.f32 %v1128, %v1187
      %v1200 = vadd.f32 %v1129, %v1187
      %v1201 = vadd.f32 %v1130, %v1187
      %v1202 = vadd.f32 %v1131, %v1187
      %v1203 = vadd.f32 %v1132, %v1187
      %v1204 = vadd.f32 %v1133, %v1187
      %v1205 = vadd.f32 %v1134, %v1187
      %v1206 = vadd.f32 %v1135, %v1187
      %v1207 = vadd.f32 %v1136, %v1187
      %v1208 = vadd.f32 %v1137, %v1187
      %v1209 = vadd.f32 %v1138, %v1187
      %v1210 = vadd.f32 %v1139, %v1187
      %v1211 = vadd.f32 %v1140, %v1187
      %v1212 = vadd.f32 %v1141, %v1187
      %v1213 = vadd.f32 %v1142, %v1187
      %v1214 = vadd.f32 %v1143, %v1187
      %v1215 = vadd.f32 %v1144, %v1187
      %v1216 = vadd.f32 %v1145, %v1187
      %v1217 = vadd.f32 %v1146, %v1187
      %v1218 = vadd.f32 %v1147, %v1187
      %v1219 = vadd.f32 %v1148, %v1187
      %v1220 = vadd.f32 %v1149, %v1187
      %v1221 = vadd.f32 %v1150, %v1187
      %v1222 = vadd.f32 %v1151, %v1187
      %v1223 = vadd.f32 %v1152, %v1187
      %v1224 = vadd.f32 %v1153, %v1187
      %v1225 = vadd.f32 %v1154, %v1187
      %v1226 = vadd.f32 %v1155, %v1187
      %v1227 = vadd.f32 %v1156, %v1187
      %v1228 = vadd.f32 %v1157, %v1187
      %v1229 = vadd.f32 %v1158, %v1187
      %v1230 = vadd.f32 %v1159, %v1187
      %v1231 = vadd.f32 %v1160, %v1187
      %v1232 = vadd.f32 %v1161, %v1187
      %v1233 = vadd.f32 %v1162, %v1187
      %v1234 = vadd.f32 %v1163, %v1187
      %v1235 = vadd.f32 %v1164, %v1187
      %v1236 = vadd.f32 %v1165, %v1187
      %v1237 = vadd.f32 %v1166, %v1187
      %v1238 = vadd.f32 %v1167, %v1187
      %v1239 = vadd.f32 %v1168, %v1187
      %v1240 = vadd.f32 %v1169, %v1187
      %v1241 = vadd.f32 %v1170, %v1187
      %v1242 = vadd.f32 %v1171, %v1187
      %v1243 = vadd.f32 %v1172, %v1187
      %v1244 = vadd.f32 %v1173, %v1187
      %v1245 = vadd.f32 %v1174, %v1187
      %v1246 = vadd.f32 %v1175, %v1187
      %v1247 = vadd.f32 %v1176, %v1187
      %v1248 = vadd.f32 %v1177, %v1187
      %v1249 = vadd.f32 %v1178, %v1187
      %v1250 = vadd.f32 %v1179, %v1187
      %v1251 = vadd.f32 %v1180, %v1187
      %v1252 = vadd.f32 %v1181, %v1187
      %v1253 = vmax.f32 %v1189, 0.0
      %v1254 = vmax.f32 %v1190, 0.0
      %v1255 = vmax.f32 %v1191, 0.0
      %v1256 = vmax.f32 %v1192, 0.0
      %v1257 = vmax.f32 %v1193, 0.0
      %v1258 = vmax.f32 %v1194, 0.0
      %v1259 = vmax.f32 %v1195, 0.0
      %v1260 = vmax.f32 %v1196, 0.0
      %v1261 = vmax.f32 %v1197, 0.0
      %v1262 = vmax.f32 %v1198, 0.0
      %v1263 = vmax.f32 %v1199, 0.0
      %v1264 = vmax.f32 %v1200, 0.0
      %v1265 = vmax.f32 %v1201, 0.0
      %v1266 = vmax.f32 %v1202, 0.0
      %v1267 = vmax.f32 %v1203, 0.0
      %v1268 = vmax.f32 %v1204, 0.0
      %v1269 = vmax.f32 %v1205, 0.0
      %v1270 = vmax.f32 %v1206, 0.0
      %v1271 = vmax.f32 %v1207, 0.0
      %v1272 = vmax.f32 %v1208, 0.0
      %v1273 = vmax.f32 %v1209, 0.0
      %v1274 = vmax.f32 %v1210, 0.0
      %v1275 = vmax.f32 %v1211, 0.0
      %v1276 = vmax.f32 %v1212, 0.0
      %v1277 = vmax.f32 %v1213, 0.0
      %v1278 = vmax.f32 %v1214, 0.0
      %v1279 = vmax.f32 %v1215, 0.0
      %v1280 = vmax.f32 %v1216, 0.0
      %v1281 = vmax.f32 %v1217, 0.0
      %v1282 = vmax.f32 %v1218, 0.0
      %v1283 = vmax.f32 %v1219, 0.0
      %v1284 = vmax.f32 %v1220, 0.0
      %v1285 = vmax.f32 %v1221, 0.0
      %v1286 = vmax.f32 %v1222, 0.0
      %v1287 = vmax.f32 %v1223, 0.0
      %v1288 = vmax.f32 %v1224, 0.0
      %v1289 = vmax.f32 %v1225, 0.0
      %v1290 = vmax.f32 %v1226, 0.0
      %v1291 = vmax.f32 %v1227, 0.0
      %v1292 = vmax.f32 %v1228, 0.0
      %v1293 = vmax.f32 %v1229, 0.0
      %v1294 = vmax.f32 %v1230, 0.0
      %v1295 = vmax.f32 %v1231, 0.0
      %v1296 = vmax.f32 %v1232, 0.0
      %v1297 = vmax.f32 %v1233, 0.0
      %v1298 = vmax.f32 %v1234, 0.0
      %v1299 = vmax.f32 %v1235, 0.0
      %v1300 = vmax.f32 %v1236, 0.0
      %v1301 = vmax.f32 %v1237, 0.0
      %v1302 = vmax.f32 %v1238, 0.0
      %v1303 = vmax.f32 %v1239, 0.0
      %v1304 = vmax.f32 %v1240, 0.0
      %v1305 = vmax.f32 %v1241, 0.0
      %v1306 = vmax.f32 %v1242, 0.0
      %v1307 = vmax.f32 %v1243, 0.0
      %v1308 = vmax.f32 %v1244, 0.0
      %v1309 = vmax.f32 %v1245, 0.0
      %v1310 = vmax.f32 %v1246, 0.0
      %v1311 = vmax.f32 %v1247, 0.0
      %v1312 = vmax.f32 %v1248, 0.0
      %v1313 = vmax.f32 %v1249, 0.0
      %v1314 = vmax.f32 %v1250, 0.0
      %v1315 = vmax.f32 %v1251, 0.0
      %v1316 = vmax.f32 %v1252, 0.0
      %v1381 = vcombine.high %v1253, %v1253
      %v1383 = vunpack.c.l.s4 1983009808
      %v1384 = vunpack.c.0.s8 %v1383
      %v1385 = vlaneseq
      %v1386 = vshrl.u32 %v1385, 7
      %v1387 = vsub.s32 %v1384, %v1386
      %v1388 = vrot.slane %v1253, %v1387
      %v1390 = vunpack.c.l.s4 1983009808
      %v1391 = vunpack.c.0.s8 %v1390
      %v1392 = vlaneseq
      %v1393 = vshrl.u32 %v1392, 7
      %v1394 = vsub.s32 %v1391, %v1393
      %v1395 = vrot.slane %v1381, %v1394
      %v1396 = vcombine.high %v1388, %v1388
      %v1397 = vcombine.high %v1395, %v1395
      %v1398 = vcombine.high %v1254, %v1254
      %v1400 = vunpack.c.l.s4 1983009808
      %v1401 = vunpack.c.0.s8 %v1400
      %v1402 = vlaneseq
      %v1403 = vshrl.u32 %v1402, 7
      %v1404 = vsub.s32 %v1401, %v1403
      %v1405 = vrot.slane %v1254, %v1404
      %v1407 = vunpack.c.l.s4 1983009808
      %v1408 = vunpack.c.0.s8 %v1407
      %v1409 = vlaneseq
      %v1410 = vshrl.u32 %v1409, 7
      %v1411 = vsub.s32 %v1408, %v1410
      %v1412 = vrot.slane %v1398, %v1411
      %v1413 = vcombine.high %v1405, %v1405
      %v1414 = vcombine.high %v1412, %v1412
      %v1415 = vcombine.high %v1255, %v1255
      %v1417 = vunpack.c.l.s4 1983009808
      %v1418 = vunpack.c.0.s8 %v1417
      %v1419 = vlaneseq
      %v1420 = vshrl.u32 %v1419, 7
      %v1421 = vsub.s32 %v1418, %v1420
      %v1422 = vrot.slane %v1255, %v1421
      %v1424 = vunpack.c.l.s4 1983009808
      %v1425 = vunpack.c.0.s8 %v1424
      %v1426 = vlaneseq
      %v1427 = vshrl.u32 %v1426, 7
      %v1428 = vsub.s32 %v1425, %v1427
      %v1429 = vrot.slane %v1415, %v1428
      %v1430 = vcombine.high %v1422, %v1422
      %v1431 = vcombine.high %v1429, %v1429
      %v1432 = vcombine.high %v1256, %v1256
      %v1434 = vunpack.c.l.s4 1983009808
      %v1435 = vunpack.c.0.s8 %v1434
      %v1436 = vlaneseq
      %v1437 = vshrl.u32 %v1436, 7
      %v1438 = vsub.s32 %v1435, %v1437
      %v1439 = vrot.slane %v1256, %v1438
      %v1441 = vunpack.c.l.s4 1983009808
      %v1442 = vunpack.c.0.s8 %v1441
      %v1443 = vlaneseq
      %v1444 = vshrl.u32 %v1443, 7
      %v1445 = vsub.s32 %v1442, %v1444
      %v1446 = vrot.slane %v1432, %v1445
      %v1447 = vcombine.high %v1439, %v1439
      %v1448 = vcombine.high %v1446, %v1446
      %v1449 = vcombine.high %v1257, %v1257
      %v1451 = vunpack.c.l.s4 1983009808
      %v1452 = vunpack.c.0.s8 %v1451
      %v1453 = vlaneseq
      %v1454 = vshrl.u32 %v1453, 7
      %v1455 = vsub.s32 %v1452, %v1454
      %v1456 = vrot.slane %v1257, %v1455
      %v1458 = vunpack.c.l.s4 1983009808
      %v1459 = vunpack.c.0.s8 %v1458
      %v1460 = vlaneseq
      %v1461 = vshrl.u32 %v1460, 7
      %v1462 = vsub.s32 %v1459, %v1461
      %v1463 = vrot.slane %v1449, %v1462
      %v1464 = vcombine.high %v1456, %v1456
      %v1465 = vcombine.high %v1463, %v1463
      %v1466 = vcombine.high %v1258, %v1258
      %v1468 = vunpack.c.l.s4 1983009808
      %v1469 = vunpack.c.0.s8 %v1468
      %v1470 = vlaneseq
      %v1471 = vshrl.u32 %v1470, 7
      %v1472 = vsub.s32 %v1469, %v1471
      %v1473 = vrot.slane %v1258, %v1472
      %v1475 = vunpack.c.l.s4 1983009808
      %v1476 = vunpack.c.0.s8 %v1475
      %v1477 = vlaneseq
      %v1478 = vshrl.u32 %v1477, 7
      %v1479 = vsub.s32 %v1476, %v1478
      %v1480 = vrot.slane %v1466, %v1479
      %v1481 = vcombine.high %v1473, %v1473
      %v1482 = vcombine.high %v1480, %v1480
      %v1483 = vcombine.high %v1259, %v1259
      %v1485 = vunpack.c.l.s4 1983009808
      %v1486 = vunpack.c.0.s8 %v1485
      %v1487 = vlaneseq
      %v1488 = vshrl.u32 %v1487, 7
      %v1489 = vsub.s32 %v1486, %v1488
      %v1490 = vrot.slane %v1259, %v1489
      %v1492 = vunpack.c.l.s4 1983009808
      %v1493 = vunpack.c.0.s8 %v1492
      %v1494 = vlaneseq
      %v1495 = vshrl.u32 %v1494, 7
      %v1496 = vsub.s32 %v1493, %v1495
      %v1497 = vrot.slane %v1483, %v1496
      %v1498 = vcombine.high %v1490, %v1490
      %v1499 = vcombine.high %v1497, %v1497
      %v1501 = vunpack.c.l.s4 1983009808
      %v1502 = vunpack.c.0.s8 %v1501
      %v1503 = vlaneseq
      %v1504 = vshrl.u32 %v1503, 7
      %v1505 = vsub.s32 %v1502, %v1504
      %v1506 = vrot.slane %v1260, %v1505
      %v1507 = vcombine.high %v1506, %v1506
      %v1508 = vcombine.high %v1261, %v1261
      %v1510 = vunpack.c.l.s4 1983009808
      %v1511 = vunpack.c.0.s8 %v1510
      %v1512 = vlaneseq
      %v1513 = vshrl.u32 %v1512, 7
      %v1514 = vsub.s32 %v1511, %v1513
      %v1515 = vrot.slane %v1261, %v1514
      %v1517 = vunpack.c.l.s4 1983009808
      %v1518 = vunpack.c.0.s8 %v1517
      %v1519 = vlaneseq
      %v1520 = vshrl.u32 %v1519, 7
      %v1521 = vsub.s32 %v1518, %v1520
      %v1522 = vrot.slane %v1508, %v1521
      %v1523 = vcombine.high %v1515, %v1515
      %v1524 = vcombine.high %v1522, %v1522
      %v1525 = vcombine.high %v1262, %v1262
      %v1527 = vunpack.c.l.s4 1983009808
      %v1528 = vunpack.c.0.s8 %v1527
      %v1529 = vlaneseq
      %v1530 = vshrl.u32 %v1529, 7
      %v1531 = vsub.s32 %v1528, %v1530
      %v1532 = vrot.slane %v1262, %v1531
      %v1534 = vunpack.c.l.s4 1983009808
      %v1535 = vunpack.c.0.s8 %v1534
      %v1536 = vlaneseq
      %v1537 = vshrl.u32 %v1536, 7
      %v1538 = vsub.s32 %v1535, %v1537
      %v1539 = vrot.slane %v1525, %v1538
      %v1540 = vcombine.high %v1532, %v1532
      %v1541 = vcombine.high %v1539, %v1539
      %v1542 = vcombine.high %v1263, %v1263
      %v1544 = vunpack.c.l.s4 1983009808
      %v1545 = vunpack.c.0.s8 %v1544
      %v1546 = vlaneseq
      %v1547 = vshrl.u32 %v1546, 7
      %v1548 = vsub.s32 %v1545, %v1547
      %v1549 = vrot.slane %v1263, %v1548
      %v1551 = vunpack.c.l.s4 1983009808
      %v1552 = vunpack.c.0.s8 %v1551
      %v1553 = vlaneseq
      %v1554 = vshrl.u32 %v1553, 7
      %v1555 = vsub.s32 %v1552, %v1554
      %v1556 = vrot.slane %v1542, %v1555
      %v1557 = vcombine.high %v1549, %v1549
      %v1558 = vcombine.high %v1556, %v1556
      %v1559 = vcombine.high %v1264, %v1264
      %v1561 = vunpack.c.l.s4 1983009808
      %v1562 = vunpack.c.0.s8 %v1561
      %v1563 = vlaneseq
      %v1564 = vshrl.u32 %v1563, 7
      %v1565 = vsub.s32 %v1562, %v1564
      %v1566 = vrot.slane %v1264, %v1565
      %v1568 = vunpack.c.l.s4 1983009808
      %v1569 = vunpack.c.0.s8 %v1568
      %v1570 = vlaneseq
      %v1571 = vshrl.u32 %v1570, 7
      %v1572 = vsub.s32 %v1569, %v1571
      %v1573 = vrot.slane %v1559, %v1572
      %v1574 = vcombine.high %v1566, %v1566
      %v1575 = vcombine.high %v1573, %v1573
      %v1576 = vcombine.high %v1265, %v1265
      %v1578 = vunpack.c.l.s4 1983009808
      %v1579 = vunpack.c.0.s8 %v1578
      %v1580 = vlaneseq
      %v1581 = vshrl.u32 %v1580, 7
      %v1582 = vsub.s32 %v1579, %v1581
      %v1583 = vrot.slane %v1265, %v1582
      %v1585 = vunpack.c.l.s4 1983009808
      %v1586 = vunpack.c.0.s8 %v1585
      %v1587 = vlaneseq
      %v1588 = vshrl.u32 %v1587, 7
      %v1589 = vsub.s32 %v1586, %v1588
      %v1590 = vrot.slane %v1576, %v1589
      %v1591 = vcombine.high %v1583, %v1583
      %v1592 = vcombine.high %v1590, %v1590
      %v1593 = vcombine.high %v1266, %v1266
      %v1595 = vunpack.c.l.s4 1983009808
      %v1596 = vunpack.c.0.s8 %v1595
      %v1597 = vlaneseq
      %v1598 = vshrl.u32 %v1597, 7
      %v1599 = vsub.s32 %v1596, %v1598
      %v1600 = vrot.slane %v1266, %v1599
      %v1602 = vunpack.c.l.s4 1983009808
      %v1603 = vunpack.c.0.s8 %v1602
      %v1604 = vlaneseq
      %v1605 = vshrl.u32 %v1604, 7
      %v1606 = vsub.s32 %v1603, %v1605
      %v1607 = vrot.slane %v1593, %v1606
      %v1608 = vcombine.high %v1600, %v1600
      %v1609 = vcombine.high %v1607, %v1607
      %v1610 = vcombine.high %v1267, %v1267
      %v1612 = vunpack.c.l.s4 1983009808
      %v1613 = vunpack.c.0.s8 %v1612
      %v1614 = vlaneseq
      %v1615 = vshrl.u32 %v1614, 7
      %v1616 = vsub.s32 %v1613, %v1615
      %v1617 = vrot.slane %v1267, %v1616
      %v1619 = vunpack.c.l.s4 1983009808
      %v1620 = vunpack.c.0.s8 %v1619
      %v1621 = vlaneseq
      %v1622 = vshrl.u32 %v1621, 7
      %v1623 = vsub.s32 %v1620, %v1622
      %v1624 = vrot.slane %v1610, %v1623
      %v1625 = vcombine.high %v1617, %v1617
      %v1626 = vcombine.high %v1624, %v1624
      %v1628 = vunpack.c.l.s4 1983009808
      %v1629 = vunpack.c.0.s8 %v1628
      %v1630 = vlaneseq
      %v1631 = vshrl.u32 %v1630, 7
      %v1632 = vsub.s32 %v1629, %v1631
      %v1633 = vrot.slane %v1268, %v1632
      %v1634 = vcombine.high %v1633, %v1633
      %v1635 = vcombine.high %v1269, %v1269
      %v1637 = vunpack.c.l.s4 1983009808
      %v1638 = vunpack.c.0.s8 %v1637
      %v1639 = vlaneseq
      %v1640 = vshrl.u32 %v1639, 7
      %v1641 = vsub.s32 %v1638, %v1640
      %v1642 = vrot.slane %v1269, %v1641
      %v1644 = vunpack.c.l.s4 1983009808
      %v1645 = vunpack.c.0.s8 %v1644
      %v1646 = vlaneseq
      %v1647 = vshrl.u32 %v1646, 7
      %v1648 = vsub.s32 %v1645, %v1647
      %v1649 = vrot.slane %v1635, %v1648
      %v1650 = vcombine.high %v1642, %v1642
      %v1651 = vcombine.high %v1649, %v1649
      %v1652 = vcombine.high %v1270, %v1270
      %v1654 = vunpack.c.l.s4 1983009808
      %v1655 = vunpack.c.0.s8 %v1654
      %v1656 = vlaneseq
      %v1657 = vshrl.u32 %v1656, 7
      %v1658 = vsub.s32 %v1655, %v1657
      %v1659 = vrot.slane %v1270, %v1658
      %v1661 = vunpack.c.l.s4 1983009808
      %v1662 = vunpack.c.0.s8 %v1661
      %v1663 = vlaneseq
      %v1664 = vshrl.u32 %v1663, 7
      %v1665 = vsub.s32 %v1662, %v1664
      %v1666 = vrot.slane %v1652, %v1665
      %v1667 = vcombine.high %v1659, %v1659
      %v1668 = vcombine.high %v1666, %v1666
      %v1669 = vcombine.high %v1271, %v1271
      %v1671 = vunpack.c.l.s4 1983009808
      %v1672 = vunpack.c.0.s8 %v1671
      %v1673 = vlaneseq
      %v1674 = vshrl.u32 %v1673, 7
      %v1675 = vsub.s32 %v1672, %v1674
      %v1676 = vrot.slane %v1271, %v1675
      %v1678 = vunpack.c.l.s4 1983009808
      %v1679 = vunpack.c.0.s8 %v1678
      %v1680 = vlaneseq
      %v1681 = vshrl.u32 %v1680, 7
      %v1682 = vsub.s32 %v1679, %v1681
      %v1683 = vrot.slane %v1669, %v1682
      %v1684 = vcombine.high %v1676, %v1676
      %v1685 = vcombine.high %v1683, %v1683
      %v1686 = vcombine.high %v1272, %v1272
      %v1688 = vunpack.c.l.s4 1983009808
      %v1689 = vunpack.c.0.s8 %v1688
      %v1690 = vlaneseq
      %v1691 = vshrl.u32 %v1690, 7
      %v1692 = vsub.s32 %v1689, %v1691
      %v1693 = vrot.slane %v1272, %v1692
      %v1695 = vunpack.c.l.s4 1983009808
      %v1696 = vunpack.c.0.s8 %v1695
      %v1697 = vlaneseq
      %v1698 = vshrl.u32 %v1697, 7
      %v1699 = vsub.s32 %v1696, %v1698
      %v1700 = vrot.slane %v1686, %v1699
      %v1701 = vcombine.high %v1693, %v1693
      %v1702 = vcombine.high %v1700, %v1700
      %v1703 = vcombine.high %v1273, %v1273
      %v1705 = vunpack.c.l.s4 1983009808
      %v1706 = vunpack.c.0.s8 %v1705
      %v1707 = vlaneseq
      %v1708 = vshrl.u32 %v1707, 7
      %v1709 = vsub.s32 %v1706, %v1708
      %v1710 = vrot.slane %v1273, %v1709
      %v1712 = vunpack.c.l.s4 1983009808
      %v1713 = vunpack.c.0.s8 %v1712
      %v1714 = vlaneseq
      %v1715 = vshrl.u32 %v1714, 7
      %v1716 = vsub.s32 %v1713, %v1715
      %v1717 = vrot.slane %v1703, %v1716
      %v1718 = vcombine.high %v1710, %v1710
      %v1719 = vcombine.high %v1717, %v1717
      %v1720 = vcombine.high %v1274, %v1274
      %v1722 = vunpack.c.l.s4 1983009808
      %v1723 = vunpack.c.0.s8 %v1722
      %v1724 = vlaneseq
      %v1725 = vshrl.u32 %v1724, 7
      %v1726 = vsub.s32 %v1723, %v1725
      %v1727 = vrot.slane %v1274, %v1726
      %v1729 = vunpack.c.l.s4 1983009808
      %v1730 = vunpack.c.0.s8 %v1729
      %v1731 = vlaneseq
      %v1732 = vshrl.u32 %v1731, 7
      %v1733 = vsub.s32 %v1730, %v1732
      %v1734 = vrot.slane %v1720, %v1733
      %v1735 = vcombine.high %v1727, %v1727
      %v1736 = vcombine.high %v1734, %v1734
      %v1737 = vcombine.high %v1275, %v1275
      %v1739 = vunpack.c.l.s4 1983009808
      %v1740 = vunpack.c.0.s8 %v1739
      %v1741 = vlaneseq
      %v1742 = vshrl.u32 %v1741, 7
      %v1743 = vsub.s32 %v1740, %v1742
      %v1744 = vrot.slane %v1275, %v1743
      %v1746 = vunpack.c.l.s4 1983009808
      %v1747 = vunpack.c.0.s8 %v1746
      %v1748 = vlaneseq
      %v1749 = vshrl.u32 %v1748, 7
      %v1750 = vsub.s32 %v1747, %v1749
      %v1751 = vrot.slane %v1737, %v1750
      %v1752 = vcombine.high %v1744, %v1744
      %v1753 = vcombine.high %v1751, %v1751
      %v1755 = vunpack.c.l.s4 1983009808
      %v1756 = vunpack.c.0.s8 %v1755
      %v1757 = vlaneseq
      %v1758 = vshrl.u32 %v1757, 7
      %v1759 = vsub.s32 %v1756, %v1758
      %v1760 = vrot.slane %v1276, %v1759
      %v1761 = vcombine.high %v1760, %v1760
      %v1762 = vcombine.high %v1277, %v1277
      %v1764 = vunpack.c.l.s4 1983009808
      %v1765 = vunpack.c.0.s8 %v1764
      %v1766 = vlaneseq
      %v1767 = vshrl.u32 %v1766, 7
      %v1768 = vsub.s32 %v1765, %v1767
      %v1769 = vrot.slane %v1277, %v1768
      %v1771 = vunpack.c.l.s4 1983009808
      %v1772 = vunpack.c.0.s8 %v1771
      %v1773 = vlaneseq
      %v1774 = vshrl.u32 %v1773, 7
      %v1775 = vsub.s32 %v1772, %v1774
      %v1776 = vrot.slane %v1762, %v1775
      %v1777 = vcombine.high %v1769, %v1769
      %v1778 = vcombine.high %v1776, %v1776
      %v1779 = vcombine.high %v1278, %v1278
      %v1781 = vunpack.c.l.s4 1983009808
      %v1782 = vunpack.c.0.s8 %v1781
      %v1783 = vlaneseq
      %v1784 = vshrl.u32 %v1783, 7
      %v1785 = vsub.s32 %v1782, %v1784
      %v1786 = vrot.slane %v1278, %v1785
      %v1788 = vunpack.c.l.s4 1983009808
      %v1789 = vunpack.c.0.s8 %v1788
      %v1790 = vlaneseq
      %v1791 = vshrl.u32 %v1790, 7
      %v1792 = vsub.s32 %v1789, %v1791
      %v1793 = vrot.slane %v1779, %v1792
      %v1794 = vcombine.high %v1786, %v1786
      %v1795 = vcombine.high %v1793, %v1793
      %v1796 = vcombine.high %v1279, %v1279
      %v1798 = vunpack.c.l.s4 1983009808
      %v1799 = vunpack.c.0.s8 %v1798
      %v1800 = vlaneseq
      %v1801 = vshrl.u32 %v1800, 7
      %v1802 = vsub.s32 %v1799, %v1801
      %v1803 = vrot.slane %v1279, %v1802
      %v1805 = vunpack.c.l.s4 1983009808
      %v1806 = vunpack.c.0.s8 %v1805
      %v1807 = vlaneseq
      %v1808 = vshrl.u32 %v1807, 7
      %v1809 = vsub.s32 %v1806, %v1808
      %v1810 = vrot.slane %v1796, %v1809
      %v1811 = vcombine.high %v1803, %v1803
      %v1812 = vcombine.high %v1810, %v1810
      %v1813 = vcombine.high %v1280, %v1280
      %v1815 = vunpack.c.l.s4 1983009808
      %v1816 = vunpack.c.0.s8 %v1815
      %v1817 = vlaneseq
      %v1818 = vshrl.u32 %v1817, 7
      %v1819 = vsub.s32 %v1816, %v1818
      %v1820 = vrot.slane %v1280, %v1819
      %v1822 = vunpack.c.l.s4 1983009808
      %v1823 = vunpack.c.0.s8 %v1822
      %v1824 = vlaneseq
      %v1825 = vshrl.u32 %v1824, 7
      %v1826 = vsub.s32 %v1823, %v1825
      %v1827 = vrot.slane %v1813, %v1826
      %v1828 = vcombine.high %v1820, %v1820
      %v1829 = vcombine.high %v1827, %v1827
      %v1830 = vcombine.high %v1281, %v1281
      %v1832 = vunpack.c.l.s4 1983009808
      %v1833 = vunpack.c.0.s8 %v1832
      %v1834 = vlaneseq
      %v1835 = vshrl.u32 %v1834, 7
      %v1836 = vsub.s32 %v1833, %v1835
      %v1837 = vrot.slane %v1281, %v1836
      %v1839 = vunpack.c.l.s4 1983009808
      %v1840 = vunpack.c.0.s8 %v1839
      %v1841 = vlaneseq
      %v1842 = vshrl.u32 %v1841, 7
      %v1843 = vsub.s32 %v1840, %v1842
      %v1844 = vrot.slane %v1830, %v1843
      %v1845 = vcombine.high %v1837, %v1837
      %v1846 = vcombine.high %v1844, %v1844
      %v1847 = vcombine.high %v1282, %v1282
      %v1849 = vunpack.c.l.s4 1983009808
      %v1850 = vunpack.c.0.s8 %v1849
      %v1851 = vlaneseq
      %v1852 = vshrl.u32 %v1851, 7
      %v1853 = vsub.s32 %v1850, %v1852
      %v1854 = vrot.slane %v1282, %v1853
      %v1856 = vunpack.c.l.s4 1983009808
      %v1857 = vunpack.c.0.s8 %v1856
      %v1858 = vlaneseq
      %v1859 = vshrl.u32 %v1858, 7
      %v1860 = vsub.s32 %v1857, %v1859
      %v1861 = vrot.slane %v1847, %v1860
      %v1862 = vcombine.high %v1854, %v1854
      %v1863 = vcombine.high %v1861, %v1861
      %v1864 = vcombine.high %v1283, %v1283
      %v1866 = vunpack.c.l.s4 1983009808
      %v1867 = vunpack.c.0.s8 %v1866
      %v1868 = vlaneseq
      %v1869 = vshrl.u32 %v1868, 7
      %v1870 = vsub.s32 %v1867, %v1869
      %v1871 = vrot.slane %v1283, %v1870
      %v1873 = vunpack.c.l.s4 1983009808
      %v1874 = vunpack.c.0.s8 %v1873
      %v1875 = vlaneseq
      %v1876 = vshrl.u32 %v1875, 7
      %v1877 = vsub.s32 %v1874, %v1876
      %v1878 = vrot.slane %v1864, %v1877
      %v1879 = vcombine.high %v1871, %v1871
      %v1880 = vcombine.high %v1878, %v1878
      %v1882 = vunpack.c.l.s4 1983009808
      %v1883 = vunpack.c.0.s8 %v1882
      %v1884 = vlaneseq
      %v1885 = vshrl.u32 %v1884, 7
      %v1886 = vsub.s32 %v1883, %v1885
      %v1887 = vrot.slane %v1284, %v1886
      %v1888 = vcombine.high %v1887, %v1887
      %v1889 = vcombine.high %v1285, %v1285
      %v1891 = vunpack.c.l.s4 1983009808
      %v1892 = vunpack.c.0.s8 %v1891
      %v1893 = vlaneseq
      %v1894 = vshrl.u32 %v1893, 7
      %v1895 = vsub.s32 %v1892, %v1894
      %v1896 = vrot.slane %v1285, %v1895
      %v1898 = vunpack.c.l.s4 1983009808
      %v1899 = vunpack.c.0.s8 %v1898
      %v1900 = vlaneseq
      %v1901 = vshrl.u32 %v1900, 7
      %v1902 = vsub.s32 %v1899, %v1901
      %v1903 = vrot.slane %v1889, %v1902
      %v1904 = vcombine.high %v1896, %v1896
      %v1905 = vcombine.high %v1903, %v1903
      %v1906 = vcombine.high %v1286, %v1286
      %v1908 = vunpack.c.l.s4 1983009808
      %v1909 = vunpack.c.0.s8 %v1908
      %v1910 = vlaneseq
      %v1911 = vshrl.u32 %v1910, 7
      %v1912 = vsub.s32 %v1909, %v1911
      %v1913 = vrot.slane %v1286, %v1912
      %v1915 = vunpack.c.l.s4 1983009808
      %v1916 = vunpack.c.0.s8 %v1915
      %v1917 = vlaneseq
      %v1918 = vshrl.u32 %v1917, 7
      %v1919 = vsub.s32 %v1916, %v1918
      %v1920 = vrot.slane %v1906, %v1919
      %v1921 = vcombine.high %v1913, %v1913
      %v1922 = vcombine.high %v1920, %v1920
      %v1923 = vcombine.high %v1287, %v1287
      %v1925 = vunpack.c.l.s4 1983009808
      %v1926 = vunpack.c.0.s8 %v1925
      %v1927 = vlaneseq
      %v1928 = vshrl.u32 %v1927, 7
      %v1929 = vsub.s32 %v1926, %v1928
      %v1930 = vrot.slane %v1287, %v1929
      %v1932 = vunpack.c.l.s4 1983009808
      %v1933 = vunpack.c.0.s8 %v1932
      %v1934 = vlaneseq
      %v1935 = vshrl.u32 %v1934, 7
      %v1936 = vsub.s32 %v1933, %v1935
      %v1937 = vrot.slane %v1923, %v1936
      %v1938 = vcombine.high %v1930, %v1930
      %v1939 = vcombine.high %v1937, %v1937
      %v1940 = vcombine.high %v1288, %v1288
      %v1942 = vunpack.c.l.s4 1983009808
      %v1943 = vunpack.c.0.s8 %v1942
      %v1944 = vlaneseq
      %v1945 = vshrl.u32 %v1944, 7
      %v1946 = vsub.s32 %v1943, %v1945
      %v1947 = vrot.slane %v1288, %v1946
      %v1949 = vunpack.c.l.s4 1983009808
      %v1950 = vunpack.c.0.s8 %v1949
      %v1951 = vlaneseq
      %v1952 = vshrl.u32 %v1951, 7
      %v1953 = vsub.s32 %v1950, %v1952
      %v1954 = vrot.slane %v1940, %v1953
      %v1955 = vcombine.high %v1947, %v1947
      %v1956 = vcombine.high %v1954, %v1954
      %v1957 = vcombine.high %v1289, %v1289
      %v1959 = vunpack.c.l.s4 1983009808
      %v1960 = vunpack.c.0.s8 %v1959
      %v1961 = vlaneseq
      %v1962 = vshrl.u32 %v1961, 7
      %v1963 = vsub.s32 %v1960, %v1962
      %v1964 = vrot.slane %v1289, %v1963
      %v1966 = vunpack.c.l.s4 1983009808
      %v1967 = vunpack.c.0.s8 %v1966
      %v1968 = vlaneseq
      %v1969 = vshrl.u32 %v1968, 7
      %v1970 = vsub.s32 %v1967, %v1969
      %v1971 = vrot.slane %v1957, %v1970
      %v1972 = vcombine.high %v1964, %v1964
      %v1973 = vcombine.high %v1971, %v1971
      %v1974 = vcombine.high %v1290, %v1290
      %v1976 = vunpack.c.l.s4 1983009808
      %v1977 = vunpack.c.0.s8 %v1976
      %v1978 = vlaneseq
      %v1979 = vshrl.u32 %v1978, 7
      %v1980 = vsub.s32 %v1977, %v1979
      %v1981 = vrot.slane %v1290, %v1980
      %v1983 = vunpack.c.l.s4 1983009808
      %v1984 = vunpack.c.0.s8 %v1983
      %v1985 = vlaneseq
      %v1986 = vshrl.u32 %v1985, 7
      %v1987 = vsub.s32 %v1984, %v1986
      %v1988 = vrot.slane %v1974, %v1987
      %v1989 = vcombine.high %v1981, %v1981
      %v1990 = vcombine.high %v1988, %v1988
      %v1991 = vcombine.high %v1291, %v1291
      %v1993 = vunpack.c.l.s4 1983009808
      %v1994 = vunpack.c.0.s8 %v1993
      %v1995 = vlaneseq
      %v1996 = vshrl.u32 %v1995, 7
      %v1997 = vsub.s32 %v1994, %v1996
      %v1998 = vrot.slane %v1291, %v1997
      %v2000 = vunpack.c.l.s4 1983009808
      %v2001 = vunpack.c.0.s8 %v2000
      %v2002 = vlaneseq
      %v2003 = vshrl.u32 %v2002, 7
      %v2004 = vsub.s32 %v2001, %v2003
      %v2005 = vrot.slane %v1991, %v2004
      %v2006 = vcombine.high %v1998, %v1998
      %v2007 = vcombine.high %v2005, %v2005
      %v2009 = vunpack.c.l.s4 1983009808
      %v2010 = vunpack.c.0.s8 %v2009
      %v2011 = vlaneseq
      %v2012 = vshrl.u32 %v2011, 7
      %v2013 = vsub.s32 %v2010, %v2012
      %v2014 = vrot.slane %v1292, %v2013
      %v2015 = vcombine.high %v2014, %v2014
      %v2016 = vcombine.high %v1293, %v1293
      %v2018 = vunpack.c.l.s4 1983009808
      %v2019 = vunpack.c.0.s8 %v2018
      %v2020 = vlaneseq
      %v2021 = vshrl.u32 %v2020, 7
      %v2022 = vsub.s32 %v2019, %v2021
      %v2023 = vrot.slane %v1293, %v2022
      %v2025 = vunpack.c.l.s4 1983009808
      %v2026 = vunpack.c.0.s8 %v2025
      %v2027 = vlaneseq
      %v2028 = vshrl.u32 %v2027, 7
      %v2029 = vsub.s32 %v2026, %v2028
      %v2030 = vrot.slane %v2016, %v2029
      %v2031 = vcombine.high %v2023, %v2023
      %v2032 = vcombine.high %v2030, %v2030
      %v2033 = vcombine.high %v1294, %v1294
      %v2035 = vunpack.c.l.s4 1983009808
      %v2036 = vunpack.c.0.s8 %v2035
      %v2037 = vlaneseq
      %v2038 = vshrl.u32 %v2037, 7
      %v2039 = vsub.s32 %v2036, %v2038
      %v2040 = vrot.slane %v1294, %v2039
      %v2042 = vunpack.c.l.s4 1983009808
      %v2043 = vunpack.c.0.s8 %v2042
      %v2044 = vlaneseq
      %v2045 = vshrl.u32 %v2044, 7
      %v2046 = vsub.s32 %v2043, %v2045
      %v2047 = vrot.slane %v2033, %v2046
      %v2048 = vcombine.high %v2040, %v2040
      %v2049 = vcombine.high %v2047, %v2047
      %v2050 = vcombine.high %v1295, %v1295
      %v2052 = vunpack.c.l.s4 1983009808
      %v2053 = vunpack.c.0.s8 %v2052
      %v2054 = vlaneseq
      %v2055 = vshrl.u32 %v2054, 7
      %v2056 = vsub.s32 %v2053, %v2055
      %v2057 = vrot.slane %v1295, %v2056
      %v2059 = vunpack.c.l.s4 1983009808
      %v2060 = vunpack.c.0.s8 %v2059
      %v2061 = vlaneseq
      %v2062 = vshrl.u32 %v2061, 7
      %v2063 = vsub.s32 %v2060, %v2062
      %v2064 = vrot.slane %v2050, %v2063
      %v2065 = vcombine.high %v2057, %v2057
      %v2066 = vcombine.high %v2064, %v2064
      %v2067 = vcombine.high %v1296, %v1296
      %v2069 = vunpack.c.l.s4 1983009808
      %v2070 = vunpack.c.0.s8 %v2069
      %v2071 = vlaneseq
      %v2072 = vshrl.u32 %v2071, 7
      %v2073 = vsub.s32 %v2070, %v2072
      %v2074 = vrot.slane %v1296, %v2073
      %v2076 = vunpack.c.l.s4 1983009808
      %v2077 = vunpack.c.0.s8 %v2076
      %v2078 = vlaneseq
      %v2079 = vshrl.u32 %v2078, 7
      %v2080 = vsub.s32 %v2077, %v2079
      %v2081 = vrot.slane %v2067, %v2080
      %v2082 = vcombine.high %v2074, %v2074
      %v2083 = vcombine.high %v2081, %v2081
      %v2084 = vcombine.high %v1297, %v1297
      %v2086 = vunpack.c.l.s4 1983009808
      %v2087 = vunpack.c.0.s8 %v2086
      %v2088 = vlaneseq
      %v2089 = vshrl.u32 %v2088, 7
      %v2090 = vsub.s32 %v2087, %v2089
      %v2091 = vrot.slane %v1297, %v2090
      %v2093 = vunpack.c.l.s4 1983009808
      %v2094 = vunpack.c.0.s8 %v2093
      %v2095 = vlaneseq
      %v2096 = vshrl.u32 %v2095, 7
      %v2097 = vsub.s32 %v2094, %v2096
      %v2098 = vrot.slane %v2084, %v2097
      %v2099 = vcombine.high %v2091, %v2091
      %v2100 = vcombine.high %v2098, %v2098
      %v2101 = vcombine.high %v1298, %v1298
      %v2103 = vunpack.c.l.s4 1983009808
      %v2104 = vunpack.c.0.s8 %v2103
      %v2105 = vlaneseq
      %v2106 = vshrl.u32 %v2105, 7
      %v2107 = vsub.s32 %v2104, %v2106
      %v2108 = vrot.slane %v1298, %v2107
      %v2110 = vunpack.c.l.s4 1983009808
      %v2111 = vunpack.c.0.s8 %v2110
      %v2112 = vlaneseq
      %v2113 = vshrl.u32 %v2112, 7
      %v2114 = vsub.s32 %v2111, %v2113
      %v2115 = vrot.slane %v2101, %v2114
      %v2116 = vcombine.high %v2108, %v2108
      %v2117 = vcombine.high %v2115, %v2115
      %v2118 = vcombine.high %v1299, %v1299
      %v2120 = vunpack.c.l.s4 1983009808
      %v2121 = vunpack.c.0.s8 %v2120
      %v2122 = vlaneseq
      %v2123 = vshrl.u32 %v2122, 7
      %v2124 = vsub.s32 %v2121, %v2123
      %v2125 = vrot.slane %v1299, %v2124
      %v2127 = vunpack.c.l.s4 1983009808
      %v2128 = vunpack.c.0.s8 %v2127
      %v2129 = vlaneseq
      %v2130 = vshrl.u32 %v2129, 7
      %v2131 = vsub.s32 %v2128, %v2130
      %v2132 = vrot.slane %v2118, %v2131
      %v2133 = vcombine.high %v2125, %v2125
      %v2134 = vcombine.high %v2132, %v2132
      %v2136 = vunpack.c.l.s4 1983009808
      %v2137 = vunpack.c.0.s8 %v2136
      %v2138 = vlaneseq
      %v2139 = vshrl.u32 %v2138, 7
      %v2140 = vsub.s32 %v2137, %v2139
      %v2141 = vrot.slane %v1300, %v2140
      %v2142 = vcombine.high %v2141, %v2141
      %v2143 = vcombine.high %v1301, %v1301
      %v2145 = vunpack.c.l.s4 1983009808
      %v2146 = vunpack.c.0.s8 %v2145
      %v2147 = vlaneseq
      %v2148 = vshrl.u32 %v2147, 7
      %v2149 = vsub.s32 %v2146, %v2148
      %v2150 = vrot.slane %v1301, %v2149
      %v2152 = vunpack.c.l.s4 1983009808
      %v2153 = vunpack.c.0.s8 %v2152
      %v2154 = vlaneseq
      %v2155 = vshrl.u32 %v2154, 7
      %v2156 = vsub.s32 %v2153, %v2155
      %v2157 = vrot.slane %v2143, %v2156
      %v2158 = vcombine.high %v2150, %v2150
      %v2159 = vcombine.high %v2157, %v2157
      %v2160 = vcombine.high %v1302, %v1302
      %v2162 = vunpack.c.l.s4 1983009808
      %v2163 = vunpack.c.0.s8 %v2162
      %v2164 = vlaneseq
      %v2165 = vshrl.u32 %v2164, 7
      %v2166 = vsub.s32 %v2163, %v2165
      %v2167 = vrot.slane %v1302, %v2166
      %v2169 = vunpack.c.l.s4 1983009808
      %v2170 = vunpack.c.0.s8 %v2169
      %v2171 = vlaneseq
      %v2172 = vshrl.u32 %v2171, 7
      %v2173 = vsub.s32 %v2170, %v2172
      %v2174 = vrot.slane %v2160, %v2173
      %v2175 = vcombine.high %v2167, %v2167
      %v2176 = vcombine.high %v2174, %v2174
      %v2177 = vcombine.high %v1303, %v1303
      %v2179 = vunpack.c.l.s4 1983009808
      %v2180 = vunpack.c.0.s8 %v2179
      %v2181 = vlaneseq
      %v2182 = vshrl.u32 %v2181, 7
      %v2183 = vsub.s32 %v2180, %v2182
      %v2184 = vrot.slane %v1303, %v2183
      %v2186 = vunpack.c.l.s4 1983009808
      %v2187 = vunpack.c.0.s8 %v2186
      %v2188 = vlaneseq
      %v2189 = vshrl.u32 %v2188, 7
      %v2190 = vsub.s32 %v2187, %v2189
      %v2191 = vrot.slane %v2177, %v2190
      %v2192 = vcombine.high %v2184, %v2184
      %v2193 = vcombine.high %v2191, %v2191
      %v2194 = vcombine.high %v1304, %v1304
      %v2196 = vunpack.c.l.s4 1983009808
      %v2197 = vunpack.c.0.s8 %v2196
      %v2198 = vlaneseq
      %v2199 = vshrl.u32 %v2198, 7
      %v2200 = vsub.s32 %v2197, %v2199
      %v2201 = vrot.slane %v1304, %v2200
      %v2203 = vunpack.c.l.s4 1983009808
      %v2204 = vunpack.c.0.s8 %v2203
      %v2205 = vlaneseq
      %v2206 = vshrl.u32 %v2205, 7
      %v2207 = vsub.s32 %v2204, %v2206
      %v2208 = vrot.slane %v2194, %v2207
      %v2209 = vcombine.high %v2201, %v2201
      %v2210 = vcombine.high %v2208, %v2208
      %v2211 = vcombine.high %v1305, %v1305
      %v2213 = vunpack.c.l.s4 1983009808
      %v2214 = vunpack.c.0.s8 %v2213
      %v2215 = vlaneseq
      %v2216 = vshrl.u32 %v2215, 7
      %v2217 = vsub.s32 %v2214, %v2216
      %v2218 = vrot.slane %v1305, %v2217
      %v2220 = vunpack.c.l.s4 1983009808
      %v2221 = vunpack.c.0.s8 %v2220
      %v2222 = vlaneseq
      %v2223 = vshrl.u32 %v2222, 7
      %v2224 = vsub.s32 %v2221, %v2223
      %v2225 = vrot.slane %v2211, %v2224
      %v2226 = vcombine.high %v2218, %v2218
      %v2227 = vcombine.high %v2225, %v2225
      %v2228 = vcombine.high %v1306, %v1306
      %v2230 = vunpack.c.l.s4 1983009808
      %v2231 = vunpack.c.0.s8 %v2230
      %v2232 = vlaneseq
      %v2233 = vshrl.u32 %v2232, 7
      %v2234 = vsub.s32 %v2231, %v2233
      %v2235 = vrot.slane %v1306, %v2234
      %v2237 = vunpack.c.l.s4 1983009808
      %v2238 = vunpack.c.0.s8 %v2237
      %v2239 = vlaneseq
      %v2240 = vshrl.u32 %v2239, 7
      %v2241 = vsub.s32 %v2238, %v2240
      %v2242 = vrot.slane %v2228, %v2241
      %v2243 = vcombine.high %v2235, %v2235
      %v2244 = vcombine.high %v2242, %v2242
      %v2245 = vcombine.high %v1307, %v1307
      %v2247 = vunpack.c.l.s4 1983009808
      %v2248 = vunpack.c.0.s8 %v2247
      %v2249 = vlaneseq
      %v2250 = vshrl.u32 %v2249, 7
      %v2251 = vsub.s32 %v2248, %v2250
      %v2252 = vrot.slane %v1307, %v2251
      %v2254 = vunpack.c.l.s4 1983009808
      %v2255 = vunpack.c.0.s8 %v2254
      %v2256 = vlaneseq
      %v2257 = vshrl.u32 %v2256, 7
      %v2258 = vsub.s32 %v2255, %v2257
      %v2259 = vrot.slane %v2245, %v2258
      %v2260 = vcombine.high %v2252, %v2252
      %v2261 = vcombine.high %v2259, %v2259
      %v2263 = vunpack.c.l.s4 1983009808
      %v2264 = vunpack.c.0.s8 %v2263
      %v2265 = vlaneseq
      %v2266 = vshrl.u32 %v2265, 7
      %v2267 = vsub.s32 %v2264, %v2266
      %v2268 = vrot.slane %v1308, %v2267
      %v2269 = vcombine.high %v2268, %v2268
      %v2270 = vcombine.high %v1309, %v1309
      %v2272 = vunpack.c.l.s4 1983009808
      %v2273 = vunpack.c.0.s8 %v2272
      %v2274 = vlaneseq
      %v2275 = vshrl.u32 %v2274, 7
      %v2276 = vsub.s32 %v2273, %v2275
      %v2277 = vrot.slane %v1309, %v2276
      %v2279 = vunpack.c.l.s4 1983009808
      %v2280 = vunpack.c.0.s8 %v2279
      %v2281 = vlaneseq
      %v2282 = vshrl.u32 %v2281, 7
      %v2283 = vsub.s32 %v2280, %v2282
      %v2284 = vrot.slane %v2270, %v2283
      %v2285 = vcombine.high %v2277, %v2277
      %v2286 = vcombine.high %v2284, %v2284
      %v2287 = vcombine.high %v1310, %v1310
      %v2289 = vunpack.c.l.s4 1983009808
      %v2290 = vunpack.c.0.s8 %v2289
      %v2291 = vlaneseq
      %v2292 = vshrl.u32 %v2291, 7
      %v2293 = vsub.s32 %v2290, %v2292
      %v2294 = vrot.slane %v1310, %v2293
      %v2296 = vunpack.c.l.s4 1983009808
      %v2297 = vunpack.c.0.s8 %v2296
      %v2298 = vlaneseq
      %v2299 = vshrl.u32 %v2298, 7
      %v2300 = vsub.s32 %v2297, %v2299
      %v2301 = vrot.slane %v2287, %v2300
      %v2302 = vcombine.high %v2294, %v2294
      %v2303 = vcombine.high %v2301, %v2301
      %v2304 = vcombine.high %v1311, %v1311
      %v2306 = vunpack.c.l.s4 1983009808
      %v2307 = vunpack.c.0.s8 %v2306
      %v2308 = vlaneseq
      %v2309 = vshrl.u32 %v2308, 7
      %v2310 = vsub.s32 %v2307, %v2309
      %v2311 = vrot.slane %v1311, %v2310
      %v2313 = vunpack.c.l.s4 1983009808
      %v2314 = vunpack.c.0.s8 %v2313
      %v2315 = vlaneseq
      %v2316 = vshrl.u32 %v2315, 7
      %v2317 = vsub.s32 %v2314, %v2316
      %v2318 = vrot.slane %v2304, %v2317
      %v2319 = vcombine.high %v2311, %v2311
      %v2320 = vcombine.high %v2318, %v2318
      %v2321 = vcombine.high %v1312, %v1312
      %v2323 = vunpack.c.l.s4 1983009808
      %v2324 = vunpack.c.0.s8 %v2323
      %v2325 = vlaneseq
      %v2326 = vshrl.u32 %v2325, 7
      %v2327 = vsub.s32 %v2324, %v2326
      %v2328 = vrot.slane %v1312, %v2327
      %v2330 = vunpack.c.l.s4 1983009808
      %v2331 = vunpack.c.0.s8 %v2330
      %v2332 = vlaneseq
      %v2333 = vshrl.u32 %v2332, 7
      %v2334 = vsub.s32 %v2331, %v2333
      %v2335 = vrot.slane %v2321, %v2334
      %v2336 = vcombine.high %v2328, %v2328
      %v2337 = vcombine.high %v2335, %v2335
      %v2338 = vcombine.high %v1313, %v1313
      %v2340 = vunpack.c.l.s4 1983009808
      %v2341 = vunpack.c.0.s8 %v2340
      %v2342 = vlaneseq
      %v2343 = vshrl.u32 %v2342, 7
      %v2344 = vsub.s32 %v2341, %v2343
      %v2345 = vrot.slane %v1313, %v2344
      %v2347 = vunpack.c.l.s4 1983009808
      %v2348 = vunpack.c.0.s8 %v2347
      %v2349 = vlaneseq
      %v2350 = vshrl.u32 %v2349, 7
      %v2351 = vsub.s32 %v2348, %v2350
      %v2352 = vrot.slane %v2338, %v2351
      %v2353 = vcombine.high %v2345, %v2345
      %v2354 = vcombine.high %v2352, %v2352
      %v2355 = vcombine.high %v1314, %v1314
      %v2357 = vunpack.c.l.s4 1983009808
      %v2358 = vunpack.c.0.s8 %v2357
      %v2359 = vlaneseq
      %v2360 = vshrl.u32 %v2359, 7
      %v2361 = vsub.s32 %v2358, %v2360
      %v2362 = vrot.slane %v1314, %v2361
      %v2364 = vunpack.c.l.s4 1983009808
      %v2365 = vunpack.c.0.s8 %v2364
      %v2366 = vlaneseq
      %v2367 = vshrl.u32 %v2366, 7
      %v2368 = vsub.s32 %v2365, %v2367
      %v2369 = vrot.slane %v2355, %v2368
      %v2370 = vcombine.high %v2362, %v2362
      %v2371 = vcombine.high %v2369, %v2369
      %v2372 = vcombine.high %v1315, %v1315
      %v2374 = vunpack.c.l.s4 1983009808
      %v2375 = vunpack.c.0.s8 %v2374
      %v2376 = vlaneseq
      %v2377 = vshrl.u32 %v2376, 7
      %v2378 = vsub.s32 %v2375, %v2377
      %v2379 = vrot.slane %v1315, %v2378
      %v2381 = vunpack.c.l.s4 1983009808
      %v2382 = vunpack.c.0.s8 %v2381
      %v2383 = vlaneseq
      %v2384 = vshrl.u32 %v2383, 7
      %v2385 = vsub.s32 %v2382, %v2384
      %v2386 = vrot.slane %v2372, %v2385
      %v2387 = vcombine.high %v2379, %v2379
      %v2388 = vcombine.high %v2386, %v2386
      %v2390 = vunpack.c.l.s4 1983009808
      %v2391 = vunpack.c.0.s8 %v2390
      %v2392 = vlaneseq
      %v2393 = vshrl.u32 %v2392, 7
      %v2394 = vsub.s32 %v2391, %v2393
      %v2395 = vrot.slane %v1316, %v2394
      %v2396 = vcombine.high %v2395, %v2395
      %vm2637 = vcmask 254976
      %v2638 = vsel %vm2637, %v1388, -inf
      %v2639 = vrot.slane %v2638, 4
      %v2640 = vmax.f32 %v2638, %v2639
      %v2641 = vrot.slane %v2640, 2
      %v2642 = vmax.f32 %v2640, %v2641
      %v2643 = vrot.slane %v2642, 1
      %v2644 = vmax.f32 %v2642, %v2643
      %v2645 = vsel %vm2637, %v1396, -inf
      %v2646 = vrot.slane %v2645, 4
      %v2647 = vmax.f32 %v2645, %v2646
      %v2648 = vrot.slane %v2647, 2
      %v2649 = vmax.f32 %v2647, %v2648
      %v2650 = vrot.slane %v2649, 1
      %v2651 = vmax.f32 %v2649, %v2650
      %v2652 = vsel %vm2637, %v1395, -inf
      %v2653 = vrot.slane %v2652, 4
      %v2654 = vmax.f32 %v2652, %v2653
      %v2655 = vrot.slane %v2654, 2
      %v2656 = vmax.f32 %v2654, %v2655
      %v2657 = vrot.slane %v2656, 1
      %v2658 = vmax.f32 %v2656, %v2657
      %v2659 = vsel %vm2637, %v1397, -inf
      %v2660 = vrot.slane %v2659, 4
      %v2661 = vmax.f32 %v2659, %v2660
      %v2662 = vrot.slane %v2661, 2
      %v2663 = vmax.f32 %v2661, %v2662
      %v2664 = vrot.slane %v2663, 1
      %v2665 = vmax.f32 %v2663, %v2664
      %v2666 = vsel %vm2637, %v1405, -inf
      %v2667 = vrot.slane %v2666, 4
      %v2668 = vmax.f32 %v2666, %v2667
      %v2669 = vrot.slane %v2668, 2
      %v2670 = vmax.f32 %v2668, %v2669
      %v2671 = vrot.slane %v2670, 1
      %v2672 = vmax.f32 %v2670, %v2671
      %v2673 = vsel %vm2637, %v1413, -inf
      %v2674 = vrot.slane %v2673, 4
      %v2675 = vmax.f32 %v2673, %v2674
      %v2676 = vrot.slane %v2675, 2
      %v2677 = vmax.f32 %v2675, %v2676
      %v2678 = vrot.slane %v2677, 1
      %v2679 = vmax.f32 %v2677, %v2678
      %v2680 = vsel %vm2637, %v1412, -inf
      %v2681 = vrot.slane %v2680, 4
      %v2682 = vmax.f32 %v2680, %v2681
      %v2683 = vrot.slane %v2682, 2
      %v2684 = vmax.f32 %v2682, %v2683
      %v2685 = vrot.slane %v2684, 1
      %v2686 = vmax.f32 %v2684, %v2685
      %v2687 = vsel %vm2637, %v1414, -inf
      %v2688 = vrot.slane %v2687, 4
      %v2689 = vmax.f32 %v2687, %v2688
      %v2690 = vrot.slane %v2689, 2
      %v2691 = vmax.f32 %v2689, %v2690
      %v2692 = vrot.slane %v2691, 1
      %v2693 = vmax.f32 %v2691, %v2692
      %v2694 = vsel %vm2637, %v1422, -inf
      %v2695 = vrot.slane %v2694, 4
      %v2696 = vmax.f32 %v2694, %v2695
      %v2697 = vrot.slane %v2696, 2
      %v2698 = vmax.f32 %v2696, %v2697
      %v2699 = vrot.slane %v2698, 1
      %v2700 = vmax.f32 %v2698, %v2699
      %v2701 = vsel %vm2637, %v1430, -inf
      %v2702 = vrot.slane %v2701, 4
      %v2703 = vmax.f32 %v2701, %v2702
      %v2704 = vrot.slane %v2703, 2
      %v2705 = vmax.f32 %v2703, %v2704
      %v2706 = vrot.slane %v2705, 1
      %v2707 = vmax.f32 %v2705, %v2706
      %v2708 = vsel %vm2637, %v1429, -inf
      %v2709 = vrot.slane %v2708, 4
      %v2710 = vmax.f32 %v2708, %v2709
      %v2711 = vrot.slane %v2710, 2
      %v2712 = vmax.f32 %v2710, %v2711
      %v2713 = vrot.slane %v2712, 1
      %v2714 = vmax.f32 %v2712, %v2713
      %v2715 = vsel %vm2637, %v1431, -inf
      %v2716 = vrot.slane %v2715, 4
      %v2717 = vmax.f32 %v2715, %v2716
      %v2718 = vrot.slane %v2717, 2
      %v2719 = vmax.f32 %v2717, %v2718
      %v2720 = vrot.slane %v2719, 1
      %v2721 = vmax.f32 %v2719, %v2720
      %v2722 = vsel %vm2637, %v1439, -inf
      %v2723 = vrot.slane %v2722, 4
      %v2724 = vmax.f32 %v2722, %v2723
      %v2725 = vrot.slane %v2724, 2
      %v2726 = vmax.f32 %v2724, %v2725
      %v2727 = vrot.slane %v2726, 1
      %v2728 = vmax.f32 %v2726, %v2727
      %v2729 = vsel %vm2637, %v1447, -inf
      %v2730 = vrot.slane %v2729, 4
      %v2731 = vmax.f32 %v2729, %v2730
      %v2732 = vrot.slane %v2731, 2
      %v2733 = vmax.f32 %v2731, %v2732
      %v2734 = vrot.slane %v2733, 1
      %v2735 = vmax.f32 %v2733, %v2734
      %v2736 = vsel %vm2637, %v1446, -inf
      %v2737 = vrot.slane %v2736, 4
      %v2738 = vmax.f32 %v2736, %v2737
      %v2739 = vrot.slane %v2738, 2
      %v2740 = vmax.f32 %v2738, %v2739
      %v2741 = vrot.slane %v2740, 1
      %v2742 = vmax.f32 %v2740, %v2741
      %v2743 = vsel %vm2637, %v1448, -inf
      %v2744 = vrot.slane %v2743, 4
      %v2745 = vmax.f32 %v2743, %v2744
      %v2746 = vrot.slane %v2745, 2
      %v2747 = vmax.f32 %v2745, %v2746
      %v2748 = vrot.slane %v2747, 1
      %v2749 = vmax.f32 %v2747, %v2748
      %v2750 = vsel %vm2637, %v1456, -inf
      %v2751 = vrot.slane %v2750, 4
      %v2752 = vmax.f32 %v2750, %v2751
      %v2753 = vrot.slane %v2752, 2
      %v2754 = vmax.f32 %v2752, %v2753
      %v2755 = vrot.slane %v2754, 1
      %v2756 = vmax.f32 %v2754, %v2755
      %v2757 = vsel %vm2637, %v1464, -inf
      %v2758 = vrot.slane %v2757, 4
      %v2759 = vmax.f32 %v2757, %v2758
      %v2760 = vrot.slane %v2759, 2
      %v2761 = vmax.f32 %v2759, %v2760
      %v2762 = vrot.slane %v2761, 1
      %v2763 = vmax.f32 %v2761, %v2762
      %v2764 = vsel %vm2637, %v1463, -inf
      %v2765 = vrot.slane %v2764, 4
      %v2766 = vmax.f32 %v2764, %v2765
      %v2767 = vrot.slane %v2766, 2
      %v2768 = vmax.f32 %v2766, %v2767
      %v2769 = vrot.slane %v2768, 1
      %v2770 = vmax.f32 %v2768, %v2769
      %v2771 = vsel %vm2637, %v1465, -inf
      %v2772 = vrot.slane %v2771, 4
      %v2773 = vmax.f32 %v2771, %v2772
      %v2774 = vrot.slane %v2773, 2
      %v2775 = vmax.f32 %v2773, %v2774
      %v2776 = vrot.slane %v2775, 1
      %v2777 = vmax.f32 %v2775, %v2776
      %v2778 = vsel %vm2637, %v1473, -inf
      %v2779 = vrot.slane %v2778, 4
      %v2780 = vmax.f32 %v2778, %v2779
      %v2781 = vrot.slane %v2780, 2
      %v2782 = vmax.f32 %v2780, %v2781
      %v2783 = vrot.slane %v2782, 1
      %v2784 = vmax.f32 %v2782, %v2783
      %v2785 = vsel %vm2637, %v1481, -inf
      %v2786 = vrot.slane %v2785, 4
      %v2787 = vmax.f32 %v2785, %v2786
      %v2788 = vrot.slane %v2787, 2
      %v2789 = vmax.f32 %v2787, %v2788
      %v2790 = vrot.slane %v2789, 1
      %v2791 = vmax.f32 %v2789, %v2790
      %v2792 = vsel %vm2637, %v1480, -inf
      %v2793 = vrot.slane %v2792, 4
      %v2794 = vmax.f32 %v2792, %v2793
      %v2795 = vrot.slane %v2794, 2
      %v2796 = vmax.f32 %v2794, %v2795
      %v2797 = vrot.slane %v2796, 1
      %v2798 = vmax.f32 %v2796, %v2797
      %v2799 = vsel %vm2637, %v1482, -inf
      %v2800 = vrot.slane %v2799, 4
      %v2801 = vmax.f32 %v2799, %v2800
      %v2802 = vrot.slane %v2801, 2
      %v2803 = vmax.f32 %v2801, %v2802
      %v2804 = vrot.slane %v2803, 1
      %v2805 = vmax.f32 %v2803, %v2804
      %v2806 = vsel %vm2637, %v1490, -inf
      %v2807 = vrot.slane %v2806, 4
      %v2808 = vmax.f32 %v2806, %v2807
      %v2809 = vrot.slane %v2808, 2
      %v2810 = vmax.f32 %v2808, %v2809
      %v2811 = vrot.slane %v2810, 1
      %v2812 = vmax.f32 %v2810, %v2811
      %v2813 = vsel %vm2637, %v1498, -inf
      %v2814 = vrot.slane %v2813, 4
      %v2815 = vmax.f32 %v2813, %v2814
      %v2816 = vrot.slane %v2815, 2
      %v2817 = vmax.f32 %v2815, %v2816
      %v2818 = vrot.slane %v2817, 1
      %v2819 = vmax.f32 %v2817, %v2818
      %v2820 = vsel %vm2637, %v1497, -inf
      %v2821 = vrot.slane %v2820, 4
      %v2822 = vmax.f32 %v2820, %v2821
      %v2823 = vrot.slane %v2822, 2
      %v2824 = vmax.f32 %v2822, %v2823
      %v2825 = vrot.slane %v2824, 1
      %v2826 = vmax.f32 %v2824, %v2825
      %v2827 = vsel %vm2637, %v1499, -inf
      %v2828 = vrot.slane %v2827, 4
      %v2829 = vmax.f32 %v2827, %v2828
      %v2830 = vrot.slane %v2829, 2
      %v2831 = vmax.f32 %v2829, %v2830
      %v2832 = vrot.slane %v2831, 1
      %v2833 = vmax.f32 %v2831, %v2832
      %v2834 = vsel %vm2637, %v1506, -inf
      %v2835 = vrot.slane %v2834, 4
      %v2836 = vmax.f32 %v2834, %v2835
      %v2837 = vrot.slane %v2836, 2
      %v2838 = vmax.f32 %v2836, %v2837
      %v2839 = vrot.slane %v2838, 1
      %v2840 = vmax.f32 %v2838, %v2839
      %v2841 = vsel %vm2637, %v1507, -inf
      %v2842 = vrot.slane %v2841, 4
      %v2843 = vmax.f32 %v2841, %v2842
      %v2844 = vrot.slane %v2843, 2
      %v2845 = vmax.f32 %v2843, %v2844
      %v2846 = vrot.slane %v2845, 1
      %v2847 = vmax.f32 %v2845, %v2846
      %v2848 = vsel %vm2637, %v1515, -inf
      %v2849 = vrot.slane %v2848, 4
      %v2850 = vmax.f32 %v2848, %v2849
      %v2851 = vrot.slane %v2850, 2
      %v2852 = vmax.f32 %v2850, %v2851
      %v2853 = vrot.slane %v2852, 1
      %v2854 = vmax.f32 %v2852, %v2853
      %v2855 = vsel %vm2637, %v1523, -inf
      %v2856 = vrot.slane %v2855, 4
      %v2857 = vmax.f32 %v2855, %v2856
      %v2858 = vrot.slane %v2857, 2
      %v2859 = vmax.f32 %v2857, %v2858
      %v2860 = vrot.slane %v2859, 1
      %v2861 = vmax.f32 %v2859, %v2860
      %v2862 = vsel %vm2637, %v1522, -inf
      %v2863 = vrot.slane %v2862, 4
      %v2864 = vmax.f32 %v2862, %v2863
      %v2865 = vrot.slane %v2864, 2
      %v2866 = vmax.f32 %v2864, %v2865
      %v2867 = vrot.slane %v2866, 1
      %v2868 = vmax.f32 %v2866, %v2867
      %v2869 = vsel %vm2637, %v1524, -inf
      %v2870 = vrot.slane %v2869, 4
      %v2871 = vmax.f32 %v2869, %v2870
      %v2872 = vrot.slane %v2871, 2
      %v2873 = vmax.f32 %v2871, %v2872
      %v2874 = vrot.slane %v2873, 1
      %v2875 = vmax.f32 %v2873, %v2874
      %v2876 = vsel %vm2637, %v1532, -inf
      %v2877 = vrot.slane %v2876, 4
      %v2878 = vmax.f32 %v2876, %v2877
      %v2879 = vrot.slane %v2878, 2
      %v2880 = vmax.f32 %v2878, %v2879
      %v2881 = vrot.slane %v2880, 1
      %v2882 = vmax.f32 %v2880, %v2881
      %v2883 = vsel %vm2637, %v1540, -inf
      %v2884 = vrot.slane %v2883, 4
      %v2885 = vmax.f32 %v2883, %v2884
      %v2886 = vrot.slane %v2885, 2
      %v2887 = vmax.f32 %v2885, %v2886
      %v2888 = vrot.slane %v2887, 1
      %v2889 = vmax.f32 %v2887, %v2888
      %v2890 = vsel %vm2637, %v1539, -inf
      %v2891 = vrot.slane %v2890, 4
      %v2892 = vmax.f32 %v2890, %v2891
      %v2893 = vrot.slane %v2892, 2
      %v2894 = vmax.f32 %v2892, %v2893
      %v2895 = vrot.slane %v2894, 1
      %v2896 = vmax.f32 %v2894, %v2895
      %v2897 = vsel %vm2637, %v1541, -inf
      %v2898 = vrot.slane %v2897, 4
      %v2899 = vmax.f32 %v2897, %v2898
      %v2900 = vrot.slane %v2899, 2
      %v2901 = vmax.f32 %v2899, %v2900
      %v2902 = vrot.slane %v2901, 1
      %v2903 = vmax.f32 %v2901, %v2902
      %v2904 = vsel %vm2637, %v1549, -inf
      %v2905 = vrot.slane %v2904, 4
      %v2906 = vmax.f32 %v2904, %v2905
      %v2907 = vrot.slane %v2906, 2
      %v2908 = vmax.f32 %v2906, %v2907
      %v2909 = vrot.slane %v2908, 1
      %v2910 = vmax.f32 %v2908, %v2909
      %v2911 = vsel %vm2637, %v1557, -inf
      %v2912 = vrot.slane %v2911, 4
      %v2913 = vmax.f32 %v2911, %v2912
      %v2914 = vrot.slane %v2913, 2
      %v2915 = vmax.f32 %v2913, %v2914
      %v2916 = vrot.slane %v2915, 1
      %v2917 = vmax.f32 %v2915, %v2916
      %v2918 = vsel %vm2637, %v1556, -inf
      %v2919 = vrot.slane %v2918, 4
      %v2920 = vmax.f32 %v2918, %v2919
      %v2921 = vrot.slane %v2920, 2
      %v2922 = vmax.f32 %v2920, %v2921
      %v2923 = vrot.slane %v2922, 1
      %v2924 = vmax.f32 %v2922, %v2923
      %v2925 = vsel %vm2637, %v1558, -inf
      %v2926 = vrot.slane %v2925, 4
      %v2927 = vmax.f32 %v2925, %v2926
      %v2928 = vrot.slane %v2927, 2
      %v2929 = vmax.f32 %v2927, %v2928
      %v2930 = vrot.slane %v2929, 1
      %v2931 = vmax.f32 %v2929, %v2930
      %v2932 = vsel %vm2637, %v1566, -inf
      %v2933 = vrot.slane %v2932, 4
      %v2934 = vmax.f32 %v2932, %v2933
      %v2935 = vrot.slane %v2934, 2
      %v2936 = vmax.f32 %v2934, %v2935
      %v2937 = vrot.slane %v2936, 1
      %v2938 = vmax.f32 %v2936, %v2937
      %v2939 = vsel %vm2637, %v1574, -inf
      %v2940 = vrot.slane %v2939, 4
      %v2941 = vmax.f32 %v2939, %v2940
      %v2942 = vrot.slane %v2941, 2
      %v2943 = vmax.f32 %v2941, %v2942
      %v2944 = vrot.slane %v2943, 1
      %v2945 = vmax.f32 %v2943, %v2944
      %v2946 = vsel %vm2637, %v1573, -inf
      %v2947 = vrot.slane %v2946, 4
      %v2948 = vmax.f32 %v2946, %v2947
      %v2949 = vrot.slane %v2948, 2
      %v2950 = vmax.f32 %v2948, %v2949
      %v2951 = vrot.slane %v2950, 1
      %v2952 = vmax.f32 %v2950, %v2951
      %v2953 = vsel %vm2637, %v1575, -inf
      %v2954 = vrot.slane %v2953, 4
      %v2955 = vmax.f32 %v2953, %v2954
      %v2956 = vrot.slane %v2955, 2
      %v2957 = vmax.f32 %v2955, %v2956
      %v2958 = vrot.slane %v2957, 1
      %v2959 = vmax.f32 %v2957, %v2958
      %v2960 = vsel %vm2637, %v1583, -inf
      %v2961 = vrot.slane %v2960, 4
      %v2962 = vmax.f32 %v2960, %v2961
      %v2963 = vrot.slane %v2962, 2
      %v2964 = vmax.f32 %v2962, %v2963
      %v2965 = vrot.slane %v2964, 1
      %v2966 = vmax.f32 %v2964, %v2965
      %v2967 = vsel %vm2637, %v1591, -inf
      %v2968 = vrot.slane %v2967, 4
      %v2969 = vmax.f32 %v2967, %v2968
      %v2970 = vrot.slane %v2969, 2
      %v2971 = vmax.f32 %v2969, %v2970
      %v2972 = vrot.slane %v2971, 1
      %v2973 = vmax.f32 %v2971, %v2972
      %v2974 = vsel %vm2637, %v1590, -inf
      %v2975 = vrot.slane %v2974, 4
      %v2976 = vmax.f32 %v2974, %v2975
      %v2977 = vrot.slane %v2976, 2
      %v2978 = vmax.f32 %v2976, %v2977
      %v2979 = vrot.slane %v2978, 1
      %v2980 = vmax.f32 %v2978, %v2979
      %v2981 = vsel %vm2637, %v1592, -inf
      %v2982 = vrot.slane %v2981, 4
      %v2983 = vmax.f32 %v2981, %v2982
      %v2984 = vrot.slane %v2983, 2
      %v2985 = vmax.f32 %v2983, %v2984
      %v2986 = vrot.slane %v2985, 1
      %v2987 = vmax.f32 %v2985, %v2986
      %v2988 = vsel %vm2637, %v1600, -inf
      %v2989 = vrot.slane %v2988, 4
      %v2990 = vmax.f32 %v2988, %v2989
      %v2991 = vrot.slane %v2990, 2
      %v2992 = vmax.f32 %v2990, %v2991
      %v2993 = vrot.slane %v2992, 1
      %v2994 = vmax.f32 %v2992, %v2993
      %v2995 = vsel %vm2637, %v1608, -inf
      %v2996 = vrot.slane %v2995, 4
      %v2997 = vmax.f32 %v2995, %v2996
      %v2998 = vrot.slane %v2997, 2
      %v2999 = vmax.f32 %v2997, %v2998
      %v3000 = vrot.slane %v2999, 1
      %v3001 = vmax.f32 %v2999, %v3000
      %v3002 = vsel %vm2637, %v1607, -inf
      %v3003 = vrot.slane %v3002, 4
      %v3004 = vmax.f32 %v3002, %v3003
      %v3005 = vrot.slane %v3004, 2
      %v3006 = vmax.f32 %v3004, %v3005
      %v3007 = vrot.slane %v3006, 1
      %v3008 = vmax.f32 %v3006, %v3007
      %v3009 = vsel %vm2637, %v1609, -inf
      %v3010 = vrot.slane %v3009, 4
      %v3011 = vmax.f32 %v3009, %v3010
      %v3012 = vrot.slane %v3011, 2
      %v3013 = vmax.f32 %v3011, %v3012
      %v3014 = vrot.slane %v3013, 1
      %v3015 = vmax.f32 %v3013, %v3014
      %v3016 = vsel %vm2637, %v1617, -inf
      %v3017 = vrot.slane %v3016, 4
      %v3018 = vmax.f32 %v3016, %v3017
      %v3019 = vrot.slane %v3018, 2
      %v3020 = vmax.f32 %v3018, %v3019
      %v3021 = vrot.slane %v3020, 1
      %v3022 = vmax.f32 %v3020, %v3021
      %v3023 = vsel %vm2637, %v1625, -inf
      %v3024 = vrot.slane %v3023, 4
      %v3025 = vmax.f32 %v3023, %v3024
      %v3026 = vrot.slane %v3025, 2
      %v3027 = vmax.f32 %v3025, %v3026
      %v3028 = vrot.slane %v3027, 1
      %v3029 = vmax.f32 %v3027, %v3028
      %v3030 = vsel %vm2637, %v1624, -inf
      %v3031 = vrot.slane %v3030, 4
      %v3032 = vmax.f32 %v3030, %v3031
      %v3033 = vrot.slane %v3032, 2
      %v3034 = vmax.f32 %v3032, %v3033
      %v3035 = vrot.slane %v3034, 1
      %v3036 = vmax.f32 %v3034, %v3035
      %v3037 = vsel %vm2637, %v1626, -inf
      %v3038 = vrot.slane %v3037, 4
      %v3039 = vmax.f32 %v3037, %v3038
      %v3040 = vrot.slane %v3039, 2
      %v3041 = vmax.f32 %v3039, %v3040
      %v3042 = vrot.slane %v3041, 1
      %v3043 = vmax.f32 %v3041, %v3042
      %v3044 = vsel %vm2637, %v1633, -inf
      %v3045 = vrot.slane %v3044, 4
      %v3046 = vmax.f32 %v3044, %v3045
      %v3047 = vrot.slane %v3046, 2
      %v3048 = vmax.f32 %v3046, %v3047
      %v3049 = vrot.slane %v3048, 1
      %v3050 = vmax.f32 %v3048, %v3049
      %v3051 = vsel %vm2637, %v1634, -inf
      %v3052 = vrot.slane %v3051, 4
      %v3053 = vmax.f32 %v3051, %v3052
      %v3054 = vrot.slane %v3053, 2
      %v3055 = vmax.f32 %v3053, %v3054
      %v3056 = vrot.slane %v3055, 1
      %v3057 = vmax.f32 %v3055, %v3056
      %v3058 = vsel %vm2637, %v1642, -inf
      %v3059 = vrot.slane %v3058, 4
      %v3060 = vmax.f32 %v3058, %v3059
      %v3061 = vrot.slane %v3060, 2
      %v3062 = vmax.f32 %v3060, %v3061
      %v3063 = vrot.slane %v3062, 1
      %v3064 = vmax.f32 %v3062, %v3063
      %v3065 = vsel %vm2637, %v1650, -inf
      %v3066 = vrot.slane %v3065, 4
      %v3067 = vmax.f32 %v3065, %v3066
      %v3068 = vrot.slane %v3067, 2
      %v3069 = vmax.f32 %v3067, %v3068
      %v3070 = vrot.slane %v3069, 1
      %v3071 = vmax.f32 %v3069, %v3070
      %v3072 = vsel %vm2637, %v1649, -inf
      %v3073 = vrot.slane %v3072, 4
      %v3074 = vmax.f32 %v3072, %v3073
      %v3075 = vrot.slane %v3074, 2
      %v3076 = vmax.f32 %v3074, %v3075
      %v3077 = vrot.slane %v3076, 1
      %v3078 = vmax.f32 %v3076, %v3077
      %v3079 = vsel %vm2637, %v1651, -inf
      %v3080 = vrot.slane %v3079, 4
      %v3081 = vmax.f32 %v3079, %v3080
      %v3082 = vrot.slane %v3081, 2
      %v3083 = vmax.f32 %v3081, %v3082
      %v3084 = vrot.slane %v3083, 1
      %v3085 = vmax.f32 %v3083, %v3084
      %v3086 = vsel %vm2637, %v1659, -inf
      %v3087 = vrot.slane %v3086, 4
      %v3088 = vmax.f32 %v3086, %v3087
      %v3089 = vrot.slane %v3088, 2
      %v3090 = vmax.f32 %v3088, %v3089
      %v3091 = vrot.slane %v3090, 1
      %v3092 = vmax.f32 %v3090, %v3091
      %v3093 = vsel %vm2637, %v1667, -inf
      %v3094 = vrot.slane %v3093, 4
      %v3095 = vmax.f32 %v3093, %v3094
      %v3096 = vrot.slane %v3095, 2
      %v3097 = vmax.f32 %v3095, %v3096
      %v3098 = vrot.slane %v3097, 1
      %v3099 = vmax.f32 %v3097, %v3098
      %v3100 = vsel %vm2637, %v1666, -inf
      %v3101 = vrot.slane %v3100, 4
      %v3102 = vmax.f32 %v3100, %v3101
      %v3103 = vrot.slane %v3102, 2
      %v3104 = vmax.f32 %v3102, %v3103
      %v3105 = vrot.slane %v3104, 1
      %v3106 = vmax.f32 %v3104, %v3105
      %v3107 = vsel %vm2637, %v1668, -inf
      %v3108 = vrot.slane %v3107, 4
      %v3109 = vmax.f32 %v3107, %v3108
      %v3110 = vrot.slane %v3109, 2
      %v3111 = vmax.f32 %v3109, %v3110
      %v3112 = vrot.slane %v3111, 1
      %v3113 = vmax.f32 %v3111, %v3112
      %v3114 = vsel %vm2637, %v1676, -inf
      %v3115 = vrot.slane %v3114, 4
      %v3116 = vmax.f32 %v3114, %v3115
      %v3117 = vrot.slane %v3116, 2
      %v3118 = vmax.f32 %v3116, %v3117
      %v3119 = vrot.slane %v3118, 1
      %v3120 = vmax.f32 %v3118, %v3119
      %v3121 = vsel %vm2637, %v1684, -inf
      %v3122 = vrot.slane %v3121, 4
      %v3123 = vmax.f32 %v3121, %v3122
      %v3124 = vrot.slane %v3123, 2
      %v3125 = vmax.f32 %v3123, %v3124
      %v3126 = vrot.slane %v3125, 1
      %v3127 = vmax.f32 %v3125, %v3126
      %v3128 = vsel %vm2637, %v1683, -inf
      %v3129 = vrot.slane %v3128, 4
      %v3130 = vmax.f32 %v3128, %v3129
      %v3131 = vrot.slane %v3130, 2
      %v3132 = vmax.f32 %v3130, %v3131
      %v3133 = vrot.slane %v3132, 1
      %v3134 = vmax.f32 %v3132, %v3133
      %v3135 = vsel %vm2637, %v1685, -inf
      %v3136 = vrot.slane %v3135, 4
      %v3137 = vmax.f32 %v3135, %v3136
      %v3138 = vrot.slane %v3137, 2
      %v3139 = vmax.f32 %v3137, %v3138
      %v3140 = vrot.slane %v3139, 1
      %v3141 = vmax.f32 %v3139, %v3140
      %v3142 = vsel %vm2637, %v1693, -inf
      %v3143 = vrot.slane %v3142, 4
      %v3144 = vmax.f32 %v3142, %v3143
      %v3145 = vrot.slane %v3144, 2
      %v3146 = vmax.f32 %v3144, %v3145
      %v3147 = vrot.slane %v3146, 1
      %v3148 = vmax.f32 %v3146, %v3147
      %v3149 = vsel %vm2637, %v1701, -inf
      %v3150 = vrot.slane %v3149, 4
      %v3151 = vmax.f32 %v3149, %v3150
      %v3152 = vrot.slane %v3151, 2
      %v3153 = vmax.f32 %v3151, %v3152
      %v3154 = vrot.slane %v3153, 1
      %v3155 = vmax.f32 %v3153, %v3154
      %v3156 = vsel %vm2637, %v1700, -inf
      %v3157 = vrot.slane %v3156, 4
      %v3158 = vmax.f32 %v3156, %v3157
      %v3159 = vrot.slane %v3158, 2
      %v3160 = vmax.f32 %v3158, %v3159
      %v3161 = vrot.slane %v3160, 1
      %v3162 = vmax.f32 %v3160, %v3161
      %v3163 = vsel %vm2637, %v1702, -inf
      %v3164 = vrot.slane %v3163, 4
      %v3165 = vmax.f32 %v3163, %v3164
      %v3166 = vrot.slane %v3165, 2
      %v3167 = vmax.f32 %v3165, %v3166
      %v3168 = vrot.slane %v3167, 1
      %v3169 = vmax.f32 %v3167, %v3168
      %v3170 = vsel %vm2637, %v1710, -inf
      %v3171 = vrot.slane %v3170, 4
      %v3172 = vmax.f32 %v3170, %v3171
      %v3173 = vrot.slane %v3172, 2
      %v3174 = vmax.f32 %v3172, %v3173
      %v3175 = vrot.slane %v3174, 1
      %v3176 = vmax.f32 %v3174, %v3175
      %v3177 = vsel %vm2637, %v1718, -inf
      %v3178 = vrot.slane %v3177, 4
      %v3179 = vmax.f32 %v3177, %v3178
      %v3180 = vrot.slane %v3179, 2
      %v3181 = vmax.f32 %v3179, %v3180
      %v3182 = vrot.slane %v3181, 1
      %v3183 = vmax.f32 %v3181, %v3182
      %v3184 = vsel %vm2637, %v1717, -inf
      %v3185 = vrot.slane %v3184, 4
      %v3186 = vmax.f32 %v3184, %v3185
      %v3187 = vrot.slane %v3186, 2
      %v3188 = vmax.f32 %v3186, %v3187
      %v3189 = vrot.slane %v3188, 1
      %v3190 = vmax.f32 %v3188, %v3189
      %v3191 = vsel %vm2637, %v1719, -inf
      %v3192 = vrot.slane %v3191, 4
      %v3193 = vmax.f32 %v3191, %v3192
      %v3194 = vrot.slane %v3193, 2
      %v3195 = vmax.f32 %v3193, %v3194
      %v3196 = vrot.slane %v3195, 1
      %v3197 = vmax.f32 %v3195, %v3196
      %v3198 = vsel %vm2637, %v1727, -inf
      %v3199 = vrot.slane %v3198, 4
      %v3200 = vmax.f32 %v3198, %v3199
      %v3201 = vrot.slane %v3200, 2
      %v3202 = vmax.f32 %v3200, %v3201
      %v3203 = vrot.slane %v3202, 1
      %v3204 = vmax.f32 %v3202, %v3203
      %v3205 = vsel %vm2637, %v1735, -inf
      %v3206 = vrot.slane %v3205, 4
      %v3207 = vmax.f32 %v3205, %v3206
      %v3208 = vrot.slane %v3207, 2
      %v3209 = vmax.f32 %v3207, %v3208
      %v3210 = vrot.slane %v3209, 1
      %v3211 = vmax.f32 %v3209, %v3210
      %v3212 = vsel %vm2637, %v1734, -inf
      %v3213 = vrot.slane %v3212, 4
      %v3214 = vmax.f32 %v3212, %v3213
      %v3215 = vrot.slane %v3214, 2
      %v3216 = vmax.f32 %v3214, %v3215
      %v3217 = vrot.slane %v3216, 1
      %v3218 = vmax.f32 %v3216, %v3217
      %v3219 = vsel %vm2637, %v1736, -inf
      %v3220 = vrot.slane %v3219, 4
      %v3221 = vmax.f32 %v3219, %v3220
      %v3222 = vrot.slane %v3221, 2
      %v3223 = vmax.f32 %v3221, %v3222
      %v3224 = vrot.slane %v3223, 1
      %v3225 = vmax.f32 %v3223, %v3224
      %v3226 = vsel %vm2637, %v1744, -inf
      %v3227 = vrot.slane %v3226, 4
      %v3228 = vmax.f32 %v3226, %v3227
      %v3229 = vrot.slane %v3228, 2
      %v3230 = vmax.f32 %v3228, %v3229
      %v3231 = vrot.slane %v3230, 1
      %v3232 = vmax.f32 %v3230, %v3231
      %v3233 = vsel %vm2637, %v1752, -inf
      %v3234 = vrot.slane %v3233, 4
      %v3235 = vmax.f32 %v3233, %v3234
      %v3236 = vrot.slane %v3235, 2
      %v3237 = vmax.f32 %v3235, %v3236
      %v3238 = vrot.slane %v3237, 1
      %v3239 = vmax.f32 %v3237, %v3238
      %v3240 = vsel %vm2637, %v1751, -inf
      %v3241 = vrot.slane %v3240, 4
      %v3242 = vmax.f32 %v3240, %v3241
      %v3243 = vrot.slane %v3242, 2
      %v3244 = vmax.f32 %v3242, %v3243
      %v3245 = vrot.slane %v3244, 1
      %v3246 = vmax.f32 %v3244, %v3245
      %v3247 = vsel %vm2637, %v1753, -inf
      %v3248 = vrot.slane %v3247, 4
      %v3249 = vmax.f32 %v3247, %v3248
      %v3250 = vrot.slane %v3249, 2
      %v3251 = vmax.f32 %v3249, %v3250
      %v3252 = vrot.slane %v3251, 1
      %v3253 = vmax.f32 %v3251, %v3252
      %v3254 = vsel %vm2637, %v1760, -inf
      %v3255 = vrot.slane %v3254, 4
      %v3256 = vmax.f32 %v3254, %v3255
      %v3257 = vrot.slane %v3256, 2
      %v3258 = vmax.f32 %v3256, %v3257
      %v3259 = vrot.slane %v3258, 1
      %v3260 = vmax.f32 %v3258, %v3259
      %v3261 = vsel %vm2637, %v1761, -inf
      %v3262 = vrot.slane %v3261, 4
      %v3263 = vmax.f32 %v3261, %v3262
      %v3264 = vrot.slane %v3263, 2
      %v3265 = vmax.f32 %v3263, %v3264
      %v3266 = vrot.slane %v3265, 1
      %v3267 = vmax.f32 %v3265, %v3266
      %v3268 = vsel %vm2637, %v1769, -inf
      %v3269 = vrot.slane %v3268, 4
      %v3270 = vmax.f32 %v3268, %v3269
      %v3271 = vrot.slane %v3270, 2
      %v3272 = vmax.f32 %v3270, %v3271
      %v3273 = vrot.slane %v3272, 1
      %v3274 = vmax.f32 %v3272, %v3273
      %v3275 = vsel %vm2637, %v1777, -inf
      %v3276 = vrot.slane %v3275, 4
      %v3277 = vmax.f32 %v3275, %v3276
      %v3278 = vrot.slane %v3277, 2
      %v3279 = vmax.f32 %v3277, %v3278
      %v3280 = vrot.slane %v3279, 1
      %v3281 = vmax.f32 %v3279, %v3280
      %v3282 = vsel %vm2637, %v1776, -inf
      %v3283 = vrot.slane %v3282, 4
      %v3284 = vmax.f32 %v3282, %v3283
      %v3285 = vrot.slane %v3284, 2
      %v3286 = vmax.f32 %v3284, %v3285
      %v3287 = vrot.slane %v3286, 1
      %v3288 = vmax.f32 %v3286, %v3287
      %v3289 = vsel %vm2637, %v1778, -inf
      %v3290 = vrot.slane %v3289, 4
      %v3291 = vmax.f32 %v3289, %v3290
      %v3292 = vrot.slane %v3291, 2
      %v3293 = vmax.f32 %v3291, %v3292
      %v3294 = vrot.slane %v3293, 1
      %v3295 = vmax.f32 %v3293, %v3294
      %v3296 = vsel %vm2637, %v1786, -inf
      %v3297 = vrot.slane %v3296, 4
      %v3298 = vmax.f32 %v3296, %v3297
      %v3299 = vrot.slane %v3298, 2
      %v3300 = vmax.f32 %v3298, %v3299
      %v3301 = vrot.slane %v3300, 1
      %v3302 = vmax.f32 %v3300, %v3301
      %v3303 = vsel %vm2637, %v1794, -inf
      %v3304 = vrot.slane %v3303, 4
      %v3305 = vmax.f32 %v3303, %v3304
      %v3306 = vrot.slane %v3305, 2
      %v3307 = vmax.f32 %v3305, %v3306
      %v3308 = vrot.slane %v3307, 1
      %v3309 = vmax.f32 %v3307, %v3308
      %v3310 = vsel %vm2637, %v1793, -inf
      %v3311 = vrot.slane %v3310, 4
      %v3312 = vmax.f32 %v3310, %v3311
      %v3313 = vrot.slane %v3312, 2
      %v3314 = vmax.f32 %v3312, %v3313
      %v3315 = vrot.slane %v3314, 1
      %v3316 = vmax.f32 %v3314, %v3315
      %v3317 = vsel %vm2637, %v1795, -inf
      %v3318 = vrot.slane %v3317, 4
      %v3319 = vmax.f32 %v3317, %v3318
      %v3320 = vrot.slane %v3319, 2
      %v3321 = vmax.f32 %v3319, %v3320
      %v3322 = vrot.slane %v3321, 1
      %v3323 = vmax.f32 %v3321, %v3322
      %v3324 = vsel %vm2637, %v1803, -inf
      %v3325 = vrot.slane %v3324, 4
      %v3326 = vmax.f32 %v3324, %v3325
      %v3327 = vrot.slane %v3326, 2
      %v3328 = vmax.f32 %v3326, %v3327
      %v3329 = vrot.slane %v3328, 1
      %v3330 = vmax.f32 %v3328, %v3329
      %v3331 = vsel %vm2637, %v1811, -inf
      %v3332 = vrot.slane %v3331, 4
      %v3333 = vmax.f32 %v3331, %v3332
      %v3334 = vrot.slane %v3333, 2
      %v3335 = vmax.f32 %v3333, %v3334
      %v3336 = vrot.slane %v3335, 1
      %v3337 = vmax.f32 %v3335, %v3336
      %v3338 = vsel %vm2637, %v1810, -inf
      %v3339 = vrot.slane %v3338, 4
      %v3340 = vmax.f32 %v3338, %v3339
      %v3341 = vrot.slane %v3340, 2
      %v3342 = vmax.f32 %v3340, %v3341
      %v3343 = vrot.slane %v3342, 1
      %v3344 = vmax.f32 %v3342, %v3343
      %v3345 = vsel %vm2637, %v1812, -inf
      %v3346 = vrot.slane %v3345, 4
      %v3347 = vmax.f32 %v3345, %v3346
      %v3348 = vrot.slane %v3347, 2
      %v3349 = vmax.f32 %v3347, %v3348
      %v3350 = vrot.slane %v3349, 1
      %v3351 = vmax.f32 %v3349, %v3350
      %v3352 = vsel %vm2637, %v1820, -inf
      %v3353 = vrot.slane %v3352, 4
      %v3354 = vmax.f32 %v3352, %v3353
      %v3355 = vrot.slane %v3354, 2
      %v3356 = vmax.f32 %v3354, %v3355
      %v3357 = vrot.slane %v3356, 1
      %v3358 = vmax.f32 %v3356, %v3357
      %v3359 = vsel %vm2637, %v1828, -inf
      %v3360 = vrot.slane %v3359, 4
      %v3361 = vmax.f32 %v3359, %v3360
      %v3362 = vrot.slane %v3361, 2
      %v3363 = vmax.f32 %v3361, %v3362
      %v3364 = vrot.slane %v3363, 1
      %v3365 = vmax.f32 %v3363, %v3364
      %v3366 = vsel %vm2637, %v1827, -inf
      %v3367 = vrot.slane %v3366, 4
      %v3368 = vmax.f32 %v3366, %v3367
      %v3369 = vrot.slane %v3368, 2
      %v3370 = vmax.f32 %v3368, %v3369
      %v3371 = vrot.slane %v3370, 1
      %v3372 = vmax.f32 %v3370, %v3371
      %v3373 = vsel %vm2637, %v1829, -inf
      %v3374 = vrot.slane %v3373, 4
      %v3375 = vmax.f32 %v3373, %v3374
      %v3376 = vrot.slane %v3375, 2
      %v3377 = vmax.f32 %v3375, %v3376
      %v3378 = vrot.slane %v3377, 1
      %v3379 = vmax.f32 %v3377, %v3378
      %v3380 = vsel %vm2637, %v1837, -inf
      %v3381 = vrot.slane %v3380, 4
      %v3382 = vmax.f32 %v3380, %v3381
      %v3383 = vrot.slane %v3382, 2
      %v3384 = vmax.f32 %v3382, %v3383
      %v3385 = vrot.slane %v3384, 1
      %v3386 = vmax.f32 %v3384, %v3385
      %v3387 = vsel %vm2637, %v1845, -inf
      %v3388 = vrot.slane %v3387, 4
      %v3389 = vmax.f32 %v3387, %v3388
      %v3390 = vrot.slane %v3389, 2
      %v3391 = vmax.f32 %v3389, %v3390
      %v3392 = vrot.slane %v3391, 1
      %v3393 = vmax.f32 %v3391, %v3392
      %v3394 = vsel %vm2637, %v1844, -inf
      %v3395 = vrot.slane %v3394, 4
      %v3396 = vmax.f32 %v3394, %v3395
      %v3397 = vrot.slane %v3396, 2
      %v3398 = vmax.f32 %v3396, %v3397
      %v3399 = vrot.slane %v3398, 1
      %v3400 = vmax.f32 %v3398, %v3399
      %v3401 = vsel %vm2637, %v1846, -inf
      %v3402 = vrot.slane %v3401, 4
      %v3403 = vmax.f32 %v3401, %v3402
      %v3404 = vrot.slane %v3403, 2
      %v3405 = vmax.f32 %v3403, %v3404
      %v3406 = vrot.slane %v3405, 1
      %v3407 = vmax.f32 %v3405, %v3406
      %v3408 = vsel %vm2637, %v1854, -inf
      %v3409 = vrot.slane %v3408, 4
      %v3410 = vmax.f32 %v3408, %v3409
      %v3411 = vrot.slane %v3410, 2
      %v3412 = vmax.f32 %v3410, %v3411
      %v3413 = vrot.slane %v3412, 1
      %v3414 = vmax.f32 %v3412, %v3413
      %v3415 = vsel %vm2637, %v1862, -inf
      %v3416 = vrot.slane %v3415, 4
      %v3417 = vmax.f32 %v3415, %v3416
      %v3418 = vrot.slane %v3417, 2
      %v3419 = vmax.f32 %v3417, %v3418
      %v3420 = vrot.slane %v3419, 1
      %v3421 = vmax.f32 %v3419, %v3420
      %v3422 = vsel %vm2637, %v1861, -inf
      %v3423 = vrot.slane %v3422, 4
      %v3424 = vmax.f32 %v3422, %v3423
      %v3425 = vrot.slane %v3424, 2
      %v3426 = vmax.f32 %v3424, %v3425
      %v3427 = vrot.slane %v3426, 1
      %v3428 = vmax.f32 %v3426, %v3427
      %v3429 = vsel %vm2637, %v1863, -inf
      %v3430 = vrot.slane %v3429, 4
      %v3431 = vmax.f32 %v3429, %v3430
      %v3432 = vrot.slane %v3431, 2
      %v3433 = vmax.f32 %v3431, %v3432
      %v3434 = vrot.slane %v3433, 1
      %v3435 = vmax.f32 %v3433, %v3434
      %v3436 = vsel %vm2637, %v1871, -inf
      %v3437 = vrot.slane %v3436, 4
      %v3438 = vmax.f32 %v3436, %v3437
      %v3439 = vrot.slane %v3438, 2
      %v3440 = vmax.f32 %v3438, %v3439
      %v3441 = vrot.slane %v3440, 1
      %v3442 = vmax.f32 %v3440, %v3441
      %v3443 = vsel %vm2637, %v1879, -inf
      %v3444 = vrot.slane %v3443, 4
      %v3445 = vmax.f32 %v3443, %v3444
      %v3446 = vrot.slane %v3445, 2
      %v3447 = vmax.f32 %v3445, %v3446
      %v3448 = vrot.slane %v3447, 1
      %v3449 = vmax.f32 %v3447, %v3448
      %v3450 = vsel %vm2637, %v1878, -inf
      %v3451 = vrot.slane %v3450, 4
      %v3452 = vmax.f32 %v3450, %v3451
      %v3453 = vrot.slane %v3452, 2
      %v3454 = vmax.f32 %v3452, %v3453
      %v3455 = vrot.slane %v3454, 1
      %v3456 = vmax.f32 %v3454, %v3455
      %v3457 = vsel %vm2637, %v1880, -inf
      %v3458 = vrot.slane %v3457, 4
      %v3459 = vmax.f32 %v3457, %v3458
      %v3460 = vrot.slane %v3459, 2
      %v3461 = vmax.f32 %v3459, %v3460
      %v3462 = vrot.slane %v3461, 1
      %v3463 = vmax.f32 %v3461, %v3462
      %v3464 = vsel %vm2637, %v1887, -inf
      %v3465 = vrot.slane %v3464, 4
      %v3466 = vmax.f32 %v3464, %v3465
      %v3467 = vrot.slane %v3466, 2
      %v3468 = vmax.f32 %v3466, %v3467
      %v3469 = vrot.slane %v3468, 1
      %v3470 = vmax.f32 %v3468, %v3469
      %v3471 = vsel %vm2637, %v1888, -inf
      %v3472 = vrot.slane %v3471, 4
      %v3473 = vmax.f32 %v3471, %v3472
      %v3474 = vrot.slane %v3473, 2
      %v3475 = vmax.f32 %v3473, %v3474
      %v3476 = vrot.slane %v3475, 1
      %v3477 = vmax.f32 %v3475, %v3476
      %v3478 = vsel %vm2637, %v1896, -inf
      %v3479 = vrot.slane %v3478, 4
      %v3480 = vmax.f32 %v3478, %v3479
      %v3481 = vrot.slane %v3480, 2
      %v3482 = vmax.f32 %v3480, %v3481
      %v3483 = vrot.slane %v3482, 1
      %v3484 = vmax.f32 %v3482, %v3483
      %v3485 = vsel %vm2637, %v1904, -inf
      %v3486 = vrot.slane %v3485, 4
      %v3487 = vmax.f32 %v3485, %v3486
      %v3488 = vrot.slane %v3487, 2
      %v3489 = vmax.f32 %v3487, %v3488
      %v3490 = vrot.slane %v3489, 1
      %v3491 = vmax.f32 %v3489, %v3490
      %v3492 = vsel %vm2637, %v1903, -inf
      %v3493 = vrot.slane %v3492, 4
      %v3494 = vmax.f32 %v3492, %v3493
      %v3495 = vrot.slane %v3494, 2
      %v3496 = vmax.f32 %v3494, %v3495
      %v3497 = vrot.slane %v3496, 1
      %v3498 = vmax.f32 %v3496, %v3497
      %v3499 = vsel %vm2637, %v1905, -inf
      %v3500 = vrot.slane %v3499, 4
      %v3501 = vmax.f32 %v3499, %v3500
      %v3502 = vrot.slane %v3501, 2
      %v3503 = vmax.f32 %v3501, %v3502
      %v3504 = vrot.slane %v3503, 1
      %v3505 = vmax.f32 %v3503, %v3504
      %v3506 = vsel %vm2637, %v1913, -inf
      %v3507 = vrot.slane %v3506, 4
      %v3508 = vmax.f32 %v3506, %v3507
      %v3509 = vrot.slane %v3508, 2
      %v3510 = vmax.f32 %v3508, %v3509
      %v3511 = vrot.slane %v3510, 1
      %v3512 = vmax.f32 %v3510, %v3511
      %v3513 = vsel %vm2637, %v1921, -inf
      %v3514 = vrot.slane %v3513, 4
      %v3515 = vmax.f32 %v3513, %v3514
      %v3516 = vrot.slane %v3515, 2
      %v3517 = vmax.f32 %v3515, %v3516
      %v3518 = vrot.slane %v3517, 1
      %v3519 = vmax.f32 %v3517, %v3518
      %v3520 = vsel %vm2637, %v1920, -inf
      %v3521 = vrot.slane %v3520, 4
      %v3522 = vmax.f32 %v3520, %v3521
      %v3523 = vrot.slane %v3522, 2
      %v3524 = vmax.f32 %v3522, %v3523
      %v3525 = vrot.slane %v3524, 1
      %v3526 = vmax.f32 %v3524, %v3525
      %v3527 = vsel %vm2637, %v1922, -inf
      %v3528 = vrot.slane %v3527, 4
      %v3529 = vmax.f32 %v3527, %v3528
      %v3530 = vrot.slane %v3529, 2
      %v3531 = vmax.f32 %v3529, %v3530
      %v3532 = vrot.slane %v3531, 1
      %v3533 = vmax.f32 %v3531, %v3532
      %v3534 = vsel %vm2637, %v1930, -inf
      %v3535 = vrot.slane %v3534, 4
      %v3536 = vmax.f32 %v3534, %v3535
      %v3537 = vrot.slane %v3536, 2
      %v3538 = vmax.f32 %v3536, %v3537
      %v3539 = vrot.slane %v3538, 1
      %v3540 = vmax.f32 %v3538, %v3539
      %v3541 = vsel %vm2637, %v1938, -inf
      %v3542 = vrot.slane %v3541, 4
      %v3543 = vmax.f32 %v3541, %v3542
      %v3544 = vrot.slane %v3543, 2
      %v3545 = vmax.f32 %v3543, %v3544
      %v3546 = vrot.slane %v3545, 1
      %v3547 = vmax.f32 %v3545, %v3546
      %v3548 = vsel %vm2637, %v1937, -inf
      %v3549 = vrot.slane %v3548, 4
      %v3550 = vmax.f32 %v3548, %v3549
      %v3551 = vrot.slane %v3550, 2
      %v3552 = vmax.f32 %v3550, %v3551
      %v3553 = vrot.slane %v3552, 1
      %v3554 = vmax.f32 %v3552, %v3553
      %v3555 = vsel %vm2637, %v1939, -inf
      %v3556 = vrot.slane %v3555, 4
      %v3557 = vmax.f32 %v3555, %v3556
      %v3558 = vrot.slane %v3557, 2
      %v3559 = vmax.f32 %v3557, %v3558
      %v3560 = vrot.slane %v3559, 1
      %v3561 = vmax.f32 %v3559, %v3560
      %v3562 = vsel %vm2637, %v1947, -inf
      %v3563 = vrot.slane %v3562, 4
      %v3564 = vmax.f32 %v3562, %v3563
      %v3565 = vrot.slane %v3564, 2
      %v3566 = vmax.f32 %v3564, %v3565
      %v3567 = vrot.slane %v3566, 1
      %v3568 = vmax.f32 %v3566, %v3567
      %v3569 = vsel %vm2637, %v1955, -inf
      %v3570 = vrot.slane %v3569, 4
      %v3571 = vmax.f32 %v3569, %v3570
      %v3572 = vrot.slane %v3571, 2
      %v3573 = vmax.f32 %v3571, %v3572
      %v3574 = vrot.slane %v3573, 1
      %v3575 = vmax.f32 %v3573, %v3574
      %v3576 = vsel %vm2637, %v1954, -inf
      %v3577 = vrot.slane %v3576, 4
      %v3578 = vmax.f32 %v3576, %v3577
      %v3579 = vrot.slane %v3578, 2
      %v3580 = vmax.f32 %v3578, %v3579
      %v3581 = vrot.slane %v3580, 1
      %v3582 = vmax.f32 %v3580, %v3581
      %v3583 = vsel %vm2637, %v1956, -inf
      %v3584 = vrot.slane %v3583, 4
      %v3585 = vmax.f32 %v3583, %v3584
      %v3586 = vrot.slane %v3585, 2
      %v3587 = vmax.f32 %v3585, %v3586
      %v3588 = vrot.slane %v3587, 1
      %v3589 = vmax.f32 %v3587, %v3588
      %v3590 = vsel %vm2637, %v1964, -inf
      %v3591 = vrot.slane %v3590, 4
      %v3592 = vmax.f32 %v3590, %v3591
      %v3593 = vrot.slane %v3592, 2
      %v3594 = vmax.f32 %v3592, %v3593
      %v3595 = vrot.slane %v3594, 1
      %v3596 = vmax.f32 %v3594, %v3595
      %v3597 = vsel %vm2637, %v1972, -inf
      %v3598 = vrot.slane %v3597, 4
      %v3599 = vmax.f32 %v3597, %v3598
      %v3600 = vrot.slane %v3599, 2
      %v3601 = vmax.f32 %v3599, %v3600
      %v3602 = vrot.slane %v3601, 1
      %v3603 = vmax.f32 %v3601, %v3602
      %v3604 = vsel %vm2637, %v1971, -inf
      %v3605 = vrot.slane %v3604, 4
      %v3606 = vmax.f32 %v3604, %v3605
      %v3607 = vrot.slane %v3606, 2
      %v3608 = vmax.f32 %v3606, %v3607
      %v3609 = vrot.slane %v3608, 1
      %v3610 = vmax.f32 %v3608, %v3609
      %v3611 = vsel %vm2637, %v1973, -inf
      %v3612 = vrot.slane %v3611, 4
      %v3613 = vmax.f32 %v3611, %v3612
      %v3614 = vrot.slane %v3613, 2
      %v3615 = vmax.f32 %v3613, %v3614
      %v3616 = vrot.slane %v3615, 1
      %v3617 = vmax.f32 %v3615, %v3616
      %v3618 = vsel %vm2637, %v1981, -inf
      %v3619 = vrot.slane %v3618, 4
      %v3620 = vmax.f32 %v3618, %v3619
      %v3621 = vrot.slane %v3620, 2
      %v3622 = vmax.f32 %v3620, %v3621
      %v3623 = vrot.slane %v3622, 1
      %v3624 = vmax.f32 %v3622, %v3623
      %v3625 = vsel %vm2637, %v1989, -inf
      %v3626 = vrot.slane %v3625, 4
      %v3627 = vmax.f32 %v3625, %v3626
      %v3628 = vrot.slane %v3627, 2
      %v3629 = vmax.f32 %v3627, %v3628
      %v3630 = vrot.slane %v3629, 1
      %v3631 = vmax.f32 %v3629, %v3630
      %v3632 = vsel %vm2637, %v1988, -inf
      %v3633 = vrot.slane %v3632, 4
      %v3634 = vmax.f32 %v3632, %v3633
      %v3635 = vrot.slane %v3634, 2
      %v3636 = vmax.f32 %v3634, %v3635
      %v3637 = vrot.slane %v3636, 1
      %v3638 = vmax.f32 %v3636, %v3637
      %v3639 = vsel %vm2637, %v1990, -inf
      %v3640 = vrot.slane %v3639, 4
      %v3641 = vmax.f32 %v3639, %v3640
      %v3642 = vrot.slane %v3641, 2
      %v3643 = vmax.f32 %v3641, %v3642
      %v3644 = vrot.slane %v3643, 1
      %v3645 = vmax.f32 %v3643, %v3644
      %v3646 = vsel %vm2637, %v1998, -inf
      %v3647 = vrot.slane %v3646, 4
      %v3648 = vmax.f32 %v3646, %v3647
      %v3649 = vrot.slane %v3648, 2
      %v3650 = vmax.f32 %v3648, %v3649
      %v3651 = vrot.slane %v3650, 1
      %v3652 = vmax.f32 %v3650, %v3651
      %v3653 = vsel %vm2637, %v2006, -inf
      %v3654 = vrot.slane %v3653, 4
      %v3655 = vmax.f32 %v3653, %v3654
      %v3656 = vrot.slane %v3655, 2
      %v3657 = vmax.f32 %v3655, %v3656
      %v3658 = vrot.slane %v3657, 1
      %v3659 = vmax.f32 %v3657, %v3658
      %v3660 = vsel %vm2637, %v2005, -inf
      %v3661 = vrot.slane %v3660, 4
      %v3662 = vmax.f32 %v3660, %v3661
      %v3663 = vrot.slane %v3662, 2
      %v3664 = vmax.f32 %v3662, %v3663
      %v3665 = vrot.slane %v3664, 1
      %v3666 = vmax.f32 %v3664, %v3665
      %v3667 = vsel %vm2637, %v2007, -inf
      %v3668 = vrot.slane %v3667, 4
      %v3669 = vmax.f32 %v3667, %v3668
      %v3670 = vrot.slane %v3669, 2
      %v3671 = vmax.f32 %v3669, %v3670
      %v3672 = vrot.slane %v3671, 1
      %v3673 = vmax.f32 %v3671, %v3672
      %v3674 = vsel %vm2637, %v2014, -inf
      %v3675 = vrot.slane %v3674, 4
      %v3676 = vmax.f32 %v3674, %v3675
      %v3677 = vrot.slane %v3676, 2
      %v3678 = vmax.f32 %v3676, %v3677
      %v3679 = vrot.slane %v3678, 1
      %v3680 = vmax.f32 %v3678, %v3679
      %v3681 = vsel %vm2637, %v2015, -inf
      %v3682 = vrot.slane %v3681, 4
      %v3683 = vmax.f32 %v3681, %v3682
      %v3684 = vrot.slane %v3683, 2
      %v3685 = vmax.f32 %v3683, %v3684
      %v3686 = vrot.slane %v3685, 1
      %v3687 = vmax.f32 %v3685, %v3686
      %v3688 = vsel %vm2637, %v2023, -inf
      %v3689 = vrot.slane %v3688, 4
      %v3690 = vmax.f32 %v3688, %v3689
      %v3691 = vrot.slane %v3690, 2
      %v3692 = vmax.f32 %v3690, %v3691
      %v3693 = vrot.slane %v3692, 1
      %v3694 = vmax.f32 %v3692, %v3693
      %v3695 = vsel %vm2637, %v2031, -inf
      %v3696 = vrot.slane %v3695, 4
      %v3697 = vmax.f32 %v3695, %v3696
      %v3698 = vrot.slane %v3697, 2
      %v3699 = vmax.f32 %v3697, %v3698
      %v3700 = vrot.slane %v3699, 1
      %v3701 = vmax.f32 %v3699, %v3700
      %v3702 = vsel %vm2637, %v2030, -inf
      %v3703 = vrot.slane %v3702, 4
      %v3704 = vmax.f32 %v3702, %v3703
      %v3705 = vrot.slane %v3704, 2
      %v3706 = vmax.f32 %v3704, %v3705
      %v3707 = vrot.slane %v3706, 1
      %v3708 = vmax.f32 %v3706, %v3707
      %v3709 = vsel %vm2637, %v2032, -inf
      %v3710 = vrot.slane %v3709, 4
      %v3711 = vmax.f32 %v3709, %v3710
      %v3712 = vrot.slane %v3711, 2
      %v3713 = vmax.f32 %v3711, %v3712
      %v3714 = vrot.slane %v3713, 1
      %v3715 = vmax.f32 %v3713, %v3714
      %v3716 = vsel %vm2637, %v2040, -inf
      %v3717 = vrot.slane %v3716, 4
      %v3718 = vmax.f32 %v3716, %v3717
      %v3719 = vrot.slane %v3718, 2
      %v3720 = vmax.f32 %v3718, %v3719
      %v3721 = vrot.slane %v3720, 1
      %v3722 = vmax.f32 %v3720, %v3721
      %v3723 = vsel %vm2637, %v2048, -inf
      %v3724 = vrot.slane %v3723, 4
      %v3725 = vmax.f32 %v3723, %v3724
      %v3726 = vrot.slane %v3725, 2
      %v3727 = vmax.f32 %v3725, %v3726
      %v3728 = vrot.slane %v3727, 1
      %v3729 = vmax.f32 %v3727, %v3728
      %v3730 = vsel %vm2637, %v2047, -inf
      %v3731 = vrot.slane %v3730, 4
      %v3732 = vmax.f32 %v3730, %v3731
      %v3733 = vrot.slane %v3732, 2
      %v3734 = vmax.f32 %v3732, %v3733
      %v3735 = vrot.slane %v3734, 1
      %v3736 = vmax.f32 %v3734, %v3735
      %v3737 = vsel %vm2637, %v2049, -inf
      %v3738 = vrot.slane %v3737, 4
      %v3739 = vmax.f32 %v3737, %v3738
      %v3740 = vrot.slane %v3739, 2
      %v3741 = vmax.f32 %v3739, %v3740
      %v3742 = vrot.slane %v3741, 1
      %v3743 = vmax.f32 %v3741, %v3742
      %v3744 = vsel %vm2637, %v2057, -inf
      %v3745 = vrot.slane %v3744, 4
      %v3746 = vmax.f32 %v3744, %v3745
      %v3747 = vrot.slane %v3746, 2
      %v3748 = vmax.f32 %v3746, %v3747
      %v3749 = vrot.slane %v3748, 1
      %v3750 = vmax.f32 %v3748, %v3749
      %v3751 = vsel %vm2637, %v2065, -inf
      %v3752 = vrot.slane %v3751, 4
      %v3753 = vmax.f32 %v3751, %v3752
      %v3754 = vrot.slane %v3753, 2
      %v3755 = vmax.f32 %v3753, %v3754
      %v3756 = vrot.slane %v3755, 1
      %v3757 = vmax.f32 %v3755, %v3756
      %v3758 = vsel %vm2637, %v2064, -inf
      %v3759 = vrot.slane %v3758, 4
      %v3760 = vmax.f32 %v3758, %v3759
      %v3761 = vrot.slane %v3760, 2
      %v3762 = vmax.f32 %v3760, %v3761
      %v3763 = vrot.slane %v3762, 1
      %v3764 = vmax.f32 %v3762, %v3763
      %v3765 = vsel %vm2637, %v2066, -inf
      %v3766 = vrot.slane %v3765, 4
      %v3767 = vmax.f32 %v3765, %v3766
      %v3768 = vrot.slane %v3767, 2
      %v3769 = vmax.f32 %v3767, %v3768
      %v3770 = vrot.slane %v3769, 1
      %v3771 = vmax.f32 %v3769, %v3770
      %v3772 = vsel %vm2637, %v2074, -inf
      %v3773 = vrot.slane %v3772, 4
      %v3774 = vmax.f32 %v3772, %v3773
      %v3775 = vrot.slane %v3774, 2
      %v3776 = vmax.f32 %v3774, %v3775
      %v3777 = vrot.slane %v3776, 1
      %v3778 = vmax.f32 %v3776, %v3777
      %v3779 = vsel %vm2637, %v2082, -inf
      %v3780 = vrot.slane %v3779, 4
      %v3781 = vmax.f32 %v3779, %v3780
      %v3782 = vrot.slane %v3781, 2
      %v3783 = vmax.f32 %v3781, %v3782
      %v3784 = vrot.slane %v3783, 1
      %v3785 = vmax.f32 %v3783, %v3784
      %v3786 = vsel %vm2637, %v2081, -inf
      %v3787 = vrot.slane %v3786, 4
      %v3788 = vmax.f32 %v3786, %v3787
      %v3789 = vrot.slane %v3788, 2
      %v3790 = vmax.f32 %v3788, %v3789
      %v3791 = vrot.slane %v3790, 1
      %v3792 = vmax.f32 %v3790, %v3791
      %v3793 = vsel %vm2637, %v2083, -inf
      %v3794 = vrot.slane %v3793, 4
      %v3795 = vmax.f32 %v3793, %v3794
      %v3796 = vrot.slane %v3795, 2
      %v3797 = vmax.f32 %v3795, %v3796
      %v3798 = vrot.slane %v3797, 1
      %v3799 = vmax.f32 %v3797, %v3798
      %v3800 = vsel %vm2637, %v2091, -inf
      %v3801 = vrot.slane %v3800, 4
      %v3802 = vmax.f32 %v3800, %v3801
      %v3803 = vrot.slane %v3802, 2
      %v3804 = vmax.f32 %v3802, %v3803
      %v3805 = vrot.slane %v3804, 1
      %v3806 = vmax.f32 %v3804, %v3805
      %v3807 = vsel %vm2637, %v2099, -inf
      %v3808 = vrot.slane %v3807, 4
      %v3809 = vmax.f32 %v3807, %v3808
      %v3810 = vrot.slane %v3809, 2
      %v3811 = vmax.f32 %v3809, %v3810
      %v3812 = vrot.slane %v3811, 1
      %v3813 = vmax.f32 %v3811, %v3812
      %v3814 = vsel %vm2637, %v2098, -inf
      %v3815 = vrot.slane %v3814, 4
      %v3816 = vmax.f32 %v3814, %v3815
      %v3817 = vrot.slane %v3816, 2
      %v3818 = vmax.f32 %v3816, %v3817
      %v3819 = vrot.slane %v3818, 1
      %v3820 = vmax.f32 %v3818, %v3819
      %v3821 = vsel %vm2637, %v2100, -inf
      %v3822 = vrot.slane %v3821, 4
      %v3823 = vmax.f32 %v3821, %v3822
      %v3824 = vrot.slane %v3823, 2
      %v3825 = vmax.f32 %v3823, %v3824
      %v3826 = vrot.slane %v3825, 1
      %v3827 = vmax.f32 %v3825, %v3826
      %v3828 = vsel %vm2637, %v2108, -inf
      %v3829 = vrot.slane %v3828, 4
      %v3830 = vmax.f32 %v3828, %v3829
      %v3831 = vrot.slane %v3830, 2
      %v3832 = vmax.f32 %v3830, %v3831
      %v3833 = vrot.slane %v3832, 1
      %v3834 = vmax.f32 %v3832, %v3833
      %v3835 = vsel %vm2637, %v2116, -inf
      %v3836 = vrot.slane %v3835, 4
      %v3837 = vmax.f32 %v3835, %v3836
      %v3838 = vrot.slane %v3837, 2
      %v3839 = vmax.f32 %v3837, %v3838
      %v3840 = vrot.slane %v3839, 1
      %v3841 = vmax.f32 %v3839, %v3840
      %v3842 = vsel %vm2637, %v2115, -inf
      %v3843 = vrot.slane %v3842, 4
      %v3844 = vmax.f32 %v3842, %v3843
      %v3845 = vrot.slane %v3844, 2
      %v3846 = vmax.f32 %v3844, %v3845
      %v3847 = vrot.slane %v3846, 1
      %v3848 = vmax.f32 %v3846, %v3847
      %v3849 = vsel %vm2637, %v2117, -inf
      %v3850 = vrot.slane %v3849, 4
      %v3851 = vmax.f32 %v3849, %v3850
      %v3852 = vrot.slane %v3851, 2
      %v3853 = vmax.f32 %v3851, %v3852
      %v3854 = vrot.slane %v3853, 1
      %v3855 = vmax.f32 %v3853, %v3854
      %v3856 = vsel %vm2637, %v2125, -inf
      %v3857 = vrot.slane %v3856, 4
      %v3858 = vmax.f32 %v3856, %v3857
      %v3859 = vrot.slane %v3858, 2
      %v3860 = vmax.f32 %v3858, %v3859
      %v3861 = vrot.slane %v3860, 1
      %v3862 = vmax.f32 %v3860, %v3861
      %v3863 = vsel %vm2637, %v2133, -inf
      %v3864 = vrot.slane %v3863, 4
      %v3865 = vmax.f32 %v3863, %v3864
      %v3866 = vrot.slane %v3865, 2
      %v3867 = vmax.f32 %v3865, %v3866
      %v3868 = vrot.slane %v3867, 1
      %v3869 = vmax.f32 %v3867, %v3868
      %v3870 = vsel %vm2637, %v2132, -inf
      %v3871 = vrot.slane %v3870, 4
      %v3872 = vmax.f32 %v3870, %v3871
      %v3873 = vrot.slane %v3872, 2
      %v3874 = vmax.f32 %v3872, %v3873
      %v3875 = vrot.slane %v3874, 1
      %v3876 = vmax.f32 %v3874, %v3875
      %v3877 = vsel %vm2637, %v2134, -inf
      %v3878 = vrot.slane %v3877, 4
      %v3879 = vmax.f32 %v3877, %v3878
      %v3880 = vrot.slane %v3879, 2
      %v3881 = vmax.f32 %v3879, %v3880
      %v3882 = vrot.slane %v3881, 1
      %v3883 = vmax.f32 %v3881, %v3882
      %v3884 = vsel %vm2637, %v2141, -inf
      %v3885 = vrot.slane %v3884, 4
      %v3886 = vmax.f32 %v3884, %v3885
      %v3887 = vrot.slane %v3886, 2
      %v3888 = vmax.f32 %v3886, %v3887
      %v3889 = vrot.slane %v3888, 1
      %v3890 = vmax.f32 %v3888, %v3889
      %v3891 = vsel %vm2637, %v2142, -inf
      %v3892 = vrot.slane %v3891, 4
      %v3893 = vmax.f32 %v3891, %v3892
      %v3894 = vrot.slane %v3893, 2
      %v3895 = vmax.f32 %v3893, %v3894
      %v3896 = vrot.slane %v3895, 1
      %v3897 = vmax.f32 %v3895, %v3896
      %v3898 = vsel %vm2637, %v2150, -inf
      %v3899 = vrot.slane %v3898, 4
      %v3900 = vmax.f32 %v3898, %v3899
      %v3901 = vrot.slane %v3900, 2
      %v3902 = vmax.f32 %v3900, %v3901
      %v3903 = vrot.slane %v3902, 1
      %v3904 = vmax.f32 %v3902, %v3903
      %v3905 = vsel %vm2637, %v2158, -inf
      %v3906 = vrot.slane %v3905, 4
      %v3907 = vmax.f32 %v3905, %v3906
      %v3908 = vrot.slane %v3907, 2
      %v3909 = vmax.f32 %v3907, %v3908
      %v3910 = vrot.slane %v3909, 1
      %v3911 = vmax.f32 %v3909, %v3910
      %v3912 = vsel %vm2637, %v2157, -inf
      %v3913 = vrot.slane %v3912, 4
      %v3914 = vmax.f32 %v3912, %v3913
      %v3915 = vrot.slane %v3914, 2
      %v3916 = vmax.f32 %v3914, %v3915
      %v3917 = vrot.slane %v3916, 1
      %v3918 = vmax.f32 %v3916, %v3917
      %v3919 = vsel %vm2637, %v2159, -inf
      %v3920 = vrot.slane %v3919, 4
      %v3921 = vmax.f32 %v3919, %v3920
      %v3922 = vrot.slane %v3921, 2
      %v3923 = vmax.f32 %v3921, %v3922
      %v3924 = vrot.slane %v3923, 1
      %v3925 = vmax.f32 %v3923, %v3924
      %v3926 = vsel %vm2637, %v2167, -inf
      %v3927 = vrot.slane %v3926, 4
      %v3928 = vmax.f32 %v3926, %v3927
      %v3929 = vrot.slane %v3928, 2
      %v3930 = vmax.f32 %v3928, %v3929
      %v3931 = vrot.slane %v3930, 1
      %v3932 = vmax.f32 %v3930, %v3931
      %v3933 = vsel %vm2637, %v2175, -inf
      %v3934 = vrot.slane %v3933, 4
      %v3935 = vmax.f32 %v3933, %v3934
      %v3936 = vrot.slane %v3935, 2
      %v3937 = vmax.f32 %v3935, %v3936
      %v3938 = vrot.slane %v3937, 1
      %v3939 = vmax.f32 %v3937, %v3938
      %v3940 = vsel %vm2637, %v2174, -inf
      %v3941 = vrot.slane %v3940, 4
      %v3942 = vmax.f32 %v3940, %v3941
      %v3943 = vrot.slane %v3942, 2
      %v3944 = vmax.f32 %v3942, %v3943
      %v3945 = vrot.slane %v3944, 1
      %v3946 = vmax.f32 %v3944, %v3945
      %v3947 = vsel %vm2637, %v2176, -inf
      %v3948 = vrot.slane %v3947, 4
      %v3949 = vmax.f32 %v3947, %v3948
      %v3950 = vrot.slane %v3949, 2
      %v3951 = vmax.f32 %v3949, %v3950
      %v3952 = vrot.slane %v3951, 1
      %v3953 = vmax.f32 %v3951, %v3952
      %v3954 = vsel %vm2637, %v2184, -inf
      %v3955 = vrot.slane %v3954, 4
      %v3956 = vmax.f32 %v3954, %v3955
      %v3957 = vrot.slane %v3956, 2
      %v3958 = vmax.f32 %v3956, %v3957
      %v3959 = vrot.slane %v3958, 1
      %v3960 = vmax.f32 %v3958, %v3959
      %v3961 = vsel %vm2637, %v2192, -inf
      %v3962 = vrot.slane %v3961, 4
      %v3963 = vmax.f32 %v3961, %v3962
      %v3964 = vrot.slane %v3963, 2
      %v3965 = vmax.f32 %v3963, %v3964
      %v3966 = vrot.slane %v3965, 1
      %v3967 = vmax.f32 %v3965, %v3966
      %v3968 = vsel %vm2637, %v2191, -inf
      %v3969 = vrot.slane %v3968, 4
      %v3970 = vmax.f32 %v3968, %v3969
      %v3971 = vrot.slane %v3970, 2
      %v3972 = vmax.f32 %v3970, %v3971
      %v3973 = vrot.slane %v3972, 1
      %v3974 = vmax.f32 %v3972, %v3973
      %v3975 = vsel %vm2637, %v2193, -inf
      %v3976 = vrot.slane %v3975, 4
      %v3977 = vmax.f32 %v3975, %v3976
      %v3978 = vrot.slane %v3977, 2
      %v3979 = vmax.f32 %v3977, %v3978
      %v3980 = vrot.slane %v3979, 1
      %v3981 = vmax.f32 %v3979, %v3980
      %v3982 = vsel %vm2637, %v2201, -inf
      %v3983 = vrot.slane %v3982, 4
      %v3984 = vmax.f32 %v3982, %v3983
      %v3985 = vrot.slane %v3984, 2
      %v3986 = vmax.f32 %v3984, %v3985
      %v3987 = vrot.slane %v3986, 1
      %v3988 = vmax.f32 %v3986, %v3987
      %v3989 = vsel %vm2637, %v2209, -inf
      %v3990 = vrot.slane %v3989, 4
      %v3991 = vmax.f32 %v3989, %v3990
      %v3992 = vrot.slane %v3991, 2
      %v3993 = vmax.f32 %v3991, %v3992
      %v3994 = vrot.slane %v3993, 1
      %v3995 = vmax.f32 %v3993, %v3994
      %v3996 = vsel %vm2637, %v2208, -inf
      %v3997 = vrot.slane %v3996, 4
      %v3998 = vmax.f32 %v3996, %v3997
      %v3999 = vrot.slane %v3998, 2
      %v4000 = vmax.f32 %v3998, %v3999
      %v4001 = vrot.slane %v4000, 1
      %v4002 = vmax.f32 %v4000, %v4001
      %v4003 = vsel %vm2637, %v2210, -inf
      %v4004 = vrot.slane %v4003, 4
      %v4005 = vmax.f32 %v4003, %v4004
      %v4006 = vrot.slane %v4005, 2
      %v4007 = vmax.f32 %v4005, %v4006
      %v4008 = vrot.slane %v4007, 1
      %v4009 = vmax.f32 %v4007, %v4008
      %v4010 = vsel %vm2637, %v2218, -inf
      %v4011 = vrot.slane %v4010, 4
      %v4012 = vmax.f32 %v4010, %v4011
      %v4013 = vrot.slane %v4012, 2
      %v4014 = vmax.f32 %v4012, %v4013
      %v4015 = vrot.slane %v4014, 1
      %v4016 = vmax.f32 %v4014, %v4015
      %v4017 = vsel %vm2637, %v2226, -inf
      %v4018 = vrot.slane %v4017, 4
      %v4019 = vmax.f32 %v4017, %v4018
      %v4020 = vrot.slane %v4019, 2
      %v4021 = vmax.f32 %v4019, %v4020
      %v4022 = vrot.slane %v4021, 1
      %v4023 = vmax.f32 %v4021, %v4022
      %v4024 = vsel %vm2637, %v2225, -inf
      %v4025 = vrot.slane %v4024, 4
      %v4026 = vmax.f32 %v4024, %v4025
      %v4027 = vrot.slane %v4026, 2
      %v4028 = vmax.f32 %v4026, %v4027
      %v4029 = vrot.slane %v4028, 1
      %v4030 = vmax.f32 %v4028, %v4029
      %v4031 = vsel %vm2637, %v2227, -inf
      %v4032 = vrot.slane %v4031, 4
      %v4033 = vmax.f32 %v4031, %v4032
      %v4034 = vrot.slane %v4033, 2
      %v4035 = vmax.f32 %v4033, %v4034
      %v4036 = vrot.slane %v4035, 1
      %v4037 = vmax.f32 %v4035, %v4036
      %v4038 = vsel %vm2637, %v2235, -inf
      %v4039 = vrot.slane %v4038, 4
      %v4040 = vmax.f32 %v4038, %v4039
      %v4041 = vrot.slane %v4040, 2
      %v4042 = vmax.f32 %v4040, %v4041
      %v4043 = vrot.slane %v4042, 1
      %v4044 = vmax.f32 %v4042, %v4043
      %v4045 = vsel %vm2637, %v2243, -inf
      %v4046 = vrot.slane %v4045, 4
      %v4047 = vmax.f32 %v4045, %v4046
      %v4048 = vrot.slane %v4047, 2
      %v4049 = vmax.f32 %v4047, %v4048
      %v4050 = vrot.slane %v4049, 1
      %v4051 = vmax.f32 %v4049, %v4050
      %v4052 = vsel %vm2637, %v2242, -inf
      %v4053 = vrot.slane %v4052, 4
      %v4054 = vmax.f32 %v4052, %v4053
      %v4055 = vrot.slane %v4054, 2
      %v4056 = vmax.f32 %v4054, %v4055
      %v4057 = vrot.slane %v4056, 1
      %v4058 = vmax.f32 %v4056, %v4057
      %v4059 = vsel %vm2637, %v2244, -inf
      %v4060 = vrot.slane %v4059, 4
      %v4061 = vmax.f32 %v4059, %v4060
      %v4062 = vrot.slane %v4061, 2
      %v4063 = vmax.f32 %v4061, %v4062
      %v4064 = vrot.slane %v4063, 1
      %v4065 = vmax.f32 %v4063, %v4064
      %v4066 = vsel %vm2637, %v2252, -inf
      %v4067 = vrot.slane %v4066, 4
      %v4068 = vmax.f32 %v4066, %v4067
      %v4069 = vrot.slane %v4068, 2
      %v4070 = vmax.f32 %v4068, %v4069
      %v4071 = vrot.slane %v4070, 1
      %v4072 = vmax.f32 %v4070, %v4071
      %v4073 = vsel %vm2637, %v2260, -inf
      %v4074 = vrot.slane %v4073, 4
      %v4075 = vmax.f32 %v4073, %v4074
      %v4076 = vrot.slane %v4075, 2
      %v4077 = vmax.f32 %v4075, %v4076
      %v4078 = vrot.slane %v4077, 1
      %v4079 = vmax.f32 %v4077, %v4078
      %v4080 = vsel %vm2637, %v2259, -inf
      %v4081 = vrot.slane %v4080, 4
      %v4082 = vmax.f32 %v4080, %v4081
      %v4083 = vrot.slane %v4082, 2
      %v4084 = vmax.f32 %v4082, %v4083
      %v4085 = vrot.slane %v4084, 1
      %v4086 = vmax.f32 %v4084, %v4085
      %v4087 = vsel %vm2637, %v2261, -inf
      %v4088 = vrot.slane %v4087, 4
      %v4089 = vmax.f32 %v4087, %v4088
      %v4090 = vrot.slane %v4089, 2
      %v4091 = vmax.f32 %v4089, %v4090
      %v4092 = vrot.slane %v4091, 1
      %v4093 = vmax.f32 %v4091, %v4092
      %v4094 = vsel %vm2637, %v2268, -inf
      %v4095 = vrot.slane %v4094, 4
      %v4096 = vmax.f32 %v4094, %v4095
      %v4097 = vrot.slane %v4096, 2
      %v4098 = vmax.f32 %v4096, %v4097
      %v4099 = vrot.slane %v4098, 1
      %v4100 = vmax.f32 %v4098, %v4099
      %v4101 = vsel %vm2637, %v2269, -inf
      %v4102 = vrot.slane %v4101, 4
      %v4103 = vmax.f32 %v4101, %v4102
      %v4104 = vrot.slane %v4103, 2
      %v4105 = vmax.f32 %v4103, %v4104
      %v4106 = vrot.slane %v4105, 1
      %v4107 = vmax.f32 %v4105, %v4106
      %v4108 = vsel %vm2637, %v2277, -inf
      %v4109 = vrot.slane %v4108, 4
      %v4110 = vmax.f32 %v4108, %v4109
      %v4111 = vrot.slane %v4110, 2
      %v4112 = vmax.f32 %v4110, %v4111
      %v4113 = vrot.slane %v4112, 1
      %v4114 = vmax.f32 %v4112, %v4113
      %v4115 = vsel %vm2637, %v2285, -inf
      %v4116 = vrot.slane %v4115, 4
      %v4117 = vmax.f32 %v4115, %v4116
      %v4118 = vrot.slane %v4117, 2
      %v4119 = vmax.f32 %v4117, %v4118
      %v4120 = vrot.slane %v4119, 1
      %v4121 = vmax.f32 %v4119, %v4120
      %v4122 = vsel %vm2637, %v2284, -inf
      %v4123 = vrot.slane %v4122, 4
      %v4124 = vmax.f32 %v4122, %v4123
      %v4125 = vrot.slane %v4124, 2
      %v4126 = vmax.f32 %v4124, %v4125
      %v4127 = vrot.slane %v4126, 1
      %v4128 = vmax.f32 %v4126, %v4127
      %v4129 = vsel %vm2637, %v2286, -inf
      %v4130 = vrot.slane %v4129, 4
      %v4131 = vmax.f32 %v4129, %v4130
      %v4132 = vrot.slane %v4131, 2
      %v4133 = vmax.f32 %v4131, %v4132
      %v4134 = vrot.slane %v4133, 1
      %v4135 = vmax.f32 %v4133, %v4134
      %v4136 = vsel %vm2637, %v2294, -inf
      %v4137 = vrot.slane %v4136, 4
      %v4138 = vmax.f32 %v4136, %v4137
      %v4139 = vrot.slane %v4138, 2
      %v4140 = vmax.f32 %v4138, %v4139
      %v4141 = vrot.slane %v4140, 1
      %v4142 = vmax.f32 %v4140, %v4141
      %v4143 = vsel %vm2637, %v2302, -inf
      %v4144 = vrot.slane %v4143, 4
      %v4145 = vmax.f32 %v4143, %v4144
      %v4146 = vrot.slane %v4145, 2
      %v4147 = vmax.f32 %v4145, %v4146
      %v4148 = vrot.slane %v4147, 1
      %v4149 = vmax.f32 %v4147, %v4148
      %v4150 = vsel %vm2637, %v2301, -inf
      %v4151 = vrot.slane %v4150, 4
      %v4152 = vmax.f32 %v4150, %v4151
      %v4153 = vrot.slane %v4152, 2
      %v4154 = vmax.f32 %v4152, %v4153
      %v4155 = vrot.slane %v4154, 1
      %v4156 = vmax.f32 %v4154, %v4155
      %v4157 = vsel %vm2637, %v2303, -inf
      %v4158 = vrot.slane %v4157, 4
      %v4159 = vmax.f32 %v4157, %v4158
      %v4160 = vrot.slane %v4159, 2
      %v4161 = vmax.f32 %v4159, %v4160
      %v4162 = vrot.slane %v4161, 1
      %v4163 = vmax.f32 %v4161, %v4162
      %v4164 = vsel %vm2637, %v2311, -inf
      %v4165 = vrot.slane %v4164, 4
      %v4166 = vmax.f32 %v4164, %v4165
      %v4167 = vrot.slane %v4166, 2
      %v4168 = vmax.f32 %v4166, %v4167
      %v4169 = vrot.slane %v4168, 1
      %v4170 = vmax.f32 %v4168, %v4169
      %v4171 = vsel %vm2637, %v2319, -inf
      %v4172 = vrot.slane %v4171, 4
      %v4173 = vmax.f32 %v4171, %v4172
      %v4174 = vrot.slane %v4173, 2
      %v4175 = vmax.f32 %v4173, %v4174
      %v4176 = vrot.slane %v4175, 1
      %v4177 = vmax.f32 %v4175, %v4176
      %v4178 = vsel %vm2637, %v2318, -inf
      %v4179 = vrot.slane %v4178, 4
      %v4180 = vmax.f32 %v4178, %v4179
      %v4181 = vrot.slane %v4180, 2
      %v4182 = vmax.f32 %v4180, %v4181
      %v4183 = vrot.slane %v4182, 1
      %v4184 = vmax.f32 %v4182, %v4183
      %v4185 = vsel %vm2637, %v2320, -inf
      %v4186 = vrot.slane %v4185, 4
      %v4187 = vmax.f32 %v4185, %v4186
      %v4188 = vrot.slane %v4187, 2
      %v4189 = vmax.f32 %v4187, %v4188
      %v4190 = vrot.slane %v4189, 1
      %v4191 = vmax.f32 %v4189, %v4190
      %v4192 = vsel %vm2637, %v2328, -inf
      %v4193 = vrot.slane %v4192, 4
      %v4194 = vmax.f32 %v4192, %v4193
      %v4195 = vrot.slane %v4194, 2
      %v4196 = vmax.f32 %v4194, %v4195
      %v4197 = vrot.slane %v4196, 1
      %v4198 = vmax.f32 %v4196, %v4197
      %v4199 = vsel %vm2637, %v2336, -inf
      %v4200 = vrot.slane %v4199, 4
      %v4201 = vmax.f32 %v4199, %v4200
      %v4202 = vrot.slane %v4201, 2
      %v4203 = vmax.f32 %v4201, %v4202
      %v4204 = vrot.slane %v4203, 1
      %v4205 = vmax.f32 %v4203, %v4204
      %v4206 = vsel %vm2637, %v2335, -inf
      %v4207 = vrot.slane %v4206, 4
      %v4208 = vmax.f32 %v4206, %v4207
      %v4209 = vrot.slane %v4208, 2
      %v4210 = vmax.f32 %v4208, %v4209
      %v4211 = vrot.slane %v4210, 1
      %v4212 = vmax.f32 %v4210, %v4211
      %v4213 = vsel %vm2637, %v2337, -inf
      %v4214 = vrot.slane %v4213, 4
      %v4215 = vmax.f32 %v4213, %v4214
      %v4216 = vrot.slane %v4215, 2
      %v4217 = vmax.f32 %v4215, %v4216
      %v4218 = vrot.slane %v4217, 1
      %v4219 = vmax.f32 %v4217, %v4218
      %v4220 = vsel %vm2637, %v2345, -inf
      %v4221 = vrot.slane %v4220, 4
      %v4222 = vmax.f32 %v4220, %v4221
      %v4223 = vrot.slane %v4222, 2
      %v4224 = vmax.f32 %v4222, %v4223
      %v4225 = vrot.slane %v4224, 1
      %v4226 = vmax.f32 %v4224, %v4225
      %v4227 = vsel %vm2637, %v2353, -inf
      %v4228 = vrot.slane %v4227, 4
      %v4229 = vmax.f32 %v4227, %v4228
      %v4230 = vrot.slane %v4229, 2
      %v4231 = vmax.f32 %v4229, %v4230
      %v4232 = vrot.slane %v4231, 1
      %v4233 = vmax.f32 %v4231, %v4232
      %v4234 = vsel %vm2637, %v2352, -inf
      %v4235 = vrot.slane %v4234, 4
      %v4236 = vmax.f32 %v4234, %v4235
      %v4237 = vrot.slane %v4236, 2
      %v4238 = vmax.f32 %v4236, %v4237
      %v4239 = vrot.slane %v4238, 1
      %v4240 = vmax.f32 %v4238, %v4239
      %v4241 = vsel %vm2637, %v2354, -inf
      %v4242 = vrot.slane %v4241, 4
      %v4243 = vmax.f32 %v4241, %v4242
      %v4244 = vrot.slane %v4243, 2
      %v4245 = vmax.f32 %v4243, %v4244
      %v4246 = vrot.slane %v4245, 1
      %v4247 = vmax.f32 %v4245, %v4246
      %v4248 = vsel %vm2637, %v2362, -inf
      %v4249 = vrot.slane %v4248, 4
      %v4250 = vmax.f32 %v4248, %v4249
      %v4251 = vrot.slane %v4250, 2
      %v4252 = vmax.f32 %v4250, %v4251
      %v4253 = vrot.slane %v4252, 1
      %v4254 = vmax.f32 %v4252, %v4253
      %v4255 = vsel %vm2637, %v2370, -inf
      %v4256 = vrot.slane %v4255, 4
      %v4257 = vmax.f32 %v4255, %v4256
      %v4258 = vrot.slane %v4257, 2
      %v4259 = vmax.f32 %v4257, %v4258
      %v4260 = vrot.slane %v4259, 1
      %v4261 = vmax.f32 %v4259, %v4260
      %v4262 = vsel %vm2637, %v2369, -inf
      %v4263 = vrot.slane %v4262, 4
      %v4264 = vmax.f32 %v4262, %v4263
      %v4265 = vrot.slane %v4264, 2
      %v4266 = vmax.f32 %v4264, %v4265
      %v4267 = vrot.slane %v4266, 1
      %v4268 = vmax.f32 %v4266, %v4267
      %v4269 = vsel %vm2637, %v2371, -inf
      %v4270 = vrot.slane %v4269, 4
      %v4271 = vmax.f32 %v4269, %v4270
      %v4272 = vrot.slane %v4271, 2
      %v4273 = vmax.f32 %v4271, %v4272
      %v4274 = vrot.slane %v4273, 1
      %v4275 = vmax.f32 %v4273, %v4274
      %v4276 = vsel %vm2637, %v2379, -inf
      %v4277 = vrot.slane %v4276, 4
      %v4278 = vmax.f32 %v4276, %v4277
      %v4279 = vrot.slane %v4278, 2
      %v4280 = vmax.f32 %v4278, %v4279
      %v4281 = vrot.slane %v4280, 1
      %v4282 = vmax.f32 %v4280, %v4281
      %v4283 = vsel %vm2637, %v2387, -inf
      %v4284 = vrot.slane %v4283, 4
      %v4285 = vmax.f32 %v4283, %v4284
      %v4286 = vrot.slane %v4285, 2
      %v4287 = vmax.f32 %v4285, %v4286
      %v4288 = vrot.slane %v4287, 1
      %v4289 = vmax.f32 %v4287, %v4288
      %v4290 = vsel %vm2637, %v2386, -inf
      %v4291 = vrot.slane %v4290, 4
      %v4292 = vmax.f32 %v4290, %v4291
      %v4293 = vrot.slane %v4292, 2
      %v4294 = vmax.f32 %v4292, %v4293
      %v4295 = vrot.slane %v4294, 1
      %v4296 = vmax.f32 %v4294, %v4295
      %v4297 = vsel %vm2637, %v2388, -inf
      %v4298 = vrot.slane %v4297, 4
      %v4299 = vmax.f32 %v4297, %v4298
      %v4300 = vrot.slane %v4299, 2
      %v4301 = vmax.f32 %v4299, %v4300
      %v4302 = vrot.slane %v4301, 1
      %v4303 = vmax.f32 %v4301, %v4302
      %v4304 = vsel %vm2637, %v2395, -inf
      %v4305 = vrot.slane %v4304, 4
      %v4306 = vmax.f32 %v4304, %v4305
      %v4307 = vrot.slane %v4306, 2
      %v4308 = vmax.f32 %v4306, %v4307
      %v4309 = vrot.slane %v4308, 1
      %v4310 = vmax.f32 %v4308, %v4309
      %v4311 = vsel %vm2637, %v2396, -inf
      %v4312 = vrot.slane %v4311, 4
      %v4313 = vmax.f32 %v4311, %v4312
      %v4314 = vrot.slane %v4313, 2
      %v4315 = vmax.f32 %v4313, %v4314
      %v4316 = vrot.slane %v4315, 1
      %v4317 = vmax.f32 %v4315, %v4316
      %4318 = vst.msk [vmem:[#allocation2] sm:$0x3] %vm2637, 0.0
      %4319 = vst.msk [vmem:[#allocation2 + $0x28] sm:$0x3] %vm2637, 0.0
      %4320 = vst.msk [vmem:[#allocation2 + $0x50] sm:$0x3] %vm2637, 0.0
      %4321 = vst.msk [vmem:[#allocation2 + $0x78] sm:$0x3] %vm2637, 0.0
      %4322 = vst.msk [vmem:[#allocation2 + $0xa0] sm:$0x3] %vm2637, 0.0
      %4323 = vst.msk [vmem:[#allocation2 + $0xc8] sm:$0x3] %vm2637, 0.0
      %4324 = vst.msk [vmem:[#allocation2 + $0xf0] sm:$0x3] %vm2637, 0.0
      %4325 = vst.msk [vmem:[#allocation2 + $0x118] sm:$0x3] %vm2637, 0.0
      %vm4326 = vcmask 261120
      %4327 = vst.msk [vmem:[#allocation2 + $0x20] sm:$0xff] %vm4326, 0.0
      %4328 = vst.msk [vmem:[#allocation2 + $0x48] sm:$0xff] %vm4326, 0.0
      %4329 = vst.msk [vmem:[#allocation2 + $0x70] sm:$0xff] %vm4326, 0.0
      %4330 = vst.msk [vmem:[#allocation2 + $0x98] sm:$0xff] %vm4326, 0.0
      %4331 = vst.msk [vmem:[#allocation2 + $0xc0] sm:$0xff] %vm4326, 0.0
      %4332 = vst.msk [vmem:[#allocation2 + $0xe8] sm:$0xff] %vm4326, 0.0
      %4333 = vst.msk [vmem:[#allocation2 + $0x110] sm:$0xff] %vm4326, 0.0
      %4334 = vst.msk [vmem:[#allocation2 + $0x138] sm:$0xff] %vm4326, 0.0
      %vm4575 = vcmask 1041409
      %v4576 = vsel %vm4575, %v2651, %v2644
      %vm4577 = vcmask 1042434
      %v4578 = vsel %vm4577, %v2658, %v4576
      %vm4579 = vcmask 1043459
      %v4580 = vsel %vm4579, %v2665, %v4578
      %vm4581 = vcmask 1044484
      %v4582 = vsel %vm4581, %v2672, %v4580
      %vm4583 = vcmask 1045509
      %v4584 = vsel %vm4583, %v2679, %v4582
      %vm4585 = vcmask 1046534
      %v4586 = vsel %vm4585, %v2686, %v4584
      %vm4587 = vcmask 1047559
      %v4588 = vsel %vm4587, %v2693, %v4586
      %v4589 = vsel %vm4575, %v2707, %v2700
      %v4590 = vsel %vm4577, %v2714, %v4589
      %v4591 = vsel %vm4579, %v2721, %v4590
      %v4592 = vsel %vm4581, %v2728, %v4591
      %v4593 = vsel %vm4583, %v2735, %v4592
      %v4594 = vsel %vm4585, %v2742, %v4593
      %v4595 = vsel %vm4587, %v2749, %v4594
      %v4596 = vsel %vm4575, %v2763, %v2756
      %v4597 = vsel %vm4577, %v2770, %v4596
      %v4598 = vsel %vm4579, %v2777, %v4597
      %v4599 = vsel %vm4581, %v2784, %v4598
      %v4600 = vsel %vm4583, %v2791, %v4599
      %v4601 = vsel %vm4585, %v2798, %v4600
      %v4602 = vsel %vm4587, %v2805, %v4601
      %v4603 = vsel %vm4575, %v2819, %v2812
      %v4604 = vsel %vm4577, %v2826, %v4603
      %v4605 = vsel %vm4579, %v2833, %v4604
      %v4606 = vsel %vm4581, %v2840, %v4605
      %v4607 = vsel %vm4583, %v2847, %v4606
      %v4608 = vsel %vm4575, %v2861, %v2854
      %v4609 = vsel %vm4577, %v2868, %v4608
      %v4610 = vsel %vm4579, %v2875, %v4609
      %v4611 = vsel %vm4581, %v2882, %v4610
      %v4612 = vsel %vm4583, %v2889, %v4611
      %v4613 = vsel %vm4585, %v2896, %v4612
      %v4614 = vsel %vm4587, %v2903, %v4613
      %v4615 = vsel %vm4575, %v2917, %v2910
      %v4616 = vsel %vm4577, %v2924, %v4615
      %v4617 = vsel %vm4579, %v2931, %v4616
      %v4618 = vsel %vm4581, %v2938, %v4617
      %v4619 = vsel %vm4583, %v2945, %v4618
      %v4620 = vsel %vm4585, %v2952, %v4619
      %v4621 = vsel %vm4587, %v2959, %v4620
      %v4622 = vsel %vm4575, %v2973, %v2966
      %v4623 = vsel %vm4577, %v2980, %v4622
      %v4624 = vsel %vm4579, %v2987, %v4623
      %v4625 = vsel %vm4581, %v2994, %v4624
      %v4626 = vsel %vm4583, %v3001, %v4625
      %v4627 = vsel %vm4585, %v3008, %v4626
      %v4628 = vsel %vm4587, %v3015, %v4627
      %v4629 = vsel %vm4575, %v3029, %v3022
      %v4630 = vsel %vm4577, %v3036, %v4629
      %v4631 = vsel %vm4579, %v3043, %v4630
      %v4632 = vsel %vm4581, %v3050, %v4631
      %v4633 = vsel %vm4583, %v3057, %v4632
      %v4634 = vsel %vm4575, %v3071, %v3064
      %v4635 = vsel %vm4577, %v3078, %v4634
      %v4636 = vsel %vm4579, %v3085, %v4635
      %v4637 = vsel %vm4581, %v3092, %v4636
      %v4638 = vsel %vm4583, %v3099, %v4637
      %v4639 = vsel %vm4585, %v3106, %v4638
      %v4640 = vsel %vm4587, %v3113, %v4639
      %v4641 = vsel %vm4575, %v3127, %v3120
      %v4642 = vsel %vm4577, %v3134, %v4641
      %v4643 = vsel %vm4579, %v3141, %v4642
      %v4644 = vsel %vm4581, %v3148, %v4643
      %v4645 = vsel %vm4583, %v3155, %v4644
      %v4646 = vsel %vm4585, %v3162, %v4645
      %v4647 = vsel %vm4587, %v3169, %v4646
      %v4648 = vsel %vm4575, %v3183, %v3176
      %v4649 = vsel %vm4577, %v3190, %v4648
      %v4650 = vsel %vm4579, %v3197, %v4649
      %v4651 = vsel %vm4581, %v3204, %v4650
      %v4652 = vsel %vm4583, %v3211, %v4651
      %v4653 = vsel %vm4585, %v3218, %v4652
      %v4654 = vsel %vm4587, %v3225, %v4653
      %v4655 = vsel %vm4575, %v3239, %v3232
      %v4656 = vsel %vm4577, %v3246, %v4655
      %v4657 = vsel %vm4579, %v3253, %v4656
      %v4658 = vsel %vm4581, %v3260, %v4657
      %v4659 = vsel %vm4583, %v3267, %v4658
      %v4660 = vsel %vm4575, %v3281, %v3274
      %v4661 = vsel %vm4577, %v3288, %v4660
      %v4662 = vsel %vm4579, %v3295, %v4661
      %v4663 = vsel %vm4581, %v3302, %v4662
      %v4664 = vsel %vm4583, %v3309, %v4663
      %v4665 = vsel %vm4585, %v3316, %v4664
      %v4666 = vsel %vm4587, %v3323, %v4665
      %v4667 = vsel %vm4575, %v3337, %v3330
      %v4668 = vsel %vm4577, %v3344, %v4667
      %v4669 = vsel %vm4579, %v3351, %v4668
      %v4670 = vsel %vm4581, %v3358, %v4669
      %v4671 = vsel %vm4583, %v3365, %v4670
      %v4672 = vsel %vm4585, %v3372, %v4671
      %v4673 = vsel %vm4587, %v3379, %v4672
      %v4674 = vsel %vm4575, %v3393, %v3386
      %v4675 = vsel %vm4577, %v3400, %v4674
      %v4676 = vsel %vm4579, %v3407, %v4675
      %v4677 = vsel %vm4581, %v3414, %v4676
      %v4678 = vsel %vm4583, %v3421, %v4677
      %v4679 = vsel %vm4585, %v3428, %v4678
      %v4680 = vsel %vm4587, %v3435, %v4679
      %v4681 = vsel %vm4575, %v3449, %v3442
      %v4682 = vsel %vm4577, %v3456, %v4681
      %v4683 = vsel %vm4579, %v3463, %v4682
      %v4684 = vsel %vm4581, %v3470, %v4683
      %v4685 = vsel %vm4583, %v3477, %v4684
      %v4686 = vsel %vm4575, %v3491, %v3484
      %v4687 = vsel %vm4577, %v3498, %v4686
      %v4688 = vsel %vm4579, %v3505, %v4687
      %v4689 = vsel %vm4581, %v3512, %v4688
      %v4690 = vsel %vm4583, %v3519, %v4689
      %v4691 = vsel %vm4585, %v3526, %v4690
      %v4692 = vsel %vm4587, %v3533, %v4691
      %v4693 = vsel %vm4575, %v3547, %v3540
      %v4694 = vsel %vm4577, %v3554, %v4693
      %v4695 = vsel %vm4579, %v3561, %v4694
      %v4696 = vsel %vm4581, %v3568, %v4695
      %v4697 = vsel %vm4583, %v3575, %v4696
      %v4698 = vsel %vm4585, %v3582, %v4697
      %v4699 = vsel %vm4587, %v3589, %v4698
      %v4700 = vsel %vm4575, %v3603, %v3596
      %v4701 = vsel %vm4577, %v3610, %v4700
      %v4702 = vsel %vm4579, %v3617, %v4701
      %v4703 = vsel %vm4581, %v3624, %v4702
      %v4704 = vsel %vm4583, %v3631, %v4703
      %v4705 = vsel %vm4585, %v3638, %v4704
      %v4706 = vsel %vm4587, %v3645, %v4705
      %v4707 = vsel %vm4575, %v3659, %v3652
      %v4708 = vsel %vm4577, %v3666, %v4707
      %v4709 = vsel %vm4579, %v3673, %v4708
      %v4710 = vsel %vm4581, %v3680, %v4709
      %v4711 = vsel %vm4583, %v3687, %v4710
      %v4712 = vsel %vm4575, %v3701, %v3694
      %v4713 = vsel %vm4577, %v3708, %v4712
      %v4714 = vsel %vm4579, %v3715, %v4713
      %v4715 = vsel %vm4581, %v3722, %v4714
      %v4716 = vsel %vm4583, %v3729, %v4715
      %v4717 = vsel %vm4585, %v3736, %v4716
      %v4718 = vsel %vm4587, %v3743, %v4717
      %v4719 = vsel %vm4575, %v3757, %v3750
      %v4720 = vsel %vm4577, %v3764, %v4719
      %v4721 = vsel %vm4579, %v3771, %v4720
      %v4722 = vsel %vm4581, %v3778, %v4721
      %v4723 = vsel %vm4583, %v3785, %v4722
      %v4724 = vsel %vm4585, %v3792, %v4723
      %v4725 = vsel %vm4587, %v3799, %v4724
      %v4726 = vsel %vm4575, %v3813, %v3806
      %v4727 = vsel %vm4577, %v3820, %v4726
      %v4728 = vsel %vm4579, %v3827, %v4727
      %v4729 = vsel %vm4581, %v3834, %v4728
      %v4730 = vsel %vm4583, %v3841, %v4729
      %v4731 = vsel %vm4585, %v3848, %v4730
      %v4732 = vsel %vm4587, %v3855, %v4731
      %v4733 = vsel %vm4575, %v3869, %v3862
      %v4734 = vsel %vm4577, %v3876, %v4733
      %v4735 = vsel %vm4579, %v3883, %v4734
      %v4736 = vsel %vm4581, %v3890, %v4735
      %v4737 = vsel %vm4583, %v3897, %v4736
      %v4738 = vsel %vm4575, %v3911, %v3904
      %v4739 = vsel %vm4577, %v3918, %v4738
      %v4740 = vsel %vm4579, %v3925, %v4739
      %v4741 = vsel %vm4581, %v3932, %v4740
      %v4742 = vsel %vm4583, %v3939, %v4741
      %v4743 = vsel %vm4585, %v3946, %v4742
      %v4744 = vsel %vm4587, %v3953, %v4743
      %v4745 = vsel %vm4575, %v3967, %v3960
      %v4746 = vsel %vm4577, %v3974, %v4745
      %v4747 = vsel %vm4579, %v3981, %v4746
      %v4748 = vsel %vm4581, %v3988, %v4747
      %v4749 = vsel %vm4583, %v3995, %v4748
      %v4750 = vsel %vm4585, %v4002, %v4749
      %v4751 = vsel %vm4587, %v4009, %v4750
      %v4752 = vsel %vm4575, %v4023, %v4016
      %v4753 = vsel %vm4577, %v4030, %v4752
      %v4754 = vsel %vm4579, %v4037, %v4753
      %v4755 = vsel %vm4581, %v4044, %v4754
      %v4756 = vsel %vm4583, %v4051, %v4755
      %v4757 = vsel %vm4585, %v4058, %v4756
      %v4758 = vsel %vm4587, %v4065, %v4757
      %v4759 = vsel %vm4575, %v4079, %v4072
      %v4760 = vsel %vm4577, %v4086, %v4759
      %v4761 = vsel %vm4579, %v4093, %v4760
      %v4762 = vsel %vm4581, %v4100, %v4761
      %v4763 = vsel %vm4583, %v4107, %v4762
      %v4764 = vsel %vm4575, %v4121, %v4114
      %v4765 = vsel %vm4577, %v4128, %v4764
      %v4766 = vsel %vm4579, %v4135, %v4765
      %v4767 = vsel %vm4581, %v4142, %v4766
      %v4768 = vsel %vm4583, %v4149, %v4767
      %v4769 = vsel %vm4585, %v4156, %v4768
      %v4770 = vsel %vm4587, %v4163, %v4769
      %v4771 = vsel %vm4575, %v4177, %v4170
      %v4772 = vsel %vm4577, %v4184, %v4771
      %v4773 = vsel %vm4579, %v4191, %v4772
      %v4774 = vsel %vm4581, %v4198, %v4773
      %v4775 = vsel %vm4583, %v4205, %v4774
      %v4776 = vsel %vm4585, %v4212, %v4775
      %v4777 = vsel %vm4587, %v4219, %v4776
      %v4778 = vsel %vm4575, %v4233, %v4226
      %v4779 = vsel %vm4577, %v4240, %v4778
      %v4780 = vsel %vm4579, %v4247, %v4779
      %v4781 = vsel %vm4581, %v4254, %v4780
      %v4782 = vsel %vm4583, %v4261, %v4781
      %v4783 = vsel %vm4585, %v4268, %v4782
      %v4784 = vsel %vm4587, %v4275, %v4783
      %v4785 = vsel %vm4575, %v4289, %v4282
      %v4786 = vsel %vm4577, %v4296, %v4785
      %v4787 = vsel %vm4579, %v4303, %v4786
      %v4788 = vsel %vm4581, %v4310, %v4787
      %v4789 = vsel %vm4583, %v4317, %v4788
      %4822 = vst.msk [vmem:[#allocation2 + $0x2] sm:$0xff] %vm4326, %v4588
      %4823 = vst.msk [vmem:[#allocation2 + $0xa] sm:$0xff] %vm4326, %v4595
      %4824 = vst.msk [vmem:[#allocation2 + $0x12] sm:$0xff] %vm4326, %v4602
      %vm4825 = vcmask 259072
      %4826 = vst.msk [vmem:[#allocation2 + $0x1a] sm:$0x3f] %vm4825, %v4607
      %4827 = vst.msk [vmem:[#allocation2 + $0x2a] sm:$0xff] %vm4326, %v4614
      %4828 = vst.msk [vmem:[#allocation2 + $0x32] sm:$0xff] %vm4326, %v4621
      %4829 = vst.msk [vmem:[#allocation2 + $0x3a] sm:$0xff] %vm4326, %v4628
      %4830 = vst.msk [vmem:[#allocation2 + $0x42] sm:$0x3f] %vm4825, %v4633
      %4831 = vst.msk [vmem:[#allocation2 + $0x52] sm:$0xff] %vm4326, %v4640
      %4832 = vst.msk [vmem:[#allocation2 + $0x5a] sm:$0xff] %vm4326, %v4647
      %4833 = vst.msk [vmem:[#allocation2 + $0x62] sm:$0xff] %vm4326, %v4654
      %4834 = vst.msk [vmem:[#allocation2 + $0x6a] sm:$0x3f] %vm4825, %v4659
      %4835 = vst.msk [vmem:[#allocation2 + $0x7a] sm:$0xff] %vm4326, %v4666
      %4836 = vst.msk [vmem:[#allocation2 + $0x82] sm:$0xff] %vm4326, %v4673
      %4837 = vst.msk [vmem:[#allocation2 + $0x8a] sm:$0xff] %vm4326, %v4680
      %4838 = vst.msk [vmem:[#allocation2 + $0x92] sm:$0x3f] %vm4825, %v4685
      %4839 = vst.msk [vmem:[#allocation2 + $0xa2] sm:$0xff] %vm4326, %v4692
      %4840 = vst.msk [vmem:[#allocation2 + $0xaa] sm:$0xff] %vm4326, %v4699
      %4841 = vst.msk [vmem:[#allocation2 + $0xb2] sm:$0xff] %vm4326, %v4706
      %4842 = vst.msk [vmem:[#allocation2 + $0xba] sm:$0x3f] %vm4825, %v4711
      %4843 = vst.msk [vmem:[#allocation2 + $0xca] sm:$0xff] %vm4326, %v4718
      %4844 = vst.msk [vmem:[#allocation2 + $0xd2] sm:$0xff] %vm4326, %v4725
      %4845 = vst.msk [vmem:[#allocation2 + $0xda] sm:$0xff] %vm4326, %v4732
      %4846 = vst.msk [vmem:[#allocation2 + $0xe2] sm:$0x3f] %vm4825, %v4737
      %4847 = vst.msk [vmem:[#allocation2 + $0xf2] sm:$0xff] %vm4326, %v4744
      %4848 = vst.msk [vmem:[#allocation2 + $0xfa] sm:$0xff] %vm4326, %v4751
      %4849 = vst.msk [vmem:[#allocation2 + $0x102] sm:$0xff] %vm4326, %v4758
      %4850 = vst.msk [vmem:[#allocation2 + $0x10a] sm:$0x3f] %vm4825, %v4763
      %4851 = vst.msk [vmem:[#allocation2 + $0x11a] sm:$0xff] %vm4326, %v4770
      %4852 = vst.msk [vmem:[#allocation2 + $0x122] sm:$0xff] %vm4326, %v4777
      %4853 = vst.msk [vmem:[#allocation2 + $0x12a] sm:$0xff] %vm4326, %v4784
      %4854 = vst.msk [vmem:[#allocation2 + $0x132] sm:$0x3f] %vm4825, %v4789
      %v4855 = vld [vmem:[#allocation2] sm:$0xff]
      %v4856 = vld [vmem:[#allocation2 + $0x8] sm:$0xff]
      %v4857 = vld [vmem:[#allocation2 + $0x10] sm:$0xff]
      %v4858 = vld [vmem:[#allocation2 + $0x18] sm:$0xff]
      %v4859 = vld [vmem:[#allocation2 + $0x28] sm:$0xff]
      %v4860 = vld [vmem:[#allocation2 + $0x30] sm:$0xff]
      %v4861 = vld [vmem:[#allocation2 + $0x38] sm:$0xff]
      %v4862 = vld [vmem:[#allocation2 + $0x40] sm:$0xff]
      %v4863 = vld [vmem:[#allocation2 + $0x50] sm:$0xff]
      %v4864 = vld [vmem:[#allocation2 + $0x58] sm:$0xff]
      %v4865 = vld [vmem:[#allocation2 + $0x60] sm:$0xff]
      %v4866 = vld [vmem:[#allocation2 + $0x68] sm:$0xff]
      %v4867 = vld [vmem:[#allocation2 + $0x78] sm:$0xff]
      %v4868 = vld [vmem:[#allocation2 + $0x80] sm:$0xff]
      %v4869 = vld [vmem:[#allocation2 + $0x88] sm:$0xff]
      %v4870 = vld [vmem:[#allocation2 + $0x90] sm:$0xff]
      %v4871 = vld [vmem:[#allocation2 + $0xa0] sm:$0xff]
      %v4872 = vld [vmem:[#allocation2 + $0xa8] sm:$0xff]
      %v4873 = vld [vmem:[#allocation2 + $0xb0] sm:$0xff]
      %v4874 = vld [vmem:[#allocation2 + $0xb8] sm:$0xff]
      %v4875 = vld [vmem:[#allocation2 + $0xc8] sm:$0xff]
      %v4876 = vld [vmem:[#allocation2 + $0xd0] sm:$0xff]
      %v4877 = vld [vmem:[#allocation2 + $0xd8] sm:$0xff]
      %v4878 = vld [vmem:[#allocation2 + $0xe0] sm:$0xff]
      %v4879 = vld [vmem:[#allocation2 + $0xf0] sm:$0xff]
      %v4880 = vld [vmem:[#allocation2 + $0xf8] sm:$0xff]
      %v4881 = vld [vmem:[#allocation2 + $0x100] sm:$0xff]
      %v4882 = vld [vmem:[#allocation2 + $0x108] sm:$0xff]
      %v4883 = vld [vmem:[#allocation2 + $0x118] sm:$0xff]
      %v4884 = vld [vmem:[#allocation2 + $0x120] sm:$0xff]
      %v4885 = vld [vmem:[#allocation2 + $0x128] sm:$0xff]
      %v4886 = vld [vmem:[#allocation2 + $0x130] sm:$0xff]
      %v4887 = vpack.c.bf16 %v4856, %v4855
      %v4888 = vpack.c.bf16 %v4858, %v4857
      %v4889 = vpack.c.bf16 %v4860, %v4859
      %v4890 = vpack.c.bf16 %v4862, %v4861
      %v4891 = vpack.c.bf16 %v4864, %v4863
      %v4892 = vpack.c.bf16 %v4866, %v4865
      %v4893 = vpack.c.bf16 %v4868, %v4867
      %v4894 = vpack.c.bf16 %v4870, %v4869
      %v4895 = vpack.c.bf16 %v4872, %v4871
      %v4896 = vpack.c.bf16 %v4874, %v4873
      %v4897 = vpack.c.bf16 %v4876, %v4875
      %v4898 = vpack.c.bf16 %v4878, %v4877
      %v4899 = vpack.c.bf16 %v4880, %v4879
      %v4900 = vpack.c.bf16 %v4882, %v4881
      %v4901 = vpack.c.bf16 %v4884, %v4883
      %v4902 = vpack.c.bf16 %v4886, %v4885
      %v4903 = vld [vmem:[%s4] sm:$0xf]
      %v4904 = vld [vmem:[%s4 + $0x4] sm:$0xf]
      %v4905 = vld [vmem:[%s4 + $0x8] sm:$0xf]
      %v4906 = vld [vmem:[%s4 + $0xc] sm:$0xf]
      %v4907 = vld [vmem:[#allocation2 + $0x1] sm:$0xff]
      %v4908 = vld [vmem:[#allocation2 + $0x9] sm:$0xff]
      %v4909 = vld [vmem:[#allocation2 + $0x11] sm:$0xff]
      %v4910 = vld [vmem:[#allocation2 + $0x19] sm:$0xff]
      %v4911 = vld [vmem:[#allocation2 + $0x29] sm:$0xff]
      %v4912 = vld [vmem:[#allocation2 + $0x31] sm:$0xff]
      %v4913 = vld [vmem:[#allocation2 + $0x39] sm:$0xff]
      %v4914 = vld [vmem:[#allocation2 + $0x41] sm:$0xff]
      %v4915 = vld [vmem:[#allocation2 + $0x51] sm:$0xff]
      %v4916 = vld [vmem:[#allocation2 + $0x59] sm:$0xff]
      %v4917 = vld [vmem:[#allocation2 + $0x61] sm:$0xff]
      %v4918 = vld [vmem:[#allocation2 + $0x69] sm:$0xff]
      %v4919 = vld [vmem:[#allocation2 + $0x79] sm:$0xff]
      %v4920 = vld [vmem:[#allocation2 + $0x81] sm:$0xff]
      %v4921 = vld [vmem:[#allocation2 + $0x89] sm:$0xff]
      %v4922 = vld [vmem:[#allocation2 + $0x91] sm:$0xff]
      %v4923 = vld [vmem:[#allocation2 + $0xa1] sm:$0xff]
      %v4924 = vld [vmem:[#allocation2 + $0xa9] sm:$0xff]
      %v4925 = vld [vmem:[#allocation2 + $0xb1] sm:$0xff]
      %v4926 = vld [vmem:[#allocation2 + $0xb9] sm:$0xff]
      %v4927 = vld [vmem:[#allocation2 + $0xc9] sm:$0xff]
      %v4928 = vld [vmem:[#allocation2 + $0xd1] sm:$0xff]
      %v4929 = vld [vmem:[#allocation2 + $0xd9] sm:$0xff]
      %v4930 = vld [vmem:[#allocation2 + $0xe1] sm:$0xff]
      %v4931 = vld [vmem:[#allocation2 + $0xf1] sm:$0xff]
      %v4932 = vld [vmem:[#allocation2 + $0xf9] sm:$0xff]
      %v4933 = vld [vmem:[#allocation2 + $0x101] sm:$0xff]
      %v4934 = vld [vmem:[#allocation2 + $0x109] sm:$0xff]
      %v4935 = vld [vmem:[#allocation2 + $0x119] sm:$0xff]
      %v4936 = vld [vmem:[#allocation2 + $0x121] sm:$0xff]
      %v4937 = vld [vmem:[#allocation2 + $0x129] sm:$0xff]
      %v4938 = vld [vmem:[#allocation2 + $0x131] sm:$0xff]
      %v4939 = vpack.c.bf16 %v4908, %v4907
      %v4940 = vpack.c.bf16 %v4910, %v4909
      %v4941 = vpack.c.bf16 %v4912, %v4911
      %v4942 = vpack.c.bf16 %v4914, %v4913
      %v4943 = vpack.c.bf16 %v4916, %v4915
      %v4944 = vpack.c.bf16 %v4918, %v4917
      %v4945 = vpack.c.bf16 %v4920, %v4919
      %v4946 = vpack.c.bf16 %v4922, %v4921
      %v4947 = vpack.c.bf16 %v4924, %v4923
      %v4948 = vpack.c.bf16 %v4926, %v4925
      %v4949 = vpack.c.bf16 %v4928, %v4927
      %v4950 = vpack.c.bf16 %v4930, %v4929
      %v4951 = vpack.c.bf16 %v4932, %v4931
      %v4952 = vpack.c.bf16 %v4934, %v4933
      %v4953 = vpack.c.bf16 %v4936, %v4935
      %v4954 = vpack.c.bf16 %v4938, %v4937
      %s4955 = scalar_lea.vmem %s4, 16
      %v4956 = vld [vmem:[%s4955] sm:$0xf]
      %v4957 = vld [vmem:[%s4955 + $0x4] sm:$0xf]
      %v4958 = vld [vmem:[%s4955 + $0x8] sm:$0xf]
      %v4959 = vld [vmem:[%s4955 + $0xc] sm:$0xf]
      %v4964 = vunpack.c.l.b16 %v4956
      %v4965 = vunpack.c.l.b16 %v4957
      %v4966 = vunpack.c.l.b16 %v4958
      %v4967 = vunpack.c.l.b16 %v4959
      %v4968 = vpack.c.b16 %v4965, %v4964
      %v4969 = vpack.c.b16 %v4967, %v4966
      %v4973 = vsel %vm4326, %v4939, 0
      %v4976 = vsel %vm4326, %v4940, 0
      %v4979 = vsel %vm4326, %v4941, 0
      %v4982 = vsel %vm4326, %v4942, 0
      %v4985 = vsel %vm4326, %v4943, 0
      %v4988 = vsel %vm4326, %v4944, 0
      %v4991 = vsel %vm4326, %v4945, 0
      %v4994 = vsel %vm4326, %v4946, 0
      %v4997 = vsel %vm4326, %v4947, 0
      %v5000 = vsel %vm4326, %v4948, 0
      %v5003 = vsel %vm4326, %v4949, 0
      %v5006 = vsel %vm4326, %v4950, 0
      %v5009 = vsel %vm4326, %v4951, 0
      %v5012 = vsel %vm4326, %v4952, 0
      %v5015 = vsel %vm4326, %v4953, 0
      %v5018 = vsel %vm4326, %v4954, 0
      %5020 = vmatprep.subr.bf16.mxu0 0
      %5021 = vmatpush1.bf16.msra.mxu0 0
      %5022 = vmatprep.subr.bf16.mxu0 0
      %5023 = vmatpush1.bf16.msra.mxu0 0
      %5024 = vmatprep.subr.bf16.mxu0 0
      %5025 = vmatpush1.bf16.msra.mxu0 0
      %5026 = vmatprep.subr.bf16.mxu0 0
      %5027 = vmatpush1.bf16.msra.mxu0 0
      %5028 = vmatprep.subr.bf16.mxu0 0
      %5029 = vmatpush1.bf16.msra.mxu0 0
      %5030 = vmatprep.subr.bf16.mxu0 0
      %5031 = vmatpush1.bf16.msra.mxu0 0
      %5032 = vmatprep.subr.bf16.mxu0 0
      %5033 = vmatpush1.bf16.msra.mxu0 %v4969
      %5034 = vmatprep.subr.bf16.mxu0 0
      %5035 = vmatpush1.bf16.msra.mxu0 %v4968
      %5036 = vmatprep.subr.bf16.mxu0 0
      %5037 = vmatpush2.bf16.msra.mxu0 0
      %5038 = vmatprep.subr.bf16.mxu0 0
      %5039 = vmatpush2.bf16.msra.mxu0 0
      %5040 = vmatprep.subr.bf16.mxu0 0
      %5041 = vmatpush2.bf16.msra.mxu0 0
      %5042 = vmatprep.subr.bf16.mxu0 0
      %5043 = vmatpush2.bf16.msra.mxu0 0
      %5044 = vmatprep.subr.bf16.mxu0 0
      %5045 = vmatpush2.bf16.msra.mxu0 0
      %5046 = vmatprep.subr.bf16.mxu0 0
      %5047 = vmatpush2.bf16.msra.mxu0 0
      %5048 = vmatprep.subr.bf16.mxu0 0
      %5049 = vmatpush2.bf16.msra.mxu0 0
      %5050 = vmatprep.subr.bf16.mxu0 0
      %5051 = vmatpush2.bf16.msra.mxu0 0
      %5052 = vmatprep.mubr.bf16.mxu0 0
      %5053 = vmatmul.mubr.bf16.gmra.mxu0 %v4973
      %v5054 = vpop.f32.mrf.mxu0
      %v5055 = vadd.f32 0.0, %v5054
      %v5056 = vpop.f32.mrf.mxu0
      %v5057 = vpop.f32.mrf.mxu0
      %v5058 = vadd.f32 0.0, %v5057
      %v5059 = vpop.f32.mrf.mxu0
      %5060 = vmatprep.mubr.bf16.mxu0 0
      %5061 = vmatmul.mubr.bf16.gmra.mxu0 %v4976
      %v5062 = vpop.f32.mrf.mxu0
      %v5063 = vadd.f32 0.0, %v5062
      %v5064 = vpop.f32.mrf.mxu0
      %v5065 = vpop.f32.mrf.mxu0
      %v5066 = vadd.f32 0.0, %v5065
      %v5067 = vpop.f32.mrf.mxu0
      %5068 = vmatprep.mubr.bf16.mxu0 0
      %5069 = vmatmul.mubr.bf16.gmra.mxu0 %v4979
      %v5070 = vpop.f32.mrf.mxu0
      %v5071 = vadd.f32 0.0, %v5070
      %v5072 = vpop.f32.mrf.mxu0
      %v5073 = vpop.f32.mrf.mxu0
      %v5074 = vadd.f32 0.0, %v5073
      %v5075 = vpop.f32.mrf.mxu0
      %5076 = vmatprep.mubr.bf16.mxu0 0
      %5077 = vmatmul.mubr.bf16.gmra.mxu0 %v4982
      %v5078 = vpop.f32.mrf.mxu0
      %v5079 = vadd.f32 0.0, %v5078
      %v5080 = vpop.f32.mrf.mxu0
      %v5081 = vpop.f32.mrf.mxu0
      %v5082 = vadd.f32 0.0, %v5081
      %v5083 = vpop.f32.mrf.mxu0
      %5084 = vmatprep.mubr.bf16.mxu0 0
      %5085 = vmatmul.mubr.bf16.gmra.mxu0 %v4985
      %v5086 = vpop.f32.mrf.mxu0
      %v5087 = vadd.f32 0.0, %v5086
      %v5088 = vpop.f32.mrf.mxu0
      %v5089 = vpop.f32.mrf.mxu0
      %v5090 = vadd.f32 0.0, %v5089
      %v5091 = vpop.f32.mrf.mxu0
      %5092 = vmatprep.mubr.bf16.mxu0 0
      %5093 = vmatmul.mubr.bf16.gmra.mxu0 %v4988
      %v5094 = vpop.f32.mrf.mxu0
      %v5095 = vadd.f32 0.0, %v5094
      %v5096 = vpop.f32.mrf.mxu0
      %v5097 = vpop.f32.mrf.mxu0
      %v5098 = vadd.f32 0.0, %v5097
      %v5099 = vpop.f32.mrf.mxu0
      %5100 = vmatprep.mubr.bf16.mxu0 0
      %5101 = vmatmul.mubr.bf16.gmra.mxu0 %v4991
      %v5102 = vpop.f32.mrf.mxu0
      %v5103 = vadd.f32 0.0, %v5102
      %v5104 = vpop.f32.mrf.mxu0
      %v5105 = vpop.f32.mrf.mxu0
      %v5106 = vadd.f32 0.0, %v5105
      %v5107 = vpop.f32.mrf.mxu0
      %5108 = vmatprep.mubr.bf16.mxu0 0
      %5109 = vmatmul.mubr.bf16.gmra.mxu0 %v4994
      %v5110 = vpop.f32.mrf.mxu0
      %v5111 = vadd.f32 0.0, %v5110
      %v5112 = vpop.f32.mrf.mxu0
      %v5113 = vpop.f32.mrf.mxu0
      %v5114 = vadd.f32 0.0, %v5113
      %v5115 = vpop.f32.mrf.mxu0
      %5116 = vmatprep.mubr.bf16.mxu0 0
      %5117 = vmatmul.mubr.bf16.gmra.mxu0 %v4997
      %v5118 = vpop.f32.mrf.mxu0
      %v5119 = vadd.f32 0.0, %v5118
      %v5120 = vpop.f32.mrf.mxu0
      %v5121 = vpop.f32.mrf.mxu0
      %v5122 = vadd.f32 0.0, %v5121
      %v5123 = vpop.f32.mrf.mxu0
      %5124 = vmatprep.mubr.bf16.mxu0 0
      %5125 = vmatmul.mubr.bf16.gmra.mxu0 %v5000
      %v5126 = vpop.f32.mrf.mxu0
      %v5127 = vadd.f32 0.0, %v5126
      %v5128 = vpop.f32.mrf.mxu0
      %v5129 = vpop.f32.mrf.mxu0
      %v5130 = vadd.f32 0.0, %v5129
      %v5131 = vpop.f32.mrf.mxu0
      %5132 = vmatprep.mubr.bf16.mxu0 0
      %5133 = vmatmul.mubr.bf16.gmra.mxu0 %v5003
      %v5134 = vpop.f32.mrf.mxu0
      %v5135 = vadd.f32 0.0, %v5134
      %v5136 = vpop.f32.mrf.mxu0
      %v5137 = vpop.f32.mrf.mxu0
      %v5138 = vadd.f32 0.0, %v5137
      %v5139 = vpop.f32.mrf.mxu0
      %5140 = vmatprep.mubr.bf16.mxu0 0
      %5141 = vmatmul.mubr.bf16.gmra.mxu0 %v5006
      %v5142 = vpop.f32.mrf.mxu0
      %v5143 = vadd.f32 0.0, %v5142
      %v5144 = vpop.f32.mrf.mxu0
      %v5145 = vpop.f32.mrf.mxu0
      %v5146 = vadd.f32 0.0, %v5145
      %v5147 = vpop.f32.mrf.mxu0
      %5148 = vmatprep.mubr.bf16.mxu0 0
      %5149 = vmatmul.mubr.bf16.gmra.mxu0 %v5009
      %v5150 = vpop.f32.mrf.mxu0
      %v5151 = vadd.f32 0.0, %v5150
      %v5152 = vpop.f32.mrf.mxu0
      %v5153 = vpop.f32.mrf.mxu0
      %v5154 = vadd.f32 0.0, %v5153
      %v5155 = vpop.f32.mrf.mxu0
      %5156 = vmatprep.mubr.bf16.mxu0 0
      %5157 = vmatmul.mubr.bf16.gmra.mxu0 %v5012
      %v5158 = vpop.f32.mrf.mxu0
      %v5159 = vadd.f32 0.0, %v5158
      %v5160 = vpop.f32.mrf.mxu0
      %v5161 = vpop.f32.mrf.mxu0
      %v5162 = vadd.f32 0.0, %v5161
      %v5163 = vpop.f32.mrf.mxu0
      %5164 = vmatprep.mubr.bf16.mxu0 0
      %5165 = vmatmul.mubr.bf16.gmra.mxu0 %v5015
      %v5166 = vpop.f32.mrf.mxu0
      %v5167 = vadd.f32 0.0, %v5166
      %v5168 = vpop.f32.mrf.mxu0
      %v5169 = vpop.f32.mrf.mxu0
      %v5170 = vadd.f32 0.0, %v5169
      %v5171 = vpop.f32.mrf.mxu0
      %5172 = vmatprep.mubr.bf16.mxu0 0
      %5173 = vmatmul.mubr.bf16.gmra.mxu0 %v5018
      %v5174 = vpop.f32.mrf.mxu0
      %v5175 = vadd.f32 0.0, %v5174
      %v5176 = vpop.f32.mrf.mxu0
      %v5177 = vpop.f32.mrf.mxu0
      %v5178 = vadd.f32 0.0, %v5177
      %v5179 = vpop.f32.mrf.mxu0
      %5180 = vdwg.mxu0
      %v5185 = vunpack.c.l.b16 %v4903
      %v5186 = vunpack.c.l.b16 %v4904
      %v5187 = vunpack.c.l.b16 %v4905
      %v5188 = vunpack.c.l.b16 %v4906
      %v5189 = vpack.c.b16 %v5186, %v5185
      %v5190 = vpack.c.b16 %v5188, %v5187
      %v5194 = vsel %vm4326, %v4887, 0
      %v5197 = vsel %vm4326, %v4888, 0
      %v5200 = vsel %vm4326, %v4889, 0
      %v5203 = vsel %vm4326, %v4890, 0
      %v5206 = vsel %vm4326, %v4891, 0
      %v5209 = vsel %vm4326, %v4892, 0
      %v5212 = vsel %vm4326, %v4893, 0
      %v5215 = vsel %vm4326, %v4894, 0
      %v5218 = vsel %vm4326, %v4895, 0
      %v5221 = vsel %vm4326, %v4896, 0
      %v5224 = vsel %vm4326, %v4897, 0
      %v5227 = vsel %vm4326, %v4898, 0
      %v5230 = vsel %vm4326, %v4899, 0
      %v5233 = vsel %vm4326, %v4900, 0
      %v5236 = vsel %vm4326, %v4901, 0
      %v5239 = vsel %vm4326, %v4902, 0
      %5241 = vmatprep.subr.bf16.mxu0 0
      %5242 = vmatpush1.bf16.msra.mxu0 0
      %5243 = vmatprep.subr.bf16.mxu0 0
      %5244 = vmatpush1.bf16.msra.mxu0 0
      %5245 = vmatprep.subr.bf16.mxu0 0
      %5246 = vmatpush1.bf16.msra.mxu0 0
      %5247 = vmatprep.subr.bf16.mxu0 0
      %5248 = vmatpush1.bf16.msra.mxu0 0
      %5249 = vmatprep.subr.bf16.mxu0 0
      %5250 = vmatpush1.bf16.msra.mxu0 0
      %5251 = vmatprep.subr.bf16.mxu0 0
      %5252 = vmatpush1.bf16.msra.mxu0 0
      %5253 = vmatprep.subr.bf16.mxu0 0
      %5254 = vmatpush1.bf16.msra.mxu0 %v5190
      %5255 = vmatprep.subr.bf16.mxu0 0
      %5256 = vmatpush1.bf16.msra.mxu0 %v5189
      %5257 = vmatprep.subr.bf16.mxu0 0
      %5258 = vmatpush2.bf16.msra.mxu0 0
      %5259 = vmatprep.subr.bf16.mxu0 0
      %5260 = vmatpush2.bf16.msra.mxu0 0
      %5261 = vmatprep.subr.bf16.mxu0 0
      %5262 = vmatpush2.bf16.msra.mxu0 0
      %5263 = vmatprep.subr.bf16.mxu0 0
      %5264 = vmatpush2.bf16.msra.mxu0 0
      %5265 = vmatprep.subr.bf16.mxu0 0
      %5266 = vmatpush2.bf16.msra.mxu0 0
      %5267 = vmatprep.subr.bf16.mxu0 0
      %5268 = vmatpush2.bf16.msra.mxu0 0
      %5269 = vmatprep.subr.bf16.mxu0 0
      %5270 = vmatpush2.bf16.msra.mxu0 0
      %5271 = vmatprep.subr.bf16.mxu0 0
      %5272 = vmatpush2.bf16.msra.mxu0 0
      %5273 = vmatprep.mubr.bf16.mxu0 0
      %5274 = vmatmul.mubr.bf16.gmra.mxu0 %v5194
      %v5275 = vpop.f32.mrf.mxu0
      %v5276 = vadd.f32 %v5055, %v5275
      %v5277 = vpop.f32.mrf.mxu0
      %v5278 = vpop.f32.mrf.mxu0
      %v5279 = vadd.f32 %v5058, %v5278
      %v5280 = vpop.f32.mrf.mxu0
      %5281 = vmatprep.mubr.bf16.mxu0 0
      %5282 = vmatmul.mubr.bf16.gmra.mxu0 %v5197
      %v5283 = vpop.f32.mrf.mxu0
      %v5284 = vadd.f32 %v5063, %v5283
      %v5285 = vpop.f32.mrf.mxu0
      %v5286 = vpop.f32.mrf.mxu0
      %v5287 = vadd.f32 %v5066, %v5286
      %v5288 = vpop.f32.mrf.mxu0
      %5289 = vmatprep.mubr.bf16.mxu0 0
      %5290 = vmatmul.mubr.bf16.gmra.mxu0 %v5200
      %v5291 = vpop.f32.mrf.mxu0
      %v5292 = vadd.f32 %v5071, %v5291
      %v5293 = vpop.f32.mrf.mxu0
      %v5294 = vpop.f32.mrf.mxu0
      %v5295 = vadd.f32 %v5074, %v5294
      %v5296 = vpop.f32.mrf.mxu0
      %5297 = vmatprep.mubr.bf16.mxu0 0
      %5298 = vmatmul.mubr.bf16.gmra.mxu0 %v5203
      %v5299 = vpop.f32.mrf.mxu0
      %v5300 = vadd.f32 %v5079, %v5299
      %v5301 = vpop.f32.mrf.mxu0
      %v5302 = vpop.f32.mrf.mxu0
      %v5303 = vadd.f32 %v5082, %v5302
      %v5304 = vpop.f32.mrf.mxu0
      %5305 = vmatprep.mubr.bf16.mxu0 0
      %5306 = vmatmul.mubr.bf16.gmra.mxu0 %v5206
      %v5307 = vpop.f32.mrf.mxu0
      %v5308 = vadd.f32 %v5087, %v5307
      %v5309 = vpop.f32.mrf.mxu0
      %v5310 = vpop.f32.mrf.mxu0
      %v5311 = vadd.f32 %v5090, %v5310
      %v5312 = vpop.f32.mrf.mxu0
      %5313 = vmatprep.mubr.bf16.mxu0 0
      %5314 = vmatmul.mubr.bf16.gmra.mxu0 %v5209
      %v5315 = vpop.f32.mrf.mxu0
      %v5316 = vadd.f32 %v5095, %v5315
      %v5317 = vpop.f32.mrf.mxu0
      %v5318 = vpop.f32.mrf.mxu0
      %v5319 = vadd.f32 %v5098, %v5318
      %v5320 = vpop.f32.mrf.mxu0
      %5321 = vmatprep.mubr.bf16.mxu0 0
      %5322 = vmatmul.mubr.bf16.gmra.mxu0 %v5212
      %v5323 = vpop.f32.mrf.mxu0
      %v5324 = vadd.f32 %v5103, %v5323
      %v5325 = vpop.f32.mrf.mxu0
      %v5326 = vpop.f32.mrf.mxu0
      %v5327 = vadd.f32 %v5106, %v5326
      %v5328 = vpop.f32.mrf.mxu0
      %5329 = vmatprep.mubr.bf16.mxu0 0
      %5330 = vmatmul.mubr.bf16.gmra.mxu0 %v5215
      %v5331 = vpop.f32.mrf.mxu0
      %v5332 = vadd.f32 %v5111, %v5331
      %v5333 = vpop.f32.mrf.mxu0
      %v5334 = vpop.f32.mrf.mxu0
      %v5335 = vadd.f32 %v5114, %v5334
      %v5336 = vpop.f32.mrf.mxu0
      %5337 = vmatprep.mubr.bf16.mxu0 0
      %5338 = vmatmul.mubr.bf16.gmra.mxu0 %v5218
      %v5339 = vpop.f32.mrf.mxu0
      %v5340 = vadd.f32 %v5119, %v5339
      %v5341 = vpop.f32.mrf.mxu0
      %v5342 = vpop.f32.mrf.mxu0
      %v5343 = vadd.f32 %v5122, %v5342
      %v5344 = vpop.f32.mrf.mxu0
      %5345 = vmatprep.mubr.bf16.mxu0 0
      %5346 = vmatmul.mubr.bf16.gmra.mxu0 %v5221
      %v5347 = vpop.f32.mrf.mxu0
      %v5348 = vadd.f32 %v5127, %v5347
      %v5349 = vpop.f32.mrf.mxu0
      %v5350 = vpop.f32.mrf.mxu0
      %v5351 = vadd.f32 %v5130, %v5350
      %v5352 = vpop.f32.mrf.mxu0
      %5353 = vmatprep.mubr.bf16.mxu0 0
      %5354 = vmatmul.mubr.bf16.gmra.mxu0 %v5224
      %v5355 = vpop.f32.mrf.mxu0
      %v5356 = vadd.f32 %v5135, %v5355
      %v5357 = vpop.f32.mrf.mxu0
      %v5358 = vpop.f32.mrf.mxu0
      %v5359 = vadd.f32 %v5138, %v5358
      %v5360 = vpop.f32.mrf.mxu0
      %5361 = vmatprep.mubr.bf16.mxu0 0
      %5362 = vmatmul.mubr.bf16.gmra.mxu0 %v5227
      %v5363 = vpop.f32.mrf.mxu0
      %v5364 = vadd.f32 %v5143, %v5363
      %v5365 = vpop.f32.mrf.mxu0
      %v5366 = vpop.f32.mrf.mxu0
      %v5367 = vadd.f32 %v5146, %v5366
      %v5368 = vpop.f32.mrf.mxu0
      %5369 = vmatprep.mubr.bf16.mxu0 0
      %5370 = vmatmul.mubr.bf16.gmra.mxu0 %v5230
      %v5371 = vpop.f32.mrf.mxu0
      %v5372 = vadd.f32 %v5151, %v5371
      %v5373 = vpop.f32.mrf.mxu0
      %v5374 = vpop.f32.mrf.mxu0
      %v5375 = vadd.f32 %v5154, %v5374
      %v5376 = vpop.f32.mrf.mxu0
      %5377 = vmatprep.mubr.bf16.mxu0 0
      %5378 = vmatmul.mubr.bf16.gmra.mxu0 %v5233
      %v5379 = vpop.f32.mrf.mxu0
      %v5380 = vadd.f32 %v5159, %v5379
      %v5381 = vpop.f32.mrf.mxu0
      %v5382 = vpop.f32.mrf.mxu0
      %v5383 = vadd.f32 %v5162, %v5382
      %v5384 = vpop.f32.mrf.mxu0
      %5385 = vmatprep.mubr.bf16.mxu0 0
      %5386 = vmatmul.mubr.bf16.gmra.mxu0 %v5236
      %v5387 = vpop.f32.mrf.mxu0
      %v5388 = vadd.f32 %v5167, %v5387
      %v5389 = vpop.f32.mrf.mxu0
      %v5390 = vpop.f32.mrf.mxu0
      %v5391 = vadd.f32 %v5170, %v5390
      %v5392 = vpop.f32.mrf.mxu0
      %5393 = vmatprep.mubr.bf16.mxu0 0
      %5394 = vmatmul.mubr.bf16.gmra.mxu0 %v5239
      %v5395 = vpop.f32.mrf.mxu0
      %v5396 = vadd.f32 %v5175, %v5395
      %v5397 = vpop.f32.mrf.mxu0
      %v5398 = vpop.f32.mrf.mxu0
      %v5399 = vadd.f32 %v5178, %v5398
      %v5400 = vpop.f32.mrf.mxu0
      %5401 = vdwg.mxu0
      %v5402 = vld [vmem:[#allocation2 + $0x2] sm:$0xff]
      %v5403 = vld [vmem:[#allocation2 + $0xa] sm:$0xff]
      %v5404 = vld [vmem:[#allocation2 + $0x12] sm:$0xff]
      %v5405 = vld [vmem:[#allocation2 + $0x1a] sm:$0xff]
      %v5406 = vld [vmem:[#allocation2 + $0x2a] sm:$0xff]
      %v5407 = vld [vmem:[#allocation2 + $0x32] sm:$0xff]
      %v5408 = vld [vmem:[#allocation2 + $0x3a] sm:$0xff]
      %v5409 = vld [vmem:[#allocation2 + $0x42] sm:$0xff]
      %v5410 = vld [vmem:[#allocation2 + $0x52] sm:$0xff]
      %v5411 = vld [vmem:[#allocation2 + $0x5a] sm:$0xff]
      %v5412 = vld [vmem:[#allocation2 + $0x62] sm:$0xff]
      %v5413 = vld [vmem:[#allocation2 + $0x6a] sm:$0xff]
      %v5414 = vld [vmem:[#allocation2 + $0x7a] sm:$0xff]
      %v5415 = vld [vmem:[#allocation2 + $0x82] sm:$0xff]
      %v5416 = vld [vmem:[#allocation2 + $0x8a] sm:$0xff]
      %v5417 = vld [vmem:[#allocation2 + $0x92] sm:$0xff]
      %v5418 = vld [vmem:[#allocation2 + $0xa2] sm:$0xff]
      %v5419 = vld [vmem:[#allocation2 + $0xaa] sm:$0xff]
      %v5420 = vld [vmem:[#allocation2 + $0xb2] sm:$0xff]
      %v5421 = vld [vmem:[#allocation2 + $0xba] sm:$0xff]
      %v5422 = vld [vmem:[#allocation2 + $0xca] sm:$0xff]
      %v5423 = vld [vmem:[#allocation2 + $0xd2] sm:$0xff]
      %v5424 = vld [vmem:[#allocation2 + $0xda] sm:$0xff]
      %v5425 = vld [vmem:[#allocation2 + $0xe2] sm:$0xff]
      %v5426 = vld [vmem:[#allocation2 + $0xf2] sm:$0xff]
      %v5427 = vld [vmem:[#allocation2 + $0xfa] sm:$0xff]
      %v5428 = vld [vmem:[#allocation2 + $0x102] sm:$0xff]
      %v5429 = vld [vmem:[#allocation2 + $0x10a] sm:$0xff]
      %v5430 = vld [vmem:[#allocation2 + $0x11a] sm:$0xff]
      %v5431 = vld [vmem:[#allocation2 + $0x122] sm:$0xff]
      %v5432 = vld [vmem:[#allocation2 + $0x12a] sm:$0xff]
      %v5433 = vld [vmem:[#allocation2 + $0x132] sm:$0xff]
      %v5434 = vpack.c.bf16 %v5403, %v5402
      %v5435 = vpack.c.bf16 %v5405, %v5404
      %v5436 = vpack.c.bf16 %v5407, %v5406
      %v5437 = vpack.c.bf16 %v5409, %v5408
      %v5438 = vpack.c.bf16 %v5411, %v5410
      %v5439 = vpack.c.bf16 %v5413, %v5412
      %v5440 = vpack.c.bf16 %v5415, %v5414
      %v5441 = vpack.c.bf16 %v5417, %v5416
      %v5442 = vpack.c.bf16 %v5419, %v5418
      %v5443 = vpack.c.bf16 %v5421, %v5420
      %v5444 = vpack.c.bf16 %v5423, %v5422
      %v5445 = vpack.c.bf16 %v5425, %v5424
      %v5446 = vpack.c.bf16 %v5427, %v5426
      %v5447 = vpack.c.bf16 %v5429, %v5428
      %v5448 = vpack.c.bf16 %v5431, %v5430
      %v5449 = vpack.c.bf16 %v5433, %v5432
      %s5450 = scalar_lea.vmem %s4, 32
      %v5451 = vld [vmem:[%s5450] sm:$0xf]
      %v5452 = vld [vmem:[%s5450 + $0x4] sm:$0xf]
      %v5453 = vld [vmem:[%s5450 + $0x8] sm:$0xf]
      %v5454 = vld [vmem:[%s5450 + $0xc] sm:$0xf]
      %v5459 = vunpack.c.l.b16 %v5451
      %v5460 = vunpack.c.l.b16 %v5452
      %v5461 = vunpack.c.l.b16 %v5453
      %v5462 = vunpack.c.l.b16 %v5454
      %v5463 = vpack.c.b16 %v5460, %v5459
      %v5464 = vpack.c.b16 %v5462, %v5461
      %v5468 = vsel %vm4326, %v5434, 0
      %v5471 = vsel %vm4326, %v5435, 0
      %v5474 = vsel %vm4326, %v5436, 0
      %v5477 = vsel %vm4326, %v5437, 0
      %v5480 = vsel %vm4326, %v5438, 0
      %v5483 = vsel %vm4326, %v5439, 0
      %v5486 = vsel %vm4326, %v5440, 0
      %v5489 = vsel %vm4326, %v5441, 0
      %v5492 = vsel %vm4326, %v5442, 0
      %v5495 = vsel %vm4326, %v5443, 0
      %v5498 = vsel %vm4326, %v5444, 0
      %v5501 = vsel %vm4326, %v5445, 0
      %v5504 = vsel %vm4326, %v5446, 0
      %v5507 = vsel %vm4326, %v5447, 0
      %v5510 = vsel %vm4326, %v5448, 0
      %v5513 = vsel %vm4326, %v5449, 0
      %5515 = vmatprep.subr.bf16.mxu0 0
      %5516 = vmatpush1.bf16.msra.mxu0 0
      %5517 = vmatprep.subr.bf16.mxu0 0
      %5518 = vmatpush1.bf16.msra.mxu0 0
      %5519 = vmatprep.subr.bf16.mxu0 0
      %5520 = vmatpush1.bf16.msra.mxu0 0
      %5521 = vmatprep.subr.bf16.mxu0 0
      %5522 = vmatpush1.bf16.msra.mxu0 0
      %5523 = vmatprep.subr.bf16.mxu0 0
      %5524 = vmatpush1.bf16.msra.mxu0 0
      %5525 = vmatprep.subr.bf16.mxu0 0
      %5526 = vmatpush1.bf16.msra.mxu0 0
      %5527 = vmatprep.subr.bf16.mxu0 0
      %5528 = vmatpush1.bf16.msra.mxu0 %v5464
      %5529 = vmatprep.subr.bf16.mxu0 0
      %5530 = vmatpush1.bf16.msra.mxu0 %v5463
      %5531 = vmatprep.subr.bf16.mxu0 0
      %5532 = vmatpush2.bf16.msra.mxu0 0
      %5533 = vmatprep.subr.bf16.mxu0 0
      %5534 = vmatpush2.bf16.msra.mxu0 0
      %5535 = vmatprep.subr.bf16.mxu0 0
      %5536 = vmatpush2.bf16.msra.mxu0 0
      %5537 = vmatprep.subr.bf16.mxu0 0
      %5538 = vmatpush2.bf16.msra.mxu0 0
      %5539 = vmatprep.subr.bf16.mxu0 0
      %5540 = vmatpush2.bf16.msra.mxu0 0
      %5541 = vmatprep.subr.bf16.mxu0 0
      %5542 = vmatpush2.bf16.msra.mxu0 0
      %5543 = vmatprep.subr.bf16.mxu0 0
      %5544 = vmatpush2.bf16.msra.mxu0 0
      %5545 = vmatprep.subr.bf16.mxu0 0
      %5546 = vmatpush2.bf16.msra.mxu0 0
      %5547 = vmatprep.mubr.bf16.mxu0 0
      %5548 = vmatmul.mubr.bf16.gmra.mxu0 %v5468
      %v5549 = vpop.f32.mrf.mxu0
      %v5550 = vadd.f32 0.0, %v5549
      %v5551 = vpop.f32.mrf.mxu0
      %v5552 = vpop.f32.mrf.mxu0
      %v5553 = vadd.f32 0.0, %v5552
      %v5554 = vpop.f32.mrf.mxu0
      %5555 = vmatprep.mubr.bf16.mxu0 0
      %5556 = vmatmul.mubr.bf16.gmra.mxu0 %v5471
      %v5557 = vpop.f32.mrf.mxu0
      %v5558 = vadd.f32 0.0, %v5557
      %v5559 = vpop.f32.mrf.mxu0
      %v5560 = vpop.f32.mrf.mxu0
      %v5561 = vadd.f32 0.0, %v5560
      %v5562 = vpop.f32.mrf.mxu0
      %5563 = vmatprep.mubr.bf16.mxu0 0
      %5564 = vmatmul.mubr.bf16.gmra.mxu0 %v5474
      %v5565 = vpop.f32.mrf.mxu0
      %v5566 = vadd.f32 0.0, %v5565
      %v5567 = vpop.f32.mrf.mxu0
      %v5568 = vpop.f32.mrf.mxu0
      %v5569 = vadd.f32 0.0, %v5568
      %v5570 = vpop.f32.mrf.mxu0
      %5571 = vmatprep.mubr.bf16.mxu0 0
      %5572 = vmatmul.mubr.bf16.gmra.mxu0 %v5477
      %v5573 = vpop.f32.mrf.mxu0
      %v5574 = vadd.f32 0.0, %v5573
      %v5575 = vpop.f32.mrf.mxu0
      %v5576 = vpop.f32.mrf.mxu0
      %v5577 = vadd.f32 0.0, %v5576
      %v5578 = vpop.f32.mrf.mxu0
      %5579 = vmatprep.mubr.bf16.mxu0 0
      %5580 = vmatmul.mubr.bf16.gmra.mxu0 %v5480
      %v5581 = vpop.f32.mrf.mxu0
      %v5582 = vadd.f32 0.0, %v5581
      %v5583 = vpop.f32.mrf.mxu0
      %v5584 = vpop.f32.mrf.mxu0
      %v5585 = vadd.f32 0.0, %v5584
      %v5586 = vpop.f32.mrf.mxu0
      %5587 = vmatprep.mubr.bf16.mxu0 0
      %5588 = vmatmul.mubr.bf16.gmra.mxu0 %v5483
      %v5589 = vpop.f32.mrf.mxu0
      %v5590 = vadd.f32 0.0, %v5589
      %v5591 = vpop.f32.mrf.mxu0
      %v5592 = vpop.f32.mrf.mxu0
      %v5593 = vadd.f32 0.0, %v5592
      %v5594 = vpop.f32.mrf.mxu0
      %5595 = vmatprep.mubr.bf16.mxu0 0
      %5596 = vmatmul.mubr.bf16.gmra.mxu0 %v5486
      %v5597 = vpop.f32.mrf.mxu0
      %v5598 = vadd.f32 0.0, %v5597
      %v5599 = vpop.f32.mrf.mxu0
      %v5600 = vpop.f32.mrf.mxu0
      %v5601 = vadd.f32 0.0, %v5600
      %v5602 = vpop.f32.mrf.mxu0
      %5603 = vmatprep.mubr.bf16.mxu0 0
      %5604 = vmatmul.mubr.bf16.gmra.mxu0 %v5489
      %v5605 = vpop.f32.mrf.mxu0
      %v5606 = vadd.f32 0.0, %v5605
      %v5607 = vpop.f32.mrf.mxu0
      %v5608 = vpop.f32.mrf.mxu0
      %v5609 = vadd.f32 0.0, %v5608
      %v5610 = vpop.f32.mrf.mxu0
      %5611 = vmatprep.mubr.bf16.mxu0 0
      %5612 = vmatmul.mubr.bf16.gmra.mxu0 %v5492
      %v5613 = vpop.f32.mrf.mxu0
      %v5614 = vadd.f32 0.0, %v5613
      %v5615 = vpop.f32.mrf.mxu0
      %v5616 = vpop.f32.mrf.mxu0
      %v5617 = vadd.f32 0.0, %v5616
      %v5618 = vpop.f32.mrf.mxu0
      %5619 = vmatprep.mubr.bf16.mxu0 0
      %5620 = vmatmul.mubr.bf16.gmra.mxu0 %v5495
      %v5621 = vpop.f32.mrf.mxu0
      %v5622 = vadd.f32 0.0, %v5621
      %v5623 = vpop.f32.mrf.mxu0
      %v5624 = vpop.f32.mrf.mxu0
      %v5625 = vadd.f32 0.0, %v5624
      %v5626 = vpop.f32.mrf.mxu0
      %5627 = vmatprep.mubr.bf16.mxu0 0
      %5628 = vmatmul.mubr.bf16.gmra.mxu0 %v5498
      %v5629 = vpop.f32.mrf.mxu0
      %v5630 = vadd.f32 0.0, %v5629
      %v5631 = vpop.f32.mrf.mxu0
      %v5632 = vpop.f32.mrf.mxu0
      %v5633 = vadd.f32 0.0, %v5632
      %v5634 = vpop.f32.mrf.mxu0
      %5635 = vmatprep.mubr.bf16.mxu0 0
      %5636 = vmatmul.mubr.bf16.gmra.mxu0 %v5501
      %v5637 = vpop.f32.mrf.mxu0
      %v5638 = vadd.f32 0.0, %v5637
      %v5639 = vpop.f32.mrf.mxu0
      %v5640 = vpop.f32.mrf.mxu0
      %v5641 = vadd.f32 0.0, %v5640
      %v5642 = vpop.f32.mrf.mxu0
      %5643 = vmatprep.mubr.bf16.mxu0 0
      %5644 = vmatmul.mubr.bf16.gmra.mxu0 %v5504
      %v5645 = vpop.f32.mrf.mxu0
      %v5646 = vadd.f32 0.0, %v5645
      %v5647 = vpop.f32.mrf.mxu0
      %v5648 = vpop.f32.mrf.mxu0
      %v5649 = vadd.f32 0.0, %v5648
      %v5650 = vpop.f32.mrf.mxu0
      %5651 = vmatprep.mubr.bf16.mxu0 0
      %5652 = vmatmul.mubr.bf16.gmra.mxu0 %v5507
      %v5653 = vpop.f32.mrf.mxu0
      %v5654 = vadd.f32 0.0, %v5653
      %v5655 = vpop.f32.mrf.mxu0
      %v5656 = vpop.f32.mrf.mxu0
      %v5657 = vadd.f32 0.0, %v5656
      %v5658 = vpop.f32.mrf.mxu0
      %5659 = vmatprep.mubr.bf16.mxu0 0
      %5660 = vmatmul.mubr.bf16.gmra.mxu0 %v5510
      %v5661 = vpop.f32.mrf.mxu0
      %v5662 = vadd.f32 0.0, %v5661
      %v5663 = vpop.f32.mrf.mxu0
      %v5664 = vpop.f32.mrf.mxu0
      %v5665 = vadd.f32 0.0, %v5664
      %v5666 = vpop.f32.mrf.mxu0
      %5667 = vmatprep.mubr.bf16.mxu0 0
      %5668 = vmatmul.mubr.bf16.gmra.mxu0 %v5513
      %v5669 = vpop.f32.mrf.mxu0
      %v5670 = vadd.f32 0.0, %v5669
      %v5671 = vpop.f32.mrf.mxu0
      %v5672 = vpop.f32.mrf.mxu0
      %v5673 = vadd.f32 0.0, %v5672
      %v5674 = vpop.f32.mrf.mxu0
      %5675 = vdwg.mxu0
      %v5676 = vadd.f32 %v5276, %v5550
      %v5677 = vadd.f32 %v5279, %v5553
      %v5678 = vadd.f32 %v5284, %v5558
      %v5679 = vadd.f32 %v5287, %v5561
      %v5680 = vadd.f32 %v5292, %v5566
      %v5681 = vadd.f32 %v5295, %v5569
      %v5682 = vadd.f32 %v5300, %v5574
      %v5683 = vadd.f32 %v5303, %v5577
      %v5684 = vadd.f32 %v5308, %v5582
      %v5685 = vadd.f32 %v5311, %v5585
      %v5686 = vadd.f32 %v5316, %v5590
      %v5687 = vadd.f32 %v5319, %v5593
      %v5688 = vadd.f32 %v5324, %v5598
      %v5689 = vadd.f32 %v5327, %v5601
      %v5690 = vadd.f32 %v5332, %v5606
      %v5691 = vadd.f32 %v5335, %v5609
      %v5692 = vadd.f32 %v5340, %v5614
      %v5693 = vadd.f32 %v5343, %v5617
      %v5694 = vadd.f32 %v5348, %v5622
      %v5695 = vadd.f32 %v5351, %v5625
      %v5696 = vadd.f32 %v5356, %v5630
      %v5697 = vadd.f32 %v5359, %v5633
      %v5698 = vadd.f32 %v5364, %v5638
      %v5699 = vadd.f32 %v5367, %v5641
      %v5700 = vadd.f32 %v5372, %v5646
      %v5701 = vadd.f32 %v5375, %v5649
      %v5702 = vadd.f32 %v5380, %v5654
      %v5703 = vadd.f32 %v5383, %v5657
      %v5704 = vadd.f32 %v5388, %v5662
      %v5705 = vadd.f32 %v5391, %v5665
      %v5706 = vadd.f32 %v5396, %v5670
      %v5707 = vadd.f32 %v5399, %v5673
      %v5708 = vld [vmem:[#allocation2 + $0x3] sm:$0xff]
      %v5709 = vld [vmem:[#allocation2 + $0xb] sm:$0xff]
      %v5710 = vld [vmem:[#allocation2 + $0x13] sm:$0xff]
      %v5711 = vld [vmem:[#allocation2 + $0x1b] sm:$0xff]
      %v5712 = vld [vmem:[#allocation2 + $0x2b] sm:$0xff]
      %v5713 = vld [vmem:[#allocation2 + $0x33] sm:$0xff]
      %v5714 = vld [vmem:[#allocation2 + $0x3b] sm:$0xff]
      %v5715 = vld [vmem:[#allocation2 + $0x43] sm:$0xff]
      %v5716 = vld [vmem:[#allocation2 + $0x53] sm:$0xff]
      %v5717 = vld [vmem:[#allocation2 + $0x5b] sm:$0xff]
      %v5718 = vld [vmem:[#allocation2 + $0x63] sm:$0xff]
      %v5719 = vld [vmem:[#allocation2 + $0x6b] sm:$0xff]
      %v5720 = vld [vmem:[#allocation2 + $0x7b] sm:$0xff]
      %v5721 = vld [vmem:[#allocation2 + $0x83] sm:$0xff]
      %v5722 = vld [vmem:[#allocation2 + $0x8b] sm:$0xff]
      %v5723 = vld [vmem:[#allocation2 + $0x93] sm:$0xff]
      %v5724 = vld [vmem:[#allocation2 + $0xa3] sm:$0xff]
      %v5725 = vld [vmem:[#allocation2 + $0xab] sm:$0xff]
      %v5726 = vld [vmem:[#allocation2 + $0xb3] sm:$0xff]
      %v5727 = vld [vmem:[#allocation2 + $0xbb] sm:$0xff]
      %v5728 = vld [vmem:[#allocation2 + $0xcb] sm:$0xff]
      %v5729 = vld [vmem:[#allocation2 + $0xd3] sm:$0xff]
      %v5730 = vld [vmem:[#allocation2 + $0xdb] sm:$0xff]
      %v5731 = vld [vmem:[#allocation2 + $0xe3] sm:$0xff]
      %v5732 = vld [vmem:[#allocation2 + $0xf3] sm:$0xff]
      %v5733 = vld [vmem:[#allocation2 + $0xfb] sm:$0xff]
      %v5734 = vld [vmem:[#allocation2 + $0x103] sm:$0xff]
      %v5735 = vld [vmem:[#allocation2 + $0x10b] sm:$0xff]
      %v5736 = vld [vmem:[#allocation2 + $0x11b] sm:$0xff]
      %v5737 = vld [vmem:[#allocation2 + $0x123] sm:$0xff]
      %v5738 = vld [vmem:[#allocation2 + $0x12b] sm:$0xff]
      %v5739 = vld [vmem:[#allocation2 + $0x133] sm:$0xff]
      %v5740 = vpack.c.bf16 %v5709, %v5708
      %v5741 = vpack.c.bf16 %v5711, %v5710
      %v5742 = vpack.c.bf16 %v5713, %v5712
      %v5743 = vpack.c.bf16 %v5715, %v5714
      %v5744 = vpack.c.bf16 %v5717, %v5716
      %v5745 = vpack.c.bf16 %v5719, %v5718
      %v5746 = vpack.c.bf16 %v5721, %v5720
      %v5747 = vpack.c.bf16 %v5723, %v5722
      %v5748 = vpack.c.bf16 %v5725, %v5724
      %v5749 = vpack.c.bf16 %v5727, %v5726
      %v5750 = vpack.c.bf16 %v5729, %v5728
      %v5751 = vpack.c.bf16 %v5731, %v5730
      %v5752 = vpack.c.bf16 %v5733, %v5732
      %v5753 = vpack.c.bf16 %v5735, %v5734
      %v5754 = vpack.c.bf16 %v5737, %v5736
      %v5755 = vpack.c.bf16 %v5739, %v5738
      %s5756 = scalar_lea.vmem %s4, 48
      %v5757 = vld [vmem:[%s5756] sm:$0xf]
      %v5758 = vld [vmem:[%s5756 + $0x4] sm:$0xf]
      %v5759 = vld [vmem:[%s5756 + $0x8] sm:$0xf]
      %v5760 = vld [vmem:[%s5756 + $0xc] sm:$0xf]
      %v5765 = vunpack.c.l.b16 %v5757
      %v5766 = vunpack.c.l.b16 %v5758
      %v5767 = vunpack.c.l.b16 %v5759
      %v5768 = vunpack.c.l.b16 %v5760
      %v5769 = vpack.c.b16 %v5766, %v5765
      %v5770 = vpack.c.b16 %v5768, %v5767
      %v5774 = vsel %vm4326, %v5740, 0
      %v5777 = vsel %vm4326, %v5741, 0
      %v5780 = vsel %vm4326, %v5742, 0
      %v5783 = vsel %vm4326, %v5743, 0
      %v5786 = vsel %vm4326, %v5744, 0
      %v5789 = vsel %vm4326, %v5745, 0
      %v5792 = vsel %vm4326, %v5746, 0
      %v5795 = vsel %vm4326, %v5747, 0
      %v5798 = vsel %vm4326, %v5748, 0
      %v5801 = vsel %vm4326, %v5749, 0
      %v5804 = vsel %vm4326, %v5750, 0
      %v5807 = vsel %vm4326, %v5751, 0
      %v5810 = vsel %vm4326, %v5752, 0
      %v5813 = vsel %vm4326, %v5753, 0
      %v5816 = vsel %vm4326, %v5754, 0
      %v5819 = vsel %vm4326, %v5755, 0
      %5821 = vmatprep.subr.bf16.mxu0 0
      %5822 = vmatpush1.bf16.msra.mxu0 0
      %5823 = vmatprep.subr.bf16.mxu0 0
      %5824 = vmatpush1.bf16.msra.mxu0 0
      %5825 = vmatprep.subr.bf16.mxu0 0
      %5826 = vmatpush1.bf16.msra.mxu0 0
      %5827 = vmatprep.subr.bf16.mxu0 0
      %5828 = vmatpush1.bf16.msra.mxu0 0
      %5829 = vmatprep.subr.bf16.mxu0 0
      %5830 = vmatpush1.bf16.msra.mxu0 0
      %5831 = vmatprep.subr.bf16.mxu0 0
      %5832 = vmatpush1.bf16.msra.mxu0 0
      %5833 = vmatprep.subr.bf16.mxu0 0
      %5834 = vmatpush1.bf16.msra.mxu0 %v5770
      %5835 = vmatprep.subr.bf16.mxu0 0
      %5836 = vmatpush1.bf16.msra.mxu0 %v5769
      %5837 = vmatprep.subr.bf16.mxu0 0
      %5838 = vmatpush2.bf16.msra.mxu0 0
      %5839 = vmatprep.subr.bf16.mxu0 0
      %5840 = vmatpush2.bf16.msra.mxu0 0
      %5841 = vmatprep.subr.bf16.mxu0 0
      %5842 = vmatpush2.bf16.msra.mxu0 0
      %5843 = vmatprep.subr.bf16.mxu0 0
      %5844 = vmatpush2.bf16.msra.mxu0 0
      %5845 = vmatprep.subr.bf16.mxu0 0
      %5846 = vmatpush2.bf16.msra.mxu0 0
      %5847 = vmatprep.subr.bf16.mxu0 0
      %5848 = vmatpush2.bf16.msra.mxu0 0
      %5849 = vmatprep.subr.bf16.mxu0 0
      %5850 = vmatpush2.bf16.msra.mxu0 0
      %5851 = vmatprep.subr.bf16.mxu0 0
      %5852 = vmatpush2.bf16.msra.mxu0 0
      %5853 = vmatprep.mubr.bf16.mxu0 0
      %5854 = vmatmul.mubr.bf16.gmra.mxu0 %v5774
      %v5855 = vpop.f32.mrf.mxu0
      %v5856 = vadd.f32 0.0, %v5855
      %v5857 = vpop.f32.mrf.mxu0
      %v5858 = vpop.f32.mrf.mxu0
      %v5859 = vadd.f32 0.0, %v5858
      %v5860 = vpop.f32.mrf.mxu0
      %5861 = vmatprep.mubr.bf16.mxu0 0
      %5862 = vmatmul.mubr.bf16.gmra.mxu0 %v5777
      %v5863 = vpop.f32.mrf.mxu0
      %v5864 = vadd.f32 0.0, %v5863
      %v5865 = vpop.f32.mrf.mxu0
      %v5866 = vpop.f32.mrf.mxu0
      %v5867 = vadd.f32 0.0, %v5866
      %v5868 = vpop.f32.mrf.mxu0
      %5869 = vmatprep.mubr.bf16.mxu0 0
      %5870 = vmatmul.mubr.bf16.gmra.mxu0 %v5780
      %v5871 = vpop.f32.mrf.mxu0
      %v5872 = vadd.f32 0.0, %v5871
      %v5873 = vpop.f32.mrf.mxu0
      %v5874 = vpop.f32.mrf.mxu0
      %v5875 = vadd.f32 0.0, %v5874
      %v5876 = vpop.f32.mrf.mxu0
      %5877 = vmatprep.mubr.bf16.mxu0 0
      %5878 = vmatmul.mubr.bf16.gmra.mxu0 %v5783
      %v5879 = vpop.f32.mrf.mxu0
      %v5880 = vadd.f32 0.0, %v5879
      %v5881 = vpop.f32.mrf.mxu0
      %v5882 = vpop.f32.mrf.mxu0
      %v5883 = vadd.f32 0.0, %v5882
      %v5884 = vpop.f32.mrf.mxu0
      %5885 = vmatprep.mubr.bf16.mxu0 0
      %5886 = vmatmul.mubr.bf16.gmra.mxu0 %v5786
      %v5887 = vpop.f32.mrf.mxu0
      %v5888 = vadd.f32 0.0, %v5887
      %v5889 = vpop.f32.mrf.mxu0
      %v5890 = vpop.f32.mrf.mxu0
      %v5891 = vadd.f32 0.0, %v5890
      %v5892 = vpop.f32.mrf.mxu0
      %5893 = vmatprep.mubr.bf16.mxu0 0
      %5894 = vmatmul.mubr.bf16.gmra.mxu0 %v5789
      %v5895 = vpop.f32.mrf.mxu0
      %v5896 = vadd.f32 0.0, %v5895
      %v5897 = vpop.f32.mrf.mxu0
      %v5898 = vpop.f32.mrf.mxu0
      %v5899 = vadd.f32 0.0, %v5898
      %v5900 = vpop.f32.mrf.mxu0
      %5901 = vmatprep.mubr.bf16.mxu0 0
      %5902 = vmatmul.mubr.bf16.gmra.mxu0 %v5792
      %v5903 = vpop.f32.mrf.mxu0
      %v5904 = vadd.f32 0.0, %v5903
      %v5905 = vpop.f32.mrf.mxu0
      %v5906 = vpop.f32.mrf.mxu0
      %v5907 = vadd.f32 0.0, %v5906
      %v5908 = vpop.f32.mrf.mxu0
      %5909 = vmatprep.mubr.bf16.mxu0 0
      %5910 = vmatmul.mubr.bf16.gmra.mxu0 %v5795
      %v5911 = vpop.f32.mrf.mxu0
      %v5912 = vadd.f32 0.0, %v5911
      %v5913 = vpop.f32.mrf.mxu0
      %v5914 = vpop.f32.mrf.mxu0
      %v5915 = vadd.f32 0.0, %v5914
      %v5916 = vpop.f32.mrf.mxu0
      %5917 = vmatprep.mubr.bf16.mxu0 0
      %5918 = vmatmul.mubr.bf16.gmra.mxu0 %v5798
      %v5919 = vpop.f32.mrf.mxu0
      %v5920 = vadd.f32 0.0, %v5919
      %v5921 = vpop.f32.mrf.mxu0
      %v5922 = vpop.f32.mrf.mxu0
      %v5923 = vadd.f32 0.0, %v5922
      %v5924 = vpop.f32.mrf.mxu0
      %5925 = vmatprep.mubr.bf16.mxu0 0
      %5926 = vmatmul.mubr.bf16.gmra.mxu0 %v5801
      %v5927 = vpop.f32.mrf.mxu0
      %v5928 = vadd.f32 0.0, %v5927
      %v5929 = vpop.f32.mrf.mxu0
      %v5930 = vpop.f32.mrf.mxu0
      %v5931 = vadd.f32 0.0, %v5930
      %v5932 = vpop.f32.mrf.mxu0
      %5933 = vmatprep.mubr.bf16.mxu0 0
      %5934 = vmatmul.mubr.bf16.gmra.mxu0 %v5804
      %v5935 = vpop.f32.mrf.mxu0
      %v5936 = vadd.f32 0.0, %v5935
      %v5937 = vpop.f32.mrf.mxu0
      %v5938 = vpop.f32.mrf.mxu0
      %v5939 = vadd.f32 0.0, %v5938
      %v5940 = vpop.f32.mrf.mxu0
      %5941 = vmatprep.mubr.bf16.mxu0 0
      %5942 = vmatmul.mubr.bf16.gmra.mxu0 %v5807
      %v5943 = vpop.f32.mrf.mxu0
      %v5944 = vadd.f32 0.0, %v5943
      %v5945 = vpop.f32.mrf.mxu0
      %v5946 = vpop.f32.mrf.mxu0
      %v5947 = vadd.f32 0.0, %v5946
      %v5948 = vpop.f32.mrf.mxu0
      %5949 = vmatprep.mubr.bf16.mxu0 0
      %5950 = vmatmul.mubr.bf16.gmra.mxu0 %v5810
      %v5951 = vpop.f32.mrf.mxu0
      %v5952 = vadd.f32 0.0, %v5951
      %v5953 = vpop.f32.mrf.mxu0
      %v5954 = vpop.f32.mrf.mxu0
      %v5955 = vadd.f32 0.0, %v5954
      %v5956 = vpop.f32.mrf.mxu0
      %5957 = vmatprep.mubr.bf16.mxu0 0
      %5958 = vmatmul.mubr.bf16.gmra.mxu0 %v5813
      %v5959 = vpop.f32.mrf.mxu0
      %v5960 = vadd.f32 0.0, %v5959
      %v5961 = vpop.f32.mrf.mxu0
      %v5962 = vpop.f32.mrf.mxu0
      %v5963 = vadd.f32 0.0, %v5962
      %v5964 = vpop.f32.mrf.mxu0
      %5965 = vmatprep.mubr.bf16.mxu0 0
      %5966 = vmatmul.mubr.bf16.gmra.mxu0 %v5816
      %v5967 = vpop.f32.mrf.mxu0
      %v5968 = vadd.f32 0.0, %v5967
      %v5969 = vpop.f32.mrf.mxu0
      %v5970 = vpop.f32.mrf.mxu0
      %v5971 = vadd.f32 0.0, %v5970
      %v5972 = vpop.f32.mrf.mxu0
      %5973 = vmatprep.mubr.bf16.mxu0 0
      %5974 = vmatmul.mubr.bf16.gmra.mxu0 %v5819
      %v5975 = vpop.f32.mrf.mxu0
      %v5976 = vadd.f32 0.0, %v5975
      %v5977 = vpop.f32.mrf.mxu0
      %v5978 = vpop.f32.mrf.mxu0
      %v5979 = vadd.f32 0.0, %v5978
      %v5980 = vpop.f32.mrf.mxu0
      %5981 = vdwg.mxu0
      %v5982 = vadd.f32 %v5676, %v5856
      %v5983 = vadd.f32 %v5677, %v5859
      %v5984 = vadd.f32 %v5678, %v5864
      %v5985 = vadd.f32 %v5679, %v5867
      %v5986 = vadd.f32 %v5680, %v5872
      %v5987 = vadd.f32 %v5681, %v5875
      %v5988 = vadd.f32 %v5682, %v5880
      %v5989 = vadd.f32 %v5683, %v5883
      %v5990 = vadd.f32 %v5684, %v5888
      %v5991 = vadd.f32 %v5685, %v5891
      %v5992 = vadd.f32 %v5686, %v5896
      %v5993 = vadd.f32 %v5687, %v5899
      %v5994 = vadd.f32 %v5688, %v5904
      %v5995 = vadd.f32 %v5689, %v5907
      %v5996 = vadd.f32 %v5690, %v5912
      %v5997 = vadd.f32 %v5691, %v5915
      %v5998 = vadd.f32 %v5692, %v5920
      %v5999 = vadd.f32 %v5693, %v5923
      %v6000 = vadd.f32 %v5694, %v5928
      %v6001 = vadd.f32 %v5695, %v5931
      %v6002 = vadd.f32 %v5696, %v5936
      %v6003 = vadd.f32 %v5697, %v5939
      %v6004 = vadd.f32 %v5698, %v5944
      %v6005 = vadd.f32 %v5699, %v5947
      %v6006 = vadd.f32 %v5700, %v5952
      %v6007 = vadd.f32 %v5701, %v5955
      %v6008 = vadd.f32 %v5702, %v5960
      %v6009 = vadd.f32 %v5703, %v5963
      %v6010 = vadd.f32 %v5704, %v5968
      %v6011 = vadd.f32 %v5705, %v5971
      %v6012 = vadd.f32 %v5706, %v5976
      %v6013 = vadd.f32 %v5707, %v5979
      %v6014 = vld [vmem:[#allocation2 + $0x4] sm:$0xff]
      %v6015 = vld [vmem:[#allocation2 + $0xc] sm:$0xff]
      %v6016 = vld [vmem:[#allocation2 + $0x14] sm:$0xff]
      %v6017 = vld [vmem:[#allocation2 + $0x1c] sm:$0xff]
      %v6018 = vld [vmem:[#allocation2 + $0x2c] sm:$0xff]
      %v6019 = vld [vmem:[#allocation2 + $0x34] sm:$0xff]
      %v6020 = vld [vmem:[#allocation2 + $0x3c] sm:$0xff]
      %v6021 = vld [vmem:[#allocation2 + $0x44] sm:$0xff]
      %v6022 = vld [vmem:[#allocation2 + $0x54] sm:$0xff]
      %v6023 = vld [vmem:[#allocation2 + $0x5c] sm:$0xff]
      %v6024 = vld [vmem:[#allocation2 + $0x64] sm:$0xff]
      %v6025 = vld [vmem:[#allocation2 + $0x6c] sm:$0xff]
      %v6026 = vld [vmem:[#allocation2 + $0x7c] sm:$0xff]
      %v6027 = vld [vmem:[#allocation2 + $0x84] sm:$0xff]
      %v6028 = vld [vmem:[#allocation2 + $0x8c] sm:$0xff]
      %v6029 = vld [vmem:[#allocation2 + $0x94] sm:$0xff]
      %v6030 = vld [vmem:[#allocation2 + $0xa4] sm:$0xff]
      %v6031 = vld [vmem:[#allocation2 + $0xac] sm:$0xff]
      %v6032 = vld [vmem:[#allocation2 + $0xb4] sm:$0xff]
      %v6033 = vld [vmem:[#allocation2 + $0xbc] sm:$0xff]
      %v6034 = vld [vmem:[#allocation2 + $0xcc] sm:$0xff]
      %v6035 = vld [vmem:[#allocation2 + $0xd4] sm:$0xff]
      %v6036 = vld [vmem:[#allocation2 + $0xdc] sm:$0xff]
      %v6037 = vld [vmem:[#allocation2 + $0xe4] sm:$0xff]
      %v6038 = vld [vmem:[#allocation2 + $0xf4] sm:$0xff]
      %v6039 = vld [vmem:[#allocation2 + $0xfc] sm:$0xff]
      %v6040 = vld [vmem:[#allocation2 + $0x104] sm:$0xff]
      %v6041 = vld [vmem:[#allocation2 + $0x10c] sm:$0xff]
      %v6042 = vld [vmem:[#allocation2 + $0x11c] sm:$0xff]
      %v6043 = vld [vmem:[#allocation2 + $0x124] sm:$0xff]
      %v6044 = vld [vmem:[#allocation2 + $0x12c] sm:$0xff]
      %v6045 = vld [vmem:[#allocation2 + $0x134] sm:$0xff]
      %v6046 = vpack.c.bf16 %v6015, %v6014
      %v6047 = vpack.c.bf16 %v6017, %v6016
      %v6048 = vpack.c.bf16 %v6019, %v6018
      %v6049 = vpack.c.bf16 %v6021, %v6020
      %v6050 = vpack.c.bf16 %v6023, %v6022
      %v6051 = vpack.c.bf16 %v6025, %v6024
      %v6052 = vpack.c.bf16 %v6027, %v6026
      %v6053 = vpack.c.bf16 %v6029, %v6028
      %v6054 = vpack.c.bf16 %v6031, %v6030
      %v6055 = vpack.c.bf16 %v6033, %v6032
      %v6056 = vpack.c.bf16 %v6035, %v6034
      %v6057 = vpack.c.bf16 %v6037, %v6036
      %v6058 = vpack.c.bf16 %v6039, %v6038
      %v6059 = vpack.c.bf16 %v6041, %v6040
      %v6060 = vpack.c.bf16 %v6043, %v6042
      %v6061 = vpack.c.bf16 %v6045, %v6044
      %s6062 = scalar_lea.vmem %s4, 64
      %v6063 = vld [vmem:[%s6062] sm:$0xf]
      %v6064 = vld [vmem:[%s6062 + $0x4] sm:$0xf]
      %v6065 = vld [vmem:[%s6062 + $0x8] sm:$0xf]
      %v6066 = vld [vmem:[%s6062 + $0xc] sm:$0xf]
      %v6071 = vunpack.c.l.b16 %v6063
      %v6072 = vunpack.c.l.b16 %v6064
      %v6073 = vunpack.c.l.b16 %v6065
      %v6074 = vunpack.c.l.b16 %v6066
      %v6075 = vpack.c.b16 %v6072, %v6071
      %v6076 = vpack.c.b16 %v6074, %v6073
      %v6080 = vsel %vm4326, %v6046, 0
      %v6083 = vsel %vm4326, %v6047, 0
      %v6086 = vsel %vm4326, %v6048, 0
      %v6089 = vsel %vm4326, %v6049, 0
      %v6092 = vsel %vm4326, %v6050, 0
      %v6095 = vsel %vm4326, %v6051, 0
      %v6098 = vsel %vm4326, %v6052, 0
      %v6101 = vsel %vm4326, %v6053, 0
      %v6104 = vsel %vm4326, %v6054, 0
      %v6107 = vsel %vm4326, %v6055, 0
      %v6110 = vsel %vm4326, %v6056, 0
      %v6113 = vsel %vm4326, %v6057, 0
      %v6116 = vsel %vm4326, %v6058, 0
      %v6119 = vsel %vm4326, %v6059, 0
      %v6122 = vsel %vm4326, %v6060, 0
      %v6125 = vsel %vm4326, %v6061, 0
      %6127 = vmatprep.subr.bf16.mxu0 0
      %6128 = vmatpush1.bf16.msra.mxu0 0
      %6129 = vmatprep.subr.bf16.mxu0 0
      %6130 = vmatpush1.bf16.msra.mxu0 0
      %6131 = vmatprep.subr.bf16.mxu0 0
      %6132 = vmatpush1.bf16.msra.mxu0 0
      %6133 = vmatprep.subr.bf16.mxu0 0
      %6134 = vmatpush1.bf16.msra.mxu0 0
      %6135 = vmatprep.subr.bf16.mxu0 0
      %6136 = vmatpush1.bf16.msra.mxu0 0
      %6137 = vmatprep.subr.bf16.mxu0 0
      %6138 = vmatpush1.bf16.msra.mxu0 0
      %6139 = vmatprep.subr.bf16.mxu0 0
      %6140 = vmatpush1.bf16.msra.mxu0 %v6076
      %6141 = vmatprep.subr.bf16.mxu0 0
      %6142 = vmatpush1.bf16.msra.mxu0 %v6075
      %6143 = vmatprep.subr.bf16.mxu0 0
      %6144 = vmatpush2.bf16.msra.mxu0 0
      %6145 = vmatprep.subr.bf16.mxu0 0
      %6146 = vmatpush2.bf16.msra.mxu0 0
      %6147 = vmatprep.subr.bf16.mxu0 0
      %6148 = vmatpush2.bf16.msra.mxu0 0
      %6149 = vmatprep.subr.bf16.mxu0 0
      %6150 = vmatpush2.bf16.msra.mxu0 0
      %6151 = vmatprep.subr.bf16.mxu0 0
      %6152 = vmatpush2.bf16.msra.mxu0 0
      %6153 = vmatprep.subr.bf16.mxu0 0
      %6154 = vmatpush2.bf16.msra.mxu0 0
      %6155 = vmatprep.subr.bf16.mxu0 0
      %6156 = vmatpush2.bf16.msra.mxu0 0
      %6157 = vmatprep.subr.bf16.mxu0 0
      %6158 = vmatpush2.bf16.msra.mxu0 0
      %6159 = vmatprep.mubr.bf16.mxu0 0
      %6160 = vmatmul.mubr.bf16.gmra.mxu0 %v6080
      %v6161 = vpop.f32.mrf.mxu0
      %v6162 = vadd.f32 0.0, %v6161
      %v6163 = vpop.f32.mrf.mxu0
      %v6164 = vpop.f32.mrf.mxu0
      %v6165 = vadd.f32 0.0, %v6164
      %v6166 = vpop.f32.mrf.mxu0
      %6167 = vmatprep.mubr.bf16.mxu0 0
      %6168 = vmatmul.mubr.bf16.gmra.mxu0 %v6083
      %v6169 = vpop.f32.mrf.mxu0
      %v6170 = vadd.f32 0.0, %v6169
      %v6171 = vpop.f32.mrf.mxu0
      %v6172 = vpop.f32.mrf.mxu0
      %v6173 = vadd.f32 0.0, %v6172
      %v6174 = vpop.f32.mrf.mxu0
      %6175 = vmatprep.mubr.bf16.mxu0 0
      %6176 = vmatmul.mubr.bf16.gmra.mxu0 %v6086
      %v6177 = vpop.f32.mrf.mxu0
      %v6178 = vadd.f32 0.0, %v6177
      %v6179 = vpop.f32.mrf.mxu0
      %v6180 = vpop.f32.mrf.mxu0
      %v6181 = vadd.f32 0.0, %v6180
      %v6182 = vpop.f32.mrf.mxu0
      %6183 = vmatprep.mubr.bf16.mxu0 0
      %6184 = vmatmul.mubr.bf16.gmra.mxu0 %v6089
      %v6185 = vpop.f32.mrf.mxu0
      %v6186 = vadd.f32 0.0, %v6185
      %v6187 = vpop.f32.mrf.mxu0
      %v6188 = vpop.f32.mrf.mxu0
      %v6189 = vadd.f32 0.0, %v6188
      %v6190 = vpop.f32.mrf.mxu0
      %6191 = vmatprep.mubr.bf16.mxu0 0
      %6192 = vmatmul.mubr.bf16.gmra.mxu0 %v6092
      %v6193 = vpop.f32.mrf.mxu0
      %v6194 = vadd.f32 0.0, %v6193
      %v6195 = vpop.f32.mrf.mxu0
      %v6196 = vpop.f32.mrf.mxu0
      %v6197 = vadd.f32 0.0, %v6196
      %v6198 = vpop.f32.mrf.mxu0
      %6199 = vmatprep.mubr.bf16.mxu0 0
      %6200 = vmatmul.mubr.bf16.gmra.mxu0 %v6095
      %v6201 = vpop.f32.mrf.mxu0
      %v6202 = vadd.f32 0.0, %v6201
      %v6203 = vpop.f32.mrf.mxu0
      %v6204 = vpop.f32.mrf.mxu0
      %v6205 = vadd.f32 0.0, %v6204
      %v6206 = vpop.f32.mrf.mxu0
      %6207 = vmatprep.mubr.bf16.mxu0 0
      %6208 = vmatmul.mubr.bf16.gmra.mxu0 %v6098
      %v6209 = vpop.f32.mrf.mxu0
      %v6210 = vadd.f32 0.0, %v6209
      %v6211 = vpop.f32.mrf.mxu0
      %v6212 = vpop.f32.mrf.mxu0
      %v6213 = vadd.f32 0.0, %v6212
      %v6214 = vpop.f32.mrf.mxu0
      %6215 = vmatprep.mubr.bf16.mxu0 0
      %6216 = vmatmul.mubr.bf16.gmra.mxu0 %v6101
      %v6217 = vpop.f32.mrf.mxu0
      %v6218 = vadd.f32 0.0, %v6217
      %v6219 = vpop.f32.mrf.mxu0
      %v6220 = vpop.f32.mrf.mxu0
      %v6221 = vadd.f32 0.0, %v6220
      %v6222 = vpop.f32.mrf.mxu0
      %6223 = vmatprep.mubr.bf16.mxu0 0
      %6224 = vmatmul.mubr.bf16.gmra.mxu0 %v6104
      %v6225 = vpop.f32.mrf.mxu0
      %v6226 = vadd.f32 0.0, %v6225
      %v6227 = vpop.f32.mrf.mxu0
      %v6228 = vpop.f32.mrf.mxu0
      %v6229 = vadd.f32 0.0, %v6228
      %v6230 = vpop.f32.mrf.mxu0
      %6231 = vmatprep.mubr.bf16.mxu0 0
      %6232 = vmatmul.mubr.bf16.gmra.mxu0 %v6107
      %v6233 = vpop.f32.mrf.mxu0
      %v6234 = vadd.f32 0.0, %v6233
      %v6235 = vpop.f32.mrf.mxu0
      %v6236 = vpop.f32.mrf.mxu0
      %v6237 = vadd.f32 0.0, %v6236
      %v6238 = vpop.f32.mrf.mxu0
      %6239 = vmatprep.mubr.bf16.mxu0 0
      %6240 = vmatmul.mubr.bf16.gmra.mxu0 %v6110
      %v6241 = vpop.f32.mrf.mxu0
      %v6242 = vadd.f32 0.0, %v6241
      %v6243 = vpop.f32.mrf.mxu0
      %v6244 = vpop.f32.mrf.mxu0
      %v6245 = vadd.f32 0.0, %v6244
      %v6246 = vpop.f32.mrf.mxu0
      %6247 = vmatprep.mubr.bf16.mxu0 0
      %6248 = vmatmul.mubr.bf16.gmra.mxu0 %v6113
      %v6249 = vpop.f32.mrf.mxu0
      %v6250 = vadd.f32 0.0, %v6249
      %v6251 = vpop.f32.mrf.mxu0
      %v6252 = vpop.f32.mrf.mxu0
      %v6253 = vadd.f32 0.0, %v6252
      %v6254 = vpop.f32.mrf.mxu0
      %6255 = vmatprep.mubr.bf16.mxu0 0
      %6256 = vmatmul.mubr.bf16.gmra.mxu0 %v6116
      %v6257 = vpop.f32.mrf.mxu0
      %v6258 = vadd.f32 0.0, %v6257
      %v6259 = vpop.f32.mrf.mxu0
      %v6260 = vpop.f32.mrf.mxu0
      %v6261 = vadd.f32 0.0, %v6260
      %v6262 = vpop.f32.mrf.mxu0
      %6263 = vmatprep.mubr.bf16.mxu0 0
      %6264 = vmatmul.mubr.bf16.gmra.mxu0 %v6119
      %v6265 = vpop.f32.mrf.mxu0
      %v6266 = vadd.f32 0.0, %v6265
      %v6267 = vpop.f32.mrf.mxu0
      %v6268 = vpop.f32.mrf.mxu0
      %v6269 = vadd.f32 0.0, %v6268
      %v6270 = vpop.f32.mrf.mxu0
      %6271 = vmatprep.mubr.bf16.mxu0 0
      %6272 = vmatmul.mubr.bf16.gmra.mxu0 %v6122
      %v6273 = vpop.f32.mrf.mxu0
      %v6274 = vadd.f32 0.0, %v6273
      %v6275 = vpop.f32.mrf.mxu0
      %v6276 = vpop.f32.mrf.mxu0
      %v6277 = vadd.f32 0.0, %v6276
      %v6278 = vpop.f32.mrf.mxu0
      %6279 = vmatprep.mubr.bf16.mxu0 0
      %6280 = vmatmul.mubr.bf16.gmra.mxu0 %v6125
      %v6281 = vpop.f32.mrf.mxu0
      %v6282 = vadd.f32 0.0, %v6281
      %v6283 = vpop.f32.mrf.mxu0
      %v6284 = vpop.f32.mrf.mxu0
      %v6285 = vadd.f32 0.0, %v6284
      %v6286 = vpop.f32.mrf.mxu0
      %6287 = vdwg.mxu0
      %v6288 = vadd.f32 %v5982, %v6162
      %v6289 = vadd.f32 %v5983, %v6165
      %v6290 = vadd.f32 %v5984, %v6170
      %v6291 = vadd.f32 %v5985, %v6173
      %v6292 = vadd.f32 %v5986, %v6178
      %v6293 = vadd.f32 %v5987, %v6181
      %v6294 = vadd.f32 %v5988, %v6186
      %v6295 = vadd.f32 %v5989, %v6189
      %v6296 = vadd.f32 %v5990, %v6194
      %v6297 = vadd.f32 %v5991, %v6197
      %v6298 = vadd.f32 %v5992, %v6202
      %v6299 = vadd.f32 %v5993, %v6205
      %v6300 = vadd.f32 %v5994, %v6210
      %v6301 = vadd.f32 %v5995, %v6213
      %v6302 = vadd.f32 %v5996, %v6218
      %v6303 = vadd.f32 %v5997, %v6221
      %v6304 = vadd.f32 %v5998, %v6226
      %v6305 = vadd.f32 %v5999, %v6229
      %v6306 = vadd.f32 %v6000, %v6234
      %v6307 = vadd.f32 %v6001, %v6237
      %v6308 = vadd.f32 %v6002, %v6242
      %v6309 = vadd.f32 %v6003, %v6245
      %v6310 = vadd.f32 %v6004, %v6250
      %v6311 = vadd.f32 %v6005, %v6253
      %v6312 = vadd.f32 %v6006, %v6258
      %v6313 = vadd.f32 %v6007, %v6261
      %v6314 = vadd.f32 %v6008, %v6266
      %v6315 = vadd.f32 %v6009, %v6269
      %v6316 = vadd.f32 %v6010, %v6274
      %v6317 = vadd.f32 %v6011, %v6277
      %v6318 = vadd.f32 %v6012, %v6282
      %v6319 = vadd.f32 %v6013, %v6285
      %v6320 = vld [vmem:[%s5] sm:$0x1]
      %v6322 = vlaneseq
      %v6323 = vshrl.u32 %v6322, 7
      %v6324 = vsub.s32 0, %v6323
      %v6325 = vrot.slane %v6320, %v6324
      %v6327 = vmul.f32 %v6288, %v6325
      %v6328 = vmul.f32 %v6289, %v6325
      %v6329 = vmul.f32 %v6290, %v6325
      %v6330 = vmul.f32 %v6291, %v6325
      %v6331 = vmul.f32 %v6292, %v6325
      %v6332 = vmul.f32 %v6293, %v6325
      %v6333 = vmul.f32 %v6294, %v6325
      %v6334 = vmul.f32 %v6295, %v6325
      %v6335 = vmul.f32 %v6296, %v6325
      %v6336 = vmul.f32 %v6297, %v6325
      %v6337 = vmul.f32 %v6298, %v6325
      %v6338 = vmul.f32 %v6299, %v6325
      %v6339 = vmul.f32 %v6300, %v6325
      %v6340 = vmul.f32 %v6301, %v6325
      %v6341 = vmul.f32 %v6302, %v6325
      %v6342 = vmul.f32 %v6303, %v6325
      %v6343 = vmul.f32 %v6304, %v6325
      %v6344 = vmul.f32 %v6305, %v6325
      %v6345 = vmul.f32 %v6306, %v6325
      %v6346 = vmul.f32 %v6307, %v6325
      %v6347 = vmul.f32 %v6308, %v6325
      %v6348 = vmul.f32 %v6309, %v6325
      %v6349 = vmul.f32 %v6310, %v6325
      %v6350 = vmul.f32 %v6311, %v6325
      %v6351 = vmul.f32 %v6312, %v6325
      %v6352 = vmul.f32 %v6313, %v6325
      %v6353 = vmul.f32 %v6314, %v6325
      %v6354 = vmul.f32 %v6315, %v6325
      %v6355 = vmul.f32 %v6316, %v6325
      %v6356 = vmul.f32 %v6317, %v6325
      %v6357 = vmul.f32 %v6318, %v6325
      %v6358 = vmul.f32 %v6319, %v6325
      %v6359 = vld [vmem:[%s6] sm:$0x1]
      %v6361 = vlaneseq
      %v6362 = vshrl.u32 %v6361, 7
      %v6363 = vsub.s32 0, %v6362
      %v6364 = vrot.slane %v6359, %v6363
      %v6366 = vadd.f32 %v6327, %v6364
      %v6367 = vadd.f32 %v6328, %v6364
      %v6368 = vadd.f32 %v6329, %v6364
      %v6369 = vadd.f32 %v6330, %v6364
      %v6370 = vadd.f32 %v6331, %v6364
      %v6371 = vadd.f32 %v6332, %v6364
      %v6372 = vadd.f32 %v6333, %v6364
      %v6373 = vadd.f32 %v6334, %v6364
      %v6374 = vadd.f32 %v6335, %v6364
      %v6375 = vadd.f32 %v6336, %v6364
      %v6376 = vadd.f32 %v6337, %v6364
      %v6377 = vadd.f32 %v6338, %v6364
      %v6378 = vadd.f32 %v6339, %v6364
      %v6379 = vadd.f32 %v6340, %v6364
      %v6380 = vadd.f32 %v6341, %v6364
      %v6381 = vadd.f32 %v6342, %v6364
      %v6382 = vadd.f32 %v6343, %v6364
      %v6383 = vadd.f32 %v6344, %v6364
      %v6384 = vadd.f32 %v6345, %v6364
      %v6385 = vadd.f32 %v6346, %v6364
      %v6386 = vadd.f32 %v6347, %v6364
      %v6387 = vadd.f32 %v6348, %v6364
      %v6388 = vadd.f32 %v6349, %v6364
      %v6389 = vadd.f32 %v6350, %v6364
      %v6390 = vadd.f32 %v6351, %v6364
      %v6391 = vadd.f32 %v6352, %v6364
      %v6392 = vadd.f32 %v6353, %v6364
      %v6393 = vadd.f32 %v6354, %v6364
      %v6394 = vadd.f32 %v6355, %v6364
      %v6395 = vadd.f32 %v6356, %v6364
      %v6396 = vadd.f32 %v6357, %v6364
      %v6397 = vadd.f32 %v6358, %v6364
      %v6398 = vmax.f32 %v6366, 0.0
      %v6399 = vmax.f32 %v6367, 0.0
      %v6400 = vmax.f32 %v6368, 0.0
      %v6401 = vmax.f32 %v6369, 0.0
      %v6402 = vmax.f32 %v6370, 0.0
      %v6403 = vmax.f32 %v6371, 0.0
      %v6404 = vmax.f32 %v6372, 0.0
      %v6405 = vmax.f32 %v6373, 0.0
      %v6406 = vmax.f32 %v6374, 0.0
      %v6407 = vmax.f32 %v6375, 0.0
      %v6408 = vmax.f32 %v6376, 0.0
      %v6409 = vmax.f32 %v6377, 0.0
      %v6410 = vmax.f32 %v6378, 0.0
      %v6411 = vmax.f32 %v6379, 0.0
      %v6412 = vmax.f32 %v6380, 0.0
      %v6413 = vmax.f32 %v6381, 0.0
      %v6414 = vmax.f32 %v6382, 0.0
      %v6415 = vmax.f32 %v6383, 0.0
      %v6416 = vmax.f32 %v6384, 0.0
      %v6417 = vmax.f32 %v6385, 0.0
      %v6418 = vmax.f32 %v6386, 0.0
      %v6419 = vmax.f32 %v6387, 0.0
      %v6420 = vmax.f32 %v6388, 0.0
      %v6421 = vmax.f32 %v6389, 0.0
      %v6422 = vmax.f32 %v6390, 0.0
      %v6423 = vmax.f32 %v6391, 0.0
      %v6424 = vmax.f32 %v6392, 0.0
      %v6425 = vmax.f32 %v6393, 0.0
      %v6426 = vmax.f32 %v6394, 0.0
      %v6427 = vmax.f32 %v6395, 0.0
      %v6428 = vmax.f32 %v6396, 0.0
      %v6429 = vmax.f32 %v6397, 0.0
      %v6462 = vcombine.high %v6398, %v6398
      %v6464 = vunpack.c.l.s4 1983009808
      %v6465 = vunpack.c.0.s8 %v6464
      %v6466 = vlaneseq
      %v6467 = vshrl.u32 %v6466, 7
      %v6468 = vsub.s32 %v6465, %v6467
      %v6469 = vrot.slane %v6398, %v6468
      %v6471 = vunpack.c.l.s4 1983009808
      %v6472 = vunpack.c.0.s8 %v6471
      %v6473 = vlaneseq
      %v6474 = vshrl.u32 %v6473, 7
      %v6475 = vsub.s32 %v6472, %v6474
      %v6476 = vrot.slane %v6462, %v6475
      %v6477 = vcombine.high %v6469, %v6469
      %v6478 = vcombine.high %v6476, %v6476
      %v6479 = vcombine.high %v6399, %v6399
      %v6481 = vunpack.c.l.s4 1983009808
      %v6482 = vunpack.c.0.s8 %v6481
      %v6483 = vlaneseq
      %v6484 = vshrl.u32 %v6483, 7
      %v6485 = vsub.s32 %v6482, %v6484
      %v6486 = vrot.slane %v6399, %v6485
      %v6488 = vunpack.c.l.s4 1983009808
      %v6489 = vunpack.c.0.s8 %v6488
      %v6490 = vlaneseq
      %v6491 = vshrl.u32 %v6490, 7
      %v6492 = vsub.s32 %v6489, %v6491
      %v6493 = vrot.slane %v6479, %v6492
      %v6494 = vcombine.high %v6486, %v6486
      %v6495 = vcombine.high %v6493, %v6493
      %v6496 = vcombine.high %v6400, %v6400
      %v6498 = vunpack.c.l.s4 1983009808
      %v6499 = vunpack.c.0.s8 %v6498
      %v6500 = vlaneseq
      %v6501 = vshrl.u32 %v6500, 7
      %v6502 = vsub.s32 %v6499, %v6501
      %v6503 = vrot.slane %v6400, %v6502
      %v6505 = vunpack.c.l.s4 1983009808
      %v6506 = vunpack.c.0.s8 %v6505
      %v6507 = vlaneseq
      %v6508 = vshrl.u32 %v6507, 7
      %v6509 = vsub.s32 %v6506, %v6508
      %v6510 = vrot.slane %v6496, %v6509
      %v6511 = vcombine.high %v6503, %v6503
      %v6512 = vcombine.high %v6510, %v6510
      %v6513 = vcombine.high %v6401, %v6401
      %v6515 = vunpack.c.l.s4 1983009808
      %v6516 = vunpack.c.0.s8 %v6515
      %v6517 = vlaneseq
      %v6518 = vshrl.u32 %v6517, 7
      %v6519 = vsub.s32 %v6516, %v6518
      %v6520 = vrot.slane %v6401, %v6519
      %v6522 = vunpack.c.l.s4 1983009808
      %v6523 = vunpack.c.0.s8 %v6522
      %v6524 = vlaneseq
      %v6525 = vshrl.u32 %v6524, 7
      %v6526 = vsub.s32 %v6523, %v6525
      %v6527 = vrot.slane %v6513, %v6526
      %v6528 = vcombine.high %v6520, %v6520
      %v6529 = vcombine.high %v6402, %v6402
      %v6531 = vunpack.c.l.s4 1983009808
      %v6532 = vunpack.c.0.s8 %v6531
      %v6533 = vlaneseq
      %v6534 = vshrl.u32 %v6533, 7
      %v6535 = vsub.s32 %v6532, %v6534
      %v6536 = vrot.slane %v6402, %v6535
      %v6538 = vunpack.c.l.s4 1983009808
      %v6539 = vunpack.c.0.s8 %v6538
      %v6540 = vlaneseq
      %v6541 = vshrl.u32 %v6540, 7
      %v6542 = vsub.s32 %v6539, %v6541
      %v6543 = vrot.slane %v6529, %v6542
      %v6544 = vcombine.high %v6536, %v6536
      %v6545 = vcombine.high %v6543, %v6543
      %v6546 = vcombine.high %v6403, %v6403
      %v6548 = vunpack.c.l.s4 1983009808
      %v6549 = vunpack.c.0.s8 %v6548
      %v6550 = vlaneseq
      %v6551 = vshrl.u32 %v6550, 7
      %v6552 = vsub.s32 %v6549, %v6551
      %v6553 = vrot.slane %v6403, %v6552
      %v6555 = vunpack.c.l.s4 1983009808
      %v6556 = vunpack.c.0.s8 %v6555
      %v6557 = vlaneseq
      %v6558 = vshrl.u32 %v6557, 7
      %v6559 = vsub.s32 %v6556, %v6558
      %v6560 = vrot.slane %v6546, %v6559
      %v6561 = vcombine.high %v6553, %v6553
      %v6562 = vcombine.high %v6560, %v6560
      %v6563 = vcombine.high %v6404, %v6404
      %v6565 = vunpack.c.l.s4 1983009808
      %v6566 = vunpack.c.0.s8 %v6565
      %v6567 = vlaneseq
      %v6568 = vshrl.u32 %v6567, 7
      %v6569 = vsub.s32 %v6566, %v6568
      %v6570 = vrot.slane %v6404, %v6569
      %v6572 = vunpack.c.l.s4 1983009808
      %v6573 = vunpack.c.0.s8 %v6572
      %v6574 = vlaneseq
      %v6575 = vshrl.u32 %v6574, 7
      %v6576 = vsub.s32 %v6573, %v6575
      %v6577 = vrot.slane %v6563, %v6576
      %v6578 = vcombine.high %v6570, %v6570
      %v6579 = vcombine.high %v6577, %v6577
      %v6580 = vcombine.high %v6405, %v6405
      %v6582 = vunpack.c.l.s4 1983009808
      %v6583 = vunpack.c.0.s8 %v6582
      %v6584 = vlaneseq
      %v6585 = vshrl.u32 %v6584, 7
      %v6586 = vsub.s32 %v6583, %v6585
      %v6587 = vrot.slane %v6405, %v6586
      %v6589 = vunpack.c.l.s4 1983009808
      %v6590 = vunpack.c.0.s8 %v6589
      %v6591 = vlaneseq
      %v6592 = vshrl.u32 %v6591, 7
      %v6593 = vsub.s32 %v6590, %v6592
      %v6594 = vrot.slane %v6580, %v6593
      %v6595 = vcombine.high %v6587, %v6587
      %v6596 = vcombine.high %v6406, %v6406
      %v6598 = vunpack.c.l.s4 1983009808
      %v6599 = vunpack.c.0.s8 %v6598
      %v6600 = vlaneseq
      %v6601 = vshrl.u32 %v6600, 7
      %v6602 = vsub.s32 %v6599, %v6601
      %v6603 = vrot.slane %v6406, %v6602
      %v6605 = vunpack.c.l.s4 1983009808
      %v6606 = vunpack.c.0.s8 %v6605
      %v6607 = vlaneseq
      %v6608 = vshrl.u32 %v6607, 7
      %v6609 = vsub.s32 %v6606, %v6608
      %v6610 = vrot.slane %v6596, %v6609
      %v6611 = vcombine.high %v6603, %v6603
      %v6612 = vcombine.high %v6610, %v6610
      %v6613 = vcombine.high %v6407, %v6407
      %v6615 = vunpack.c.l.s4 1983009808
      %v6616 = vunpack.c.0.s8 %v6615
      %v6617 = vlaneseq
      %v6618 = vshrl.u32 %v6617, 7
      %v6619 = vsub.s32 %v6616, %v6618
      %v6620 = vrot.slane %v6407, %v6619
      %v6622 = vunpack.c.l.s4 1983009808
      %v6623 = vunpack.c.0.s8 %v6622
      %v6624 = vlaneseq
      %v6625 = vshrl.u32 %v6624, 7
      %v6626 = vsub.s32 %v6623, %v6625
      %v6627 = vrot.slane %v6613, %v6626
      %v6628 = vcombine.high %v6620, %v6620
      %v6629 = vcombine.high %v6627, %v6627
      %v6630 = vcombine.high %v6408, %v6408
      %v6632 = vunpack.c.l.s4 1983009808
      %v6633 = vunpack.c.0.s8 %v6632
      %v6634 = vlaneseq
      %v6635 = vshrl.u32 %v6634, 7
      %v6636 = vsub.s32 %v6633, %v6635
      %v6637 = vrot.slane %v6408, %v6636
      %v6639 = vunpack.c.l.s4 1983009808
      %v6640 = vunpack.c.0.s8 %v6639
      %v6641 = vlaneseq
      %v6642 = vshrl.u32 %v6641, 7
      %v6643 = vsub.s32 %v6640, %v6642
      %v6644 = vrot.slane %v6630, %v6643
      %v6645 = vcombine.high %v6637, %v6637
      %v6646 = vcombine.high %v6644, %v6644
      %v6647 = vcombine.high %v6409, %v6409
      %v6649 = vunpack.c.l.s4 1983009808
      %v6650 = vunpack.c.0.s8 %v6649
      %v6651 = vlaneseq
      %v6652 = vshrl.u32 %v6651, 7
      %v6653 = vsub.s32 %v6650, %v6652
      %v6654 = vrot.slane %v6409, %v6653
      %v6656 = vunpack.c.l.s4 1983009808
      %v6657 = vunpack.c.0.s8 %v6656
      %v6658 = vlaneseq
      %v6659 = vshrl.u32 %v6658, 7
      %v6660 = vsub.s32 %v6657, %v6659
      %v6661 = vrot.slane %v6647, %v6660
      %v6662 = vcombine.high %v6654, %v6654
      %v6663 = vcombine.high %v6410, %v6410
      %v6665 = vunpack.c.l.s4 1983009808
      %v6666 = vunpack.c.0.s8 %v6665
      %v6667 = vlaneseq
      %v6668 = vshrl.u32 %v6667, 7
      %v6669 = vsub.s32 %v6666, %v6668
      %v6670 = vrot.slane %v6410, %v6669
      %v6672 = vunpack.c.l.s4 1983009808
      %v6673 = vunpack.c.0.s8 %v6672
      %v6674 = vlaneseq
      %v6675 = vshrl.u32 %v6674, 7
      %v6676 = vsub.s32 %v6673, %v6675
      %v6677 = vrot.slane %v6663, %v6676
      %v6678 = vcombine.high %v6670, %v6670
      %v6679 = vcombine.high %v6677, %v6677
      %v6680 = vcombine.high %v6411, %v6411
      %v6682 = vunpack.c.l.s4 1983009808
      %v6683 = vunpack.c.0.s8 %v6682
      %v6684 = vlaneseq
      %v6685 = vshrl.u32 %v6684, 7
      %v6686 = vsub.s32 %v6683, %v6685
      %v6687 = vrot.slane %v6411, %v6686
      %v6689 = vunpack.c.l.s4 1983009808
      %v6690 = vunpack.c.0.s8 %v6689
      %v6691 = vlaneseq
      %v6692 = vshrl.u32 %v6691, 7
      %v6693 = vsub.s32 %v6690, %v6692
      %v6694 = vrot.slane %v6680, %v6693
      %v6695 = vcombine.high %v6687, %v6687
      %v6696 = vcombine.high %v6694, %v6694
      %v6697 = vcombine.high %v6412, %v6412
      %v6699 = vunpack.c.l.s4 1983009808
      %v6700 = vunpack.c.0.s8 %v6699
      %v6701 = vlaneseq
      %v6702 = vshrl.u32 %v6701, 7
      %v6703 = vsub.s32 %v6700, %v6702
      %v6704 = vrot.slane %v6412, %v6703
      %v6706 = vunpack.c.l.s4 1983009808
      %v6707 = vunpack.c.0.s8 %v6706
      %v6708 = vlaneseq
      %v6709 = vshrl.u32 %v6708, 7
      %v6710 = vsub.s32 %v6707, %v6709
      %v6711 = vrot.slane %v6697, %v6710
      %v6712 = vcombine.high %v6704, %v6704
      %v6713 = vcombine.high %v6711, %v6711
      %v6714 = vcombine.high %v6413, %v6413
      %v6716 = vunpack.c.l.s4 1983009808
      %v6717 = vunpack.c.0.s8 %v6716
      %v6718 = vlaneseq
      %v6719 = vshrl.u32 %v6718, 7
      %v6720 = vsub.s32 %v6717, %v6719
      %v6721 = vrot.slane %v6413, %v6720
      %v6723 = vunpack.c.l.s4 1983009808
      %v6724 = vunpack.c.0.s8 %v6723
      %v6725 = vlaneseq
      %v6726 = vshrl.u32 %v6725, 7
      %v6727 = vsub.s32 %v6724, %v6726
      %v6728 = vrot.slane %v6714, %v6727
      %v6729 = vcombine.high %v6721, %v6721
      %v6730 = vcombine.high %v6414, %v6414
      %v6732 = vunpack.c.l.s4 1983009808
      %v6733 = vunpack.c.0.s8 %v6732
      %v6734 = vlaneseq
      %v6735 = vshrl.u32 %v6734, 7
      %v6736 = vsub.s32 %v6733, %v6735
      %v6737 = vrot.slane %v6414, %v6736
      %v6739 = vunpack.c.l.s4 1983009808
      %v6740 = vunpack.c.0.s8 %v6739
      %v6741 = vlaneseq
      %v6742 = vshrl.u32 %v6741, 7
      %v6743 = vsub.s32 %v6740, %v6742
      %v6744 = vrot.slane %v6730, %v6743
      %v6745 = vcombine.high %v6737, %v6737
      %v6746 = vcombine.high %v6744, %v6744
      %v6747 = vcombine.high %v6415, %v6415
      %v6749 = vunpack.c.l.s4 1983009808
      %v6750 = vunpack.c.0.s8 %v6749
      %v6751 = vlaneseq
      %v6752 = vshrl.u32 %v6751, 7
      %v6753 = vsub.s32 %v6750, %v6752
      %v6754 = vrot.slane %v6415, %v6753
      %v6756 = vunpack.c.l.s4 1983009808
      %v6757 = vunpack.c.0.s8 %v6756
      %v6758 = vlaneseq
      %v6759 = vshrl.u32 %v6758, 7
      %v6760 = vsub.s32 %v6757, %v6759
      %v6761 = vrot.slane %v6747, %v6760
      %v6762 = vcombine.high %v6754, %v6754
      %v6763 = vcombine.high %v6761, %v6761
      %v6764 = vcombine.high %v6416, %v6416
      %v6766 = vunpack.c.l.s4 1983009808
      %v6767 = vunpack.c.0.s8 %v6766
      %v6768 = vlaneseq
      %v6769 = vshrl.u32 %v6768, 7
      %v6770 = vsub.s32 %v6767, %v6769
      %v6771 = vrot.slane %v6416, %v6770
      %v6773 = vunpack.c.l.s4 1983009808
      %v6774 = vunpack.c.0.s8 %v6773
      %v6775 = vlaneseq
      %v6776 = vshrl.u32 %v6775, 7
      %v6777 = vsub.s32 %v6774, %v6776
      %v6778 = vrot.slane %v6764, %v6777
      %v6779 = vcombine.high %v6771, %v6771
      %v6780 = vcombine.high %v6778, %v6778
      %v6781 = vcombine.high %v6417, %v6417
      %v6783 = vunpack.c.l.s4 1983009808
      %v6784 = vunpack.c.0.s8 %v6783
      %v6785 = vlaneseq
      %v6786 = vshrl.u32 %v6785, 7
      %v6787 = vsub.s32 %v6784, %v6786
      %v6788 = vrot.slane %v6417, %v6787
      %v6790 = vunpack.c.l.s4 1983009808
      %v6791 = vunpack.c.0.s8 %v6790
      %v6792 = vlaneseq
      %v6793 = vshrl.u32 %v6792, 7
      %v6794 = vsub.s32 %v6791, %v6793
      %v6795 = vrot.slane %v6781, %v6794
      %v6796 = vcombine.high %v6788, %v6788
      %v6797 = vcombine.high %v6418, %v6418
      %v6799 = vunpack.c.l.s4 1983009808
      %v6800 = vunpack.c.0.s8 %v6799
      %v6801 = vlaneseq
      %v6802 = vshrl.u32 %v6801, 7
      %v6803 = vsub.s32 %v6800, %v6802
      %v6804 = vrot.slane %v6418, %v6803
      %v6806 = vunpack.c.l.s4 1983009808
      %v6807 = vunpack.c.0.s8 %v6806
      %v6808 = vlaneseq
      %v6809 = vshrl.u32 %v6808, 7
      %v6810 = vsub.s32 %v6807, %v6809
      %v6811 = vrot.slane %v6797, %v6810
      %v6812 = vcombine.high %v6804, %v6804
      %v6813 = vcombine.high %v6811, %v6811
      %v6814 = vcombine.high %v6419, %v6419
      %v6816 = vunpack.c.l.s4 1983009808
      %v6817 = vunpack.c.0.s8 %v6816
      %v6818 = vlaneseq
      %v6819 = vshrl.u32 %v6818, 7
      %v6820 = vsub.s32 %v6817, %v6819
      %v6821 = vrot.slane %v6419, %v6820
      %v6823 = vunpack.c.l.s4 1983009808
      %v6824 = vunpack.c.0.s8 %v6823
      %v6825 = vlaneseq
      %v6826 = vshrl.u32 %v6825, 7
      %v6827 = vsub.s32 %v6824, %v6826
      %v6828 = vrot.slane %v6814, %v6827
      %v6829 = vcombine.high %v6821, %v6821
      %v6830 = vcombine.high %v6828, %v6828
      %v6831 = vcombine.high %v6420, %v6420
      %v6833 = vunpack.c.l.s4 1983009808
      %v6834 = vunpack.c.0.s8 %v6833
      %v6835 = vlaneseq
      %v6836 = vshrl.u32 %v6835, 7
      %v6837 = vsub.s32 %v6834, %v6836
      %v6838 = vrot.slane %v6420, %v6837
      %v6840 = vunpack.c.l.s4 1983009808
      %v6841 = vunpack.c.0.s8 %v6840
      %v6842 = vlaneseq
      %v6843 = vshrl.u32 %v6842, 7
      %v6844 = vsub.s32 %v6841, %v6843
      %v6845 = vrot.slane %v6831, %v6844
      %v6846 = vcombine.high %v6838, %v6838
      %v6847 = vcombine.high %v6845, %v6845
      %v6848 = vcombine.high %v6421, %v6421
      %v6850 = vunpack.c.l.s4 1983009808
      %v6851 = vunpack.c.0.s8 %v6850
      %v6852 = vlaneseq
      %v6853 = vshrl.u32 %v6852, 7
      %v6854 = vsub.s32 %v6851, %v6853
      %v6855 = vrot.slane %v6421, %v6854
      %v6857 = vunpack.c.l.s4 1983009808
      %v6858 = vunpack.c.0.s8 %v6857
      %v6859 = vlaneseq
      %v6860 = vshrl.u32 %v6859, 7
      %v6861 = vsub.s32 %v6858, %v6860
      %v6862 = vrot.slane %v6848, %v6861
      %v6863 = vcombine.high %v6855, %v6855
      %v6864 = vcombine.high %v6422, %v6422
      %v6866 = vunpack.c.l.s4 1983009808
      %v6867 = vunpack.c.0.s8 %v6866
      %v6868 = vlaneseq
      %v6869 = vshrl.u32 %v6868, 7
      %v6870 = vsub.s32 %v6867, %v6869
      %v6871 = vrot.slane %v6422, %v6870
      %v6873 = vunpack.c.l.s4 1983009808
      %v6874 = vunpack.c.0.s8 %v6873
      %v6875 = vlaneseq
      %v6876 = vshrl.u32 %v6875, 7
      %v6877 = vsub.s32 %v6874, %v6876
      %v6878 = vrot.slane %v6864, %v6877
      %v6879 = vcombine.high %v6871, %v6871
      %v6880 = vcombine.high %v6878, %v6878
      %v6881 = vcombine.high %v6423, %v6423
      %v6883 = vunpack.c.l.s4 1983009808
      %v6884 = vunpack.c.0.s8 %v6883
      %v6885 = vlaneseq
      %v6886 = vshrl.u32 %v6885, 7
      %v6887 = vsub.s32 %v6884, %v6886
      %v6888 = vrot.slane %v6423, %v6887
      %v6890 = vunpack.c.l.s4 1983009808
      %v6891 = vunpack.c.0.s8 %v6890
      %v6892 = vlaneseq
      %v6893 = vshrl.u32 %v6892, 7
      %v6894 = vsub.s32 %v6891, %v6893
      %v6895 = vrot.slane %v6881, %v6894
      %v6896 = vcombine.high %v6888, %v6888
      %v6897 = vcombine.high %v6895, %v6895
      %v6898 = vcombine.high %v6424, %v6424
      %v6900 = vunpack.c.l.s4 1983009808
      %v6901 = vunpack.c.0.s8 %v6900
      %v6902 = vlaneseq
      %v6903 = vshrl.u32 %v6902, 7
      %v6904 = vsub.s32 %v6901, %v6903
      %v6905 = vrot.slane %v6424, %v6904
      %v6907 = vunpack.c.l.s4 1983009808
      %v6908 = vunpack.c.0.s8 %v6907
      %v6909 = vlaneseq
      %v6910 = vshrl.u32 %v6909, 7
      %v6911 = vsub.s32 %v6908, %v6910
      %v6912 = vrot.slane %v6898, %v6911
      %v6913 = vcombine.high %v6905, %v6905
      %v6914 = vcombine.high %v6912, %v6912
      %v6915 = vcombine.high %v6425, %v6425
      %v6917 = vunpack.c.l.s4 1983009808
      %v6918 = vunpack.c.0.s8 %v6917
      %v6919 = vlaneseq
      %v6920 = vshrl.u32 %v6919, 7
      %v6921 = vsub.s32 %v6918, %v6920
      %v6922 = vrot.slane %v6425, %v6921
      %v6924 = vunpack.c.l.s4 1983009808
      %v6925 = vunpack.c.0.s8 %v6924
      %v6926 = vlaneseq
      %v6927 = vshrl.u32 %v6926, 7
      %v6928 = vsub.s32 %v6925, %v6927
      %v6929 = vrot.slane %v6915, %v6928
      %v6930 = vcombine.high %v6922, %v6922
      %v6931 = vcombine.high %v6426, %v6426
      %v6933 = vunpack.c.l.s4 1983009808
      %v6934 = vunpack.c.0.s8 %v6933
      %v6935 = vlaneseq
      %v6936 = vshrl.u32 %v6935, 7
      %v6937 = vsub.s32 %v6934, %v6936
      %v6938 = vrot.slane %v6426, %v6937
      %v6940 = vunpack.c.l.s4 1983009808
      %v6941 = vunpack.c.0.s8 %v6940
      %v6942 = vlaneseq
      %v6943 = vshrl.u32 %v6942, 7
      %v6944 = vsub.s32 %v6941, %v6943
      %v6945 = vrot.slane %v6931, %v6944
      %v6946 = vcombine.high %v6938, %v6938
      %v6947 = vcombine.high %v6945, %v6945
      %v6948 = vcombine.high %v6427, %v6427
      %v6950 = vunpack.c.l.s4 1983009808
      %v6951 = vunpack.c.0.s8 %v6950
      %v6952 = vlaneseq
      %v6953 = vshrl.u32 %v6952, 7
      %v6954 = vsub.s32 %v6951, %v6953
      %v6955 = vrot.slane %v6427, %v6954
      %v6957 = vunpack.c.l.s4 1983009808
      %v6958 = vunpack.c.0.s8 %v6957
      %v6959 = vlaneseq
      %v6960 = vshrl.u32 %v6959, 7
      %v6961 = vsub.s32 %v6958, %v6960
      %v6962 = vrot.slane %v6948, %v6961
      %v6963 = vcombine.high %v6955, %v6955
      %v6964 = vcombine.high %v6962, %v6962
      %v6965 = vcombine.high %v6428, %v6428
      %v6967 = vunpack.c.l.s4 1983009808
      %v6968 = vunpack.c.0.s8 %v6967
      %v6969 = vlaneseq
      %v6970 = vshrl.u32 %v6969, 7
      %v6971 = vsub.s32 %v6968, %v6970
      %v6972 = vrot.slane %v6428, %v6971
      %v6974 = vunpack.c.l.s4 1983009808
      %v6975 = vunpack.c.0.s8 %v6974
      %v6976 = vlaneseq
      %v6977 = vshrl.u32 %v6976, 7
      %v6978 = vsub.s32 %v6975, %v6977
      %v6979 = vrot.slane %v6965, %v6978
      %v6980 = vcombine.high %v6972, %v6972
      %v6981 = vcombine.high %v6979, %v6979
      %v6982 = vcombine.high %v6429, %v6429
      %v6984 = vunpack.c.l.s4 1983009808
      %v6985 = vunpack.c.0.s8 %v6984
      %v6986 = vlaneseq
      %v6987 = vshrl.u32 %v6986, 7
      %v6988 = vsub.s32 %v6985, %v6987
      %v6989 = vrot.slane %v6429, %v6988
      %v6991 = vunpack.c.l.s4 1983009808
      %v6992 = vunpack.c.0.s8 %v6991
      %v6993 = vlaneseq
      %v6994 = vshrl.u32 %v6993, 7
      %v6995 = vsub.s32 %v6992, %v6994
      %v6996 = vrot.slane %v6982, %v6995
      %v6997 = vcombine.high %v6989, %v6989
      %vm7118 = vcmask 517120
      %v7119 = vsel %vm7118, %v6469, -inf
      %v7120 = vrot.slane %v7119, 4
      %v7121 = vmax.f32 %v7119, %v7120
      %v7122 = vrot.slane %v7121, 2
      %v7123 = vmax.f32 %v7121, %v7122
      %v7124 = vrot.slane %v7123, 1
      %v7125 = vmax.f32 %v7123, %v7124
      %v7126 = vsel %vm7118, %v6477, -inf
      %v7127 = vrot.slane %v7126, 4
      %v7128 = vmax.f32 %v7126, %v7127
      %v7129 = vrot.slane %v7128, 2
      %v7130 = vmax.f32 %v7128, %v7129
      %v7131 = vrot.slane %v7130, 1
      %v7132 = vmax.f32 %v7130, %v7131
      %v7133 = vsel %vm7118, %v6476, -inf
      %v7134 = vrot.slane %v7133, 4
      %v7135 = vmax.f32 %v7133, %v7134
      %v7136 = vrot.slane %v7135, 2
      %v7137 = vmax.f32 %v7135, %v7136
      %v7138 = vrot.slane %v7137, 1
      %v7139 = vmax.f32 %v7137, %v7138
      %v7140 = vsel %vm7118, %v6478, -inf
      %v7141 = vrot.slane %v7140, 4
      %v7142 = vmax.f32 %v7140, %v7141
      %v7143 = vrot.slane %v7142, 2
      %v7144 = vmax.f32 %v7142, %v7143
      %v7145 = vrot.slane %v7144, 1
      %v7146 = vmax.f32 %v7144, %v7145
      %v7147 = vsel %vm7118, %v6486, -inf
      %v7148 = vrot.slane %v7147, 4
      %v7149 = vmax.f32 %v7147, %v7148
      %v7150 = vrot.slane %v7149, 2
      %v7151 = vmax.f32 %v7149, %v7150
      %v7152 = vrot.slane %v7151, 1
      %v7153 = vmax.f32 %v7151, %v7152
      %v7154 = vsel %vm7118, %v6494, -inf
      %v7155 = vrot.slane %v7154, 4
      %v7156 = vmax.f32 %v7154, %v7155
      %v7157 = vrot.slane %v7156, 2
      %v7158 = vmax.f32 %v7156, %v7157
      %v7159 = vrot.slane %v7158, 1
      %v7160 = vmax.f32 %v7158, %v7159
      %v7161 = vsel %vm7118, %v6493, -inf
      %v7162 = vrot.slane %v7161, 4
      %v7163 = vmax.f32 %v7161, %v7162
      %v7164 = vrot.slane %v7163, 2
      %v7165 = vmax.f32 %v7163, %v7164
      %v7166 = vrot.slane %v7165, 1
      %v7167 = vmax.f32 %v7165, %v7166
      %v7168 = vsel %vm7118, %v6495, -inf
      %v7169 = vrot.slane %v7168, 4
      %v7170 = vmax.f32 %v7168, %v7169
      %v7171 = vrot.slane %v7170, 2
      %v7172 = vmax.f32 %v7170, %v7171
      %v7173 = vrot.slane %v7172, 1
      %v7174 = vmax.f32 %v7172, %v7173
      %v7175 = vsel %vm7118, %v6503, -inf
      %v7176 = vrot.slane %v7175, 4
      %v7177 = vmax.f32 %v7175, %v7176
      %v7178 = vrot.slane %v7177, 2
      %v7179 = vmax.f32 %v7177, %v7178
      %v7180 = vrot.slane %v7179, 1
      %v7181 = vmax.f32 %v7179, %v7180
      %v7182 = vsel %vm7118, %v6511, -inf
      %v7183 = vrot.slane %v7182, 4
      %v7184 = vmax.f32 %v7182, %v7183
      %v7185 = vrot.slane %v7184, 2
      %v7186 = vmax.f32 %v7184, %v7185
      %v7187 = vrot.slane %v7186, 1
      %v7188 = vmax.f32 %v7186, %v7187
      %v7189 = vsel %vm7118, %v6510, -inf
      %v7190 = vrot.slane %v7189, 4
      %v7191 = vmax.f32 %v7189, %v7190
      %v7192 = vrot.slane %v7191, 2
      %v7193 = vmax.f32 %v7191, %v7192
      %v7194 = vrot.slane %v7193, 1
      %v7195 = vmax.f32 %v7193, %v7194
      %v7196 = vsel %vm7118, %v6512, -inf
      %v7197 = vrot.slane %v7196, 4
      %v7198 = vmax.f32 %v7196, %v7197
      %v7199 = vrot.slane %v7198, 2
      %v7200 = vmax.f32 %v7198, %v7199
      %v7201 = vrot.slane %v7200, 1
      %v7202 = vmax.f32 %v7200, %v7201
      %v7203 = vsel %vm7118, %v6520, -inf
      %v7204 = vrot.slane %v7203, 4
      %v7205 = vmax.f32 %v7203, %v7204
      %v7206 = vrot.slane %v7205, 2
      %v7207 = vmax.f32 %v7205, %v7206
      %v7208 = vrot.slane %v7207, 1
      %v7209 = vmax.f32 %v7207, %v7208
      %v7210 = vsel %vm7118, %v6528, -inf
      %v7211 = vrot.slane %v7210, 4
      %v7212 = vmax.f32 %v7210, %v7211
      %v7213 = vrot.slane %v7212, 2
      %v7214 = vmax.f32 %v7212, %v7213
      %v7215 = vrot.slane %v7214, 1
      %v7216 = vmax.f32 %v7214, %v7215
      %v7217 = vsel %vm7118, %v6527, -inf
      %v7218 = vrot.slane %v7217, 4
      %v7219 = vmax.f32 %v7217, %v7218
      %v7220 = vrot.slane %v7219, 2
      %v7221 = vmax.f32 %v7219, %v7220
      %v7222 = vrot.slane %v7221, 1
      %v7223 = vmax.f32 %v7221, %v7222
      %v7224 = vsel %vm7118, %v6536, -inf
      %v7225 = vrot.slane %v7224, 4
      %v7226 = vmax.f32 %v7224, %v7225
      %v7227 = vrot.slane %v7226, 2
      %v7228 = vmax.f32 %v7226, %v7227
      %v7229 = vrot.slane %v7228, 1
      %v7230 = vmax.f32 %v7228, %v7229
      %v7231 = vsel %vm7118, %v6544, -inf
      %v7232 = vrot.slane %v7231, 4
      %v7233 = vmax.f32 %v7231, %v7232
      %v7234 = vrot.slane %v7233, 2
      %v7235 = vmax.f32 %v7233, %v7234
      %v7236 = vrot.slane %v7235, 1
      %v7237 = vmax.f32 %v7235, %v7236
      %v7238 = vsel %vm7118, %v6543, -inf
      %v7239 = vrot.slane %v7238, 4
      %v7240 = vmax.f32 %v7238, %v7239
      %v7241 = vrot.slane %v7240, 2
      %v7242 = vmax.f32 %v7240, %v7241
      %v7243 = vrot.slane %v7242, 1
      %v7244 = vmax.f32 %v7242, %v7243
      %v7245 = vsel %vm7118, %v6545, -inf
      %v7246 = vrot.slane %v7245, 4
      %v7247 = vmax.f32 %v7245, %v7246
      %v7248 = vrot.slane %v7247, 2
      %v7249 = vmax.f32 %v7247, %v7248
      %v7250 = vrot.slane %v7249, 1
      %v7251 = vmax.f32 %v7249, %v7250
      %v7252 = vsel %vm7118, %v6553, -inf
      %v7253 = vrot.slane %v7252, 4
      %v7254 = vmax.f32 %v7252, %v7253
      %v7255 = vrot.slane %v7254, 2
      %v7256 = vmax.f32 %v7254, %v7255
      %v7257 = vrot.slane %v7256, 1
      %v7258 = vmax.f32 %v7256, %v7257
      %v7259 = vsel %vm7118, %v6561, -inf
      %v7260 = vrot.slane %v7259, 4
      %v7261 = vmax.f32 %v7259, %v7260
      %v7262 = vrot.slane %v7261, 2
      %v7263 = vmax.f32 %v7261, %v7262
      %v7264 = vrot.slane %v7263, 1
      %v7265 = vmax.f32 %v7263, %v7264
      %v7266 = vsel %vm7118, %v6560, -inf
      %v7267 = vrot.slane %v7266, 4
      %v7268 = vmax.f32 %v7266, %v7267
      %v7269 = vrot.slane %v7268, 2
      %v7270 = vmax.f32 %v7268, %v7269
      %v7271 = vrot.slane %v7270, 1
      %v7272 = vmax.f32 %v7270, %v7271
      %v7273 = vsel %vm7118, %v6562, -inf
      %v7274 = vrot.slane %v7273, 4
      %v7275 = vmax.f32 %v7273, %v7274
      %v7276 = vrot.slane %v7275, 2
      %v7277 = vmax.f32 %v7275, %v7276
      %v7278 = vrot.slane %v7277, 1
      %v7279 = vmax.f32 %v7277, %v7278
      %v7280 = vsel %vm7118, %v6570, -inf
      %v7281 = vrot.slane %v7280, 4
      %v7282 = vmax.f32 %v7280, %v7281
      %v7283 = vrot.slane %v7282, 2
      %v7284 = vmax.f32 %v7282, %v7283
      %v7285 = vrot.slane %v7284, 1
      %v7286 = vmax.f32 %v7284, %v7285
      %v7287 = vsel %vm7118, %v6578, -inf
      %v7288 = vrot.slane %v7287, 4
      %v7289 = vmax.f32 %v7287, %v7288
      %v7290 = vrot.slane %v7289, 2
      %v7291 = vmax.f32 %v7289, %v7290
      %v7292 = vrot.slane %v7291, 1
      %v7293 = vmax.f32 %v7291, %v7292
      %v7294 = vsel %vm7118, %v6577, -inf
      %v7295 = vrot.slane %v7294, 4
      %v7296 = vmax.f32 %v7294, %v7295
      %v7297 = vrot.slane %v7296, 2
      %v7298 = vmax.f32 %v7296, %v7297
      %v7299 = vrot.slane %v7298, 1
      %v7300 = vmax.f32 %v7298, %v7299
      %v7301 = vsel %vm7118, %v6579, -inf
      %v7302 = vrot.slane %v7301, 4
      %v7303 = vmax.f32 %v7301, %v7302
      %v7304 = vrot.slane %v7303, 2
      %v7305 = vmax.f32 %v7303, %v7304
      %v7306 = vrot.slane %v7305, 1
      %v7307 = vmax.f32 %v7305, %v7306
      %v7308 = vsel %vm7118, %v6587, -inf
      %v7309 = vrot.slane %v7308, 4
      %v7310 = vmax.f32 %v7308, %v7309
      %v7311 = vrot.slane %v7310, 2
      %v7312 = vmax.f32 %v7310, %v7311
      %v7313 = vrot.slane %v7312, 1
      %v7314 = vmax.f32 %v7312, %v7313
      %v7315 = vsel %vm7118, %v6595, -inf
      %v7316 = vrot.slane %v7315, 4
      %v7317 = vmax.f32 %v7315, %v7316
      %v7318 = vrot.slane %v7317, 2
      %v7319 = vmax.f32 %v7317, %v7318
      %v7320 = vrot.slane %v7319, 1
      %v7321 = vmax.f32 %v7319, %v7320
      %v7322 = vsel %vm7118, %v6594, -inf
      %v7323 = vrot.slane %v7322, 4
      %v7324 = vmax.f32 %v7322, %v7323
      %v7325 = vrot.slane %v7324, 2
      %v7326 = vmax.f32 %v7324, %v7325
      %v7327 = vrot.slane %v7326, 1
      %v7328 = vmax.f32 %v7326, %v7327
      %v7329 = vsel %vm7118, %v6603, -inf
      %v7330 = vrot.slane %v7329, 4
      %v7331 = vmax.f32 %v7329, %v7330
      %v7332 = vrot.slane %v7331, 2
      %v7333 = vmax.f32 %v7331, %v7332
      %v7334 = vrot.slane %v7333, 1
      %v7335 = vmax.f32 %v7333, %v7334
      %v7336 = vsel %vm7118, %v6611, -inf
      %v7337 = vrot.slane %v7336, 4
      %v7338 = vmax.f32 %v7336, %v7337
      %v7339 = vrot.slane %v7338, 2
      %v7340 = vmax.f32 %v7338, %v7339
      %v7341 = vrot.slane %v7340, 1
      %v7342 = vmax.f32 %v7340, %v7341
      %v7343 = vsel %vm7118, %v6610, -inf
      %v7344 = vrot.slane %v7343, 4
      %v7345 = vmax.f32 %v7343, %v7344
      %v7346 = vrot.slane %v7345, 2
      %v7347 = vmax.f32 %v7345, %v7346
      %v7348 = vrot.slane %v7347, 1
      %v7349 = vmax.f32 %v7347, %v7348
      %v7350 = vsel %vm7118, %v6612, -inf
      %v7351 = vrot.slane %v7350, 4
      %v7352 = vmax.f32 %v7350, %v7351
      %v7353 = vrot.slane %v7352, 2
      %v7354 = vmax.f32 %v7352, %v7353
      %v7355 = vrot.slane %v7354, 1
      %v7356 = vmax.f32 %v7354, %v7355
      %v7357 = vsel %vm7118, %v6620, -inf
      %v7358 = vrot.slane %v7357, 4
      %v7359 = vmax.f32 %v7357, %v7358
      %v7360 = vrot.slane %v7359, 2
      %v7361 = vmax.f32 %v7359, %v7360
      %v7362 = vrot.slane %v7361, 1
      %v7363 = vmax.f32 %v7361, %v7362
      %v7364 = vsel %vm7118, %v6628, -inf
      %v7365 = vrot.slane %v7364, 4
      %v7366 = vmax.f32 %v7364, %v7365
      %v7367 = vrot.slane %v7366, 2
      %v7368 = vmax.f32 %v7366, %v7367
      %v7369 = vrot.slane %v7368, 1
      %v7370 = vmax.f32 %v7368, %v7369
      %v7371 = vsel %vm7118, %v6627, -inf
      %v7372 = vrot.slane %v7371, 4
      %v7373 = vmax.f32 %v7371, %v7372
      %v7374 = vrot.slane %v7373, 2
      %v7375 = vmax.f32 %v7373, %v7374
      %v7376 = vrot.slane %v7375, 1
      %v7377 = vmax.f32 %v7375, %v7376
      %v7378 = vsel %vm7118, %v6629, -inf
      %v7379 = vrot.slane %v7378, 4
      %v7380 = vmax.f32 %v7378, %v7379
      %v7381 = vrot.slane %v7380, 2
      %v7382 = vmax.f32 %v7380, %v7381
      %v7383 = vrot.slane %v7382, 1
      %v7384 = vmax.f32 %v7382, %v7383
      %v7385 = vsel %vm7118, %v6637, -inf
      %v7386 = vrot.slane %v7385, 4
      %v7387 = vmax.f32 %v7385, %v7386
      %v7388 = vrot.slane %v7387, 2
      %v7389 = vmax.f32 %v7387, %v7388
      %v7390 = vrot.slane %v7389, 1
      %v7391 = vmax.f32 %v7389, %v7390
      %v7392 = vsel %vm7118, %v6645, -inf
      %v7393 = vrot.slane %v7392, 4
      %v7394 = vmax.f32 %v7392, %v7393
      %v7395 = vrot.slane %v7394, 2
      %v7396 = vmax.f32 %v7394, %v7395
      %v7397 = vrot.slane %v7396, 1
      %v7398 = vmax.f32 %v7396, %v7397
      %v7399 = vsel %vm7118, %v6644, -inf
      %v7400 = vrot.slane %v7399, 4
      %v7401 = vmax.f32 %v7399, %v7400
      %v7402 = vrot.slane %v7401, 2
      %v7403 = vmax.f32 %v7401, %v7402
      %v7404 = vrot.slane %v7403, 1
      %v7405 = vmax.f32 %v7403, %v7404
      %v7406 = vsel %vm7118, %v6646, -inf
      %v7407 = vrot.slane %v7406, 4
      %v7408 = vmax.f32 %v7406, %v7407
      %v7409 = vrot.slane %v7408, 2
      %v7410 = vmax.f32 %v7408, %v7409
      %v7411 = vrot.slane %v7410, 1
      %v7412 = vmax.f32 %v7410, %v7411
      %v7413 = vsel %vm7118, %v6654, -inf
      %v7414 = vrot.slane %v7413, 4
      %v7415 = vmax.f32 %v7413, %v7414
      %v7416 = vrot.slane %v7415, 2
      %v7417 = vmax.f32 %v7415, %v7416
      %v7418 = vrot.slane %v7417, 1
      %v7419 = vmax.f32 %v7417, %v7418
      %v7420 = vsel %vm7118, %v6662, -inf
      %v7421 = vrot.slane %v7420, 4
      %v7422 = vmax.f32 %v7420, %v7421
      %v7423 = vrot.slane %v7422, 2
      %v7424 = vmax.f32 %v7422, %v7423
      %v7425 = vrot.slane %v7424, 1
      %v7426 = vmax.f32 %v7424, %v7425
      %v7427 = vsel %vm7118, %v6661, -inf
      %v7428 = vrot.slane %v7427, 4
      %v7429 = vmax.f32 %v7427, %v7428
      %v7430 = vrot.slane %v7429, 2
      %v7431 = vmax.f32 %v7429, %v7430
      %v7432 = vrot.slane %v7431, 1
      %v7433 = vmax.f32 %v7431, %v7432
      %v7434 = vsel %vm7118, %v6670, -inf
      %v7435 = vrot.slane %v7434, 4
      %v7436 = vmax.f32 %v7434, %v7435
      %v7437 = vrot.slane %v7436, 2
      %v7438 = vmax.f32 %v7436, %v7437
      %v7439 = vrot.slane %v7438, 1
      %v7440 = vmax.f32 %v7438, %v7439
      %v7441 = vsel %vm7118, %v6678, -inf
      %v7442 = vrot.slane %v7441, 4
      %v7443 = vmax.f32 %v7441, %v7442
      %v7444 = vrot.slane %v7443, 2
      %v7445 = vmax.f32 %v7443, %v7444
      %v7446 = vrot.slane %v7445, 1
      %v7447 = vmax.f32 %v7445, %v7446
      %v7448 = vsel %vm7118, %v6677, -inf
      %v7449 = vrot.slane %v7448, 4
      %v7450 = vmax.f32 %v7448, %v7449
      %v7451 = vrot.slane %v7450, 2
      %v7452 = vmax.f32 %v7450, %v7451
      %v7453 = vrot.slane %v7452, 1
      %v7454 = vmax.f32 %v7452, %v7453
      %v7455 = vsel %vm7118, %v6679, -inf
      %v7456 = vrot.slane %v7455, 4
      %v7457 = vmax.f32 %v7455, %v7456
      %v7458 = vrot.slane %v7457, 2
      %v7459 = vmax.f32 %v7457, %v7458
      %v7460 = vrot.slane %v7459, 1
      %v7461 = vmax.f32 %v7459, %v7460
      %v7462 = vsel %vm7118, %v6687, -inf
      %v7463 = vrot.slane %v7462, 4
      %v7464 = vmax.f32 %v7462, %v7463
      %v7465 = vrot.slane %v7464, 2
      %v7466 = vmax.f32 %v7464, %v7465
      %v7467 = vrot.slane %v7466, 1
      %v7468 = vmax.f32 %v7466, %v7467
      %v7469 = vsel %vm7118, %v6695, -inf
      %v7470 = vrot.slane %v7469, 4
      %v7471 = vmax.f32 %v7469, %v7470
      %v7472 = vrot.slane %v7471, 2
      %v7473 = vmax.f32 %v7471, %v7472
      %v7474 = vrot.slane %v7473, 1
      %v7475 = vmax.f32 %v7473, %v7474
      %v7476 = vsel %vm7118, %v6694, -inf
      %v7477 = vrot.slane %v7476, 4
      %v7478 = vmax.f32 %v7476, %v7477
      %v7479 = vrot.slane %v7478, 2
      %v7480 = vmax.f32 %v7478, %v7479
      %v7481 = vrot.slane %v7480, 1
      %v7482 = vmax.f32 %v7480, %v7481
      %v7483 = vsel %vm7118, %v6696, -inf
      %v7484 = vrot.slane %v7483, 4
      %v7485 = vmax.f32 %v7483, %v7484
      %v7486 = vrot.slane %v7485, 2
      %v7487 = vmax.f32 %v7485, %v7486
      %v7488 = vrot.slane %v7487, 1
      %v7489 = vmax.f32 %v7487, %v7488
      %v7490 = vsel %vm7118, %v6704, -inf
      %v7491 = vrot.slane %v7490, 4
      %v7492 = vmax.f32 %v7490, %v7491
      %v7493 = vrot.slane %v7492, 2
      %v7494 = vmax.f32 %v7492, %v7493
      %v7495 = vrot.slane %v7494, 1
      %v7496 = vmax.f32 %v7494, %v7495
      %v7497 = vsel %vm7118, %v6712, -inf
      %v7498 = vrot.slane %v7497, 4
      %v7499 = vmax.f32 %v7497, %v7498
      %v7500 = vrot.slane %v7499, 2
      %v7501 = vmax.f32 %v7499, %v7500
      %v7502 = vrot.slane %v7501, 1
      %v7503 = vmax.f32 %v7501, %v7502
      %v7504 = vsel %vm7118, %v6711, -inf
      %v7505 = vrot.slane %v7504, 4
      %v7506 = vmax.f32 %v7504, %v7505
      %v7507 = vrot.slane %v7506, 2
      %v7508 = vmax.f32 %v7506, %v7507
      %v7509 = vrot.slane %v7508, 1
      %v7510 = vmax.f32 %v7508, %v7509
      %v7511 = vsel %vm7118, %v6713, -inf
      %v7512 = vrot.slane %v7511, 4
      %v7513 = vmax.f32 %v7511, %v7512
      %v7514 = vrot.slane %v7513, 2
      %v7515 = vmax.f32 %v7513, %v7514
      %v7516 = vrot.slane %v7515, 1
      %v7517 = vmax.f32 %v7515, %v7516
      %v7518 = vsel %vm7118, %v6721, -inf
      %v7519 = vrot.slane %v7518, 4
      %v7520 = vmax.f32 %v7518, %v7519
      %v7521 = vrot.slane %v7520, 2
      %v7522 = vmax.f32 %v7520, %v7521
      %v7523 = vrot.slane %v7522, 1
      %v7524 = vmax.f32 %v7522, %v7523
      %v7525 = vsel %vm7118, %v6729, -inf
      %v7526 = vrot.slane %v7525, 4
      %v7527 = vmax.f32 %v7525, %v7526
      %v7528 = vrot.slane %v7527, 2
      %v7529 = vmax.f32 %v7527, %v7528
      %v7530 = vrot.slane %v7529, 1
      %v7531 = vmax.f32 %v7529, %v7530
      %v7532 = vsel %vm7118, %v6728, -inf
      %v7533 = vrot.slane %v7532, 4
      %v7534 = vmax.f32 %v7532, %v7533
      %v7535 = vrot.slane %v7534, 2
      %v7536 = vmax.f32 %v7534, %v7535
      %v7537 = vrot.slane %v7536, 1
      %v7538 = vmax.f32 %v7536, %v7537
      %v7539 = vsel %vm7118, %v6737, -inf
      %v7540 = vrot.slane %v7539, 4
      %v7541 = vmax.f32 %v7539, %v7540
      %v7542 = vrot.slane %v7541, 2
      %v7543 = vmax.f32 %v7541, %v7542
      %v7544 = vrot.slane %v7543, 1
      %v7545 = vmax.f32 %v7543, %v7544
      %v7546 = vsel %vm7118, %v6745, -inf
      %v7547 = vrot.slane %v7546, 4
      %v7548 = vmax.f32 %v7546, %v7547
      %v7549 = vrot.slane %v7548, 2
      %v7550 = vmax.f32 %v7548, %v7549
      %v7551 = vrot.slane %v7550, 1
      %v7552 = vmax.f32 %v7550, %v7551
      %v7553 = vsel %vm7118, %v6744, -inf
      %v7554 = vrot.slane %v7553, 4
      %v7555 = vmax.f32 %v7553, %v7554
      %v7556 = vrot.slane %v7555, 2
      %v7557 = vmax.f32 %v7555, %v7556
      %v7558 = vrot.slane %v7557, 1
      %v7559 = vmax.f32 %v7557, %v7558
      %v7560 = vsel %vm7118, %v6746, -inf
      %v7561 = vrot.slane %v7560, 4
      %v7562 = vmax.f32 %v7560, %v7561
      %v7563 = vrot.slane %v7562, 2
      %v7564 = vmax.f32 %v7562, %v7563
      %v7565 = vrot.slane %v7564, 1
      %v7566 = vmax.f32 %v7564, %v7565
      %v7567 = vsel %vm7118, %v6754, -inf
      %v7568 = vrot.slane %v7567, 4
      %v7569 = vmax.f32 %v7567, %v7568
      %v7570 = vrot.slane %v7569, 2
      %v7571 = vmax.f32 %v7569, %v7570
      %v7572 = vrot.slane %v7571, 1
      %v7573 = vmax.f32 %v7571, %v7572
      %v7574 = vsel %vm7118, %v6762, -inf
      %v7575 = vrot.slane %v7574, 4
      %v7576 = vmax.f32 %v7574, %v7575
      %v7577 = vrot.slane %v7576, 2
      %v7578 = vmax.f32 %v7576, %v7577
      %v7579 = vrot.slane %v7578, 1
      %v7580 = vmax.f32 %v7578, %v7579
      %v7581 = vsel %vm7118, %v6761, -inf
      %v7582 = vrot.slane %v7581, 4
      %v7583 = vmax.f32 %v7581, %v7582
      %v7584 = vrot.slane %v7583, 2
      %v7585 = vmax.f32 %v7583, %v7584
      %v7586 = vrot.slane %v7585, 1
      %v7587 = vmax.f32 %v7585, %v7586
      %v7588 = vsel %vm7118, %v6763, -inf
      %v7589 = vrot.slane %v7588, 4
      %v7590 = vmax.f32 %v7588, %v7589
      %v7591 = vrot.slane %v7590, 2
      %v7592 = vmax.f32 %v7590, %v7591
      %v7593 = vrot.slane %v7592, 1
      %v7594 = vmax.f32 %v7592, %v7593
      %v7595 = vsel %vm7118, %v6771, -inf
      %v7596 = vrot.slane %v7595, 4
      %v7597 = vmax.f32 %v7595, %v7596
      %v7598 = vrot.slane %v7597, 2
      %v7599 = vmax.f32 %v7597, %v7598
      %v7600 = vrot.slane %v7599, 1
      %v7601 = vmax.f32 %v7599, %v7600
      %v7602 = vsel %vm7118, %v6779, -inf
      %v7603 = vrot.slane %v7602, 4
      %v7604 = vmax.f32 %v7602, %v7603
      %v7605 = vrot.slane %v7604, 2
      %v7606 = vmax.f32 %v7604, %v7605
      %v7607 = vrot.slane %v7606, 1
      %v7608 = vmax.f32 %v7606, %v7607
      %v7609 = vsel %vm7118, %v6778, -inf
      %v7610 = vrot.slane %v7609, 4
      %v7611 = vmax.f32 %v7609, %v7610
      %v7612 = vrot.slane %v7611, 2
      %v7613 = vmax.f32 %v7611, %v7612
      %v7614 = vrot.slane %v7613, 1
      %v7615 = vmax.f32 %v7613, %v7614
      %v7616 = vsel %vm7118, %v6780, -inf
      %v7617 = vrot.slane %v7616, 4
      %v7618 = vmax.f32 %v7616, %v7617
      %v7619 = vrot.slane %v7618, 2
      %v7620 = vmax.f32 %v7618, %v7619
      %v7621 = vrot.slane %v7620, 1
      %v7622 = vmax.f32 %v7620, %v7621
      %v7623 = vsel %vm7118, %v6788, -inf
      %v7624 = vrot.slane %v7623, 4
      %v7625 = vmax.f32 %v7623, %v7624
      %v7626 = vrot.slane %v7625, 2
      %v7627 = vmax.f32 %v7625, %v7626
      %v7628 = vrot.slane %v7627, 1
      %v7629 = vmax.f32 %v7627, %v7628
      %v7630 = vsel %vm7118, %v6796, -inf
      %v7631 = vrot.slane %v7630, 4
      %v7632 = vmax.f32 %v7630, %v7631
      %v7633 = vrot.slane %v7632, 2
      %v7634 = vmax.f32 %v7632, %v7633
      %v7635 = vrot.slane %v7634, 1
      %v7636 = vmax.f32 %v7634, %v7635
      %v7637 = vsel %vm7118, %v6795, -inf
      %v7638 = vrot.slane %v7637, 4
      %v7639 = vmax.f32 %v7637, %v7638
      %v7640 = vrot.slane %v7639, 2
      %v7641 = vmax.f32 %v7639, %v7640
      %v7642 = vrot.slane %v7641, 1
      %v7643 = vmax.f32 %v7641, %v7642
      %v7644 = vsel %vm7118, %v6804, -inf
      %v7645 = vrot.slane %v7644, 4
      %v7646 = vmax.f32 %v7644, %v7645
      %v7647 = vrot.slane %v7646, 2
      %v7648 = vmax.f32 %v7646, %v7647
      %v7649 = vrot.slane %v7648, 1
      %v7650 = vmax.f32 %v7648, %v7649
      %v7651 = vsel %vm7118, %v6812, -inf
      %v7652 = vrot.slane %v7651, 4
      %v7653 = vmax.f32 %v7651, %v7652
      %v7654 = vrot.slane %v7653, 2
      %v7655 = vmax.f32 %v7653, %v7654
      %v7656 = vrot.slane %v7655, 1
      %v7657 = vmax.f32 %v7655, %v7656
      %v7658 = vsel %vm7118, %v6811, -inf
      %v7659 = vrot.slane %v7658, 4
      %v7660 = vmax.f32 %v7658, %v7659
      %v7661 = vrot.slane %v7660, 2
      %v7662 = vmax.f32 %v7660, %v7661
      %v7663 = vrot.slane %v7662, 1
      %v7664 = vmax.f32 %v7662, %v7663
      %v7665 = vsel %vm7118, %v6813, -inf
      %v7666 = vrot.slane %v7665, 4
      %v7667 = vmax.f32 %v7665, %v7666
      %v7668 = vrot.slane %v7667, 2
      %v7669 = vmax.f32 %v7667, %v7668
      %v7670 = vrot.slane %v7669, 1
      %v7671 = vmax.f32 %v7669, %v7670
      %v7672 = vsel %vm7118, %v6821, -inf
      %v7673 = vrot.slane %v7672, 4
      %v7674 = vmax.f32 %v7672, %v7673
      %v7675 = vrot.slane %v7674, 2
      %v7676 = vmax.f32 %v7674, %v7675
      %v7677 = vrot.slane %v7676, 1
      %v7678 = vmax.f32 %v7676, %v7677
      %v7679 = vsel %vm7118, %v6829, -inf
      %v7680 = vrot.slane %v7679, 4
      %v7681 = vmax.f32 %v7679, %v7680
      %v7682 = vrot.slane %v7681, 2
      %v7683 = vmax.f32 %v7681, %v7682
      %v7684 = vrot.slane %v7683, 1
      %v7685 = vmax.f32 %v7683, %v7684
      %v7686 = vsel %vm7118, %v6828, -inf
      %v7687 = vrot.slane %v7686, 4
      %v7688 = vmax.f32 %v7686, %v7687
      %v7689 = vrot.slane %v7688, 2
      %v7690 = vmax.f32 %v7688, %v7689
      %v7691 = vrot.slane %v7690, 1
      %v7692 = vmax.f32 %v7690, %v7691
      %v7693 = vsel %vm7118, %v6830, -inf
      %v7694 = vrot.slane %v7693, 4
      %v7695 = vmax.f32 %v7693, %v7694
      %v7696 = vrot.slane %v7695, 2
      %v7697 = vmax.f32 %v7695, %v7696
      %v7698 = vrot.slane %v7697, 1
      %v7699 = vmax.f32 %v7697, %v7698
      %v7700 = vsel %vm7118, %v6838, -inf
      %v7701 = vrot.slane %v7700, 4
      %v7702 = vmax.f32 %v7700, %v7701
      %v7703 = vrot.slane %v7702, 2
      %v7704 = vmax.f32 %v7702, %v7703
      %v7705 = vrot.slane %v7704, 1
      %v7706 = vmax.f32 %v7704, %v7705
      %v7707 = vsel %vm7118, %v6846, -inf
      %v7708 = vrot.slane %v7707, 4
      %v7709 = vmax.f32 %v7707, %v7708
      %v7710 = vrot.slane %v7709, 2
      %v7711 = vmax.f32 %v7709, %v7710
      %v7712 = vrot.slane %v7711, 1
      %v7713 = vmax.f32 %v7711, %v7712
      %v7714 = vsel %vm7118, %v6845, -inf
      %v7715 = vrot.slane %v7714, 4
      %v7716 = vmax.f32 %v7714, %v7715
      %v7717 = vrot.slane %v7716, 2
      %v7718 = vmax.f32 %v7716, %v7717
      %v7719 = vrot.slane %v7718, 1
      %v7720 = vmax.f32 %v7718, %v7719
      %v7721 = vsel %vm7118, %v6847, -inf
      %v7722 = vrot.slane %v7721, 4
      %v7723 = vmax.f32 %v7721, %v7722
      %v7724 = vrot.slane %v7723, 2
      %v7725 = vmax.f32 %v7723, %v7724
      %v7726 = vrot.slane %v7725, 1
      %v7727 = vmax.f32 %v7725, %v7726
      %v7728 = vsel %vm7118, %v6855, -inf
      %v7729 = vrot.slane %v7728, 4
      %v7730 = vmax.f32 %v7728, %v7729
      %v7731 = vrot.slane %v7730, 2
      %v7732 = vmax.f32 %v7730, %v7731
      %v7733 = vrot.slane %v7732, 1
      %v7734 = vmax.f32 %v7732, %v7733
      %v7735 = vsel %vm7118, %v6863, -inf
      %v7736 = vrot.slane %v7735, 4
      %v7737 = vmax.f32 %v7735, %v7736
      %v7738 = vrot.slane %v7737, 2
      %v7739 = vmax.f32 %v7737, %v7738
      %v7740 = vrot.slane %v7739, 1
      %v7741 = vmax.f32 %v7739, %v7740
      %v7742 = vsel %vm7118, %v6862, -inf
      %v7743 = vrot.slane %v7742, 4
      %v7744 = vmax.f32 %v7742, %v7743
      %v7745 = vrot.slane %v7744, 2
      %v7746 = vmax.f32 %v7744, %v7745
      %v7747 = vrot.slane %v7746, 1
      %v7748 = vmax.f32 %v7746, %v7747
      %v7749 = vsel %vm7118, %v6871, -inf
      %v7750 = vrot.slane %v7749, 4
      %v7751 = vmax.f32 %v7749, %v7750
      %v7752 = vrot.slane %v7751, 2
      %v7753 = vmax.f32 %v7751, %v7752
      %v7754 = vrot.slane %v7753, 1
      %v7755 = vmax.f32 %v7753, %v7754
      %v7756 = vsel %vm7118, %v6879, -inf
      %v7757 = vrot.slane %v7756, 4
      %v7758 = vmax.f32 %v7756, %v7757
      %v7759 = vrot.slane %v7758, 2
      %v7760 = vmax.f32 %v7758, %v7759
      %v7761 = vrot.slane %v7760, 1
      %v7762 = vmax.f32 %v7760, %v7761
      %v7763 = vsel %vm7118, %v6878, -inf
      %v7764 = vrot.slane %v7763, 4
      %v7765 = vmax.f32 %v7763, %v7764
      %v7766 = vrot.slane %v7765, 2
      %v7767 = vmax.f32 %v7765, %v7766
      %v7768 = vrot.slane %v7767, 1
      %v7769 = vmax.f32 %v7767, %v7768
      %v7770 = vsel %vm7118, %v6880, -inf
      %v7771 = vrot.slane %v7770, 4
      %v7772 = vmax.f32 %v7770, %v7771
      %v7773 = vrot.slane %v7772, 2
      %v7774 = vmax.f32 %v7772, %v7773
      %v7775 = vrot.slane %v7774, 1
      %v7776 = vmax.f32 %v7774, %v7775
      %v7777 = vsel %vm7118, %v6888, -inf
      %v7778 = vrot.slane %v7777, 4
      %v7779 = vmax.f32 %v7777, %v7778
      %v7780 = vrot.slane %v7779, 2
      %v7781 = vmax.f32 %v7779, %v7780
      %v7782 = vrot.slane %v7781, 1
      %v7783 = vmax.f32 %v7781, %v7782
      %v7784 = vsel %vm7118, %v6896, -inf
      %v7785 = vrot.slane %v7784, 4
      %v7786 = vmax.f32 %v7784, %v7785
      %v7787 = vrot.slane %v7786, 2
      %v7788 = vmax.f32 %v7786, %v7787
      %v7789 = vrot.slane %v7788, 1
      %v7790 = vmax.f32 %v7788, %v7789
      %v7791 = vsel %vm7118, %v6895, -inf
      %v7792 = vrot.slane %v7791, 4
      %v7793 = vmax.f32 %v7791, %v7792
      %v7794 = vrot.slane %v7793, 2
      %v7795 = vmax.f32 %v7793, %v7794
      %v7796 = vrot.slane %v7795, 1
      %v7797 = vmax.f32 %v7795, %v7796
      %v7798 = vsel %vm7118, %v6897, -inf
      %v7799 = vrot.slane %v7798, 4
      %v7800 = vmax.f32 %v7798, %v7799
      %v7801 = vrot.slane %v7800, 2
      %v7802 = vmax.f32 %v7800, %v7801
      %v7803 = vrot.slane %v7802, 1
      %v7804 = vmax.f32 %v7802, %v7803
      %v7805 = vsel %vm7118, %v6905, -inf
      %v7806 = vrot.slane %v7805, 4
      %v7807 = vmax.f32 %v7805, %v7806
      %v7808 = vrot.slane %v7807, 2
      %v7809 = vmax.f32 %v7807, %v7808
      %v7810 = vrot.slane %v7809, 1
      %v7811 = vmax.f32 %v7809, %v7810
      %v7812 = vsel %vm7118, %v6913, -inf
      %v7813 = vrot.slane %v7812, 4
      %v7814 = vmax.f32 %v7812, %v7813
      %v7815 = vrot.slane %v7814, 2
      %v7816 = vmax.f32 %v7814, %v7815
      %v7817 = vrot.slane %v7816, 1
      %v7818 = vmax.f32 %v7816, %v7817
      %v7819 = vsel %vm7118, %v6912, -inf
      %v7820 = vrot.slane %v7819, 4
      %v7821 = vmax.f32 %v7819, %v7820
      %v7822 = vrot.slane %v7821, 2
      %v7823 = vmax.f32 %v7821, %v7822
      %v7824 = vrot.slane %v7823, 1
      %v7825 = vmax.f32 %v7823, %v7824
      %v7826 = vsel %vm7118, %v6914, -inf
      %v7827 = vrot.slane %v7826, 4
      %v7828 = vmax.f32 %v7826, %v7827
      %v7829 = vrot.slane %v7828, 2
      %v7830 = vmax.f32 %v7828, %v7829
      %v7831 = vrot.slane %v7830, 1
      %v7832 = vmax.f32 %v7830, %v7831
      %v7833 = vsel %vm7118, %v6922, -inf
      %v7834 = vrot.slane %v7833, 4
      %v7835 = vmax.f32 %v7833, %v7834
      %v7836 = vrot.slane %v7835, 2
      %v7837 = vmax.f32 %v7835, %v7836
      %v7838 = vrot.slane %v7837, 1
      %v7839 = vmax.f32 %v7837, %v7838
      %v7840 = vsel %vm7118, %v6930, -inf
      %v7841 = vrot.slane %v7840, 4
      %v7842 = vmax.f32 %v7840, %v7841
      %v7843 = vrot.slane %v7842, 2
      %v7844 = vmax.f32 %v7842, %v7843
      %v7845 = vrot.slane %v7844, 1
      %v7846 = vmax.f32 %v7844, %v7845
      %v7847 = vsel %vm7118, %v6929, -inf
      %v7848 = vrot.slane %v7847, 4
      %v7849 = vmax.f32 %v7847, %v7848
      %v7850 = vrot.slane %v7849, 2
      %v7851 = vmax.f32 %v7849, %v7850
      %v7852 = vrot.slane %v7851, 1
      %v7853 = vmax.f32 %v7851, %v7852
      %v7854 = vsel %vm7118, %v6938, -inf
      %v7855 = vrot.slane %v7854, 4
      %v7856 = vmax.f32 %v7854, %v7855
      %v7857 = vrot.slane %v7856, 2
      %v7858 = vmax.f32 %v7856, %v7857
      %v7859 = vrot.slane %v7858, 1
      %v7860 = vmax.f32 %v7858, %v7859
      %v7861 = vsel %vm7118, %v6946, -inf
      %v7862 = vrot.slane %v7861, 4
      %v7863 = vmax.f32 %v7861, %v7862
      %v7864 = vrot.slane %v7863, 2
      %v7865 = vmax.f32 %v7863, %v7864
      %v7866 = vrot.slane %v7865, 1
      %v7867 = vmax.f32 %v7865, %v7866
      %v7868 = vsel %vm7118, %v6945, -inf
      %v7869 = vrot.slane %v7868, 4
      %v7870 = vmax.f32 %v7868, %v7869
      %v7871 = vrot.slane %v7870, 2
      %v7872 = vmax.f32 %v7870, %v7871
      %v7873 = vrot.slane %v7872, 1
      %v7874 = vmax.f32 %v7872, %v7873
      %v7875 = vsel %vm7118, %v6947, -inf
      %v7876 = vrot.slane %v7875, 4
      %v7877 = vmax.f32 %v7875, %v7876
      %v7878 = vrot.slane %v7877, 2
      %v7879 = vmax.f32 %v7877, %v7878
      %v7880 = vrot.slane %v7879, 1
      %v7881 = vmax.f32 %v7879, %v7880
      %v7882 = vsel %vm7118, %v6955, -inf
      %v7883 = vrot.slane %v7882, 4
      %v7884 = vmax.f32 %v7882, %v7883
      %v7885 = vrot.slane %v7884, 2
      %v7886 = vmax.f32 %v7884, %v7885
      %v7887 = vrot.slane %v7886, 1
      %v7888 = vmax.f32 %v7886, %v7887
      %v7889 = vsel %vm7118, %v6963, -inf
      %v7890 = vrot.slane %v7889, 4
      %v7891 = vmax.f32 %v7889, %v7890
      %v7892 = vrot.slane %v7891, 2
      %v7893 = vmax.f32 %v7891, %v7892
      %v7894 = vrot.slane %v7893, 1
      %v7895 = vmax.f32 %v7893, %v7894
      %v7896 = vsel %vm7118, %v6962, -inf
      %v7897 = vrot.slane %v7896, 4
      %v7898 = vmax.f32 %v7896, %v7897
      %v7899 = vrot.slane %v7898, 2
      %v7900 = vmax.f32 %v7898, %v7899
      %v7901 = vrot.slane %v7900, 1
      %v7902 = vmax.f32 %v7900, %v7901
      %v7903 = vsel %vm7118, %v6964, -inf
      %v7904 = vrot.slane %v7903, 4
      %v7905 = vmax.f32 %v7903, %v7904
      %v7906 = vrot.slane %v7905, 2
      %v7907 = vmax.f32 %v7905, %v7906
      %v7908 = vrot.slane %v7907, 1
      %v7909 = vmax.f32 %v7907, %v7908
      %v7910 = vsel %vm7118, %v6972, -inf
      %v7911 = vrot.slane %v7910, 4
      %v7912 = vmax.f32 %v7910, %v7911
      %v7913 = vrot.slane %v7912, 2
      %v7914 = vmax.f32 %v7912, %v7913
      %v7915 = vrot.slane %v7914, 1
      %v7916 = vmax.f32 %v7914, %v7915
      %v7917 = vsel %vm7118, %v6980, -inf
      %v7918 = vrot.slane %v7917, 4
      %v7919 = vmax.f32 %v7917, %v7918
      %v7920 = vrot.slane %v7919, 2
      %v7921 = vmax.f32 %v7919, %v7920
      %v7922 = vrot.slane %v7921, 1
      %v7923 = vmax.f32 %v7921, %v7922
      %v7924 = vsel %vm7118, %v6979, -inf
      %v7925 = vrot.slane %v7924, 4
      %v7926 = vmax.f32 %v7924, %v7925
      %v7927 = vrot.slane %v7926, 2
      %v7928 = vmax.f32 %v7926, %v7927
      %v7929 = vrot.slane %v7928, 1
      %v7930 = vmax.f32 %v7928, %v7929
      %v7931 = vsel %vm7118, %v6981, -inf
      %v7932 = vrot.slane %v7931, 4
      %v7933 = vmax.f32 %v7931, %v7932
      %v7934 = vrot.slane %v7933, 2
      %v7935 = vmax.f32 %v7933, %v7934
      %v7936 = vrot.slane %v7935, 1
      %v7937 = vmax.f32 %v7935, %v7936
      %v7938 = vsel %vm7118, %v6989, -inf
      %v7939 = vrot.slane %v7938, 4
      %v7940 = vmax.f32 %v7938, %v7939
      %v7941 = vrot.slane %v7940, 2
      %v7942 = vmax.f32 %v7940, %v7941
      %v7943 = vrot.slane %v7942, 1
      %v7944 = vmax.f32 %v7942, %v7943
      %v7945 = vsel %vm7118, %v6997, -inf
      %v7946 = vrot.slane %v7945, 4
      %v7947 = vmax.f32 %v7945, %v7946
      %v7948 = vrot.slane %v7947, 2
      %v7949 = vmax.f32 %v7947, %v7948
      %v7950 = vrot.slane %v7949, 1
      %v7951 = vmax.f32 %v7949, %v7950
      %v7952 = vsel %vm7118, %v6996, -inf
      %v7953 = vrot.slane %v7952, 4
      %v7954 = vmax.f32 %v7952, %v7953
      %v7955 = vrot.slane %v7954, 2
      %v7956 = vmax.f32 %v7954, %v7955
      %v7957 = vrot.slane %v7956, 1
      %v7958 = vmax.f32 %v7956, %v7957
      %vm7959 = vcmask 516096
      %7960 = vst.msk [vmem:[#allocation3] sm:$0x1] %vm7959, 0.0
      %7961 = vst.msk [vmem:[#allocation3 + $0x18] sm:$0x1] %vm7959, 0.0
      %7962 = vst.msk [vmem:[#allocation3 + $0x30] sm:$0x1] %vm7959, 0.0
      %7963 = vst.msk [vmem:[#allocation3 + $0x48] sm:$0x1] %vm7959, 0.0
      %7964 = vst.msk [vmem:[#allocation3 + $0x60] sm:$0x1] %vm7959, 0.0
      %7965 = vst.msk [vmem:[#allocation3 + $0x78] sm:$0x1] %vm7959, 0.0
      %7966 = vst.msk [vmem:[#allocation3 + $0x90] sm:$0x1] %vm7959, 0.0
      %7967 = vst.msk [vmem:[#allocation3 + $0xa8] sm:$0x1] %vm7959, 0.0
      %vm7968 = vcmask 523264
      %7969 = vst.msk [vmem:[#allocation3 + $0x10] sm:$0xff] %vm7968, 0.0
      %7970 = vst.msk [vmem:[#allocation3 + $0x28] sm:$0xff] %vm7968, 0.0
      %7971 = vst.msk [vmem:[#allocation3 + $0x40] sm:$0xff] %vm7968, 0.0
      %7972 = vst.msk [vmem:[#allocation3 + $0x58] sm:$0xff] %vm7968, 0.0
      %7973 = vst.msk [vmem:[#allocation3 + $0x70] sm:$0xff] %vm7968, 0.0
      %7974 = vst.msk [vmem:[#allocation3 + $0x88] sm:$0xff] %vm7968, 0.0
      %7975 = vst.msk [vmem:[#allocation3 + $0xa0] sm:$0xff] %vm7968, 0.0
      %7976 = vst.msk [vmem:[#allocation3 + $0xb8] sm:$0xff] %vm7968, 0.0
      %v8097 = vsel %vm4575, %v7132, %v7125
      %v8098 = vsel %vm4577, %v7139, %v8097
      %v8099 = vsel %vm4579, %v7146, %v8098
      %v8100 = vsel %vm4581, %v7153, %v8099
      %v8101 = vsel %vm4583, %v7160, %v8100
      %v8102 = vsel %vm4585, %v7167, %v8101
      %v8103 = vsel %vm4587, %v7174, %v8102
      %v8104 = vsel %vm4575, %v7188, %v7181
      %v8105 = vsel %vm4577, %v7195, %v8104
      %v8106 = vsel %vm4579, %v7202, %v8105
      %v8107 = vsel %vm4581, %v7209, %v8106
      %v8108 = vsel %vm4583, %v7216, %v8107
      %v8109 = vsel %vm4585, %v7223, %v8108
      %v8110 = vsel %vm4575, %v7237, %v7230
      %v8111 = vsel %vm4577, %v7244, %v8110
      %v8112 = vsel %vm4579, %v7251, %v8111
      %v8113 = vsel %vm4581, %v7258, %v8112
      %v8114 = vsel %vm4583, %v7265, %v8113
      %v8115 = vsel %vm4585, %v7272, %v8114
      %v8116 = vsel %vm4587, %v7279, %v8115
      %v8117 = vsel %vm4575, %v7293, %v7286
      %v8118 = vsel %vm4577, %v7300, %v8117
      %v8119 = vsel %vm4579, %v7307, %v8118
      %v8120 = vsel %vm4581, %v7314, %v8119
      %v8121 = vsel %vm4583, %v7321, %v8120
      %v8122 = vsel %vm4585, %v7328, %v8121
      %v8123 = vsel %vm4575, %v7342, %v7335
      %v8124 = vsel %vm4577, %v7349, %v8123
      %v8125 = vsel %vm4579, %v7356, %v8124
      %v8126 = vsel %vm4581, %v7363, %v8125
      %v8127 = vsel %vm4583, %v7370, %v8126
      %v8128 = vsel %vm4585, %v7377, %v8127
      %v8129 = vsel %vm4587, %v7384, %v8128
      %v8130 = vsel %vm4575, %v7398, %v7391
      %v8131 = vsel %vm4577, %v7405, %v8130
      %v8132 = vsel %vm4579, %v7412, %v8131
      %v8133 = vsel %vm4581, %v7419, %v8132
      %v8134 = vsel %vm4583, %v7426, %v8133
      %v8135 = vsel %vm4585, %v7433, %v8134
      %v8136 = vsel %vm4575, %v7447, %v7440
      %v8137 = vsel %vm4577, %v7454, %v8136
      %v8138 = vsel %vm4579, %v7461, %v8137
      %v8139 = vsel %vm4581, %v7468, %v8138
      %v8140 = vsel %vm4583, %v7475, %v8139
      %v8141 = vsel %vm4585, %v7482, %v8140
      %v8142 = vsel %vm4587, %v7489, %v8141
      %v8143 = vsel %vm4575, %v7503, %v7496
      %v8144 = vsel %vm4577, %v7510, %v8143
      %v8145 = vsel %vm4579, %v7517, %v8144
      %v8146 = vsel %vm4581, %v7524, %v8145
      %v8147 = vsel %vm4583, %v7531, %v8146
      %v8148 = vsel %vm4585, %v7538, %v8147
      %v8149 = vsel %vm4575, %v7552, %v7545
      %v8150 = vsel %vm4577, %v7559, %v8149
      %v8151 = vsel %vm4579, %v7566, %v8150
      %v8152 = vsel %vm4581, %v7573, %v8151
      %v8153 = vsel %vm4583, %v7580, %v8152
      %v8154 = vsel %vm4585, %v7587, %v8153
      %v8155 = vsel %vm4587, %v7594, %v8154
      %v8156 = vsel %vm4575, %v7608, %v7601
      %v8157 = vsel %vm4577, %v7615, %v8156
      %v8158 = vsel %vm4579, %v7622, %v8157
      %v8159 = vsel %vm4581, %v7629, %v8158
      %v8160 = vsel %vm4583, %v7636, %v8159
      %v8161 = vsel %vm4585, %v7643, %v8160
      %v8162 = vsel %vm4575, %v7657, %v7650
      %v8163 = vsel %vm4577, %v7664, %v8162
      %v8164 = vsel %vm4579, %v7671, %v8163
      %v8165 = vsel %vm4581, %v7678, %v8164
      %v8166 = vsel %vm4583, %v7685, %v8165
      %v8167 = vsel %vm4585, %v7692, %v8166
      %v8168 = vsel %vm4587, %v7699, %v8167
      %v8169 = vsel %vm4575, %v7713, %v7706
      %v8170 = vsel %vm4577, %v7720, %v8169
      %v8171 = vsel %vm4579, %v7727, %v8170
      %v8172 = vsel %vm4581, %v7734, %v8171
      %v8173 = vsel %vm4583, %v7741, %v8172
      %v8174 = vsel %vm4585, %v7748, %v8173
      %v8175 = vsel %vm4575, %v7762, %v7755
      %v8176 = vsel %vm4577, %v7769, %v8175
      %v8177 = vsel %vm4579, %v7776, %v8176
      %v8178 = vsel %vm4581, %v7783, %v8177
      %v8179 = vsel %vm4583, %v7790, %v8178
      %v8180 = vsel %vm4585, %v7797, %v8179
      %v8181 = vsel %vm4587, %v7804, %v8180
      %v8182 = vsel %vm4575, %v7818, %v7811
      %v8183 = vsel %vm4577, %v7825, %v8182
      %v8184 = vsel %vm4579, %v7832, %v8183
      %v8185 = vsel %vm4581, %v7839, %v8184
      %v8186 = vsel %vm4583, %v7846, %v8185
      %v8187 = vsel %vm4585, %v7853, %v8186
      %v8188 = vsel %vm4575, %v7867, %v7860
      %v8189 = vsel %vm4577, %v7874, %v8188
      %v8190 = vsel %vm4579, %v7881, %v8189
      %v8191 = vsel %vm4581, %v7888, %v8190
      %v8192 = vsel %vm4583, %v7895, %v8191
      %v8193 = vsel %vm4585, %v7902, %v8192
      %v8194 = vsel %vm4587, %v7909, %v8193
      %v8195 = vsel %vm4575, %v7923, %v7916
      %v8196 = vsel %vm4577, %v7930, %v8195
      %v8197 = vsel %vm4579, %v7937, %v8196
      %v8198 = vsel %vm4581, %v7944, %v8197
      %v8199 = vsel %vm4583, %v7951, %v8198
      %v8200 = vsel %vm4585, %v7958, %v8199
      %8217 = vst.msk [vmem:[#allocation3 + $0x1] sm:$0xff] %vm7968, %v8103
      %vm8218 = vcmask 522240
      %8219 = vst.msk [vmem:[#allocation3 + $0x9] sm:$0x7f] %vm8218, %v8109
      %8220 = vst.msk [vmem:[#allocation3 + $0x19] sm:$0xff] %vm7968, %v8116
      %8221 = vst.msk [vmem:[#allocation3 + $0x21] sm:$0x7f] %vm8218, %v8122
      %8222 = vst.msk [vmem:[#allocation3 + $0x31] sm:$0xff] %vm7968, %v8129
      %8223 = vst.msk [vmem:[#allocation3 + $0x39] sm:$0x7f] %vm8218, %v8135
      %8224 = vst.msk [vmem:[#allocation3 + $0x49] sm:$0xff] %vm7968, %v8142
      %8225 = vst.msk [vmem:[#allocation3 + $0x51] sm:$0x7f] %vm8218, %v8148
      %8226 = vst.msk [vmem:[#allocation3 + $0x61] sm:$0xff] %vm7968, %v8155
      %8227 = vst.msk [vmem:[#allocation3 + $0x69] sm:$0x7f] %vm8218, %v8161
      %8228 = vst.msk [vmem:[#allocation3 + $0x79] sm:$0xff] %vm7968, %v8168
      %8229 = vst.msk [vmem:[#allocation3 + $0x81] sm:$0x7f] %vm8218, %v8174
      %8230 = vst.msk [vmem:[#allocation3 + $0x91] sm:$0xff] %vm7968, %v8181
      %8231 = vst.msk [vmem:[#allocation3 + $0x99] sm:$0x7f] %vm8218, %v8187
      %8232 = vst.msk [vmem:[#allocation3 + $0xa9] sm:$0xff] %vm7968, %v8194
      %8233 = vst.msk [vmem:[#allocation3 + $0xb1] sm:$0x7f] %vm8218, %v8200
      %v8234 = vld [vmem:[#allocation3] sm:$0xff]
      %v8235 = vld [vmem:[#allocation3 + $0x8] sm:$0xff]
      %v8236 = vld [vmem:[#allocation3 + $0x18] sm:$0xff]
      %v8237 = vld [vmem:[#allocation3 + $0x20] sm:$0xff]
      %v8238 = vld [vmem:[#allocation3 + $0x30] sm:$0xff]
      %v8239 = vld [vmem:[#allocation3 + $0x38] sm:$0xff]
      %v8240 = vld [vmem:[#allocation3 + $0x48] sm:$0xff]
      %v8241 = vld [vmem:[#allocation3 + $0x50] sm:$0xff]
      %v8242 = vld [vmem:[#allocation3 + $0x60] sm:$0xff]
      %v8243 = vld [vmem:[#allocation3 + $0x68] sm:$0xff]
      %v8244 = vld [vmem:[#allocation3 + $0x78] sm:$0xff]
      %v8245 = vld [vmem:[#allocation3 + $0x80] sm:$0xff]
      %v8246 = vld [vmem:[#allocation3 + $0x90] sm:$0xff]
      %v8247 = vld [vmem:[#allocation3 + $0x98] sm:$0xff]
      %v8248 = vld [vmem:[#allocation3 + $0xa8] sm:$0xff]
      %v8249 = vld [vmem:[#allocation3 + $0xb0] sm:$0xff]
      %v8250 = vpack.c.bf16 %v8235, %v8234
      %v8251 = vpack.c.bf16 %v8237, %v8236
      %v8252 = vpack.c.bf16 %v8239, %v8238
      %v8253 = vpack.c.bf16 %v8241, %v8240
      %v8254 = vpack.c.bf16 %v8243, %v8242
      %v8255 = vpack.c.bf16 %v8245, %v8244
      %v8256 = vpack.c.bf16 %v8247, %v8246
      %v8257 = vpack.c.bf16 %v8249, %v8248
      %v8258 = vld [vmem:[%s7] sm:$0xf]
      %v8259 = vld [vmem:[%s7 + $0x4] sm:$0xf]
      %v8260 = vld [vmem:[%s7 + $0x8] sm:$0xf]
      %v8261 = vld [vmem:[%s7 + $0xc] sm:$0xf]
      %v8262 = vld [vmem:[%s7 + $0x10] sm:$0xf]
      %v8263 = vld [vmem:[%s7 + $0x14] sm:$0xf]
      %v8264 = vld [vmem:[%s7 + $0x18] sm:$0xf]
      %v8265 = vld [vmem:[%s7 + $0x1c] sm:$0xf]
      %v8266 = vld [vmem:[#allocation3 + $0x1] sm:$0xff]
      %v8267 = vld [vmem:[#allocation3 + $0x9] sm:$0xff]
      %v8268 = vld [vmem:[#allocation3 + $0x19] sm:$0xff]
      %v8269 = vld [vmem:[#allocation3 + $0x21] sm:$0xff]
      %v8270 = vld [vmem:[#allocation3 + $0x31] sm:$0xff]
      %v8271 = vld [vmem:[#allocation3 + $0x39] sm:$0xff]
      %v8272 = vld [vmem:[#allocation3 + $0x49] sm:$0xff]
      %v8273 = vld [vmem:[#allocation3 + $0x51] sm:$0xff]
      %v8274 = vld [vmem:[#allocation3 + $0x61] sm:$0xff]
      %v8275 = vld [vmem:[#allocation3 + $0x69] sm:$0xff]
      %v8276 = vld [vmem:[#allocation3 + $0x79] sm:$0xff]
      %v8277 = vld [vmem:[#allocation3 + $0x81] sm:$0xff]
      %v8278 = vld [vmem:[#allocation3 + $0x91] sm:$0xff]
      %v8279 = vld [vmem:[#allocation3 + $0x99] sm:$0xff]
      %v8280 = vld [vmem:[#allocation3 + $0xa9] sm:$0xff]
      %v8281 = vld [vmem:[#allocation3 + $0xb1] sm:$0xff]
      %v8282 = vpack.c.bf16 %v8267, %v8266
      %v8283 = vpack.c.bf16 %v8269, %v8268
      %v8284 = vpack.c.bf16 %v8271, %v8270
      %v8285 = vpack.c.bf16 %v8273, %v8272
      %v8286 = vpack.c.bf16 %v8275, %v8274
      %v8287 = vpack.c.bf16 %v8277, %v8276
      %v8288 = vpack.c.bf16 %v8279, %v8278
      %v8289 = vpack.c.bf16 %v8281, %v8280
      %s8290 = scalar_lea.vmem %s7, 32
      %v8291 = vld [vmem:[%s8290] sm:$0xf]
      %v8292 = vld [vmem:[%s8290 + $0x4] sm:$0xf]
      %v8293 = vld [vmem:[%s8290 + $0x8] sm:$0xf]
      %v8294 = vld [vmem:[%s8290 + $0xc] sm:$0xf]
      %v8295 = vld [vmem:[%s8290 + $0x10] sm:$0xf]
      %v8296 = vld [vmem:[%s8290 + $0x14] sm:$0xf]
      %v8297 = vld [vmem:[%s8290 + $0x18] sm:$0xf]
      %v8298 = vld [vmem:[%s8290 + $0x1c] sm:$0xf]
      %v8307 = vunpack.c.l.b16 %v8291
      %v8308 = vunpack.c.l.b16 %v8292
      %v8309 = vunpack.c.l.b16 %v8293
      %v8310 = vunpack.c.l.b16 %v8294
      %v8311 = vunpack.c.l.b16 %v8295
      %v8312 = vunpack.c.l.b16 %v8296
      %v8313 = vunpack.c.l.b16 %v8297
      %v8314 = vunpack.c.l.b16 %v8298
      %v8315 = vpack.c.b16 %v8308, %v8307
      %v8316 = vpack.c.b16 %v8310, %v8309
      %v8317 = vpack.c.b16 %v8312, %v8311
      %v8318 = vpack.c.b16 %v8314, %v8313
      %v8324 = vsel %vm7968, %v8282, 0
      %v8327 = vsel %vm7968, %v8283, 0
      %v8330 = vsel %vm7968, %v8284, 0
      %v8333 = vsel %vm7968, %v8285, 0
      %v8336 = vsel %vm7968, %v8286, 0
      %v8339 = vsel %vm7968, %v8287, 0
      %v8342 = vsel %vm7968, %v8288, 0
      %v8345 = vsel %vm7968, %v8289, 0
      %8347 = vmatprep.subr.bf16.mxu0 0
      %8348 = vmatpush1.bf16.msra.mxu0 0
      %8349 = vmatprep.subr.bf16.mxu0 0
      %8350 = vmatpush1.bf16.msra.mxu0 0
      %8351 = vmatprep.subr.bf16.mxu0 0
      %8352 = vmatpush1.bf16.msra.mxu0 0
      %8353 = vmatprep.subr.bf16.mxu0 0
      %8354 = vmatpush1.bf16.msra.mxu0 0
      %8355 = vmatprep.subr.bf16.mxu0 0
      %8356 = vmatpush1.bf16.msra.mxu0 %v8318
      %8357 = vmatprep.subr.bf16.mxu0 0
      %8358 = vmatpush1.bf16.msra.mxu0 %v8317
      %8359 = vmatprep.subr.bf16.mxu0 0
      %8360 = vmatpush1.bf16.msra.mxu0 %v8316
      %8361 = vmatprep.subr.bf16.mxu0 0
      %8362 = vmatpush1.bf16.msra.mxu0 %v8315
      %8363 = vmatprep.subr.bf16.mxu0 0
      %8364 = vmatpush2.bf16.msra.mxu0 0
      %8365 = vmatprep.subr.bf16.mxu0 0
      %8366 = vmatpush2.bf16.msra.mxu0 0
      %8367 = vmatprep.subr.bf16.mxu0 0
      %8368 = vmatpush2.bf16.msra.mxu0 0
      %8369 = vmatprep.subr.bf16.mxu0 0
      %8370 = vmatpush2.bf16.msra.mxu0 0
      %8371 = vmatprep.subr.bf16.mxu0 0
      %8372 = vmatpush2.bf16.msra.mxu0 0
      %8373 = vmatprep.subr.bf16.mxu0 0
      %8374 = vmatpush2.bf16.msra.mxu0 0
      %8375 = vmatprep.subr.bf16.mxu0 0
      %8376 = vmatpush2.bf16.msra.mxu0 0
      %8377 = vmatprep.subr.bf16.mxu0 0
      %8378 = vmatpush2.bf16.msra.mxu0 0
      %8379 = vmatprep.mubr.bf16.mxu0 0
      %8380 = vmatmul.mubr.bf16.gmra.mxu0 %v8324
      %v8381 = vpop.f32.mrf.mxu0
      %v8382 = vadd.f32 0.0, %v8381
      %v8383 = vpop.f32.mrf.mxu0
      %v8384 = vpop.f32.mrf.mxu0
      %v8385 = vadd.f32 0.0, %v8384
      %v8386 = vpop.f32.mrf.mxu0
      %8387 = vmatprep.mubr.bf16.mxu0 0
      %8388 = vmatmul.mubr.bf16.gmra.mxu0 %v8327
      %v8389 = vpop.f32.mrf.mxu0
      %v8390 = vadd.f32 0.0, %v8389
      %v8391 = vpop.f32.mrf.mxu0
      %v8392 = vpop.f32.mrf.mxu0
      %v8393 = vadd.f32 0.0, %v8392
      %v8394 = vpop.f32.mrf.mxu0
      %8395 = vmatprep.mubr.bf16.mxu0 0
      %8396 = vmatmul.mubr.bf16.gmra.mxu0 %v8330
      %v8397 = vpop.f32.mrf.mxu0
      %v8398 = vadd.f32 0.0, %v8397
      %v8399 = vpop.f32.mrf.mxu0
      %v8400 = vpop.f32.mrf.mxu0
      %v8401 = vadd.f32 0.0, %v8400
      %v8402 = vpop.f32.mrf.mxu0
      %8403 = vmatprep.mubr.bf16.mxu0 0
      %8404 = vmatmul.mubr.bf16.gmra.mxu0 %v8333
      %v8405 = vpop.f32.mrf.mxu0
      %v8406 = vadd.f32 0.0, %v8405
      %v8407 = vpop.f32.mrf.mxu0
      %v8408 = vpop.f32.mrf.mxu0
      %v8409 = vadd.f32 0.0, %v8408
      %v8410 = vpop.f32.mrf.mxu0
      %8411 = vmatprep.mubr.bf16.mxu0 0
      %8412 = vmatmul.mubr.bf16.gmra.mxu0 %v8336
      %v8413 = vpop.f32.mrf.mxu0
      %v8414 = vadd.f32 0.0, %v8413
      %v8415 = vpop.f32.mrf.mxu0
      %v8416 = vpop.f32.mrf.mxu0
      %v8417 = vadd.f32 0.0, %v8416
      %v8418 = vpop.f32.mrf.mxu0
      %8419 = vmatprep.mubr.bf16.mxu0 0
      %8420 = vmatmul.mubr.bf16.gmra.mxu0 %v8339
      %v8421 = vpop.f32.mrf.mxu0
      %v8422 = vadd.f32 0.0, %v8421
      %v8423 = vpop.f32.mrf.mxu0
      %v8424 = vpop.f32.mrf.mxu0
      %v8425 = vadd.f32 0.0, %v8424
      %v8426 = vpop.f32.mrf.mxu0
      %8427 = vmatprep.mubr.bf16.mxu0 0
      %8428 = vmatmul.mubr.bf16.gmra.mxu0 %v8342
      %v8429 = vpop.f32.mrf.mxu0
      %v8430 = vadd.f32 0.0, %v8429
      %v8431 = vpop.f32.mrf.mxu0
      %v8432 = vpop.f32.mrf.mxu0
      %v8433 = vadd.f32 0.0, %v8432
      %v8434 = vpop.f32.mrf.mxu0
      %8435 = vmatprep.mubr.bf16.mxu0 0
      %8436 = vmatmul.mubr.bf16.gmra.mxu0 %v8345
      %v8437 = vpop.f32.mrf.mxu0
      %v8438 = vadd.f32 0.0, %v8437
      %v8439 = vpop.f32.mrf.mxu0
      %v8440 = vpop.f32.mrf.mxu0
      %v8441 = vadd.f32 0.0, %v8440
      %v8442 = vpop.f32.mrf.mxu0
      %8443 = vdwg.mxu0
      %v8452 = vunpack.c.l.b16 %v8258
      %v8453 = vunpack.c.l.b16 %v8259
      %v8454 = vunpack.c.l.b16 %v8260
      %v8455 = vunpack.c.l.b16 %v8261
      %v8456 = vunpack.c.l.b16 %v8262
      %v8457 = vunpack.c.l.b16 %v8263
      %v8458 = vunpack.c.l.b16 %v8264
      %v8459 = vunpack.c.l.b16 %v8265
      %v8460 = vpack.c.b16 %v8453, %v8452
      %v8461 = vpack.c.b16 %v8455, %v8454
      %v8462 = vpack.c.b16 %v8457, %v8456
      %v8463 = vpack.c.b16 %v8459, %v8458
      %v8469 = vsel %vm7968, %v8250, 0
      %v8472 = vsel %vm7968, %v8251, 0
      %v8475 = vsel %vm7968, %v8252, 0
      %v8478 = vsel %vm7968, %v8253, 0
      %v8481 = vsel %vm7968, %v8254, 0
      %v8484 = vsel %vm7968, %v8255, 0
      %v8487 = vsel %vm7968, %v8256, 0
      %v8490 = vsel %vm7968, %v8257, 0
      %8492 = vmatprep.subr.bf16.mxu0 0
      %8493 = vmatpush1.bf16.msra.mxu0 0
      %8494 = vmatprep.subr.bf16.mxu0 0
      %8495 = vmatpush1.bf16.msra.mxu0 0
      %8496 = vmatprep.subr.bf16.mxu0 0
      %8497 = vmatpush1.bf16.msra.mxu0 0
      %8498 = vmatprep.subr.bf16.mxu0 0
      %8499 = vmatpush1.bf16.msra.mxu0 0
      %8500 = vmatprep.subr.bf16.mxu0 0
      %8501 = vmatpush1.bf16.msra.mxu0 %v8463
      %8502 = vmatprep.subr.bf16.mxu0 0
      %8503 = vmatpush1.bf16.msra.mxu0 %v8462
      %8504 = vmatprep.subr.bf16.mxu0 0
      %8505 = vmatpush1.bf16.msra.mxu0 %v8461
      %8506 = vmatprep.subr.bf16.mxu0 0
      %8507 = vmatpush1.bf16.msra.mxu0 %v8460
      %8508 = vmatprep.subr.bf16.mxu0 0
      %8509 = vmatpush2.bf16.msra.mxu0 0
      %8510 = vmatprep.subr.bf16.mxu0 0
      %8511 = vmatpush2.bf16.msra.mxu0 0
      %8512 = vmatprep.subr.bf16.mxu0 0
      %8513 = vmatpush2.bf16.msra.mxu0 0
      %8514 = vmatprep.subr.bf16.mxu0 0
      %8515 = vmatpush2.bf16.msra.mxu0 0
      %8516 = vmatprep.subr.bf16.mxu0 0
      %8517 = vmatpush2.bf16.msra.mxu0 0
      %8518 = vmatprep.subr.bf16.mxu0 0
      %8519 = vmatpush2.bf16.msra.mxu0 0
      %8520 = vmatprep.subr.bf16.mxu0 0
      %8521 = vmatpush2.bf16.msra.mxu0 0
      %8522 = vmatprep.subr.bf16.mxu0 0
      %8523 = vmatpush2.bf16.msra.mxu0 0
      %8524 = vmatprep.mubr.bf16.mxu0 0
      %8525 = vmatmul.mubr.bf16.gmra.mxu0 %v8469
      %v8526 = vpop.f32.mrf.mxu0
      %v8527 = vadd.f32 %v8382, %v8526
      %v8528 = vpop.f32.mrf.mxu0
      %v8529 = vpop.f32.mrf.mxu0
      %v8530 = vadd.f32 %v8385, %v8529
      %v8531 = vpop.f32.mrf.mxu0
      %8532 = vmatprep.mubr.bf16.mxu0 0
      %8533 = vmatmul.mubr.bf16.gmra.mxu0 %v8472
      %v8534 = vpop.f32.mrf.mxu0
      %v8535 = vadd.f32 %v8390, %v8534
      %v8536 = vpop.f32.mrf.mxu0
      %v8537 = vpop.f32.mrf.mxu0
      %v8538 = vadd.f32 %v8393, %v8537
      %v8539 = vpop.f32.mrf.mxu0
      %8540 = vmatprep.mubr.bf16.mxu0 0
      %8541 = vmatmul.mubr.bf16.gmra.mxu0 %v8475
      %v8542 = vpop.f32.mrf.mxu0
      %v8543 = vadd.f32 %v8398, %v8542
      %v8544 = vpop.f32.mrf.mxu0
      %v8545 = vpop.f32.mrf.mxu0
      %v8546 = vadd.f32 %v8401, %v8545
      %v8547 = vpop.f32.mrf.mxu0
      %8548 = vmatprep.mubr.bf16.mxu0 0
      %8549 = vmatmul.mubr.bf16.gmra.mxu0 %v8478
      %v8550 = vpop.f32.mrf.mxu0
      %v8551 = vadd.f32 %v8406, %v8550
      %v8552 = vpop.f32.mrf.mxu0
      %v8553 = vpop.f32.mrf.mxu0
      %v8554 = vadd.f32 %v8409, %v8553
      %v8555 = vpop.f32.mrf.mxu0
      %8556 = vmatprep.mubr.bf16.mxu0 0
      %8557 = vmatmul.mubr.bf16.gmra.mxu0 %v8481
      %v8558 = vpop.f32.mrf.mxu0
      %v8559 = vadd.f32 %v8414, %v8558
      %v8560 = vpop.f32.mrf.mxu0
      %v8561 = vpop.f32.mrf.mxu0
      %v8562 = vadd.f32 %v8417, %v8561
      %v8563 = vpop.f32.mrf.mxu0
      %8564 = vmatprep.mubr.bf16.mxu0 0
      %8565 = vmatmul.mubr.bf16.gmra.mxu0 %v8484
      %v8566 = vpop.f32.mrf.mxu0
      %v8567 = vadd.f32 %v8422, %v8566
      %v8568 = vpop.f32.mrf.mxu0
      %v8569 = vpop.f32.mrf.mxu0
      %v8570 = vadd.f32 %v8425, %v8569
      %v8571 = vpop.f32.mrf.mxu0
      %8572 = vmatprep.mubr.bf16.mxu0 0
      %8573 = vmatmul.mubr.bf16.gmra.mxu0 %v8487
      %v8574 = vpop.f32.mrf.mxu0
      %v8575 = vadd.f32 %v8430, %v8574
      %v8576 = vpop.f32.mrf.mxu0
      %v8577 = vpop.f32.mrf.mxu0
      %v8578 = vadd.f32 %v8433, %v8577
      %v8579 = vpop.f32.mrf.mxu0
      %8580 = vmatprep.mubr.bf16.mxu0 0
      %8581 = vmatmul.mubr.bf16.gmra.mxu0 %v8490
      %v8582 = vpop.f32.mrf.mxu0
      %v8583 = vadd.f32 %v8438, %v8582
      %v8584 = vpop.f32.mrf.mxu0
      %v8585 = vpop.f32.mrf.mxu0
      %v8586 = vadd.f32 %v8441, %v8585
      %v8587 = vpop.f32.mrf.mxu0
      %8588 = vdwg.mxu0
      %v8589 = vld [vmem:[#allocation3 + $0x2] sm:$0xff]
      %v8590 = vld [vmem:[#allocation3 + $0xa] sm:$0xff]
      %v8591 = vld [vmem:[#allocation3 + $0x1a] sm:$0xff]
      %v8592 = vld [vmem:[#allocation3 + $0x22] sm:$0xff]
      %v8593 = vld [vmem:[#allocation3 + $0x32] sm:$0xff]
      %v8594 = vld [vmem:[#allocation3 + $0x3a] sm:$0xff]
      %v8595 = vld [vmem:[#allocation3 + $0x4a] sm:$0xff]
      %v8596 = vld [vmem:[#allocation3 + $0x52] sm:$0xff]
      %v8597 = vld [vmem:[#allocation3 + $0x62] sm:$0xff]
      %v8598 = vld [vmem:[#allocation3 + $0x6a] sm:$0xff]
      %v8599 = vld [vmem:[#allocation3 + $0x7a] sm:$0xff]
      %v8600 = vld [vmem:[#allocation3 + $0x82] sm:$0xff]
      %v8601 = vld [vmem:[#allocation3 + $0x92] sm:$0xff]
      %v8602 = vld [vmem:[#allocation3 + $0x9a] sm:$0xff]
      %v8603 = vld [vmem:[#allocation3 + $0xaa] sm:$0xff]
      %v8604 = vld [vmem:[#allocation3 + $0xb2] sm:$0xff]
      %v8605 = vpack.c.bf16 %v8590, %v8589
      %v8606 = vpack.c.bf16 %v8592, %v8591
      %v8607 = vpack.c.bf16 %v8594, %v8593
      %v8608 = vpack.c.bf16 %v8596, %v8595
      %v8609 = vpack.c.bf16 %v8598, %v8597
      %v8610 = vpack.c.bf16 %v8600, %v8599
      %v8611 = vpack.c.bf16 %v8602, %v8601
      %v8612 = vpack.c.bf16 %v8604, %v8603
      %s8613 = scalar_lea.vmem %s7, 64
      %v8614 = vld [vmem:[%s8613] sm:$0xf]
      %v8615 = vld [vmem:[%s8613 + $0x4] sm:$0xf]
      %v8616 = vld [vmem:[%s8613 + $0x8] sm:$0xf]
      %v8617 = vld [vmem:[%s8613 + $0xc] sm:$0xf]
      %v8618 = vld [vmem:[%s8613 + $0x10] sm:$0xf]
      %v8619 = vld [vmem:[%s8613 + $0x14] sm:$0xf]
      %v8620 = vld [vmem:[%s8613 + $0x18] sm:$0xf]
      %v8621 = vld [vmem:[%s8613 + $0x1c] sm:$0xf]
      %v8630 = vunpack.c.l.b16 %v8614
      %v8631 = vunpack.c.l.b16 %v8615
      %v8632 = vunpack.c.l.b16 %v8616
      %v8633 = vunpack.c.l.b16 %v8617
      %v8634 = vunpack.c.l.b16 %v8618
      %v8635 = vunpack.c.l.b16 %v8619
      %v8636 = vunpack.c.l.b16 %v8620
      %v8637 = vunpack.c.l.b16 %v8621
      %v8638 = vpack.c.b16 %v8631, %v8630
      %v8639 = vpack.c.b16 %v8633, %v8632
      %v8640 = vpack.c.b16 %v8635, %v8634
      %v8641 = vpack.c.b16 %v8637, %v8636
      %v8647 = vsel %vm7968, %v8605, 0
      %v8650 = vsel %vm7968, %v8606, 0
      %v8653 = vsel %vm7968, %v8607, 0
      %v8656 = vsel %vm7968, %v8608, 0
      %v8659 = vsel %vm7968, %v8609, 0
      %v8662 = vsel %vm7968, %v8610, 0
      %v8665 = vsel %vm7968, %v8611, 0
      %v8668 = vsel %vm7968, %v8612, 0
      %8670 = vmatprep.subr.bf16.mxu0 0
      %8671 = vmatpush1.bf16.msra.mxu0 0
      %8672 = vmatprep.subr.bf16.mxu0 0
      %8673 = vmatpush1.bf16.msra.mxu0 0
      %8674 = vmatprep.subr.bf16.mxu0 0
      %8675 = vmatpush1.bf16.msra.mxu0 0
      %8676 = vmatprep.subr.bf16.mxu0 0
      %8677 = vmatpush1.bf16.msra.mxu0 0
      %8678 = vmatprep.subr.bf16.mxu0 0
      %8679 = vmatpush1.bf16.msra.mxu0 %v8641
      %8680 = vmatprep.subr.bf16.mxu0 0
      %8681 = vmatpush1.bf16.msra.mxu0 %v8640
      %8682 = vmatprep.subr.bf16.mxu0 0
      %8683 = vmatpush1.bf16.msra.mxu0 %v8639
      %8684 = vmatprep.subr.bf16.mxu0 0
      %8685 = vmatpush1.bf16.msra.mxu0 %v8638
      %8686 = vmatprep.subr.bf16.mxu0 0
      %8687 = vmatpush2.bf16.msra.mxu0 0
      %8688 = vmatprep.subr.bf16.mxu0 0
      %8689 = vmatpush2.bf16.msra.mxu0 0
      %8690 = vmatprep.subr.bf16.mxu0 0
      %8691 = vmatpush2.bf16.msra.mxu0 0
      %8692 = vmatprep.subr.bf16.mxu0 0
      %8693 = vmatpush2.bf16.msra.mxu0 0
      %8694 = vmatprep.subr.bf16.mxu0 0
      %8695 = vmatpush2.bf16.msra.mxu0 0
      %8696 = vmatprep.subr.bf16.mxu0 0
      %8697 = vmatpush2.bf16.msra.mxu0 0
      %8698 = vmatprep.subr.bf16.mxu0 0
      %8699 = vmatpush2.bf16.msra.mxu0 0
      %8700 = vmatprep.subr.bf16.mxu0 0
      %8701 = vmatpush2.bf16.msra.mxu0 0
      %8702 = vmatprep.mubr.bf16.mxu0 0
      %8703 = vmatmul.mubr.bf16.gmra.mxu0 %v8647
      %v8704 = vpop.f32.mrf.mxu0
      %v8705 = vadd.f32 0.0, %v8704
      %v8706 = vpop.f32.mrf.mxu0
      %v8707 = vpop.f32.mrf.mxu0
      %v8708 = vadd.f32 0.0, %v8707
      %v8709 = vpop.f32.mrf.mxu0
      %8710 = vmatprep.mubr.bf16.mxu0 0
      %8711 = vmatmul.mubr.bf16.gmra.mxu0 %v8650
      %v8712 = vpop.f32.mrf.mxu0
      %v8713 = vadd.f32 0.0, %v8712
      %v8714 = vpop.f32.mrf.mxu0
      %v8715 = vpop.f32.mrf.mxu0
      %v8716 = vadd.f32 0.0, %v8715
      %v8717 = vpop.f32.mrf.mxu0
      %8718 = vmatprep.mubr.bf16.mxu0 0
      %8719 = vmatmul.mubr.bf16.gmra.mxu0 %v8653
      %v8720 = vpop.f32.mrf.mxu0
      %v8721 = vadd.f32 0.0, %v8720
      %v8722 = vpop.f32.mrf.mxu0
      %v8723 = vpop.f32.mrf.mxu0
      %v8724 = vadd.f32 0.0, %v8723
      %v8725 = vpop.f32.mrf.mxu0
      %8726 = vmatprep.mubr.bf16.mxu0 0
      %8727 = vmatmul.mubr.bf16.gmra.mxu0 %v8656
      %v8728 = vpop.f32.mrf.mxu0
      %v8729 = vadd.f32 0.0, %v8728
      %v8730 = vpop.f32.mrf.mxu0
      %v8731 = vpop.f32.mrf.mxu0
      %v8732 = vadd.f32 0.0, %v8731
      %v8733 = vpop.f32.mrf.mxu0
      %8734 = vmatprep.mubr.bf16.mxu0 0
      %8735 = vmatmul.mubr.bf16.gmra.mxu0 %v8659
      %v8736 = vpop.f32.mrf.mxu0
      %v8737 = vadd.f32 0.0, %v8736
      %v8738 = vpop.f32.mrf.mxu0
      %v8739 = vpop.f32.mrf.mxu0
      %v8740 = vadd.f32 0.0, %v8739
      %v8741 = vpop.f32.mrf.mxu0
      %8742 = vmatprep.mubr.bf16.mxu0 0
      %8743 = vmatmul.mubr.bf16.gmra.mxu0 %v8662
      %v8744 = vpop.f32.mrf.mxu0
      %v8745 = vadd.f32 0.0, %v8744
      %v8746 = vpop.f32.mrf.mxu0
      %v8747 = vpop.f32.mrf.mxu0
      %v8748 = vadd.f32 0.0, %v8747
      %v8749 = vpop.f32.mrf.mxu0
      %8750 = vmatprep.mubr.bf16.mxu0 0
      %8751 = vmatmul.mubr.bf16.gmra.mxu0 %v8665
      %v8752 = vpop.f32.mrf.mxu0
      %v8753 = vadd.f32 0.0, %v8752
      %v8754 = vpop.f32.mrf.mxu0
      %v8755 = vpop.f32.mrf.mxu0
      %v8756 = vadd.f32 0.0, %v8755
      %v8757 = vpop.f32.mrf.mxu0
      %8758 = vmatprep.mubr.bf16.mxu0 0
      %8759 = vmatmul.mubr.bf16.gmra.mxu0 %v8668
      %v8760 = vpop.f32.mrf.mxu0
      %v8761 = vadd.f32 0.0, %v8760
      %v8762 = vpop.f32.mrf.mxu0
      %v8763 = vpop.f32.mrf.mxu0
      %v8764 = vadd.f32 0.0, %v8763
      %v8765 = vpop.f32.mrf.mxu0
      %8766 = vdwg.mxu0
      %v8767 = vadd.f32 %v8527, %v8705
      %v8768 = vadd.f32 %v8530, %v8708
      %v8769 = vadd.f32 %v8535, %v8713
      %v8770 = vadd.f32 %v8538, %v8716
      %v8771 = vadd.f32 %v8543, %v8721
      %v8772 = vadd.f32 %v8546, %v8724
      %v8773 = vadd.f32 %v8551, %v8729
      %v8774 = vadd.f32 %v8554, %v8732
      %v8775 = vadd.f32 %v8559, %v8737
      %v8776 = vadd.f32 %v8562, %v8740
      %v8777 = vadd.f32 %v8567, %v8745
      %v8778 = vadd.f32 %v8570, %v8748
      %v8779 = vadd.f32 %v8575, %v8753
      %v8780 = vadd.f32 %v8578, %v8756
      %v8781 = vadd.f32 %v8583, %v8761
      %v8782 = vadd.f32 %v8586, %v8764
      %v8783 = vld [vmem:[%s8] sm:$0x1]
      %v8785 = vlaneseq
      %v8786 = vshrl.u32 %v8785, 7
      %v8787 = vsub.s32 0, %v8786
      %v8788 = vrot.slane %v8783, %v8787
      %v8790 = vmul.f32 %v8767, %v8788
      %v8791 = vmul.f32 %v8768, %v8788
      %v8792 = vmul.f32 %v8769, %v8788
      %v8793 = vmul.f32 %v8770, %v8788
      %v8794 = vmul.f32 %v8771, %v8788
      %v8795 = vmul.f32 %v8772, %v8788
      %v8796 = vmul.f32 %v8773, %v8788
      %v8797 = vmul.f32 %v8774, %v8788
      %v8798 = vmul.f32 %v8775, %v8788
      %v8799 = vmul.f32 %v8776, %v8788
      %v8800 = vmul.f32 %v8777, %v8788
      %v8801 = vmul.f32 %v8778, %v8788
      %v8802 = vmul.f32 %v8779, %v8788
      %v8803 = vmul.f32 %v8780, %v8788
      %v8804 = vmul.f32 %v8781, %v8788
      %v8805 = vmul.f32 %v8782, %v8788
      %v8806 = vld [vmem:[%s9] sm:$0x1]
      %v8808 = vlaneseq
      %v8809 = vshrl.u32 %v8808, 7
      %v8810 = vsub.s32 0, %v8809
      %v8811 = vrot.slane %v8806, %v8810
      %v8813 = vadd.f32 %v8790, %v8811
      %v8814 = vadd.f32 %v8791, %v8811
      %v8815 = vadd.f32 %v8792, %v8811
      %v8816 = vadd.f32 %v8793, %v8811
      %v8817 = vadd.f32 %v8794, %v8811
      %v8818 = vadd.f32 %v8795, %v8811
      %v8819 = vadd.f32 %v8796, %v8811
      %v8820 = vadd.f32 %v8797, %v8811
      %v8821 = vadd.f32 %v8798, %v8811
      %v8822 = vadd.f32 %v8799, %v8811
      %v8823 = vadd.f32 %v8800, %v8811
      %v8824 = vadd.f32 %v8801, %v8811
      %v8825 = vadd.f32 %v8802, %v8811
      %v8826 = vadd.f32 %v8803, %v8811
      %v8827 = vadd.f32 %v8804, %v8811
      %v8828 = vadd.f32 %v8805, %v8811
      %v8829 = vmax.f32 %v8813, 0.0
      %v8830 = vmax.f32 %v8814, 0.0
      %v8831 = vmax.f32 %v8815, 0.0
      %v8832 = vmax.f32 %v8816, 0.0
      %v8833 = vmax.f32 %v8817, 0.0
      %v8834 = vmax.f32 %v8818, 0.0
      %v8835 = vmax.f32 %v8819, 0.0
      %v8836 = vmax.f32 %v8820, 0.0
      %v8837 = vmax.f32 %v8821, 0.0
      %v8838 = vmax.f32 %v8822, 0.0
      %v8839 = vmax.f32 %v8823, 0.0
      %v8840 = vmax.f32 %v8824, 0.0
      %v8841 = vmax.f32 %v8825, 0.0
      %v8842 = vmax.f32 %v8826, 0.0
      %v8843 = vmax.f32 %v8827, 0.0
      %v8844 = vmax.f32 %v8828, 0.0
      %v8845 = vld [vmem:[%s12] sm:$0xff]
      %8846 = vmatprep.subr.mxu0 0.0
      %8847 = vmatpush1.msra.mxu0 %v8844
      %8848 = vmatprep.subr.mxu0 0.0
      %8849 = vmatpush1.msra.mxu0 %v8843
      %8850 = vmatprep.subr.mxu0 0.0
      %8851 = vmatpush1.msra.mxu0 %v8842
      %8852 = vmatprep.subr.mxu0 0.0
      %8853 = vmatpush1.msra.mxu0 %v8841
      %8854 = vmatprep.subr.mxu0 0.0
      %8855 = vmatpush1.msra.mxu0 %v8840
      %8856 = vmatprep.subr.mxu0 0.0
      %8857 = vmatpush1.msra.mxu0 %v8839
      %8858 = vmatprep.subr.mxu0 0.0
      %8859 = vmatpush1.msra.mxu0 %v8838
      %8860 = vmatprep.subr.mxu0 0.0
      %8861 = vmatpush1.msra.mxu0 %v8837
      %8862 = vmatprep.subr.mxu0 0.0
      %8863 = vmatpush1.msra.mxu0 %v8836
      %8864 = vmatprep.subr.mxu0 0.0
      %8865 = vmatpush1.msra.mxu0 %v8835
      %8866 = vmatprep.subr.mxu0 0.0
      %8867 = vmatpush1.msra.mxu0 %v8834
      %8868 = vmatprep.subr.mxu0 0.0
      %8869 = vmatpush1.msra.mxu0 %v8833
      %8870 = vmatprep.subr.mxu0 0.0
      %8871 = vmatpush1.msra.mxu0 %v8832
      %8872 = vmatprep.subr.mxu0 0.0
      %8873 = vmatpush1.msra.mxu0 %v8831
      %8874 = vmatprep.subr.mxu0 0.0
      %8875 = vmatpush1.msra.mxu0 %v8830
      %8876 = vmatprep.subr.mxu0 0.0
      %8877 = vmatpush1.msra.mxu0 %v8829
      %8878 = vmatprep.subr.mxu0 0.0
      %8879 = vmatpush2.msra.mxu0 0.0
      %8880 = vmatprep.subr.mxu0 0.0
      %8881 = vmatpush2.msra.mxu0 0.0
      %8882 = vmatprep.subr.mxu0 0.0
      %8883 = vmatpush2.msra.mxu0 0.0
      %8884 = vmatprep.subr.mxu0 0.0
      %8885 = vmatpush2.msra.mxu0 0.0
      %8886 = vmatprep.subr.mxu0 0.0
      %8887 = vmatpush2.msra.mxu0 0.0
      %8888 = vmatprep.subr.mxu0 0.0
      %8889 = vmatpush2.msra.mxu0 0.0
      %8890 = vmatprep.subr.mxu0 0.0
      %8891 = vmatpush2.msra.mxu0 0.0
      %8892 = vmatprep.subr.mxu0 0.0
      %8893 = vmatpush2.msra.mxu0 0.0
      %8894 = vmatprep.subr.mxu0 0.0
      %8895 = vmatpush2.msra.mxu0 0.0
      %8896 = vmatprep.subr.mxu0 0.0
      %8897 = vmatpush2.msra.mxu0 0.0
      %8898 = vmatprep.subr.mxu0 0.0
      %8899 = vmatpush2.msra.mxu0 0.0
      %8900 = vmatprep.subr.mxu0 0.0
      %8901 = vmatpush2.msra.mxu0 0.0
      %8902 = vmatprep.subr.mxu0 0.0
      %8903 = vmatpush2.msra.mxu0 0.0
      %8904 = vmatprep.subr.mxu0 0.0
      %8905 = vmatpush2.msra.mxu0 0.0
      %8906 = vmatprep.subr.mxu0 0.0
      %8907 = vmatpush2.msra.mxu0 0.0
      %8908 = vmatprep.subr.mxu0 0.0
      %8909 = vmatpush2.msra.mxu0 0.0
      %8910 = vmatprep.mubr.f32.mxu0 0.0
      %8911 = vmatmul.mubr.f32.gmra.mxu0 %v8845
      %v8912 = vpop.f32.mrf.mxu0
      %v8913 = vadd.f32 0.0, %v8912
      %v8914 = vpop.f32.mrf.mxu0
      %8915 = vdwg.mxu0
      %v8916 = vpack.c.bf16 %v8913, %v8913
      %v8917 = vld [vmem:[%s10] sm:$0xf]
      %v8918 = vld [vmem:[%s10 + $0x4] sm:$0xf]
      %v8919 = vld [vmem:[%s10 + $0x8] sm:$0xf]
      %v8920 = vld [vmem:[%s10 + $0xc] sm:$0xf]
      %v8921 = vld [vmem:[%s10 + $0x10] sm:$0xf]
      %v8922 = vld [vmem:[%s10 + $0x14] sm:$0xf]
      %v8923 = vld [vmem:[%s10 + $0x18] sm:$0xf]
      %v8924 = vld [vmem:[%s10 + $0x1c] sm:$0xf]
      %v8925 = vld [vmem:[%s10 + $0x20] sm:$0xf]
      %v8926 = vld [vmem:[%s10 + $0x24] sm:$0xf]
      %v8927 = vld [vmem:[%s10 + $0x28] sm:$0xf]
      %v8928 = vld [vmem:[%s10 + $0x2c] sm:$0xf]
      %v8929 = vld [vmem:[%s10 + $0x30] sm:$0xf]
      %v8930 = vld [vmem:[%s10 + $0x34] sm:$0xf]
      %v8931 = vld [vmem:[%s10 + $0x38] sm:$0xf]
      %v8932 = vld [vmem:[%s10 + $0x3c] sm:$0xf]
      %v8933 = vld [vmem:[%s11] sm:$0x1]
      %v8935 = vlaneseq
      %v8936 = vshrl.u32 %v8935, 7
      %v8937 = vsub.s32 0, %v8936
      %v8938 = vrot.slane %v8933, %v8937
      %v8956 = vunpack.c.l.b16 %v8917
      %v8957 = vunpack.c.l.b16 %v8918
      %v8958 = vunpack.c.l.b16 %v8919
      %v8959 = vunpack.c.l.b16 %v8920
      %v8960 = vunpack.c.l.b16 %v8921
      %v8961 = vunpack.c.l.b16 %v8922
      %v8962 = vunpack.c.l.b16 %v8923
      %v8963 = vunpack.c.l.b16 %v8924
      %v8964 = vunpack.c.l.b16 %v8925
      %v8965 = vunpack.c.l.b16 %v8926
      %v8966 = vunpack.c.l.b16 %v8927
      %v8967 = vunpack.c.l.b16 %v8928
      %v8968 = vunpack.c.l.b16 %v8929
      %v8969 = vunpack.c.l.b16 %v8930
      %v8970 = vunpack.c.l.b16 %v8931
      %v8971 = vunpack.c.l.b16 %v8932
      %v8972 = vpack.c.b16 %v8957, %v8956
      %v8973 = vpack.c.b16 %v8959, %v8958
      %v8974 = vpack.c.b16 %v8961, %v8960
      %v8975 = vpack.c.b16 %v8963, %v8962
      %v8976 = vpack.c.b16 %v8965, %v8964
      %v8977 = vpack.c.b16 %v8967, %v8966
      %v8978 = vpack.c.b16 %v8969, %v8968
      %v8979 = vpack.c.b16 %v8971, %v8970
      %8988 = vmatprep.subr.bf16.mxu0 0
      %8989 = vmatpush1.bf16.msra.mxu0 %v8979
      %8990 = vmatprep.subr.bf16.mxu0 0
      %8991 = vmatpush1.bf16.msra.mxu0 %v8978
      %8992 = vmatprep.subr.bf16.mxu0 0
      %8993 = vmatpush1.bf16.msra.mxu0 %v8977
      %8994 = vmatprep.subr.bf16.mxu0 0
      %8995 = vmatpush1.bf16.msra.mxu0 %v8976
      %8996 = vmatprep.subr.bf16.mxu0 0
      %8997 = vmatpush1.bf16.msra.mxu0 %v8975
      %8998 = vmatprep.subr.bf16.mxu0 0
      %8999 = vmatpush1.bf16.msra.mxu0 %v8974
      %9000 = vmatprep.subr.bf16.mxu0 0
      %9001 = vmatpush1.bf16.msra.mxu0 %v8973
      %9002 = vmatprep.subr.bf16.mxu0 0
      %9003 = vmatpush1.bf16.msra.mxu0 %v8972
      %9004 = vmatprep.subr.bf16.mxu0 0
      %9005 = vmatpush2.bf16.msra.mxu0 0
      %9006 = vmatprep.subr.bf16.mxu0 0
      %9007 = vmatpush2.bf16.msra.mxu0 0
      %9008 = vmatprep.subr.bf16.mxu0 0
      %9009 = vmatpush2.bf16.msra.mxu0 0
      %9010 = vmatprep.subr.bf16.mxu0 0
      %9011 = vmatpush2.bf16.msra.mxu0 0
      %9012 = vmatprep.subr.bf16.mxu0 0
      %9013 = vmatpush2.bf16.msra.mxu0 0
      %9014 = vmatprep.subr.bf16.mxu0 0
      %9015 = vmatpush2.bf16.msra.mxu0 0
      %9016 = vmatprep.subr.bf16.mxu0 0
      %9017 = vmatpush2.bf16.msra.mxu0 0
      %9018 = vmatprep.subr.bf16.mxu0 0
      %9019 = vmatpush2.bf16.msra.mxu0 0
      %9020 = vmatprep.mubr.bf16.mxu0 0
      %9021 = vmatmul.mubr.bf16.gmra.mxu0 %v8916
      %v9022 = vpop.f32.mrf.mxu0
      %v9023 = vadd.f32 %v8938, %v9022
      %v9024 = vpop.f32.mrf.mxu0
      %v9025 = vpop.f32.mrf.mxu0
      %v9026 = vpop.f32.mrf.mxu0
      %9027 = vdwg.mxu0
      %9028 = vst [vmem:[%s443] sm:$0xff] %v9023
      %p9029 = scmp.lt.s32.totalorder %s24, 1
      %s9030 = scalar_select %p9029, %s24, 1
      %s9031 = smul.addr %s9030, 8
      %s9032 = scalar_lea.vmem %s13, %s9031
      // Predicated region
      $region73: #{eeg_cnn_forward.1} parent=71 // pred_check
        %p9033 = pneg %p320
      $region74: #{eeg_cnn_forward.1} parent=71 // pred_check_branch
        %9035 = sbr.rel (%p9033) target = $region76
      $region75: #{eeg_cnn_forward.1} parent=71 // pred_region
        _
      $region76: #{eeg_cnn_forward.1} parent=71 // pred_fallthru
        _
    $region72: #{eeg_cnn_forward.1} parent=5 // pred_fallthru
      _
    %p9036 = scmp.le.s32.totalorder 2, %s19
    // Predicated region
    $region77: #{eeg_cnn_forward.1} parent=5 // pred_check
      %p9037 = pneg %p9036
    $region78: #{eeg_cnn_forward.1} parent=5 // pred_check_branch
      %9039 = sbr.rel (%p9037) target = $region80
    $region79: #{eeg_cnn_forward.1} parent=5 // pred_region
      %s9040 = ssub.s32 %s19, 2
      // Predicated region
      $region81: #{eeg_cnn_forward.1} parent=79 // pred_check
        %p9041 = pneg %p326
      $region82: #{eeg_cnn_forward.1} parent=79 // pred_check_branch
        %9043 = sbr.rel (%p9041) target = $region84
      $region83: #{eeg_cnn_forward.1} parent=79 // pred_region
        %p9044 = scmp.lt.s32.totalorder %s25, 1
        %s9045 = scalar_select %p9044, %s25, 1
        %s9046 = smul.addr %s9045, 8
        %s9047 = scalar_lea.vmem %s13, %s9046
      $region84: #{eeg_cnn_forward.1} parent=79 // pred_fallthru
        _
    $region80: #{eeg_cnn_forward.1} parent=5 // pred_fallthru
      _
  $region6: #{eeg_cnn_forward.1} parent=0 // loop_footer
    %s23 = sadd.s32 1, %s19
  $region7: #{eeg_cnn_forward.1} parent=0 // loop_footer_branch
    %18 = sbr.rel target = $region3
  $region8: #{eeg_cnn_forward.1} parent=0 // loop_exit
    _

</llo_original>
